<compile_context>
chip_gen: v7x
topology: tpu7x:2x2x1
jax: 0.10.0
libtpu: 0.0.40
codegen_flags: <defaults>
</compile_context>

<pallas_src>
import numpy as np
import jax
import jax.numpy as jnp
from jax.experimental import pallas as pl
from jax.experimental.pallas import tpu as pltpu

LEAKY_SLOPE = 0.1
BN_EPS = 1e-5
BASE = 6
OUT_CH = BASE * 32  # 192
CIN = {"tiny": 128, "small": 256, "middle": 512, "large": 1024}
UP_SCALES = (2, 4, 8)                                  # small, middle, large
UP_CIN = (CIN["small"], CIN["middle"], CIN["large"])


# ---------------------------------------------------------------------------
# Fused kernel builder
# ---------------------------------------------------------------------------
def _build_neck_kernel(band_h, W, nb, banded):
    """band_h: full-res rows per grid step; W: full-res width; nb: #bands.
    banded[i]: True  -> branch i's input block holds exactly this band's
                        source pixels (band-local DMA),
               False -> block holds the whole low-res image; conv runs once
                        per batch into a persistent VMEM scratch."""
    c = OUT_CH

    def cbl(w_ref, x, b_ref):
        # 1x1 conv (matmul) + folded-BN bias + LeakyReLU(0.1)
        y = jnp.dot(w_ref[...], x, preferred_element_type=jnp.float32)
        y = y + b_ref[...]                     # (192, 1) broadcast over lanes
        return jnp.where(y >= 0.0, y, LEAKY_SLOPE * y)

    def kernel(*refs):
        (x_t_ref, x_s_ref, x_m_ref, x_l_ref,
         w_t_ref, w_s_ref, w_m_ref, w_l_ref,
         b_t_ref, b_s_ref, b_m_ref, b_l_ref,
         uc_s_ref, uc_m_ref, uc_l_ref, o_ref) = refs[:16]
        scratch_refs = refs[16:]

        hb = pl.program_id(1)

        # ---- tiny branch: conv straight into the first 192 output channels.
        o_ref[0:c, :] = cbl(w_t_ref, x_t_ref[...], b_t_ref)

        x_refs = (x_s_ref, x_m_ref, x_l_ref)
        w_refs = (w_s_ref, w_m_ref, w_l_ref)
        b_refs = (b_s_ref, b_m_ref, b_l_ref)
        uc_refs = (uc_s_ref, uc_m_ref, uc_l_ref)

        si = 0
        for bi, scale in enumerate(UP_SCALES):
            rows = band_h // scale             # low-res rows feeding this band
            w_src = W // scale                 # low-res width
            p_band = rows * w_src              # low-res pixels feeding this band
            ch_off = (bi + 1) * c

            if banded[bi]:
                # Band-local block: conv only this band's source pixels.
                act = cbl(w_refs[bi], x_refs[bi][...], b_refs[bi])
            else:
                # Whole low-res image resident per batch: conv once at hb == 0
                # into a persistent scratch split per band (static slices),
                # then pick this band with a dynamic leading-axis index.
                sref = scratch_refs[si]
                si += 1

                @pl.when(hb == 0)
                def _(bi=bi, sref=sref, p_band=p_band):
                    full = cbl(w_refs[bi], x_refs[bi][...], b_refs[bi])
                    for b in range(nb):
                        sref[b, :, :] = full[:, b * p_band:(b + 1) * p_band]

                act = sref[hb]                 # (192, p_band)

            # Factored nearest upsample: tiny (w_src, W) 0/1 matrix duplicates
            # columns on the MXU; row duplication = `scale` repeated stores.
            uc = uc_refs[bi][...]
            for r in range(rows):
                row = act[:, r * w_src:(r + 1) * w_src]            # (192, w_src)
                row_up = jnp.dot(row, uc,
                                 preferred_element_type=jnp.float32)  # (192, W)
                for d in range(scale):
                    h_out = r * scale + d
                    o_ref[ch_off:ch_off + c, h_out * W:(h_out + 1) * W] = row_up

    return kernel


# ---------------------------------------------------------------------------
# Host-side helpers
# ---------------------------------------------------------------------------
def _pick_num_bands(H, W):
    """Largest row-band count such that band_h % 8 == 0 (so /2,/4,/8 scales
    split into whole rows) and the full-res band is lane-dense (>=128 pixels,
    multiple of 128).  Falls back to a single whole-image band."""
    valid = [1]
    for nb in range(2, H + 1):
        if H % nb:
            continue
        band_h = H // nb
        if band_h % 8:
            continue
        if (band_h * W) % 128:
            continue
        valid.append(nb)
    best = 1
    for nb in valid:
        if (H // nb) * W >= 128:
            best = max(best, nb)
    return best


def _col_dup_matrix(w_src, W):
    """(w_src, W) 0/1 matrix: out[:, j] = in[:, j // scale] (nearest)."""
    scale = W // w_src
    m = np.zeros((w_src, W), np.float32)
    cols = np.arange(W)
    m[cols // scale, cols] = 1.0
    return jnp.asarray(m)


def make_cbl_params(key, cin, cout=OUT_CH):
    """Conv (no bias) + eval-mode BN folded into (w_scaled, bias)."""
    k1, k2, k3, k4, k5 = jax.random.split(key, 5)
    w = jax.random.normal(k1, (cout, cin), jnp.float32) / jnp.sqrt(float(cin))
    gamma = 1.0 + 0.1 * jax.random.normal(k2, (cout,), jnp.float32)
    beta = 0.1 * jax.random.normal(k3, (cout,), jnp.float32)
    running_mean = 0.1 * jax.random.normal(k4, (cout,), jnp.float32)
    running_var = 1.0 + 0.1 * jax.random.uniform(k5, (cout,), jnp.float32)
    scale = gamma / jnp.sqrt(running_var + BN_EPS)
    w_folded = w * scale[:, None]
    bias = (beta - running_mean * scale).reshape(cout, 1)
    return w_folded, bias


def make_neck_params(key):
    ks = jax.random.split(key, 4)
    return {
        "tiny": make_cbl_params(ks[0], CIN["tiny"]),
        "small": make_cbl_params(ks[1], CIN["small"]),
        "middle": make_cbl_params(ks[2], CIN["middle"]),
        "large": make_cbl_params(ks[3], CIN["large"]),
    }


# ---------------------------------------------------------------------------
# neck.forward (NCHW in / NCHW out), single fused pallas_call
# ---------------------------------------------------------------------------
def neck_forward(params, tiny, small, middle, large):
    N, _, H, W = tiny.shape
    assert H % 8 == 0 and W % 8 == 0, (H, W)
    assert tiny.shape[1] == CIN["tiny"]
    assert small.shape == (N, CIN["small"], H // 2, W // 2)
    assert middle.shape == (N, CIN["middle"], H // 4, W // 4)
    assert large.shape == (N, CIN["large"], H // 8, W // 8)

    nb = _pick_num_bands(H, W)
    band_h = H // nb
    bp = band_h * W                                   # full-res pixels per band

    p_full = [(H // s) * (W // s) for s in UP_SCALES]
    p_band = [(band_h // s) * (W // s) for s in UP_SCALES]
    banded = tuple(nb == 1 or p % 128 == 0 for p in p_band)

    # Free reshapes (NCHW is contiguous): no transposes anywhere.
    x_t = tiny.reshape(N, CIN["tiny"], H * W)
    x_s = small.reshape(N, CIN["small"], p_full[0])
    x_m = middle.reshape(N, CIN["middle"], p_full[1])
    x_l = large.reshape(N, CIN["large"], p_full[2])

    uc = [_col_dup_matrix(W // s, W) for s in UP_SCALES]

    w_t, b_t = params["tiny"]
    w_s, b_s = params["small"]
    w_m, b_m = params["middle"]
    w_l, b_l = params["large"]

    # ---- BlockSpecs --------------------------------------------------------
    in_specs = [pl.BlockSpec((None, CIN["tiny"], bp), lambda n, hb: (n, 0, hb))]
    for cin, pf, pb, bd in zip(UP_CIN, p_full, p_band, banded):
        if bd:   # band-local low-res block
            in_specs.append(pl.BlockSpec((None, cin, pb), lambda n, hb: (n, 0, hb)))
        else:    # whole low-res image, constant along the fast band axis
            in_specs.append(pl.BlockSpec((None, cin, pf), lambda n, hb: (n, 0, 0)))
    for cin in (CIN["tiny"],) + UP_CIN:               # folded conv weights
        in_specs.append(pl.BlockSpec((OUT_CH, cin), lambda n, hb: (0, 0)))
    for _ in range(4):                                # folded BN biases
        in_specs.append(pl.BlockSpec((OUT_CH, 1), lambda n, hb: (0, 0)))
    for s in UP_SCALES:                               # column-duplication mats
        in_specs.append(pl.BlockSpec((W // s, W), lambda n, hb: (0, 0)))

    c4 = 4 * OUT_CH
    out_spec = pl.BlockSpec((None, c4, bp), lambda n, hb: (n, 0, hb))

    scratch_shapes = [pltpu.VMEM((nb, OUT_CH, pb), jnp.float32)
                      for pb, bd in zip(p_band, banded) if not bd]

    # ---- explicit VMEM budget (double-buffered blocks + persistent scratch)
    def nbytes(*shape):
        return int(np.prod(shape)) * 4

    block_bytes = nbytes(CIN["tiny"], bp) + nbytes(c4, bp)
    for cin, pf, pb, bd in zip(UP_CIN, p_full, p_band, banded):
        block_bytes += nbytes(cin, pb if bd else pf)
    block_bytes += sum(nbytes(OUT_CH, cin) for cin in (CIN["tiny"],) + UP_CIN)
    block_bytes += 4 * nbytes(OUT_CH, 1)
    block_bytes += sum(nbytes(W // s, W) for s in UP_SCALES)
    scratch_bytes = sum(nbytes(nb, OUT_CH, pb)
                        for pb, bd in zip(p_band, banded) if not bd)
    est = 2 * block_bytes + scratch_bytes
    vmem_limit = int(min(110 * 2 ** 20, max(32 * 2 ** 20, int(1.5 * est))))

    # Per-batch scratch makes the band axis order-dependent.
    band_sem = "parallel" if all(banded) else "arbitrary"

    kernel = _build_neck_kernel(band_h, W, nb, banded)

    out = pl.pallas_call(
        kernel,
        out_shape=jax.ShapeDtypeStruct((N, c4, H * W), jnp.float32),
        grid_spec=pltpu.PrefetchScalarGridSpec(
            num_scalar_prefetch=0,
            grid=(N, nb),
            in_specs=in_specs,
            out_specs=out_spec,
            scratch_shapes=scratch_shapes),
        compiler_params=pltpu.CompilerParams(
            dimension_semantics=("parallel", band_sem),
            vmem_limit_bytes=vmem_limit),
    )(x_t, x_s, x_m, x_l, w_t, w_s, w_m, w_l, b_t, b_s, b_m, b_l, *uc)

    return out.reshape(N, c4, H, W)


# ---------------------------------------------------------------------------
# Pure-JAX reference (numeric sanity check)
# ---------------------------------------------------------------------------
def neck_reference(params, tiny, small, middle, large):
    hp = jax.lax.Precision.HIGHEST

    def cbl(x, wb):
        w, b = wb
        y = jnp.einsum("oc,nchw->nohw", w, x, precision=hp)
        y = y + b.reshape(1, -1, 1, 1)
        return jnp.where(y >= 0.0, y, LEAKY_SLOPE * y)

    def up2(x):
        return jnp.repeat(jnp.repeat(x, 2, axis=2), 2, axis=3)

    t = cbl(tiny, params["tiny"])
    s = cbl(small, params["small"])
    m = cbl(middle, params["middle"])
    l = cbl(large, params["large"])
    o = jnp.concatenate([m, up2(l)], axis=1)
    o = jnp.concatenate([s, up2(o)], axis=1)
    o = jnp.concatenate([t, up2(o)], axis=1)
    return o


if __name__ == "__main__":
    key = jax.random.PRNGKey(0)
    kp, kx = jax.random.split(key)
    params = make_neck_params(kp)

    fwd = jax.jit(neck_forward)
    ref_fn = jax.jit(neck_reference)

    # Two small pyramids: (16,16) exercises the per-batch-scratch path,
    # (16,64) exercises the band-local (lane-dense) small branch as well.
    for (H, W) in ((16, 16), (16, 64)):
        N = 2
        kt, ks, km, kl = jax.random.split(jax.random.fold_in(kx, H * 1000 + W), 4)
        tiny = jax.random.normal(kt, (N, 128, H, W), jnp.float32)
        small = jax.random.normal(ks, (N, 256, H // 2, W // 2), jnp.float32)
        middle = jax.random.normal(km, (N, 512, H // 4, W // 4), jnp.float32)
        large = jax.random.normal(kl, (N, 1024, H // 8, W // 8), jnp.float32)

        out = jax.block_until_ready(fwd(params, tiny, small, middle, large))
        assert out.shape == (N, 4 * OUT_CH, H, W), out.shape
        assert out.dtype == jnp.float32

        ref = jax.block_until_ready(ref_fn(params, tiny, small, middle, large))
        max_err = float(jnp.max(jnp.abs(out - ref)))
        assert max_err < 2e-2, ("numerical mismatch vs reference", (H, W), max_err)

    print("KERNEL_OK")
</pallas_src>

<mosaic_0001>
module attributes {stable_mosaic.version = 11 : i64} {
  func.func @kernel(%arg0: i32, %arg1: i32, %arg2: memref<1x128x128xf32, #tpu.memory_space<vmem>>, %arg3: memref<1x256x64xf32, #tpu.memory_space<vmem>>, %arg4: memref<1x512x16xf32, #tpu.memory_space<vmem>>, %arg5: memref<1x1024x4xf32, #tpu.memory_space<vmem>>, %arg6: memref<192x128xf32, #tpu.memory_space<vmem>>, %arg7: memref<192x256xf32, #tpu.memory_space<vmem>>, %arg8: memref<192x512xf32, #tpu.memory_space<vmem>>, %arg9: memref<192x1024xf32, #tpu.memory_space<vmem>>, %arg10: memref<192x1xf32, #tpu.memory_space<vmem>>, %arg11: memref<192x1xf32, #tpu.memory_space<vmem>>, %arg12: memref<192x1xf32, #tpu.memory_space<vmem>>, %arg13: memref<192x1xf32, #tpu.memory_space<vmem>>, %arg14: memref<8x16xf32, #tpu.memory_space<vmem>>, %arg15: memref<4x16xf32, #tpu.memory_space<vmem>>, %arg16: memref<2x16xf32, #tpu.memory_space<vmem>>, %arg17: memref<1x768x128xf32, #tpu.memory_space<vmem>>, %arg18: memref<2x192x32xf32, #tpu.memory_space<vmem>>, %arg19: memref<2x192x8xf32, #tpu.memory_space<vmem>>, %arg20: memref<2x192x2xf32, #tpu.memory_space<vmem>>) attributes {dimension_semantics = [#tpu.dimension_semantics<parallel>, #tpu.dimension_semantics<arbitrary>], iteration_bounds = array<i64: 2, 2>, scalar_prefetch = 0 : i64, scratch_operands = 3 : i64, tpu.core_type = #tpu.core_type<tc>, window_params = [{transform_indices = @transform_0, window_bounds = array<i64: 1, 128, 128>}, {transform_indices = @transform_1, window_bounds = array<i64: 1, 256, 64>}, {transform_indices = @transform_2, window_bounds = array<i64: 1, 512, 16>}, {transform_indices = @transform_3, window_bounds = array<i64: 1, 1024, 4>}, {pipeline_mode = #tpu.pipeline_mode<synchronous>, transform_indices = @transform_4, window_bounds = array<i64: 192, 128>}, {pipeline_mode = #tpu.pipeline_mode<synchronous>, transform_indices = @transform_5, window_bounds = array<i64: 192, 256>}, {pipeline_mode = #tpu.pipeline_mode<synchronous>, transform_indices = @transform_6, window_bounds = array<i64: 192, 512>}, {pipeline_mode = #tpu.pipeline_mode<synchronous>, transform_indices = @transform_7, window_bounds = array<i64: 192, 1024>}, {pipeline_mode = #tpu.pipeline_mode<synchronous>, transform_indices = @transform_8, window_bounds = array<i64: 192, 1>}, {pipeline_mode = #tpu.pipeline_mode<synchronous>, transform_indices = @transform_9, window_bounds = array<i64: 192, 1>}, {pipeline_mode = #tpu.pipeline_mode<synchronous>, transform_indices = @transform_10, window_bounds = array<i64: 192, 1>}, {pipeline_mode = #tpu.pipeline_mode<synchronous>, transform_indices = @transform_11, window_bounds = array<i64: 192, 1>}, {pipeline_mode = #tpu.pipeline_mode<synchronous>, transform_indices = @transform_12, window_bounds = array<i64: 8, 16>}, {pipeline_mode = #tpu.pipeline_mode<synchronous>, transform_indices = @transform_13, window_bounds = array<i64: 4, 16>}, {pipeline_mode = #tpu.pipeline_mode<synchronous>, transform_indices = @transform_14, window_bounds = array<i64: 2, 16>}, {transform_indices = @transform_15, window_bounds = array<i64: 1, 768, 128>}]} {
    %c0 = arith.constant 0 : index
    %c0_0 = arith.constant 0 : index
    %c0_1 = arith.constant 0 : index
    %0 = vector.load %arg2[%c0, %c0_0, %c0_1] : memref<1x128x128xf32, #tpu.memory_space<vmem>>, vector<1x128x128xf32>
    %1 = vector.shape_cast %0 : vector<1x128x128xf32> to vector<128x128xf32>
    %c0_2 = arith.constant 0 : index
    %c0_3 = arith.constant 0 : index
    %2 = vector.load %arg6[%c0_2, %c0_3] : memref<192x128xf32, #tpu.memory_space<vmem>>, vector<192x128xf32>
    %cst = arith.constant dense<0.000000e+00> : vector<192x128xf32>
    %3 = tpu.matmul %2, %1, %cst {dimension_numbers = #tpu.dot_dimension_numbers<[1], [0], [0], [1], [0, 0, 1, 1], [], []>} : vector<192x128xf32>, vector<128x128xf32>, vector<192x128xf32> -> vector<192x128xf32>
    %c0_4 = arith.constant 0 : index
    %c0_5 = arith.constant 0 : index
    %4 = vector.load %arg10[%c0_4, %c0_5] : memref<192x1xf32, #tpu.memory_space<vmem>>, vector<192x1xf32>
    %5 = vector.broadcast %4 : vector<192x1xf32> to vector<192x128xf32>
    %6 = arith.addf %3, %5 : vector<192x128xf32>
    %cst_6 = arith.constant 0.000000e+00 : f32
    %7 = vector.broadcast %cst_6 : f32 to vector<192x128xf32>
    %8 = arith.cmpf oge, %6, %7 : vector<192x128xf32>
    %cst_7 = arith.constant 1.000000e-01 : f32
    %9 = vector.broadcast %cst_7 : f32 to vector<192x128xf32>
    %10 = arith.mulf %9, %6 : vector<192x128xf32>
    %11 = arith.select %8, %6, %10 : vector<192x128xi1>, vector<192x128xf32>
    %c0_8 = arith.constant 0 : index
    %c0_9 = arith.constant 0 : index
    %c0_10 = arith.constant 0 : index
    %12 = vector.load %arg17[%c0_8, %c0_9, %c0_10] : memref<1x768x128xf32, #tpu.memory_space<vmem>>, vector<1x192x128xf32>
    %13 = vector.shape_cast %12 : vector<1x192x128xf32> to vector<192x128xf32>
    %14 = vector.shape_cast %11 : vector<192x128xf32> to vector<1x192x128xf32>
    tpu.vector_store %arg17[%c0_8, %c0_9, %c0_10], %14 {strides = array<i32>} : memref<1x768x128xf32, #tpu.memory_space<vmem>>, vector<1x192x128xf32>,
    %c0_i32 = arith.constant 0 : i32
    %15 = arith.cmpi eq, %arg1, %c0_i32 : i32
    %16 = arith.extui %15 : i1 to i32
    %c0_i32_11 = arith.constant 0 : i32
    %17 = arith.cmpi ne, %16, %c0_i32_11 : i32
    scf.if %17 {
      %c0_97 = arith.constant 0 : index
      %c0_98 = arith.constant 0 : index
      %c0_99 = arith.constant 0 : index
      %121 = vector.load %arg3[%c0_97, %c0_98, %c0_99] : memref<1x256x64xf32, #tpu.memory_space<vmem>>, vector<1x256x64xf32>
      %122 = vector.shape_cast %121 : vector<1x256x64xf32> to vector<256x64xf32>
      %c0_100 = arith.constant 0 : index
      %c0_101 = arith.constant 0 : index
      %123 = vector.load %arg7[%c0_100, %c0_101] : memref<192x256xf32, #tpu.memory_space<vmem>>, vector<192x256xf32>
      %cst_102 = arith.constant dense<0.000000e+00> : vector<192x64xf32>
      %124 = tpu.matmul %123, %122, %cst_102 {dimension_numbers = #tpu.dot_dimension_numbers<[1], [0], [0], [1], [0, 0, 1, 1], [], []>} : vector<192x256xf32>, vector<256x64xf32>, vector<192x64xf32> -> vector<192x64xf32>
      %c0_103 = arith.constant 0 : index
      %c0_104 = arith.constant 0 : index
      %125 = vector.load %arg11[%c0_103, %c0_104] : memref<192x1xf32, #tpu.memory_space<vmem>>, vector<192x1xf32>
      %126 = vector.broadcast %125 : vector<192x1xf32> to vector<192x64xf32>
      %127 = arith.addf %124, %126 : vector<192x64xf32>
      %cst_105 = arith.constant 0.000000e+00 : f32
      %128 = vector.broadcast %cst_105 : f32 to vector<192x64xf32>
      %129 = arith.cmpf oge, %127, %128 : vector<192x64xf32>
      %cst_106 = arith.constant 1.000000e-01 : f32
      %130 = vector.broadcast %cst_106 : f32 to vector<192x64xf32>
      %131 = arith.mulf %130, %127 : vector<192x64xf32>
      %132 = arith.select %129, %127, %131 : vector<192x64xi1>, vector<192x64xf32>
      %133 = vector.extract_strided_slice %132 {offsets = [0, 0], sizes = [192, 32], strides = [1, 1]} : vector<192x64xf32> to vector<192x32xf32>
      %c0_107 = arith.constant 0 : index
      %c0_108 = arith.constant 0 : index
      %c0_109 = arith.constant 0 : index
      %134 = vector.load %arg18[%c0_107, %c0_108, %c0_109] : memref<2x192x32xf32, #tpu.memory_space<vmem>>, vector<1x192x32xf32>
      %135 = vector.shape_cast %134 : vector<1x192x32xf32> to vector<192x32xf32>
      %136 = vector.shape_cast %133 : vector<192x32xf32> to vector<1x192x32xf32>
      tpu.vector_store %arg18[%c0_107, %c0_108, %c0_109], %136 {strides = array<i32>} : memref<2x192x32xf32, #tpu.memory_space<vmem>>, vector<1x192x32xf32>,
      %137 = vector.extract_strided_slice %132 {offsets = [0, 32], sizes = [192, 32], strides = [1, 1]} : vector<192x64xf32> to vector<192x32xf32>
      %c1 = arith.constant 1 : index
      %c0_110 = arith.constant 0 : index
      %c0_111 = arith.constant 0 : index
      %138 = vector.load %arg18[%c1, %c0_110, %c0_111] : memref<2x192x32xf32, #tpu.memory_space<vmem>>, vector<1x192x32xf32>
      %139 = vector.shape_cast %138 : vector<1x192x32xf32> to vector<192x32xf32>
      %140 = vector.shape_cast %137 : vector<192x32xf32> to vector<1x192x32xf32>
      tpu.vector_store %arg18[%c1, %c0_110, %c0_111], %140 {strides = array<i32>} : memref<2x192x32xf32, #tpu.memory_space<vmem>>, vector<1x192x32xf32>,
    } else {
    }
    %18 = arith.index_cast %arg1 : i32 to index
    %c0_12 = arith.constant 0 : index
    %c0_13 = arith.constant 0 : index
    %19 = vector.load %arg18[%18, %c0_12, %c0_13] : memref<2x192x32xf32, #tpu.memory_space<vmem>>, vector<1x192x32xf32>
    %20 = vector.shape_cast %19 : vector<1x192x32xf32> to vector<192x32xf32>
    %c0_14 = arith.constant 0 : index
    %c0_15 = arith.constant 0 : index
    %21 = vector.load %arg14[%c0_14, %c0_15] : memref<8x16xf32, #tpu.memory_space<vmem>>, vector<8x16xf32>
    %22 = vector.extract_strided_slice %20 {offsets = [0, 0], sizes = [192, 8], strides = [1, 1]} : vector<192x32xf32> to vector<192x8xf32>
    %cst_16 = arith.constant dense<0.000000e+00> : vector<192x16xf32>
    %23 = tpu.matmul %22, %21, %cst_16 {dimension_numbers = #tpu.dot_dimension_numbers<[1], [0], [0], [1], [0, 0, 1, 1], [], []>} : vector<192x8xf32>, vector<8x16xf32>, vector<192x16xf32> -> vector<192x16xf32>
    %c0_17 = arith.constant 0 : index
    %c192 = arith.constant 192 : index
    %c0_18 = arith.constant 0 : index
    %24 = vector.load %arg17[%c0_17, %c192, %c0_18] : memref<1x768x128xf32, #tpu.memory_space<vmem>>, vector<1x192x16xf32>
    %25 = vector.shape_cast %24 : vector<1x192x16xf32> to vector<192x16xf32>
    %26 = vector.shape_cast %23 : vector<192x16xf32> to vector<1x192x16xf32>
    tpu.vector_store %arg17[%c0_17, %c192, %c0_18], %26 {strides = array<i32>} : memref<1x768x128xf32, #tpu.memory_space<vmem>>, vector<1x192x16xf32>,
    %c0_19 = arith.constant 0 : index
    %c192_20 = arith.constant 192 : index
    %c16 = arith.constant 16 : index
    %27 = vector.load %arg17[%c0_19, %c192_20, %c16] : memref<1x768x128xf32, #tpu.memory_space<vmem>>, vector<1x192x16xf32>
    %28 = vector.shape_cast %27 : vector<1x192x16xf32> to vector<192x16xf32>
    %29 = vector.shape_cast %23 : vector<192x16xf32> to vector<1x192x16xf32>
    tpu.vector_store %arg17[%c0_19, %c192_20, %c16], %29 {strides = array<i32>} : memref<1x768x128xf32, #tpu.memory_space<vmem>>, vector<1x192x16xf32>,
    %30 = vector.extract_strided_slice %20 {offsets = [0, 8], sizes = [192, 8], strides = [1, 1]} : vector<192x32xf32> to vector<192x8xf32>
    %cst_21 = arith.constant dense<0.000000e+00> : vector<192x16xf32>
    %31 = tpu.matmul %30, %21, %cst_21 {dimension_numbers = #tpu.dot_dimension_numbers<[1], [0], [0], [1], [0, 0, 1, 1], [], []>} : vector<192x8xf32>, vector<8x16xf32>, vector<192x16xf32> -> vector<192x16xf32>
    %c0_22 = arith.constant 0 : index
    %c192_23 = arith.constant 192 : index
    %c32 = arith.constant 32 : index
    %32 = vector.load %arg17[%c0_22, %c192_23, %c32] : memref<1x768x128xf32, #tpu.memory_space<vmem>>, vector<1x192x16xf32>
    %33 = vector.shape_cast %32 : vector<1x192x16xf32> to vector<192x16xf32>
    %34 = vector.shape_cast %31 : vector<192x16xf32> to vector<1x192x16xf32>
    tpu.vector_store %arg17[%c0_22, %c192_23, %c32], %34 {strides = array<i32>} : memref<1x768x128xf32, #tpu.memory_space<vmem>>, vector<1x192x16xf32>,
    %c0_24 = arith.constant 0 : index
    %c192_25 = arith.constant 192 : index
    %c48 = arith.constant 48 : index
    %35 = vector.load %arg17[%c0_24, %c192_25, %c48] : memref<1x768x128xf32, #tpu.memory_space<vmem>>, vector<1x192x16xf32>
    %36 = vector.shape_cast %35 : vector<1x192x16xf32> to vector<192x16xf32>
    %37 = vector.shape_cast %31 : vector<192x16xf32> to vector<1x192x16xf32>
    tpu.vector_store %arg17[%c0_24, %c192_25, %c48], %37 {strides = array<i32>} : memref<1x768x128xf32, #tpu.memory_space<vmem>>, vector<1x192x16xf32>,
    %38 = vector.extract_strided_slice %20 {offsets = [0, 16], sizes = [192, 8], strides = [1, 1]} : vector<192x32xf32> to vector<192x8xf32>
    %cst_26 = arith.constant dense<0.000000e+00> : vector<192x16xf32>
    %39 = tpu.matmul %38, %21, %cst_26 {dimension_numbers = #tpu.dot_dimension_numbers<[1], [0], [0], [1], [0, 0, 1, 1], [], []>} : vector<192x8xf32>, vector<8x16xf32>, vector<192x16xf32> -> vector<192x16xf32>
    %c0_27 = arith.constant 0 : index
    %c192_28 = arith.constant 192 : index
    %c64 = arith.constant 64 : index
    %40 = vector.load %arg17[%c0_27, %c192_28, %c64] : memref<1x768x128xf32, #tpu.memory_space<vmem>>, vector<1x192x16xf32>
    %41 = vector.shape_cast %40 : vector<1x192x16xf32> to vector<192x16xf32>
    %42 = vector.shape_cast %39 : vector<192x16xf32> to vector<1x192x16xf32>
    tpu.vector_store %arg17[%c0_27, %c192_28, %c64], %42 {strides = array<i32>} : memref<1x768x128xf32, #tpu.memory_space<vmem>>, vector<1x192x16xf32>,
    %c0_29 = arith.constant 0 : index
    %c192_30 = arith.constant 192 : index
    %c80 = arith.constant 80 : index
    %43 = vector.load %arg17[%c0_29, %c192_30, %c80] : memref<1x768x128xf32, #tpu.memory_space<vmem>>, vector<1x192x16xf32>
    %44 = vector.shape_cast %43 : vector<1x192x16xf32> to vector<192x16xf32>
    %45 = vector.shape_cast %39 : vector<192x16xf32> to vector<1x192x16xf32>
    tpu.vector_store %arg17[%c0_29, %c192_30, %c80], %45 {strides = array<i32>} : memref<1x768x128xf32, #tpu.memory_space<vmem>>, vector<1x192x16xf32>,
    %46 = vector.extract_strided_slice %20 {offsets = [0, 24], sizes = [192, 8], strides = [1, 1]} : vector<192x32xf32> to vector<192x8xf32>
    %cst_31 = arith.constant dense<0.000000e+00> : vector<192x16xf32>
    %47 = tpu.matmul %46, %21, %cst_31 {dimension_numbers = #tpu.dot_dimension_numbers<[1], [0], [0], [1], [0, 0, 1, 1], [], []>} : vector<192x8xf32>, vector<8x16xf32>, vector<192x16xf32> -> vector<192x16xf32>
    %c0_32 = arith.constant 0 : index
    %c192_33 = arith.constant 192 : index
    %c96 = arith.constant 96 : index
    %48 = vector.load %arg17[%c0_32, %c192_33, %c96] : memref<1x768x128xf32, #tpu.memory_space<vmem>>, vector<1x192x16xf32>
    %49 = vector.shape_cast %48 : vector<1x192x16xf32> to vector<192x16xf32>
    %50 = vector.shape_cast %47 : vector<192x16xf32> to vector<1x192x16xf32>
    tpu.vector_store %arg17[%c0_32, %c192_33, %c96], %50 {strides = array<i32>} : memref<1x768x128xf32, #tpu.memory_space<vmem>>, vector<1x192x16xf32>,
    %c0_34 = arith.constant 0 : index
    %c192_35 = arith.constant 192 : index
    %c112 = arith.constant 112 : index
    %51 = vector.load %arg17[%c0_34, %c192_35, %c112] : memref<1x768x128xf32, #tpu.memory_space<vmem>>, vector<1x192x16xf32>
    %52 = vector.shape_cast %51 : vector<1x192x16xf32> to vector<192x16xf32>
    %53 = vector.shape_cast %47 : vector<192x16xf32> to vector<1x192x16xf32>
    tpu.vector_store %arg17[%c0_34, %c192_35, %c112], %53 {strides = array<i32>} : memref<1x768x128xf32, #tpu.memory_space<vmem>>, vector<1x192x16xf32>,
    %c0_i32_36 = arith.constant 0 : i32
    %54 = arith.cmpi eq, %arg1, %c0_i32_36 : i32
    %55 = arith.extui %54 : i1 to i32
    %c0_i32_37 = arith.constant 0 : i32
    %56 = arith.cmpi ne, %55, %c0_i32_37 : i32
    scf.if %56 {
      %c0_97 = arith.constant 0 : index
      %c0_98 = arith.constant 0 : index
      %c0_99 = arith.constant 0 : index
      %121 = vector.load %arg4[%c0_97, %c0_98, %c0_99] : memref<1x512x16xf32, #tpu.memory_space<vmem>>, vector<1x512x16xf32>
      %122 = vector.shape_cast %121 : vector<1x512x16xf32> to vector<512x16xf32>
      %c0_100 = arith.constant 0 : index
      %c0_101 = arith.constant 0 : index
      %123 = vector.load %arg8[%c0_100, %c0_101] : memref<192x512xf32, #tpu.memory_space<vmem>>, vector<192x512xf32>
      %cst_102 = arith.constant dense<0.000000e+00> : vector<192x16xf32>
      %124 = tpu.matmul %123, %122, %cst_102 {dimension_numbers = #tpu.dot_dimension_numbers<[1], [0], [0], [1], [0, 0, 1, 1], [], []>} : vector<192x512xf32>, vector<512x16xf32>, vector<192x16xf32> -> vector<192x16xf32>
      %c0_103 = arith.constant 0 : index
      %c0_104 = arith.constant 0 : index
      %125 = vector.load %arg12[%c0_103, %c0_104] : memref<192x1xf32, #tpu.memory_space<vmem>>, vector<192x1xf32>
      %126 = vector.broadcast %125 : vector<192x1xf32> to vector<192x16xf32>
      %127 = arith.addf %124, %126 : vector<192x16xf32>
      %cst_105 = arith.constant 0.000000e+00 : f32
      %128 = vector.broadcast %cst_105 : f32 to vector<192x16xf32>
      %129 = arith.cmpf oge, %127, %128 : vector<192x16xf32>
      %cst_106 = arith.constant 1.000000e-01 : f32
      %130 = vector.broadcast %cst_106 : f32 to vector<192x16xf32>
      %131 = arith.mulf %130, %127 : vector<192x16xf32>
      %132 = arith.select %129, %127, %131 : vector<192x16xi1>, vector<192x16xf32>
      %133 = vector.extract_strided_slice %132 {offsets = [0, 0], sizes = [192, 8], strides = [1, 1]} : vector<192x16xf32> to vector<192x8xf32>
      %c0_107 = arith.constant 0 : index
      %c0_108 = arith.constant 0 : index
      %c0_109 = arith.constant 0 : index
      %134 = vector.load %arg19[%c0_107, %c0_108, %c0_109] : memref<2x192x8xf32, #tpu.memory_space<vmem>>, vector<1x192x8xf32>
      %135 = vector.shape_cast %134 : vector<1x192x8xf32> to vector<192x8xf32>
      %136 = vector.shape_cast %133 : vector<192x8xf32> to vector<1x192x8xf32>
      tpu.vector_store %arg19[%c0_107, %c0_108, %c0_109], %136 {strides = array<i32>} : memref<2x192x8xf32, #tpu.memory_space<vmem>>, vector<1x192x8xf32>,
      %137 = vector.extract_strided_slice %132 {offsets = [0, 8], sizes = [192, 8], strides = [1, 1]} : vector<192x16xf32> to vector<192x8xf32>
      %c1 = arith.constant 1 : index
      %c0_110 = arith.constant 0 : index
      %c0_111 = arith.constant 0 : index
      %138 = vector.load %arg19[%c1, %c0_110, %c0_111] : memref<2x192x8xf32, #tpu.memory_space<vmem>>, vector<1x192x8xf32>
      %139 = vector.shape_cast %138 : vector<1x192x8xf32> to vector<192x8xf32>
      %140 = vector.shape_cast %137 : vector<192x8xf32> to vector<1x192x8xf32>
      tpu.vector_store %arg19[%c1, %c0_110, %c0_111], %140 {strides = array<i32>} : memref<2x192x8xf32, #tpu.memory_space<vmem>>, vector<1x192x8xf32>,
    } else {
    }
    %57 = arith.index_cast %arg1 : i32 to index
    %c0_38 = arith.constant 0 : index
    %c0_39 = arith.constant 0 : index
    %58 = vector.load %arg19[%57, %c0_38, %c0_39] : memref<2x192x8xf32, #tpu.memory_space<vmem>>, vector<1x192x8xf32>
    %59 = vector.shape_cast %58 : vector<1x192x8xf32> to vector<192x8xf32>
    %c0_40 = arith.constant 0 : index
    %c0_41 = arith.constant 0 : index
    %60 = vector.load %arg15[%c0_40, %c0_41] : memref<4x16xf32, #tpu.memory_space<vmem>>, vector<4x16xf32>
    %61 = vector.extract_strided_slice %59 {offsets = [0, 0], sizes = [192, 4], strides = [1, 1]} : vector<192x8xf32> to vector<192x4xf32>
    %cst_42 = arith.constant dense<0.000000e+00> : vector<192x16xf32>
    %62 = tpu.matmul %61, %60, %cst_42 {dimension_numbers = #tpu.dot_dimension_numbers<[1], [0], [0], [1], [0, 0, 1, 1], [], []>} : vector<192x4xf32>, vector<4x16xf32>, vector<192x16xf32> -> vector<192x16xf32>
    %c0_43 = arith.constant 0 : index
    %c384 = arith.constant 384 : index
    %c0_44 = arith.constant 0 : index
    %63 = vector.load %arg17[%c0_43, %c384, %c0_44] : memref<1x768x128xf32, #tpu.memory_space<vmem>>, vector<1x192x16xf32>
    %64 = vector.shape_cast %63 : vector<1x192x16xf32> to vector<192x16xf32>
    %65 = vector.shape_cast %62 : vector<192x16xf32> to vector<1x192x16xf32>
    tpu.vector_store %arg17[%c0_43, %c384, %c0_44], %65 {strides = array<i32>} : memref<1x768x128xf32, #tpu.memory_space<vmem>>, vector<1x192x16xf32>,
    %c0_45 = arith.constant 0 : index
    %c384_46 = arith.constant 384 : index
    %c16_47 = arith.constant 16 : index
    %66 = vector.load %arg17[%c0_45, %c384_46, %c16_47] : memref<1x768x128xf32, #tpu.memory_space<vmem>>, vector<1x192x16xf32>
    %67 = vector.shape_cast %66 : vector<1x192x16xf32> to vector<192x16xf32>
    %68 = vector.shape_cast %62 : vector<192x16xf32> to vector<1x192x16xf32>
    tpu.vector_store %arg17[%c0_45, %c384_46, %c16_47], %68 {strides = array<i32>} : memref<1x768x128xf32, #tpu.memory_space<vmem>>, vector<1x192x16xf32>,
    %c0_48 = arith.constant 0 : index
    %c384_49 = arith.constant 384 : index
    %c32_50 = arith.constant 32 : index
    %69 = vector.load %arg17[%c0_48, %c384_49, %c32_50] : memref<1x768x128xf32, #tpu.memory_space<vmem>>, vector<1x192x16xf32>
    %70 = vector.shape_cast %69 : vector<1x192x16xf32> to vector<192x16xf32>
    %71 = vector.shape_cast %62 : vector<192x16xf32> to vector<1x192x16xf32>
    tpu.vector_store %arg17[%c0_48, %c384_49, %c32_50], %71 {strides = array<i32>} : memref<1x768x128xf32, #tpu.memory_space<vmem>>, vector<1x192x16xf32>,
    %c0_51 = arith.constant 0 : index
    %c384_52 = arith.constant 384 : index
    %c48_53 = arith.constant 48 : index
    %72 = vector.load %arg17[%c0_51, %c384_52, %c48_53] : memref<1x768x128xf32, #tpu.memory_space<vmem>>, vector<1x192x16xf32>
    %73 = vector.shape_cast %72 : vector<1x192x16xf32> to vector<192x16xf32>
    %74 = vector.shape_cast %62 : vector<192x16xf32> to vector<1x192x16xf32>
    tpu.vector_store %arg17[%c0_51, %c384_52, %c48_53], %74 {strides = array<i32>} : memref<1x768x128xf32, #tpu.memory_space<vmem>>, vector<1x192x16xf32>,
    %75 = vector.extract_strided_slice %59 {offsets = [0, 4], sizes = [192, 4], strides = [1, 1]} : vector<192x8xf32> to vector<192x4xf32>
    %cst_54 = arith.constant dense<0.000000e+00> : vector<192x16xf32>
    %76 = tpu.matmul %75, %60, %cst_54 {dimension_numbers = #tpu.dot_dimension_numbers<[1], [0], [0], [1], [0, 0, 1, 1], [], []>} : vector<192x4xf32>, vector<4x16xf32>, vector<192x16xf32> -> vector<192x16xf32>
    %c0_55 = arith.constant 0 : index
    %c384_56 = arith.constant 384 : index
    %c64_57 = arith.constant 64 : index
    %77 = vector.load %arg17[%c0_55, %c384_56, %c64_57] : memref<1x768x128xf32, #tpu.memory_space<vmem>>, vector<1x192x16xf32>
    %78 = vector.shape_cast %77 : vector<1x192x16xf32> to vector<192x16xf32>
    %79 = vector.shape_cast %76 : vector<192x16xf32> to vector<1x192x16xf32>
    tpu.vector_store %arg17[%c0_55, %c384_56, %c64_57], %79 {strides = array<i32>} : memref<1x768x128xf32, #tpu.memory_space<vmem>>, vector<1x192x16xf32>,
    %c0_58 = arith.constant 0 : index
    %c384_59 = arith.constant 384 : index
    %c80_60 = arith.constant 80 : index
    %80 = vector.load %arg17[%c0_58, %c384_59, %c80_60] : memref<1x768x128xf32, #tpu.memory_space<vmem>>, vector<1x192x16xf32>
    %81 = vector.shape_cast %80 : vector<1x192x16xf32> to vector<192x16xf32>
    %82 = vector.shape_cast %76 : vector<192x16xf32> to vector<1x192x16xf32>
    tpu.vector_store %arg17[%c0_58, %c384_59, %c80_60], %82 {strides = array<i32>} : memref<1x768x128xf32, #tpu.memory_space<vmem>>, vector<1x192x16xf32>,
    %c0_61 = arith.constant 0 : index
    %c384_62 = arith.constant 384 : index
    %c96_63 = arith.constant 96 : index
    %83 = vector.load %arg17[%c0_61, %c384_62, %c96_63] : memref<1x768x128xf32, #tpu.memory_space<vmem>>, vector<1x192x16xf32>
    %84 = vector.shape_cast %83 : vector<1x192x16xf32> to vector<192x16xf32>
    %85 = vector.shape_cast %76 : vector<192x16xf32> to vector<1x192x16xf32>
    tpu.vector_store %arg17[%c0_61, %c384_62, %c96_63], %85 {strides = array<i32>} : memref<1x768x128xf32, #tpu.memory_space<vmem>>, vector<1x192x16xf32>,
    %c0_64 = arith.constant 0 : index
    %c384_65 = arith.constant 384 : index
    %c112_66 = arith.constant 112 : index
    %86 = vector.load %arg17[%c0_64, %c384_65, %c112_66] : memref<1x768x128xf32, #tpu.memory_space<vmem>>, vector<1x192x16xf32>
    %87 = vector.shape_cast %86 : vector<1x192x16xf32> to vector<192x16xf32>
    %88 = vector.shape_cast %76 : vector<192x16xf32> to vector<1x192x16xf32>
    tpu.vector_store %arg17[%c0_64, %c384_65, %c112_66], %88 {strides = array<i32>} : memref<1x768x128xf32, #tpu.memory_space<vmem>>, vector<1x192x16xf32>,
    %c0_i32_67 = arith.constant 0 : i32
    %89 = arith.cmpi eq, %arg1, %c0_i32_67 : i32
    %90 = arith.extui %89 : i1 to i32
    %c0_i32_68 = arith.constant 0 : i32
    %91 = arith.cmpi ne, %90, %c0_i32_68 : i32
    scf.if %91 {
      %c0_97 = arith.constant 0 : index
      %c0_98 = arith.constant 0 : index
      %c0_99 = arith.constant 0 : index
      %121 = vector.load %arg5[%c0_97, %c0_98, %c0_99] : memref<1x1024x4xf32, #tpu.memory_space<vmem>>, vector<1x1024x4xf32>
      %122 = vector.shape_cast %121 : vector<1x1024x4xf32> to vector<1024x4xf32>
      %c0_100 = arith.constant 0 : index
      %c0_101 = arith.constant 0 : index
      %123 = vector.load %arg9[%c0_100, %c0_101] : memref<192x1024xf32, #tpu.memory_space<vmem>>, vector<192x1024xf32>
      %cst_102 = arith.constant dense<0.000000e+00> : vector<192x4xf32>
      %124 = tpu.matmul %123, %122, %cst_102 {dimension_numbers = #tpu.dot_dimension_numbers<[1], [0], [0], [1], [0, 0, 1, 1], [], []>} : vector<192x1024xf32>, vector<1024x4xf32>, vector<192x4xf32> -> vector<192x4xf32>
      %c0_103 = arith.constant 0 : index
      %c0_104 = arith.constant 0 : index
      %125 = vector.load %arg13[%c0_103, %c0_104] : memref<192x1xf32, #tpu.memory_space<vmem>>, vector<192x1xf32>
      %126 = vector.broadcast %125 : vector<192x1xf32> to vector<192x4xf32>
      %127 = arith.addf %124, %126 : vector<192x4xf32>
      %cst_105 = arith.constant 0.000000e+00 : f32
      %128 = vector.broadcast %cst_105 : f32 to vector<192x4xf32>
      %129 = arith.cmpf oge, %127, %128 : vector<192x4xf32>
      %cst_106 = arith.constant 1.000000e-01 : f32
      %130 = vector.broadcast %cst_106 : f32 to vector<192x4xf32>
      %131 = arith.mulf %130, %127 : vector<192x4xf32>
      %132 = arith.select %129, %127, %131 : vector<192x4xi1>, vector<192x4xf32>
      %133 = vector.extract_strided_slice %132 {offsets = [0, 0], sizes = [192, 2], strides = [1, 1]} : vector<192x4xf32> to vector<192x2xf32>
      %c0_107 = arith.constant 0 : index
      %c0_108 = arith.constant 0 : index
      %c0_109 = arith.constant 0 : index
      %134 = vector.load %arg20[%c0_107, %c0_108, %c0_109] : memref<2x192x2xf32, #tpu.memory_space<vmem>>, vector<1x192x2xf32>
      %135 = vector.shape_cast %134 : vector<1x192x2xf32> to vector<192x2xf32>
      %136 = vector.shape_cast %133 : vector<192x2xf32> to vector<1x192x2xf32>
      tpu.vector_store %arg20[%c0_107, %c0_108, %c0_109], %136 {strides = array<i32>} : memref<2x192x2xf32, #tpu.memory_space<vmem>>, vector<1x192x2xf32>,
      %137 = vector.extract_strided_slice %132 {offsets = [0, 2], sizes = [192, 2], strides = [1, 1]} : vector<192x4xf32> to vector<192x2xf32>
      %c1 = arith.constant 1 : index
      %c0_110 = arith.constant 0 : index
      %c0_111 = arith.constant 0 : index
      %138 = vector.load %arg20[%c1, %c0_110, %c0_111] : memref<2x192x2xf32, #tpu.memory_space<vmem>>, vector<1x192x2xf32>
      %139 = vector.shape_cast %138 : vector<1x192x2xf32> to vector<192x2xf32>
      %140 = vector.shape_cast %137 : vector<192x2xf32> to vector<1x192x2xf32>
      tpu.vector_store %arg20[%c1, %c0_110, %c0_111], %140 {strides = array<i32>} : memref<2x192x2xf32, #tpu.memory_space<vmem>>, vector<1x192x2xf32>,
    } else {
    }
    %92 = arith.index_cast %arg1 : i32 to index
    %c0_69 = arith.constant 0 : index
    %c0_70 = arith.constant 0 : index
    %93 = vector.load %arg20[%92, %c0_69, %c0_70] : memref<2x192x2xf32, #tpu.memory_space<vmem>>, vector<1x192x2xf32>
    %94 = vector.shape_cast %93 : vector<1x192x2xf32> to vector<192x2xf32>
    %c0_71 = arith.constant 0 : index
    %c0_72 = arith.constant 0 : index
    %95 = vector.load %arg16[%c0_71, %c0_72] : memref<2x16xf32, #tpu.memory_space<vmem>>, vector<2x16xf32>
    %cst_73 = arith.constant dense<0.000000e+00> : vector<192x16xf32>
    %96 = tpu.matmul %94, %95, %cst_73 {dimension_numbers = #tpu.dot_dimension_numbers<[1], [0], [0], [1], [0, 0, 1, 1], [], []>} : vector<192x2xf32>, vector<2x16xf32>, vector<192x16xf32> -> vector<192x16xf32>
    %c0_74 = arith.constant 0 : index
    %c576 = arith.constant 576 : index
    %c0_75 = arith.constant 0 : index
    %97 = vector.load %arg17[%c0_74, %c576, %c0_75] : memref<1x768x128xf32, #tpu.memory_space<vmem>>, vector<1x192x16xf32>
    %98 = vector.shape_cast %97 : vector<1x192x16xf32> to vector<192x16xf32>
    %99 = vector.shape_cast %96 : vector<192x16xf32> to vector<1x192x16xf32>
    tpu.vector_store %arg17[%c0_74, %c576, %c0_75], %99 {strides = array<i32>} : memref<1x768x128xf32, #tpu.memory_space<vmem>>, vector<1x192x16xf32>,
    %c0_76 = arith.constant 0 : index
    %c576_77 = arith.constant 576 : index
    %c16_78 = arith.constant 16 : index
    %100 = vector.load %arg17[%c0_76, %c576_77, %c16_78] : memref<1x768x128xf32, #tpu.memory_space<vmem>>, vector<1x192x16xf32>
    %101 = vector.shape_cast %100 : vector<1x192x16xf32> to vector<192x16xf32>
    %102 = vector.shape_cast %96 : vector<192x16xf32> to vector<1x192x16xf32>
    tpu.vector_store %arg17[%c0_76, %c576_77, %c16_78], %102 {strides = array<i32>} : memref<1x768x128xf32, #tpu.memory_space<vmem>>, vector<1x192x16xf32>,
    %c0_79 = arith.constant 0 : index
    %c576_80 = arith.constant 576 : index
    %c32_81 = arith.constant 32 : index
    %103 = vector.load %arg17[%c0_79, %c576_80, %c32_81] : memref<1x768x128xf32, #tpu.memory_space<vmem>>, vector<1x192x16xf32>
    %104 = vector.shape_cast %103 : vector<1x192x16xf32> to vector<192x16xf32>
    %105 = vector.shape_cast %96 : vector<192x16xf32> to vector<1x192x16xf32>
    tpu.vector_store %arg17[%c0_79, %c576_80, %c32_81], %105 {strides = array<i32>} : memref<1x768x128xf32, #tpu.memory_space<vmem>>, vector<1x192x16xf32>,
    %c0_82 = arith.constant 0 : index
    %c576_83 = arith.constant 576 : index
    %c48_84 = arith.constant 48 : index
    %106 = vector.load %arg17[%c0_82, %c576_83, %c48_84] : memref<1x768x128xf32, #tpu.memory_space<vmem>>, vector<1x192x16xf32>
    %107 = vector.shape_cast %106 : vector<1x192x16xf32> to vector<192x16xf32>
    %108 = vector.shape_cast %96 : vector<192x16xf32> to vector<1x192x16xf32>
    tpu.vector_store %arg17[%c0_82, %c576_83, %c48_84], %108 {strides = array<i32>} : memref<1x768x128xf32, #tpu.memory_space<vmem>>, vector<1x192x16xf32>,
    %c0_85 = arith.constant 0 : index
    %c576_86 = arith.constant 576 : index
    %c64_87 = arith.constant 64 : index
    %109 = vector.load %arg17[%c0_85, %c576_86, %c64_87] : memref<1x768x128xf32, #tpu.memory_space<vmem>>, vector<1x192x16xf32>
    %110 = vector.shape_cast %109 : vector<1x192x16xf32> to vector<192x16xf32>
    %111 = vector.shape_cast %96 : vector<192x16xf32> to vector<1x192x16xf32>
    tpu.vector_store %arg17[%c0_85, %c576_86, %c64_87], %111 {strides = array<i32>} : memref<1x768x128xf32, #tpu.memory_space<vmem>>, vector<1x192x16xf32>,
    %c0_88 = arith.constant 0 : index
    %c576_89 = arith.constant 576 : index
    %c80_90 = arith.constant 80 : index
    %112 = vector.load %arg17[%c0_88, %c576_89, %c80_90] : memref<1x768x128xf32, #tpu.memory_space<vmem>>, vector<1x192x16xf32>
    %113 = vector.shape_cast %112 : vector<1x192x16xf32> to vector<192x16xf32>
    %114 = vector.shape_cast %96 : vector<192x16xf32> to vector<1x192x16xf32>
    tpu.vector_store %arg17[%c0_88, %c576_89, %c80_90], %114 {strides = array<i32>} : memref<1x768x128xf32, #tpu.memory_space<vmem>>, vector<1x192x16xf32>,
    %c0_91 = arith.constant 0 : index
    %c576_92 = arith.constant 576 : index
    %c96_93 = arith.constant 96 : index
    %115 = vector.load %arg17[%c0_91, %c576_92, %c96_93] : memref<1x768x128xf32, #tpu.memory_space<vmem>>, vector<1x192x16xf32>
    %116 = vector.shape_cast %115 : vector<1x192x16xf32> to vector<192x16xf32>
    %117 = vector.shape_cast %96 : vector<192x16xf32> to vector<1x192x16xf32>
    tpu.vector_store %arg17[%c0_91, %c576_92, %c96_93], %117 {strides = array<i32>} : memref<1x768x128xf32, #tpu.memory_space<vmem>>, vector<1x192x16xf32>,
    %c0_94 = arith.constant 0 : index
    %c576_95 = arith.constant 576 : index
    %c112_96 = arith.constant 112 : index
    %118 = vector.load %arg17[%c0_94, %c576_95, %c112_96] : memref<1x768x128xf32, #tpu.memory_space<vmem>>, vector<1x192x16xf32>
    %119 = vector.shape_cast %118 : vector<1x192x16xf32> to vector<192x16xf32>
    %120 = vector.shape_cast %96 : vector<192x16xf32> to vector<1x192x16xf32>
    tpu.vector_store %arg17[%c0_94, %c576_95, %c112_96], %120 {strides = array<i32>} : memref<1x768x128xf32, #tpu.memory_space<vmem>>, vector<1x192x16xf32>,
    return
  }
  func.func @transform_0(%arg0: i32, %arg1: i32) -> (i32, i32, i32) {
    %c0_i32 = arith.constant 0 : i32
    %c0_i32_0 = arith.constant 0 : i32
    return %arg0, %c0_i32, %arg1 : i32, i32, i32
  }
  func.func @transform_1(%arg0: i32, %arg1: i32) -> (i32, i32, i32) {
    %c0_i32 = arith.constant 0 : i32
    %c0_i32_0 = arith.constant 0 : i32
    %c0_i32_1 = arith.constant 0 : i32
    return %arg0, %c0_i32, %c0_i32_0 : i32, i32, i32
  }
  func.func @transform_2(%arg0: i32, %arg1: i32) -> (i32, i32, i32) {
    %c0_i32 = arith.constant 0 : i32
    %c0_i32_0 = arith.constant 0 : i32
    %c0_i32_1 = arith.constant 0 : i32
    return %arg0, %c0_i32, %c0_i32_0 : i32, i32, i32
  }
  func.func @transform_3(%arg0: i32, %arg1: i32) -> (i32, i32, i32) {
    %c0_i32 = arith.constant 0 : i32
    %c0_i32_0 = arith.constant 0 : i32
    %c0_i32_1 = arith.constant 0 : i32
    return %arg0, %c0_i32, %c0_i32_0 : i32, i32, i32
  }
  func.func @transform_4(%arg0: i32, %arg1: i32) -> (i32, i32) {
    %c0_i32 = arith.constant 0 : i32
    %c0_i32_0 = arith.constant 0 : i32
    %c0_i32_1 = arith.constant 0 : i32
    return %c0_i32, %c0_i32_0 : i32, i32
  }
  func.func @transform_5(%arg0: i32, %arg1: i32) -> (i32, i32) {
    %c0_i32 = arith.constant 0 : i32
    %c0_i32_0 = arith.constant 0 : i32
    %c0_i32_1 = arith.constant 0 : i32
    return %c0_i32, %c0_i32_0 : i32, i32
  }
  func.func @transform_6(%arg0: i32, %arg1: i32) -> (i32, i32) {
    %c0_i32 = arith.constant 0 : i32
    %c0_i32_0 = arith.constant 0 : i32
    %c0_i32_1 = arith.constant 0 : i32
    return %c0_i32, %c0_i32_0 : i32, i32
  }
  func.func @transform_7(%arg0: i32, %arg1: i32) -> (i32, i32) {
    %c0_i32 = arith.constant 0 : i32
    %c0_i32_0 = arith.constant 0 : i32
    %c0_i32_1 = arith.constant 0 : i32
    return %c0_i32, %c0_i32_0 : i32, i32
  }
  func.func @transform_8(%arg0: i32, %arg1: i32) -> (i32, i32) {
    %c0_i32 = arith.constant 0 : i32
    %c0_i32_0 = arith.constant 0 : i32
    %c0_i32_1 = arith.constant 0 : i32
    return %c0_i32, %c0_i32_0 : i32, i32
  }
  func.func @transform_9(%arg0: i32, %arg1: i32) -> (i32, i32) {
    %c0_i32 = arith.constant 0 : i32
    %c0_i32_0 = arith.constant 0 : i32
    %c0_i32_1 = arith.constant 0 : i32
    return %c0_i32, %c0_i32_0 : i32, i32
  }
  func.func @transform_10(%arg0: i32, %arg1: i32) -> (i32, i32) {
    %c0_i32 = arith.constant 0 : i32
    %c0_i32_0 = arith.constant 0 : i32
    %c0_i32_1 = arith.constant 0 : i32
    return %c0_i32, %c0_i32_0 : i32, i32
  }
  func.func @transform_11(%arg0: i32, %arg1: i32) -> (i32, i32) {
    %c0_i32 = arith.constant 0 : i32
    %c0_i32_0 = arith.constant 0 : i32
    %c0_i32_1 = arith.constant 0 : i32
    return %c0_i32, %c0_i32_0 : i32, i32
  }
  func.func @transform_12(%arg0: i32, %arg1: i32) -> (i32, i32) {
    %c0_i32 = arith.constant 0 : i32
    %c0_i32_0 = arith.constant 0 : i32
    %c0_i32_1 = arith.constant 0 : i32
    return %c0_i32, %c0_i32_0 : i32, i32
  }
  func.func @transform_13(%arg0: i32, %arg1: i32) -> (i32, i32) {
    %c0_i32 = arith.constant 0 : i32
    %c0_i32_0 = arith.constant 0 : i32
    %c0_i32_1 = arith.constant 0 : i32
    return %c0_i32, %c0_i32_0 : i32, i32
  }
  func.func @transform_14(%arg0: i32, %arg1: i32) -> (i32, i32) {
    %c0_i32 = arith.constant 0 : i32
    %c0_i32_0 = arith.constant 0 : i32
    %c0_i32_1 = arith.constant 0 : i32
    return %c0_i32, %c0_i32_0 : i32, i32
  }
  func.func @transform_15(%arg0: i32, %arg1: i32) -> (i32, i32, i32) {
    %c0_i32 = arith.constant 0 : i32
    %c0_i32_0 = arith.constant 0 : i32
    return %arg0, %c0_i32, %arg1 : i32, i32, i32
  }
}

</mosaic_0001>

<llo_original>
// kernel: neck_forward.1
$region0: #{neck_forward.1}
  #allocation0 [shape = 'u32[]', space=smem, size = 0x4, offset = 0x4, fixed_abs, tag = 'smem constant byte address 0x4 - core index']
  #allocation1 [shape = 'u32[144,128]{1,0:T(1,128)}', space=vmem, size = 0x12000, scoped, tag = 'internal scratch']
  #allocation2 [shape = 'f32[2,192,32]{2,1,0:T(8,128)}', space=vmem, size = 0x30000, scoped, tag = 'scratch operand']
  #allocation3 [shape = 'f32[2,192,8]{2,1,0:T(8,128)}', space=vmem, size = 0x30000, scoped, tag = 'scratch operand']
  #allocation4 [shape = 'f32[2,192,2]{2,1,0:T(8,128)}', space=vmem, size = 0x30000, scoped, tag = 'scratch operand']
  %s0 = inlined_call_operand.vmem [shape: f32[2,128,256], index: 0, kind: input, shape index: {}]
  %s1 = inlined_call_operand.vmem [shape: f32[2,256,64], index: 1, kind: input, shape index: {}]
  %s2 = inlined_call_operand.vmem [shape: f32[2,512,16], index: 2, kind: input, shape index: {}]
  %s3 = inlined_call_operand.vmem [shape: f32[2,1024,4], index: 3, kind: input, shape index: {}]
  %s4 = inlined_call_operand.vmem [shape: f32[192,128], index: 4, kind: input, shape index: {}]
  %s5 = inlined_call_operand.vmem [shape: f32[192,256], index: 5, kind: input, shape index: {}]
  %s6 = inlined_call_operand.vmem [shape: f32[192,512], index: 6, kind: input, shape index: {}]
  %s7 = inlined_call_operand.vmem [shape: f32[192,1024], index: 7, kind: input, shape index: {}]
  %s8 = inlined_call_operand.vmem [shape: f32[192,1], index: 8, kind: input, shape index: {}]
  %s9 = inlined_call_operand.vmem [shape: f32[192,1], index: 9, kind: input, shape index: {}]
  %s10 = inlined_call_operand.vmem [shape: f32[192,1], index: 10, kind: input, shape index: {}]
  %s11 = inlined_call_operand.vmem [shape: f32[192,1], index: 11, kind: input, shape index: {}]
  %s12 = inlined_call_operand.vmem [shape: f32[8,16], index: 12, kind: input, shape index: {}]
  %s13 = inlined_call_operand.vmem [shape: f32[4,16], index: 13, kind: input, shape index: {}]
  %s14 = inlined_call_operand.vmem [shape: f32[2,16], index: 14, kind: input, shape index: {}]
  %s15 = inlined_call_operand.vmem [shape: f32[2,768,256], index: 15, kind: output, shape index: {}]
  %s16 = sld [smem:[#allocation0]]
  $region177: #{neck_forward.1} parent=0
    _
  %s18 = ssub.s32 1, %s16
  %s19 = scalar_select 0, %s18, %s16
  $region1: #{neck_forward.1} parent=0
    #allocation5 [shape = 'u8[131072]{0}', space=vmem, size = 0x20000, scoped, tag = 'input window, operand 0']
    #allocation6 [shape = 'u8[786432]{0}', space=vmem, size = 0xc0000, scoped, tag = 'output window, operand 0']
    loop: start=0, step=1, limit=6
    $region2: #{neck_forward.1} parent=1 // loop_pre_header
      _
    $region3: #{neck_forward.1} parent=1 // loop_header
      %s21 = sphi 0, %s25
      %p22 = scmp.ge.s32.totalorder %s21, 6
      %s28 = sphi 0, %s40
      %s29 = sphi 0, %s36
      %s30 = sphi 0, %s28
      %s31 = sphi 0, %s29
      %s32 = sphi 0, %s30
      %s33 = sphi 0, %s31
      %s45 = sphi 0, %s47
      %s48 = sphi 0, %s45
      %s49 = sphi 0, %s48
      %s65 = sphi 0, %s49
      %s71 = sphi 0, %s73
      %s74 = sphi 0, %s71
      %s75 = sphi 0, %s74
      %s91 = sphi 0, %s75
      %s97 = sphi 0, %s99
      %s100 = sphi 0, %s97
      %s101 = sphi 0, %s100
      %s117 = sphi 0, %s101
      %s123 = sphi 0, %s125
      %s126 = sphi 0, %s123
      %s127 = sphi 0, %s126
      %s143 = sphi 0, %s127
      %s147 = sphi 0, %s147
      %s149 = sphi 0, %s147
      %s150 = sphi 0, %s149
      %s164 = sphi 0, %s150
      %s168 = sphi 0, %s168
      %s170 = sphi 0, %s168
      %s171 = sphi 0, %s170
      %s185 = sphi 0, %s171
      %s189 = sphi 0, %s189
      %s191 = sphi 0, %s189
      %s192 = sphi 0, %s191
      %s206 = sphi 0, %s192
      %s210 = sphi 0, %s210
      %s212 = sphi 0, %s210
      %s213 = sphi 0, %s212
      %s227 = sphi 0, %s213
      %s231 = sphi 0, %s231
      %s233 = sphi 0, %s231
      %s234 = sphi 0, %s233
      %s248 = sphi 0, %s234
      %s252 = sphi 0, %s252
      %s254 = sphi 0, %s252
      %s255 = sphi 0, %s254
      %s269 = sphi 0, %s255
      %s273 = sphi 0, %s273
      %s275 = sphi 0, %s273
      %s276 = sphi 0, %s275
      %s290 = sphi 0, %s276
      %s294 = sphi 0, %s294
      %s296 = sphi 0, %s294
      %s297 = sphi 0, %s296
      %s311 = sphi 0, %s297
      %s315 = sphi 0, %s315
      %s317 = sphi 0, %s315
      %s318 = sphi 0, %s317
      %s332 = sphi 0, %s318
      %s336 = sphi 0, %s336
      %s338 = sphi 0, %s336
      %s339 = sphi 0, %s338
      %s353 = sphi 0, %s339
      %s357 = sphi 0, %s357
      %s359 = sphi 0, %s357
      %s360 = sphi 0, %s359
      %s374 = sphi 0, %s360
      %s382 = sphi 0, %s384
      %s385 = sphi 0, %s382
      %s386 = sphi 0, %s385
      %s402 = sphi 0, %s386
    $region4: #{neck_forward.1} parent=1 // loop_header_branch
      %24 = sbr.rel (%p22) target = $region8
    $region5: #{neck_forward.1} parent=1 // loop_body
      %s26 = ssub.s32 %s21, 1
      %s27 = ssub.s32 %s21, 2
      %s34 = sadd.s32 1, %s29
      %p35 = scmp.ge.s32.totalorder %s34, 2
      %s36 = scalar_select %p35, 0, %s34
      %s37 = sadd.s32 1, %s28
      %s38 = scalar_select %p35, %s37, %s28
      %p39 = scmp.ge.s32.totalorder %s38, 2
      %s40 = scalar_select %p39, 0, %s38
      %s41 = ssub.s32 %s28, %s40
      %s42 = ssub.s32 %s29, %s36
      %s43 = sor.u32 %s41, %s42
      %p44 = scmp.eq.s32.totalorder %s43, 0
      %s46 = sadd.s32 %s45, 1
      %s47 = scalar_select %p44, %s45, %s46
      %p50 = pneg %p44
      %p51 = scmp.eq.s32.totalorder %s21, 3
      %p52 = por %p50, %p51
      %p53 = scmp.ne.s32.totalorder %s45, %s48
      %p54 = scmp.eq.s32.totalorder %s21, 0
      %p55 = por %p53, %p54
      %p56 = scmp.ne.s32.totalorder %s45, %s48
      %p57 = scmp.eq.s32.totalorder %s26, 3
      %p58 = por %p56, %p57
      %p59 = scmp.ne.s32.totalorder %s48, %s49
      %p60 = scmp.eq.s32.totalorder %s26, 0
      %p61 = por %p59, %p60
      %p62 = scmp.ne.s32.totalorder %s48, %s49
      %p63 = scmp.eq.s32.totalorder %s27, 3
      %p64 = por %p62, %p63
      %p66 = scmp.ne.s32.totalorder %s49, %s65
      %p67 = scmp.eq.s32.totalorder %s27, 0
      %p68 = por %p66, %p67
      %s69 = ssub.s32 %s28, %s40
      %p70 = scmp.eq.s32.totalorder %s69, 0
      %s72 = sadd.s32 %s71, 1
      %s73 = scalar_select %p70, %s71, %s72
      %p76 = pneg %p70
      %p77 = scmp.eq.s32.totalorder %s21, 3
      %p78 = por %p76, %p77
      %p79 = scmp.ne.s32.totalorder %s71, %s74
      %p80 = scmp.eq.s32.totalorder %s21, 0
      %p81 = por %p79, %p80
      %p82 = scmp.ne.s32.totalorder %s71, %s74
      %p83 = scmp.eq.s32.totalorder %s26, 3
      %p84 = por %p82, %p83
      %p85 = scmp.ne.s32.totalorder %s74, %s75
      %p86 = scmp.eq.s32.totalorder %s26, 0
      %p87 = por %p85, %p86
      %p88 = scmp.ne.s32.totalorder %s74, %s75
      %p89 = scmp.eq.s32.totalorder %s27, 3
      %p90 = por %p88, %p89
      %p92 = scmp.ne.s32.totalorder %s75, %s91
      %p93 = scmp.eq.s32.totalorder %s27, 0
      %p94 = por %p92, %p93
      %s95 = ssub.s32 %s28, %s40
      %p96 = scmp.eq.s32.totalorder %s95, 0
      %s98 = sadd.s32 %s97, 1
      %s99 = scalar_select %p96, %s97, %s98
      %p102 = pneg %p96
      %p103 = scmp.eq.s32.totalorder %s21, 3
      %p104 = por %p102, %p103
      %p105 = scmp.ne.s32.totalorder %s97, %s100
      %p106 = scmp.eq.s32.totalorder %s21, 0
      %p107 = por %p105, %p106
      %p108 = scmp.ne.s32.totalorder %s97, %s100
      %p109 = scmp.eq.s32.totalorder %s26, 3
      %p110 = por %p108, %p109
      %p111 = scmp.ne.s32.totalorder %s100, %s101
      %p112 = scmp.eq.s32.totalorder %s26, 0
      %p113 = por %p111, %p112
      %p114 = scmp.ne.s32.totalorder %s100, %s101
      %p115 = scmp.eq.s32.totalorder %s27, 3
      %p116 = por %p114, %p115
      %p118 = scmp.ne.s32.totalorder %s101, %s117
      %p119 = scmp.eq.s32.totalorder %s27, 0
      %p120 = por %p118, %p119
      %s121 = ssub.s32 %s28, %s40
      %p122 = scmp.eq.s32.totalorder %s121, 0
      %s124 = sadd.s32 %s123, 1
      %s125 = scalar_select %p122, %s123, %s124
      %p128 = pneg %p122
      %p129 = scmp.eq.s32.totalorder %s21, 3
      %p130 = por %p128, %p129
      %p131 = scmp.ne.s32.totalorder %s123, %s126
      %p132 = scmp.eq.s32.totalorder %s21, 0
      %p133 = por %p131, %p132
      %p134 = scmp.ne.s32.totalorder %s123, %s126
      %p135 = scmp.eq.s32.totalorder %s26, 3
      %p136 = por %p134, %p135
      %p137 = scmp.ne.s32.totalorder %s126, %s127
      %p138 = scmp.eq.s32.totalorder %s26, 0
      %p139 = por %p137, %p138
      %p140 = scmp.ne.s32.totalorder %s126, %s127
      %p141 = scmp.eq.s32.totalorder %s27, 3
      %p142 = por %p140, %p141
      %p144 = scmp.ne.s32.totalorder %s127, %s143
      %p145 = scmp.eq.s32.totalorder %s27, 0
      %p146 = por %p144, %p145
      %s148 = sadd.s32 %s147, 1
      %p151 = scmp.eq.s32.totalorder %s21, 3
      %p152 = scmp.ne.s32.totalorder %s147, %s149
      %p153 = scmp.eq.s32.totalorder %s21, 0
      %p154 = por %p152, %p153
      %p155 = scmp.ne.s32.totalorder %s147, %s149
      %p156 = scmp.eq.s32.totalorder %s26, 3
      %p157 = por %p155, %p156
      %p158 = scmp.ne.s32.totalorder %s149, %s150
      %p159 = scmp.eq.s32.totalorder %s26, 0
      %p160 = por %p158, %p159
      %p161 = scmp.ne.s32.totalorder %s149, %s150
      %p162 = scmp.eq.s32.totalorder %s27, 3
      %p163 = por %p161, %p162
      %p165 = scmp.ne.s32.totalorder %s150, %s164
      %p166 = scmp.eq.s32.totalorder %s27, 0
      %p167 = por %p165, %p166
      %s169 = sadd.s32 %s168, 1
      %p172 = scmp.eq.s32.totalorder %s21, 3
      %p173 = scmp.ne.s32.totalorder %s168, %s170
      %p174 = scmp.eq.s32.totalorder %s21, 0
      %p175 = por %p173, %p174
      %p176 = scmp.ne.s32.totalorder %s168, %s170
      %p177 = scmp.eq.s32.totalorder %s26, 3
      %p178 = por %p176, %p177
      %p179 = scmp.ne.s32.totalorder %s170, %s171
      %p180 = scmp.eq.s32.totalorder %s26, 0
      %p181 = por %p179, %p180
      %p182 = scmp.ne.s32.totalorder %s170, %s171
      %p183 = scmp.eq.s32.totalorder %s27, 3
      %p184 = por %p182, %p183
      %p186 = scmp.ne.s32.totalorder %s171, %s185
      %p187 = scmp.eq.s32.totalorder %s27, 0
      %p188 = por %p186, %p187
      %s190 = sadd.s32 %s189, 1
      %p193 = scmp.eq.s32.totalorder %s21, 3
      %p194 = scmp.ne.s32.totalorder %s189, %s191
      %p195 = scmp.eq.s32.totalorder %s21, 0
      %p196 = por %p194, %p195
      %p197 = scmp.ne.s32.totalorder %s189, %s191
      %p198 = scmp.eq.s32.totalorder %s26, 3
      %p199 = por %p197, %p198
      %p200 = scmp.ne.s32.totalorder %s191, %s192
      %p201 = scmp.eq.s32.totalorder %s26, 0
      %p202 = por %p200, %p201
      %p203 = scmp.ne.s32.totalorder %s191, %s192
      %p204 = scmp.eq.s32.totalorder %s27, 3
      %p205 = por %p203, %p204
      %p207 = scmp.ne.s32.totalorder %s192, %s206
      %p208 = scmp.eq.s32.totalorder %s27, 0
      %p209 = por %p207, %p208
      %s211 = sadd.s32 %s210, 1
      %p214 = scmp.eq.s32.totalorder %s21, 3
      %p215 = scmp.ne.s32.totalorder %s210, %s212
      %p216 = scmp.eq.s32.totalorder %s21, 0
      %p217 = por %p215, %p216
      %p218 = scmp.ne.s32.totalorder %s210, %s212
      %p219 = scmp.eq.s32.totalorder %s26, 3
      %p220 = por %p218, %p219
      %p221 = scmp.ne.s32.totalorder %s212, %s213
      %p222 = scmp.eq.s32.totalorder %s26, 0
      %p223 = por %p221, %p222
      %p224 = scmp.ne.s32.totalorder %s212, %s213
      %p225 = scmp.eq.s32.totalorder %s27, 3
      %p226 = por %p224, %p225
      %p228 = scmp.ne.s32.totalorder %s213, %s227
      %p229 = scmp.eq.s32.totalorder %s27, 0
      %p230 = por %p228, %p229
      %s232 = sadd.s32 %s231, 1
      %p235 = scmp.eq.s32.totalorder %s21, 3
      %p236 = scmp.ne.s32.totalorder %s231, %s233
      %p237 = scmp.eq.s32.totalorder %s21, 0
      %p238 = por %p236, %p237
      %p239 = scmp.ne.s32.totalorder %s231, %s233
      %p240 = scmp.eq.s32.totalorder %s26, 3
      %p241 = por %p239, %p240
      %p242 = scmp.ne.s32.totalorder %s233, %s234
      %p243 = scmp.eq.s32.totalorder %s26, 0
      %p244 = por %p242, %p243
      %p245 = scmp.ne.s32.totalorder %s233, %s234
      %p246 = scmp.eq.s32.totalorder %s27, 3
      %p247 = por %p245, %p246
      %p249 = scmp.ne.s32.totalorder %s234, %s248
      %p250 = scmp.eq.s32.totalorder %s27, 0
      %p251 = por %p249, %p250
      %s253 = sadd.s32 %s252, 1
      %p256 = scmp.eq.s32.totalorder %s21, 3
      %p257 = scmp.ne.s32.totalorder %s252, %s254
      %p258 = scmp.eq.s32.totalorder %s21, 0
      %p259 = por %p257, %p258
      %p260 = scmp.ne.s32.totalorder %s252, %s254
      %p261 = scmp.eq.s32.totalorder %s26, 3
      %p262 = por %p260, %p261
      %p263 = scmp.ne.s32.totalorder %s254, %s255
      %p264 = scmp.eq.s32.totalorder %s26, 0
      %p265 = por %p263, %p264
      %p266 = scmp.ne.s32.totalorder %s254, %s255
      %p267 = scmp.eq.s32.totalorder %s27, 3
      %p268 = por %p266, %p267
      %p270 = scmp.ne.s32.totalorder %s255, %s269
      %p271 = scmp.eq.s32.totalorder %s27, 0
      %p272 = por %p270, %p271
      %s274 = sadd.s32 %s273, 1
      %p277 = scmp.eq.s32.totalorder %s21, 3
      %p278 = scmp.ne.s32.totalorder %s273, %s275
      %p279 = scmp.eq.s32.totalorder %s21, 0
      %p280 = por %p278, %p279
      %p281 = scmp.ne.s32.totalorder %s273, %s275
      %p282 = scmp.eq.s32.totalorder %s26, 3
      %p283 = por %p281, %p282
      %p284 = scmp.ne.s32.totalorder %s275, %s276
      %p285 = scmp.eq.s32.totalorder %s26, 0
      %p286 = por %p284, %p285
      %p287 = scmp.ne.s32.totalorder %s275, %s276
      %p288 = scmp.eq.s32.totalorder %s27, 3
      %p289 = por %p287, %p288
      %p291 = scmp.ne.s32.totalorder %s276, %s290
      %p292 = scmp.eq.s32.totalorder %s27, 0
      %p293 = por %p291, %p292
      %s295 = sadd.s32 %s294, 1
      %p298 = scmp.eq.s32.totalorder %s21, 3
      %p299 = scmp.ne.s32.totalorder %s294, %s296
      %p300 = scmp.eq.s32.totalorder %s21, 0
      %p301 = por %p299, %p300
      %p302 = scmp.ne.s32.totalorder %s294, %s296
      %p303 = scmp.eq.s32.totalorder %s26, 3
      %p304 = por %p302, %p303
      %p305 = scmp.ne.s32.totalorder %s296, %s297
      %p306 = scmp.eq.s32.totalorder %s26, 0
      %p307 = por %p305, %p306
      %p308 = scmp.ne.s32.totalorder %s296, %s297
      %p309 = scmp.eq.s32.totalorder %s27, 3
      %p310 = por %p308, %p309
      %p312 = scmp.ne.s32.totalorder %s297, %s311
      %p313 = scmp.eq.s32.totalorder %s27, 0
      %p314 = por %p312, %p313
      %s316 = sadd.s32 %s315, 1
      %p319 = scmp.eq.s32.totalorder %s21, 3
      %p320 = scmp.ne.s32.totalorder %s315, %s317
      %p321 = scmp.eq.s32.totalorder %s21, 0
      %p322 = por %p320, %p321
      %p323 = scmp.ne.s32.totalorder %s315, %s317
      %p324 = scmp.eq.s32.totalorder %s26, 3
      %p325 = por %p323, %p324
      %p326 = scmp.ne.s32.totalorder %s317, %s318
      %p327 = scmp.eq.s32.totalorder %s26, 0
      %p328 = por %p326, %p327
      %p329 = scmp.ne.s32.totalorder %s317, %s318
      %p330 = scmp.eq.s32.totalorder %s27, 3
      %p331 = por %p329, %p330
      %p333 = scmp.ne.s32.totalorder %s318, %s332
      %p334 = scmp.eq.s32.totalorder %s27, 0
      %p335 = por %p333, %p334
      %s337 = sadd.s32 %s336, 1
      %p340 = scmp.eq.s32.totalorder %s21, 3
      %p341 = scmp.ne.s32.totalorder %s336, %s338
      %p342 = scmp.eq.s32.totalorder %s21, 0
      %p343 = por %p341, %p342
      %p344 = scmp.ne.s32.totalorder %s336, %s338
      %p345 = scmp.eq.s32.totalorder %s26, 3
      %p346 = por %p344, %p345
      %p347 = scmp.ne.s32.totalorder %s338, %s339
      %p348 = scmp.eq.s32.totalorder %s26, 0
      %p349 = por %p347, %p348
      %p350 = scmp.ne.s32.totalorder %s338, %s339
      %p351 = scmp.eq.s32.totalorder %s27, 3
      %p352 = por %p350, %p351
      %p354 = scmp.ne.s32.totalorder %s339, %s353
      %p355 = scmp.eq.s32.totalorder %s27, 0
      %p356 = por %p354, %p355
      %s358 = sadd.s32 %s357, 1
      %p361 = scmp.eq.s32.totalorder %s21, 3
      %p362 = scmp.ne.s32.totalorder %s357, %s359
      %p363 = scmp.eq.s32.totalorder %s21, 0
      %p364 = por %p362, %p363
      %p365 = scmp.ne.s32.totalorder %s357, %s359
      %p366 = scmp.eq.s32.totalorder %s26, 3
      %p367 = por %p365, %p366
      %p368 = scmp.ne.s32.totalorder %s359, %s360
      %p369 = scmp.eq.s32.totalorder %s26, 0
      %p370 = por %p368, %p369
      %p371 = scmp.ne.s32.totalorder %s359, %s360
      %p372 = scmp.eq.s32.totalorder %s27, 3
      %p373 = por %p371, %p372
      %p375 = scmp.ne.s32.totalorder %s360, %s374
      %p376 = scmp.eq.s32.totalorder %s27, 0
      %p377 = por %p375, %p376
      %s378 = ssub.s32 %s28, %s40
      %s379 = ssub.s32 %s29, %s36
      %s380 = sor.u32 %s378, %s379
      %p381 = scmp.eq.s32.totalorder %s380, 0
      %s383 = sadd.s32 %s382, 1
      %s384 = scalar_select %p381, %s382, %s383
      %p387 = pneg %p381
      %p388 = scmp.eq.s32.totalorder %s21, 3
      %p389 = por %p387, %p388
      %p390 = scmp.ne.s32.totalorder %s382, %s385
      %p391 = scmp.eq.s32.totalorder %s21, 0
      %p392 = por %p390, %p391
      %p393 = scmp.ne.s32.totalorder %s382, %s385
      %p394 = scmp.eq.s32.totalorder %s26, 3
      %p395 = por %p393, %p394
      %p396 = scmp.ne.s32.totalorder %s385, %s386
      %p397 = scmp.eq.s32.totalorder %s26, 0
      %p398 = por %p396, %p397
      %p399 = scmp.ne.s32.totalorder %s385, %s386
      %p400 = scmp.eq.s32.totalorder %s27, 3
      %p401 = por %p399, %p400
      %p403 = scmp.ne.s32.totalorder %s386, %s402
      %p404 = scmp.eq.s32.totalorder %s27, 0
      %p405 = por %p403, %p404
      %p406 = scmp.le.s32.totalorder 1, %s21
      %p407 = scmp.lt.s32.totalorder %s21, 5
      %p408 = pnand %p406, %p407
      %p409 = pneg %p408
      // Predicated region
      $region9: #{neck_forward.1} parent=5 // pred_check
        _
      $region10: #{neck_forward.1} parent=5 // pred_check_branch
        %411 = sbr.rel (%p408) target = $region12
      $region11: #{neck_forward.1} parent=5 // pred_region
        %s412 = ssub.s32 %s21, 1
        // Predicated region
        $region13: #{neck_forward.1} parent=11 // pred_check
          %p413 = pneg %p160
        $region14: #{neck_forward.1} parent=11 // pred_check_branch
          %415 = sbr.rel (%p413) target = $region16
        $region15: #{neck_forward.1} parent=11 // pred_region
          _
        $region16: #{neck_forward.1} parent=11 // pred_fallthru
          _
        // Predicated region
        $region17: #{neck_forward.1} parent=11 // pred_check
          %p416 = pneg %p181
        $region18: #{neck_forward.1} parent=11 // pred_check_branch
          %418 = sbr.rel (%p416) target = $region20
        $region19: #{neck_forward.1} parent=11 // pred_region
          _
        $region20: #{neck_forward.1} parent=11 // pred_fallthru
          _
        // Predicated region
        $region21: #{neck_forward.1} parent=11 // pred_check
          %p419 = pneg %p202
        $region22: #{neck_forward.1} parent=11 // pred_check_branch
          %421 = sbr.rel (%p419) target = $region24
        $region23: #{neck_forward.1} parent=11 // pred_region
          _
        $region24: #{neck_forward.1} parent=11 // pred_fallthru
          _
        // Predicated region
        $region25: #{neck_forward.1} parent=11 // pred_check
          %p422 = pneg %p223
        $region26: #{neck_forward.1} parent=11 // pred_check_branch
          %424 = sbr.rel (%p422) target = $region28
        $region27: #{neck_forward.1} parent=11 // pred_region
          _
        $region28: #{neck_forward.1} parent=11 // pred_fallthru
          _
        // Predicated region
        $region29: #{neck_forward.1} parent=11 // pred_check
          %p425 = pneg %p244
        $region30: #{neck_forward.1} parent=11 // pred_check_branch
          %427 = sbr.rel (%p425) target = $region32
        $region31: #{neck_forward.1} parent=11 // pred_region
          _
        $region32: #{neck_forward.1} parent=11 // pred_fallthru
          _
        // Predicated region
        $region33: #{neck_forward.1} parent=11 // pred_check
          %p428 = pneg %p265
        $region34: #{neck_forward.1} parent=11 // pred_check_branch
          %430 = sbr.rel (%p428) target = $region36
        $region35: #{neck_forward.1} parent=11 // pred_region
          _
        $region36: #{neck_forward.1} parent=11 // pred_fallthru
          _
        // Predicated region
        $region37: #{neck_forward.1} parent=11 // pred_check
          %p431 = pneg %p286
        $region38: #{neck_forward.1} parent=11 // pred_check_branch
          %433 = sbr.rel (%p431) target = $region40
        $region39: #{neck_forward.1} parent=11 // pred_region
          _
        $region40: #{neck_forward.1} parent=11 // pred_fallthru
          _
        // Predicated region
        $region41: #{neck_forward.1} parent=11 // pred_check
          %p434 = pneg %p307
        $region42: #{neck_forward.1} parent=11 // pred_check_branch
          %436 = sbr.rel (%p434) target = $region44
        $region43: #{neck_forward.1} parent=11 // pred_region
          _
        $region44: #{neck_forward.1} parent=11 // pred_fallthru
          _
        // Predicated region
        $region45: #{neck_forward.1} parent=11 // pred_check
          %p437 = pneg %p328
        $region46: #{neck_forward.1} parent=11 // pred_check_branch
          %439 = sbr.rel (%p437) target = $region48
        $region47: #{neck_forward.1} parent=11 // pred_region
          _
        $region48: #{neck_forward.1} parent=11 // pred_fallthru
          _
        // Predicated region
        $region49: #{neck_forward.1} parent=11 // pred_check
          %p440 = pneg %p349
        $region50: #{neck_forward.1} parent=11 // pred_check_branch
          %442 = sbr.rel (%p440) target = $region52
        $region51: #{neck_forward.1} parent=11 // pred_region
          _
        $region52: #{neck_forward.1} parent=11 // pred_fallthru
          _
        // Predicated region
        $region53: #{neck_forward.1} parent=11 // pred_check
          %p443 = pneg %p370
        $region54: #{neck_forward.1} parent=11 // pred_check_branch
          %445 = sbr.rel (%p443) target = $region56
        $region55: #{neck_forward.1} parent=11 // pred_region
          _
        $region56: #{neck_forward.1} parent=11 // pred_fallthru
          _
      $region12: #{neck_forward.1} parent=5 // pred_fallthru
        _
      %p446 = scmp.lt.s32.totalorder %s21, 4
      // Predicated region
      $region57: #{neck_forward.1} parent=5 // pred_check
        %p447 = pneg %p446
      $region58: #{neck_forward.1} parent=5 // pred_check_branch
        %449 = sbr.rel (%p447) target = $region60
      $region59: #{neck_forward.1} parent=5 // pred_region
        // Predicated region
        $region61: #{neck_forward.1} parent=59 // pred_check
          %p450 = pneg %p55
        $region62: #{neck_forward.1} parent=59 // pred_check_branch
          %452 = sbr.rel (%p450) target = $region64
        $region63: #{neck_forward.1} parent=59 // pred_region
          %s453 = sand.u32 %s45, 1
          %s454 = sand.u32 %s45, 1
          %s455 = smul.addr %s454, 128
          %s456 = scalar_lea.vmem [#allocation5], %s455
          %s457 = smul.addr %s28, 32
          %s458 = sadd.s32 %s29, %s457
          %s459 = smul.addr %s458, 8
          %s460 = scalar_lea.vmem %s0, %s459
          // Predicated region
          $region65: #{neck_forward.1} parent=63 // pred_check
            _
          $region66: #{neck_forward.1} parent=63 // pred_check_branch
            %462 = sbr.rel (0) target = $region68
          $region67: #{neck_forward.1} parent=63 // pred_region
            // Predicated region
            $region69: #{neck_forward.1} parent=67 // pred_check
              _
            $region70: #{neck_forward.1} parent=67 // pred_check_branch
              %464 = sbr.rel (0) target = $region72
            $region71: #{neck_forward.1} parent=67 // pred_region
              // Predicated region
              $region84: #{neck_forward.1} parent=71 // pred_check
                _
              $region85: #{neck_forward.1} parent=71 // pred_check_branch
                %509 = sbr.rel (0) target = $region87
              $region86: #{neck_forward.1} parent=71 // pred_region
                loop: start=0, step=1, limit=1
                $region88: #{neck_forward.1} parent=86 // loop_pre_header
                  _
                $region89: #{neck_forward.1} parent=86 // loop_header
                  %s511 = sphi 0, %s515
                  %p512 = scmp.ge.s32.totalorder %s511, 1
                  %s516 = sphi %s460, %s460
                  %s517 = sphi %s456, %s456
                $region90: #{neck_forward.1} parent=86 // loop_header_branch
                  %514 = sbr.rel (%p512) target = $region94
                $region91: #{neck_forward.1} parent=86 // loop_body
                  %v518 = vld [vmem:[%s516] sm:$0xff]
                  %519 = vst [vmem:[%s517] sm:$0xff] %v518
                  %v520 = vld [vmem:[%s516 + $0x10] sm:$0xff]
                  %521 = vst [vmem:[%s517 + $0x8] sm:$0xff] %v520
                  %v522 = vld [vmem:[%s516 + $0x20] sm:$0xff]
                  %523 = vst [vmem:[%s517 + $0x10] sm:$0xff] %v522
                  %v524 = vld [vmem:[%s516 + $0x30] sm:$0xff]
                  %525 = vst [vmem:[%s517 + $0x18] sm:$0xff] %v524
                  %v526 = vld [vmem:[%s516 + $0x40] sm:$0xff]
                  %527 = vst [vmem:[%s517 + $0x20] sm:$0xff] %v526
                  %v528 = vld [vmem:[%s516 + $0x50] sm:$0xff]
                  %529 = vst [vmem:[%s517 + $0x28] sm:$0xff] %v528
                  %v530 = vld [vmem:[%s516 + $0x60] sm:$0xff]
                  %531 = vst [vmem:[%s517 + $0x30] sm:$0xff] %v530
                  %v532 = vld [vmem:[%s516 + $0x70] sm:$0xff]
                  %533 = vst [vmem:[%s517 + $0x38] sm:$0xff] %v532
                  %v534 = vld [vmem:[%s516 + $0x80] sm:$0xff]
                  %535 = vst [vmem:[%s517 + $0x40] sm:$0xff] %v534
                  %v536 = vld [vmem:[%s516 + $0x90] sm:$0xff]
                  %537 = vst [vmem:[%s517 + $0x48] sm:$0xff] %v536
                  %v538 = vld [vmem:[%s516 + $0xa0] sm:$0xff]
                  %539 = vst [vmem:[%s517 + $0x50] sm:$0xff] %v538
                  %v540 = vld [vmem:[%s516 + $0xb0] sm:$0xff]
                  %541 = vst [vmem:[%s517 + $0x58] sm:$0xff] %v540
                  %v542 = vld [vmem:[%s516 + $0xc0] sm:$0xff]
                  %543 = vst [vmem:[%s517 + $0x60] sm:$0xff] %v542
                  %v544 = vld [vmem:[%s516 + $0xd0] sm:$0xff]
                  %545 = vst [vmem:[%s517 + $0x68] sm:$0xff] %v544
                  %v546 = vld [vmem:[%s516 + $0xe0] sm:$0xff]
                  %547 = vst [vmem:[%s517 + $0x70] sm:$0xff] %v546
                  %v548 = vld [vmem:[%s516 + $0xf0] sm:$0xff]
                  %549 = vst [vmem:[%s517 + $0x78] sm:$0xff] %v548
                $region92: #{neck_forward.1} parent=86 // loop_footer
                  %s515 = sadd.s32 1, %s511
                $region93: #{neck_forward.1} parent=86 // loop_footer_branch
                  %510 = sbr.rel target = $region89
                $region94: #{neck_forward.1} parent=86 // loop_exit
                  _
              $region87: #{neck_forward.1} parent=71 // pred_fallthru
                _
              // Predicated region
              $region95: #{neck_forward.1} parent=71 // pred_check
                _
              $region96: #{neck_forward.1} parent=71 // pred_check_branch
                %551 = sbr.rel target = $region98
              $region97: #{neck_forward.1} parent=71 // pred_region
                _
              $region98: #{neck_forward.1} parent=71 // pred_fallthru
                _
            $region72: #{neck_forward.1} parent=67 // pred_fallthru
              _
            // Predicated region
            $region73: #{neck_forward.1} parent=67 // pred_check
              _
            $region74: #{neck_forward.1} parent=67 // pred_check_branch
              %466 = sbr.rel target = $region76
            $region75: #{neck_forward.1} parent=67 // pred_region
              loop: start=0, step=1, limit=1
              $region77: #{neck_forward.1} parent=75 // loop_pre_header
                _
              $region78: #{neck_forward.1} parent=75 // loop_header
                %s469 = sphi 0, %s473
                %p470 = scmp.ge.s32.totalorder %s469, 1
                %s474 = sphi %s460, %s460
                %s475 = sphi %s456, %s456
              $region79: #{neck_forward.1} parent=75 // loop_header_branch
                %472 = sbr.rel (%p470) target = $region83
              $region80: #{neck_forward.1} parent=75 // loop_body
                %v476 = vld [vmem:[%s474] sm:$0xff]
                %477 = vst [vmem:[%s475] sm:$0xff] %v476
                %v478 = vld [vmem:[%s474 + $0x10] sm:$0xff]
                %479 = vst [vmem:[%s475 + $0x8] sm:$0xff] %v478
                %v480 = vld [vmem:[%s474 + $0x20] sm:$0xff]
                %481 = vst [vmem:[%s475 + $0x10] sm:$0xff] %v480
                %v482 = vld [vmem:[%s474 + $0x30] sm:$0xff]
                %483 = vst [vmem:[%s475 + $0x18] sm:$0xff] %v482
                %v484 = vld [vmem:[%s474 + $0x40] sm:$0xff]
                %485 = vst [vmem:[%s475 + $0x20] sm:$0xff] %v484
                %v486 = vld [vmem:[%s474 + $0x50] sm:$0xff]
                %487 = vst [vmem:[%s475 + $0x28] sm:$0xff] %v486
                %v488 = vld [vmem:[%s474 + $0x60] sm:$0xff]
                %489 = vst [vmem:[%s475 + $0x30] sm:$0xff] %v488
                %v490 = vld [vmem:[%s474 + $0x70] sm:$0xff]
                %491 = vst [vmem:[%s475 + $0x38] sm:$0xff] %v490
                %v492 = vld [vmem:[%s474 + $0x80] sm:$0xff]
                %493 = vst [vmem:[%s475 + $0x40] sm:$0xff] %v492
                %v494 = vld [vmem:[%s474 + $0x90] sm:$0xff]
                %495 = vst [vmem:[%s475 + $0x48] sm:$0xff] %v494
                %v496 = vld [vmem:[%s474 + $0xa0] sm:$0xff]
                %497 = vst [vmem:[%s475 + $0x50] sm:$0xff] %v496
                %v498 = vld [vmem:[%s474 + $0xb0] sm:$0xff]
                %499 = vst [vmem:[%s475 + $0x58] sm:$0xff] %v498
                %v500 = vld [vmem:[%s474 + $0xc0] sm:$0xff]
                %501 = vst [vmem:[%s475 + $0x60] sm:$0xff] %v500
                %v502 = vld [vmem:[%s474 + $0xd0] sm:$0xff]
                %503 = vst [vmem:[%s475 + $0x68] sm:$0xff] %v502
                %v504 = vld [vmem:[%s474 + $0xe0] sm:$0xff]
                %505 = vst [vmem:[%s475 + $0x70] sm:$0xff] %v504
                %v506 = vld [vmem:[%s474 + $0xf0] sm:$0xff]
                %507 = vst [vmem:[%s475 + $0x78] sm:$0xff] %v506
              $region81: #{neck_forward.1} parent=75 // loop_footer
                %s473 = sadd.s32 1, %s469
              $region82: #{neck_forward.1} parent=75 // loop_footer_branch
                %468 = sbr.rel target = $region78
              $region83: #{neck_forward.1} parent=75 // loop_exit
                _
            $region76: #{neck_forward.1} parent=67 // pred_fallthru
              _
          $region68: #{neck_forward.1} parent=63 // pred_fallthru
            _
          %552 = vnop
        $region64: #{neck_forward.1} parent=59 // pred_fallthru
          _
        // Predicated region
        $region99: #{neck_forward.1} parent=59 // pred_check
          %p553 = pneg %p81
        $region100: #{neck_forward.1} parent=59 // pred_check_branch
          %555 = sbr.rel (%p553) target = $region102
        $region101: #{neck_forward.1} parent=59 // pred_region
          %p556 = scmp.lt.s32.totalorder %s28, 1
          %s557 = scalar_select %p556, %s28, 1
          %s558 = smul.addr %s557, 32
          %s559 = smul.addr %s558, 8
          %s560 = scalar_lea.vmem %s1, %s559
        $region102: #{neck_forward.1} parent=59 // pred_fallthru
          _
        // Predicated region
        $region103: #{neck_forward.1} parent=59 // pred_check
          %p561 = pneg %p107
        $region104: #{neck_forward.1} parent=59 // pred_check_branch
          %563 = sbr.rel (%p561) target = $region106
        $region105: #{neck_forward.1} parent=59 // pred_region
          %p564 = scmp.lt.s32.totalorder %s28, 1
          %s565 = scalar_select %p564, %s28, 1
          %s566 = smul.addr %s565, 64
          %s567 = smul.addr %s566, 8
          %s568 = scalar_lea.vmem %s2, %s567
        $region106: #{neck_forward.1} parent=59 // pred_fallthru
          _
        // Predicated region
        $region107: #{neck_forward.1} parent=59 // pred_check
          %p569 = pneg %p133
        $region108: #{neck_forward.1} parent=59 // pred_check_branch
          %571 = sbr.rel (%p569) target = $region110
        $region109: #{neck_forward.1} parent=59 // pred_region
          %p572 = scmp.lt.s32.totalorder %s28, 1
          %s573 = scalar_select %p572, %s28, 1
          %s574 = smul.addr %s573, 128
          %s575 = smul.addr %s574, 8
          %s576 = scalar_lea.vmem %s3, %s575
        $region110: #{neck_forward.1} parent=59 // pred_fallthru
          _
      $region60: #{neck_forward.1} parent=5 // pred_fallthru
        _
      %p577 = scmp.le.s32.totalorder 1, %s21
      %p578 = scmp.lt.s32.totalorder %s21, 5
      %p579 = pnand %p577, %p578
      %p580 = pneg %p579
      // Predicated region
      $region111: #{neck_forward.1} parent=5 // pred_check
        _
      $region112: #{neck_forward.1} parent=5 // pred_check_branch
        %582 = sbr.rel (%p579) target = $region114
      $region113: #{neck_forward.1} parent=5 // pred_region
        %s583 = ssub.s32 %s21, 1
        %s584 = sand.u32 %s48, 1
        %s585 = sand.u32 %s48, 1
        %s586 = smul.addr %s585, 128
        %s587 = scalar_lea.vmem [#allocation5], %s586
        // Predicated region
        $region115: #{neck_forward.1} parent=113 // pred_check
          %p588 = pneg %p61
        $region116: #{neck_forward.1} parent=113 // pred_check_branch
          %590 = sbr.rel (%p588) target = $region118
        $region117: #{neck_forward.1} parent=113 // pred_region
          _
        $region118: #{neck_forward.1} parent=113 // pred_fallthru
          _
        %s591 = sand.u32 %s48, 1
        %s592 = sand.u32 %s48, 1
        %s593 = smul.addr %s592, 128
        %s594 = scalar_lea.vmem [#allocation5], %s593
        %p595 = pneg %p61
        %p596 = pneg %p58
        %p597 = scmp.lt.s32.totalorder %s30, 1
        %s598 = scalar_select %p597, %s30, 1
        %s599 = smul.addr %s598, 32
        %s600 = smul.addr %s599, 8
        %s601 = scalar_lea.vmem %s1, %s600
        %p602 = pneg %p87
        %p603 = pneg %p84
        %p604 = scmp.lt.s32.totalorder %s30, 1
        %s605 = scalar_select %p604, %s30, 1
        %s606 = smul.addr %s605, 64
        %s607 = smul.addr %s606, 8
        %s608 = scalar_lea.vmem %s2, %s607
        %p609 = pneg %p113
        %p610 = pneg %p110
        %p611 = scmp.lt.s32.totalorder %s30, 1
        %s612 = scalar_select %p611, %s30, 1
        %s613 = smul.addr %s612, 128
        %s614 = smul.addr %s613, 8
        %s615 = scalar_lea.vmem %s3, %s614
        %p616 = pneg %p139
        %p617 = pneg %p136
        %p618 = pneg %p160
        %p619 = pneg %p157
        %p620 = pneg %p181
        %p621 = pneg %p178
        %p622 = pneg %p202
        %p623 = pneg %p199
        %p624 = pneg %p223
        %p625 = pneg %p220
        %p626 = pneg %p244
        %p627 = pneg %p241
        %p628 = pneg %p265
        %p629 = pneg %p262
        %p630 = pneg %p286
        %p631 = pneg %p283
        %p632 = pneg %p307
        %p633 = pneg %p304
        %p634 = pneg %p328
        %p635 = pneg %p325
        %p636 = pneg %p349
        %p637 = pneg %p346
        %p638 = pneg %p370
        %p639 = pneg %p367
        %p640 = pneg %p398
        %p641 = pneg %p395
        %s642 = sand.u32 %s385, 1
        %s643 = sand.u32 %s385, 1
        %s644 = smul.addr %s643, 768
        %s645 = scalar_lea.vmem [#allocation6], %s644
        %p646 = scmp.lt.s32.totalorder %s30, 1
        %s647 = scalar_select %p646, %s30, 1
        %s648 = smul.addr %s647, 32
        %s649 = smul.addr %s648, 8
        %s650 = scalar_lea.vmem %s1, %s649
        %p651 = scmp.lt.s32.totalorder %s30, 1
        %s652 = scalar_select %p651, %s30, 1
        %s653 = smul.addr %s652, 64
        %s654 = smul.addr %s653, 8
        %s655 = scalar_lea.vmem %s2, %s654
        %p656 = scmp.lt.s32.totalorder %s30, 1
        %s657 = scalar_select %p656, %s30, 1
        %s658 = smul.addr %s657, 128
        %s659 = smul.addr %s658, 8
        %s660 = scalar_lea.vmem %s3, %s659
        %v661 = vld [vmem:[%s587] sm:$0xff]
        %v662 = vld [vmem:[%s587 + $0x8] sm:$0xff]
        %v663 = vld [vmem:[%s587 + $0x10] sm:$0xff]
        %v664 = vld [vmem:[%s587 + $0x18] sm:$0xff]
        %v665 = vld [vmem:[%s587 + $0x20] sm:$0xff]
        %v666 = vld [vmem:[%s587 + $0x28] sm:$0xff]
        %v667 = vld [vmem:[%s587 + $0x30] sm:$0xff]
        %v668 = vld [vmem:[%s587 + $0x38] sm:$0xff]
        %v669 = vld [vmem:[%s587 + $0x40] sm:$0xff]
        %v670 = vld [vmem:[%s587 + $0x48] sm:$0xff]
        %v671 = vld [vmem:[%s587 + $0x50] sm:$0xff]
        %v672 = vld [vmem:[%s587 + $0x58] sm:$0xff]
        %v673 = vld [vmem:[%s587 + $0x60] sm:$0xff]
        %v674 = vld [vmem:[%s587 + $0x68] sm:$0xff]
        %v675 = vld [vmem:[%s587 + $0x70] sm:$0xff]
        %v676 = vld [vmem:[%s587 + $0x78] sm:$0xff]
        %v677 = vld [vmem:[%s4] sm:$0xff]
        %v678 = vld [vmem:[%s4 + $0x8] sm:$0xff]
        %v679 = vld [vmem:[%s4 + $0x10] sm:$0xff]
        %v680 = vld [vmem:[%s4 + $0x18] sm:$0xff]
        %v681 = vld [vmem:[%s4 + $0x20] sm:$0xff]
        %v682 = vld [vmem:[%s4 + $0x28] sm:$0xff]
        %v683 = vld [vmem:[%s4 + $0x30] sm:$0xff]
        %v684 = vld [vmem:[%s4 + $0x38] sm:$0xff]
        %v685 = vld [vmem:[%s4 + $0x40] sm:$0xff]
        %v686 = vld [vmem:[%s4 + $0x48] sm:$0xff]
        %v687 = vld [vmem:[%s4 + $0x50] sm:$0xff]
        %v688 = vld [vmem:[%s4 + $0x58] sm:$0xff]
        %v689 = vld [vmem:[%s4 + $0x60] sm:$0xff]
        %v690 = vld [vmem:[%s4 + $0x68] sm:$0xff]
        %v691 = vld [vmem:[%s4 + $0x70] sm:$0xff]
        %v692 = vld [vmem:[%s4 + $0x78] sm:$0xff]
        %v693 = vld [vmem:[%s4 + $0x80] sm:$0xff]
        %v694 = vld [vmem:[%s4 + $0x88] sm:$0xff]
        %v695 = vld [vmem:[%s4 + $0x90] sm:$0xff]
        %v696 = vld [vmem:[%s4 + $0x98] sm:$0xff]
        %v697 = vld [vmem:[%s4 + $0xa0] sm:$0xff]
        %v698 = vld [vmem:[%s4 + $0xa8] sm:$0xff]
        %v699 = vld [vmem:[%s4 + $0xb0] sm:$0xff]
        %v700 = vld [vmem:[%s4 + $0xb8] sm:$0xff]
        %v701 = vld [vmem:[%s8] sm:$0xff]
        %v702 = vld [vmem:[%s8 + $0x8] sm:$0xff]
        %v703 = vld [vmem:[%s8 + $0x10] sm:$0xff]
        %v704 = vld [vmem:[%s8 + $0x18] sm:$0xff]
        %v705 = vld [vmem:[%s8 + $0x20] sm:$0xff]
        %v706 = vld [vmem:[%s8 + $0x28] sm:$0xff]
        %v707 = vld [vmem:[%s8 + $0x30] sm:$0xff]
        %v708 = vld [vmem:[%s8 + $0x38] sm:$0xff]
        %v709 = vld [vmem:[%s8 + $0x40] sm:$0xff]
        %v710 = vld [vmem:[%s8 + $0x48] sm:$0xff]
        %v711 = vld [vmem:[%s8 + $0x50] sm:$0xff]
        %v712 = vld [vmem:[%s8 + $0x58] sm:$0xff]
        %v713 = vld [vmem:[%s8 + $0x60] sm:$0xff]
        %v714 = vld [vmem:[%s8 + $0x68] sm:$0xff]
        %v715 = vld [vmem:[%s8 + $0x70] sm:$0xff]
        %v716 = vld [vmem:[%s8 + $0x78] sm:$0xff]
        %v717 = vld [vmem:[%s8 + $0x80] sm:$0xff]
        %v718 = vld [vmem:[%s8 + $0x88] sm:$0xff]
        %v719 = vld [vmem:[%s8 + $0x90] sm:$0xff]
        %v720 = vld [vmem:[%s8 + $0x98] sm:$0xff]
        %v721 = vld [vmem:[%s8 + $0xa0] sm:$0xff]
        %v722 = vld [vmem:[%s8 + $0xa8] sm:$0xff]
        %v723 = vld [vmem:[%s8 + $0xb0] sm:$0xff]
        %v724 = vld [vmem:[%s8 + $0xb8] sm:$0xff]
        %726 = vset.pattern.permute.xlu0 0
        %727 = vperm.xlu0 %726, %v701
        %v728 = vpop.permute.xlu0 %727
        %731 = vset.pattern.permute.xlu0 0
        %732 = vperm.xlu0 %731, %v702
        %v733 = vpop.permute.xlu0 %732
        %736 = vset.pattern.permute.xlu0 0
        %737 = vperm.xlu0 %736, %v703
        %v738 = vpop.permute.xlu0 %737
        %741 = vset.pattern.permute.xlu0 0
        %742 = vperm.xlu0 %741, %v704
        %v743 = vpop.permute.xlu0 %742
        %746 = vset.pattern.permute.xlu0 0
        %747 = vperm.xlu0 %746, %v705
        %v748 = vpop.permute.xlu0 %747
        %751 = vset.pattern.permute.xlu0 0
        %752 = vperm.xlu0 %751, %v706
        %v753 = vpop.permute.xlu0 %752
        %756 = vset.pattern.permute.xlu0 0
        %757 = vperm.xlu0 %756, %v707
        %v758 = vpop.permute.xlu0 %757
        %761 = vset.pattern.permute.xlu0 0
        %762 = vperm.xlu0 %761, %v708
        %v763 = vpop.permute.xlu0 %762
        %766 = vset.pattern.permute.xlu0 0
        %767 = vperm.xlu0 %766, %v709
        %v768 = vpop.permute.xlu0 %767
        %771 = vset.pattern.permute.xlu0 0
        %772 = vperm.xlu0 %771, %v710
        %v773 = vpop.permute.xlu0 %772
        %776 = vset.pattern.permute.xlu0 0
        %777 = vperm.xlu0 %776, %v711
        %v778 = vpop.permute.xlu0 %777
        %781 = vset.pattern.permute.xlu0 0
        %782 = vperm.xlu0 %781, %v712
        %v783 = vpop.permute.xlu0 %782
        %786 = vset.pattern.permute.xlu0 0
        %787 = vperm.xlu0 %786, %v713
        %v788 = vpop.permute.xlu0 %787
        %791 = vset.pattern.permute.xlu0 0
        %792 = vperm.xlu0 %791, %v714
        %v793 = vpop.permute.xlu0 %792
        %796 = vset.pattern.permute.xlu0 0
        %797 = vperm.xlu0 %796, %v715
        %v798 = vpop.permute.xlu0 %797
        %801 = vset.pattern.permute.xlu0 0
        %802 = vperm.xlu0 %801, %v716
        %v803 = vpop.permute.xlu0 %802
        %806 = vset.pattern.permute.xlu0 0
        %807 = vperm.xlu0 %806, %v717
        %v808 = vpop.permute.xlu0 %807
        %811 = vset.pattern.permute.xlu0 0
        %812 = vperm.xlu0 %811, %v718
        %v813 = vpop.permute.xlu0 %812
        %816 = vset.pattern.permute.xlu0 0
        %817 = vperm.xlu0 %816, %v719
        %v818 = vpop.permute.xlu0 %817
        %821 = vset.pattern.permute.xlu0 0
        %822 = vperm.xlu0 %821, %v720
        %v823 = vpop.permute.xlu0 %822
        %826 = vset.pattern.permute.xlu0 0
        %827 = vperm.xlu0 %826, %v721
        %v828 = vpop.permute.xlu0 %827
        %831 = vset.pattern.permute.xlu0 0
        %832 = vperm.xlu0 %831, %v722
        %v833 = vpop.permute.xlu0 %832
        %836 = vset.pattern.permute.xlu0 0
        %837 = vperm.xlu0 %836, %v723
        %v838 = vpop.permute.xlu0 %837
        %841 = vset.pattern.permute.xlu0 0
        %842 = vperm.xlu0 %841, %v724
        %v843 = vpop.permute.xlu0 %842
        %845 = vmatprep.subr.mxu0 0.0
        %846 = vmatpush1.msra.mxu0 %v661
        %847 = vmatprep.subr.mxu0 0.0
        %848 = vmatpush1.msra.mxu0 %v662
        %849 = vmatprep.subr.mxu0 0.0
        %850 = vmatpush1.msra.mxu0 %v663
        %851 = vmatprep.subr.mxu0 0.0
        %852 = vmatpush1.msra.mxu0 %v664
        %853 = vmatprep.subr.mxu0 0.0
        %854 = vmatpush1.msra.mxu0 %v665
        %855 = vmatprep.subr.mxu0 0.0
        %856 = vmatpush1.msra.mxu0 %v666
        %857 = vmatprep.subr.mxu0 0.0
        %858 = vmatpush1.msra.mxu0 %v667
        %859 = vmatprep.subr.mxu0 0.0
        %860 = vmatpush1.msra.mxu0 %v668
        %861 = vmatprep.subr.mxu0 0.0
        %862 = vmatpush1.msra.mxu0 %v669
        %863 = vmatprep.subr.mxu0 0.0
        %864 = vmatpush1.msra.mxu0 %v670
        %865 = vmatprep.subr.mxu0 0.0
        %866 = vmatpush1.msra.mxu0 %v671
        %867 = vmatprep.subr.mxu0 0.0
        %868 = vmatpush1.msra.mxu0 %v672
        %869 = vmatprep.subr.mxu0 0.0
        %870 = vmatpush1.msra.mxu0 %v673
        %871 = vmatprep.subr.mxu0 0.0
        %872 = vmatpush1.msra.mxu0 %v674
        %873 = vmatprep.subr.mxu0 0.0
        %874 = vmatpush1.msra.mxu0 %v675
        %875 = vmatprep.subr.mxu0 0.0
        %876 = vmatpush1.msra.mxu0 %v676
        %877 = vmatprep.subr.mxu0 0.0
        %878 = vmatpush1.msra.mxu0 0.0
        %879 = vmatprep.subr.mxu0 0.0
        %880 = vmatpush1.msra.mxu0 0.0
        %881 = vmatprep.subr.mxu0 0.0
        %882 = vmatpush1.msra.mxu0 0.0
        %883 = vmatprep.subr.mxu0 0.0
        %884 = vmatpush1.msra.mxu0 0.0
        %885 = vmatprep.subr.mxu0 0.0
        %886 = vmatpush1.msra.mxu0 0.0
        %887 = vmatprep.subr.mxu0 0.0
        %888 = vmatpush1.msra.mxu0 0.0
        %889 = vmatprep.subr.mxu0 0.0
        %890 = vmatpush1.msra.mxu0 0.0
        %891 = vmatprep.subr.mxu0 0.0
        %892 = vmatpush1.msra.mxu0 0.0
        %893 = vmatprep.subr.mxu0 0.0
        %894 = vmatpush1.msra.mxu0 0.0
        %895 = vmatprep.subr.mxu0 0.0
        %896 = vmatpush1.msra.mxu0 0.0
        %897 = vmatprep.subr.mxu0 0.0
        %898 = vmatpush1.msra.mxu0 0.0
        %899 = vmatprep.subr.mxu0 0.0
        %900 = vmatpush1.msra.mxu0 0.0
        %901 = vmatprep.subr.mxu0 0.0
        %902 = vmatpush1.msra.mxu0 0.0
        %903 = vmatprep.subr.mxu0 0.0
        %904 = vmatpush1.msra.mxu0 0.0
        %905 = vmatprep.subr.mxu0 0.0
        %906 = vmatpush1.msra.mxu0 0.0
        %907 = vmatprep.subr.mxu0 0.0
        %908 = vmatpush1.msra.mxu0 0.0
        %909 = vmatprep.mubr.f32.mxu0 0.0
        %910 = vmatmul.mubr.f32.gmra.mrb[0].mxu0 %v677
        %v911 = vpop.f32.mrb[0].mxu0
        %v912 = vadd.f32 %v728, %v911
        %v913 = vpop.f32.mrb[0].mxu0
        %914 = vmatprep.mubr.f32.mxu0 0.0
        %915 = vmatmul.mubr.f32.gmra.mrb[0].mxu0 %v678
        %v916 = vpop.f32.mrb[0].mxu0
        %v917 = vadd.f32 %v733, %v916
        %v918 = vpop.f32.mrb[0].mxu0
        %919 = vmatprep.mubr.f32.mxu0 0.0
        %920 = vmatmul.mubr.f32.gmra.mrb[0].mxu0 %v679
        %v921 = vpop.f32.mrb[0].mxu0
        %v922 = vadd.f32 %v738, %v921
        %v923 = vpop.f32.mrb[0].mxu0
        %924 = vmatprep.mubr.f32.mxu0 0.0
        %925 = vmatmul.mubr.f32.gmra.mrb[0].mxu0 %v680
        %v926 = vpop.f32.mrb[0].mxu0
        %v927 = vadd.f32 %v743, %v926
        %v928 = vpop.f32.mrb[0].mxu0
        %929 = vmatprep.mubr.f32.mxu0 0.0
        %930 = vmatmul.mubr.f32.gmra.mrb[0].mxu0 %v681
        %v931 = vpop.f32.mrb[0].mxu0
        %v932 = vadd.f32 %v748, %v931
        %v933 = vpop.f32.mrb[0].mxu0
        %934 = vmatprep.mubr.f32.mxu0 0.0
        %935 = vmatmul.mubr.f32.gmra.mrb[0].mxu0 %v682
        %v936 = vpop.f32.mrb[0].mxu0
        %v937 = vadd.f32 %v753, %v936
        %v938 = vpop.f32.mrb[0].mxu0
        %939 = vmatprep.mubr.f32.mxu0 0.0
        %940 = vmatmul.mubr.f32.gmra.mrb[0].mxu0 %v683
        %v941 = vpop.f32.mrb[0].mxu0
        %v942 = vadd.f32 %v758, %v941
        %v943 = vpop.f32.mrb[0].mxu0
        %944 = vmatprep.mubr.f32.mxu0 0.0
        %945 = vmatmul.mubr.f32.gmra.mrb[0].mxu0 %v684
        %v946 = vpop.f32.mrb[0].mxu0
        %v947 = vadd.f32 %v763, %v946
        %v948 = vpop.f32.mrb[0].mxu0
        %949 = vmatprep.mubr.f32.mxu0 0.0
        %950 = vmatmul.mubr.f32.gmra.mrb[0].mxu0 %v685
        %v951 = vpop.f32.mrb[0].mxu0
        %v952 = vadd.f32 %v768, %v951
        %v953 = vpop.f32.mrb[0].mxu0
        %954 = vmatprep.mubr.f32.mxu0 0.0
        %955 = vmatmul.mubr.f32.gmra.mrb[0].mxu0 %v686
        %v956 = vpop.f32.mrb[0].mxu0
        %v957 = vadd.f32 %v773, %v956
        %v958 = vpop.f32.mrb[0].mxu0
        %959 = vmatprep.mubr.f32.mxu0 0.0
        %960 = vmatmul.mubr.f32.gmra.mrb[0].mxu0 %v687
        %v961 = vpop.f32.mrb[0].mxu0
        %v962 = vadd.f32 %v778, %v961
        %v963 = vpop.f32.mrb[0].mxu0
        %964 = vmatprep.mubr.f32.mxu0 0.0
        %965 = vmatmul.mubr.f32.gmra.mrb[0].mxu0 %v688
        %v966 = vpop.f32.mrb[0].mxu0
        %v967 = vadd.f32 %v783, %v966
        %v968 = vpop.f32.mrb[0].mxu0
        %969 = vmatprep.mubr.f32.mxu0 0.0
        %970 = vmatmul.mubr.f32.gmra.mrb[0].mxu0 %v689
        %v971 = vpop.f32.mrb[0].mxu0
        %v972 = vadd.f32 %v788, %v971
        %v973 = vpop.f32.mrb[0].mxu0
        %974 = vmatprep.mubr.f32.mxu0 0.0
        %975 = vmatmul.mubr.f32.gmra.mrb[0].mxu0 %v690
        %v976 = vpop.f32.mrb[0].mxu0
        %v977 = vadd.f32 %v793, %v976
        %v978 = vpop.f32.mrb[0].mxu0
        %979 = vmatprep.mubr.f32.mxu0 0.0
        %980 = vmatmul.mubr.f32.gmra.mrb[0].mxu0 %v691
        %v981 = vpop.f32.mrb[0].mxu0
        %v982 = vadd.f32 %v798, %v981
        %v983 = vpop.f32.mrb[0].mxu0
        %984 = vmatprep.mubr.f32.mxu0 0.0
        %985 = vmatmul.mubr.f32.gmra.mrb[0].mxu0 %v692
        %v986 = vpop.f32.mrb[0].mxu0
        %v987 = vadd.f32 %v803, %v986
        %v988 = vpop.f32.mrb[0].mxu0
        %989 = vmatprep.mubr.f32.mxu0 0.0
        %990 = vmatmul.mubr.f32.gmra.mrb[0].mxu0 %v693
        %v991 = vpop.f32.mrb[0].mxu0
        %v992 = vadd.f32 %v808, %v991
        %v993 = vpop.f32.mrb[0].mxu0
        %994 = vmatprep.mubr.f32.mxu0 0.0
        %995 = vmatmul.mubr.f32.gmra.mrb[0].mxu0 %v694
        %v996 = vpop.f32.mrb[0].mxu0
        %v997 = vadd.f32 %v813, %v996
        %v998 = vpop.f32.mrb[0].mxu0
        %999 = vmatprep.mubr.f32.mxu0 0.0
        %1000 = vmatmul.mubr.f32.gmra.mrb[0].mxu0 %v695
        %v1001 = vpop.f32.mrb[0].mxu0
        %v1002 = vadd.f32 %v818, %v1001
        %v1003 = vpop.f32.mrb[0].mxu0
        %1004 = vmatprep.mubr.f32.mxu0 0.0
        %1005 = vmatmul.mubr.f32.gmra.mrb[0].mxu0 %v696
        %v1006 = vpop.f32.mrb[0].mxu0
        %v1007 = vadd.f32 %v823, %v1006
        %v1008 = vpop.f32.mrb[0].mxu0
        %1009 = vmatprep.mubr.f32.mxu0 0.0
        %1010 = vmatmul.mubr.f32.gmra.mrb[0].mxu0 %v697
        %v1011 = vpop.f32.mrb[0].mxu0
        %v1012 = vadd.f32 %v828, %v1011
        %v1013 = vpop.f32.mrb[0].mxu0
        %1014 = vmatprep.mubr.f32.mxu0 0.0
        %1015 = vmatmul.mubr.f32.gmra.mrb[0].mxu0 %v698
        %v1016 = vpop.f32.mrb[0].mxu0
        %v1017 = vadd.f32 %v833, %v1016
        %v1018 = vpop.f32.mrb[0].mxu0
        %1019 = vmatprep.mubr.f32.mxu0 0.0
        %1020 = vmatmul.mubr.f32.gmra.mrb[0].mxu0 %v699
        %v1021 = vpop.f32.mrb[0].mxu0
        %v1022 = vadd.f32 %v838, %v1021
        %v1023 = vpop.f32.mrb[0].mxu0
        %1024 = vmatprep.mubr.f32.mxu0 0.0
        %1025 = vmatmul.mubr.f32.gmra.mrb[0].mxu0 %v700
        %v1026 = vpop.f32.mrb[0].mxu0
        %v1027 = vadd.f32 %v843, %v1026
        %v1028 = vpop.f32.mrb[0].mxu0
        %1029 = vdwg.mxu0
        %vm1030 = vcmp.ge.f32.partialorder %v912, 0.0
        %vm1031 = vcmp.ge.f32.partialorder %v917, 0.0
        %vm1032 = vcmp.ge.f32.partialorder %v922, 0.0
        %vm1033 = vcmp.ge.f32.partialorder %v927, 0.0
        %vm1034 = vcmp.ge.f32.partialorder %v932, 0.0
        %vm1035 = vcmp.ge.f32.partialorder %v937, 0.0
        %vm1036 = vcmp.ge.f32.partialorder %v942, 0.0
        %vm1037 = vcmp.ge.f32.partialorder %v947, 0.0
        %vm1038 = vcmp.ge.f32.partialorder %v952, 0.0
        %vm1039 = vcmp.ge.f32.partialorder %v957, 0.0
        %vm1040 = vcmp.ge.f32.partialorder %v962, 0.0
        %vm1041 = vcmp.ge.f32.partialorder %v967, 0.0
        %vm1042 = vcmp.ge.f32.partialorder %v972, 0.0
        %vm1043 = vcmp.ge.f32.partialorder %v977, 0.0
        %vm1044 = vcmp.ge.f32.partialorder %v982, 0.0
        %vm1045 = vcmp.ge.f32.partialorder %v987, 0.0
        %vm1046 = vcmp.ge.f32.partialorder %v992, 0.0
        %vm1047 = vcmp.ge.f32.partialorder %v997, 0.0
        %vm1048 = vcmp.ge.f32.partialorder %v1002, 0.0
        %vm1049 = vcmp.ge.f32.partialorder %v1007, 0.0
        %vm1050 = vcmp.ge.f32.partialorder %v1012, 0.0
        %vm1051 = vcmp.ge.f32.partialorder %v1017, 0.0
        %vm1052 = vcmp.ge.f32.partialorder %v1022, 0.0
        %vm1053 = vcmp.ge.f32.partialorder %v1027, 0.0
        %v1054 = vmul.f32 %v912, 0.1
        %v1055 = vmul.f32 %v917, 0.1
        %v1056 = vmul.f32 %v922, 0.1
        %v1057 = vmul.f32 %v927, 0.1
        %v1058 = vmul.f32 %v932, 0.1
        %v1059 = vmul.f32 %v937, 0.1
        %v1060 = vmul.f32 %v942, 0.1
        %v1061 = vmul.f32 %v947, 0.1
        %v1062 = vmul.f32 %v952, 0.1
        %v1063 = vmul.f32 %v957, 0.1
        %v1064 = vmul.f32 %v962, 0.1
        %v1065 = vmul.f32 %v967, 0.1
        %v1066 = vmul.f32 %v972, 0.1
        %v1067 = vmul.f32 %v977, 0.1
        %v1068 = vmul.f32 %v982, 0.1
        %v1069 = vmul.f32 %v987, 0.1
        %v1070 = vmul.f32 %v992, 0.1
        %v1071 = vmul.f32 %v997, 0.1
        %v1072 = vmul.f32 %v1002, 0.1
        %v1073 = vmul.f32 %v1007, 0.1
        %v1074 = vmul.f32 %v1012, 0.1
        %v1075 = vmul.f32 %v1017, 0.1
        %v1076 = vmul.f32 %v1022, 0.1
        %v1077 = vmul.f32 %v1027, 0.1
        %v1078 = vsel %vm1030, %v912, %v1054
        %v1079 = vsel %vm1031, %v917, %v1055
        %v1080 = vsel %vm1032, %v922, %v1056
        %v1081 = vsel %vm1033, %v927, %v1057
        %v1082 = vsel %vm1034, %v932, %v1058
        %v1083 = vsel %vm1035, %v937, %v1059
        %v1084 = vsel %vm1036, %v942, %v1060
        %v1085 = vsel %vm1037, %v947, %v1061
        %v1086 = vsel %vm1038, %v952, %v1062
        %v1087 = vsel %vm1039, %v957, %v1063
        %v1088 = vsel %vm1040, %v962, %v1064
        %v1089 = vsel %vm1041, %v967, %v1065
        %v1090 = vsel %vm1042, %v972, %v1066
        %v1091 = vsel %vm1043, %v977, %v1067
        %v1092 = vsel %vm1044, %v982, %v1068
        %v1093 = vsel %vm1045, %v987, %v1069
        %v1094 = vsel %vm1046, %v992, %v1070
        %v1095 = vsel %vm1047, %v997, %v1071
        %v1096 = vsel %vm1048, %v1002, %v1072
        %v1097 = vsel %vm1049, %v1007, %v1073
        %v1098 = vsel %vm1050, %v1012, %v1074
        %v1099 = vsel %vm1051, %v1017, %v1075
        %v1100 = vsel %vm1052, %v1022, %v1076
        %v1101 = vsel %vm1053, %v1027, %v1077
        %1102 = vst [vmem:[%s645] sm:$0xff] %v1078
        %1103 = vst [vmem:[%s645 + $0x8] sm:$0xff] %v1079
        %1104 = vst [vmem:[%s645 + $0x10] sm:$0xff] %v1080
        %1105 = vst [vmem:[%s645 + $0x18] sm:$0xff] %v1081
        %1106 = vst [vmem:[%s645 + $0x20] sm:$0xff] %v1082
        %1107 = vst [vmem:[%s645 + $0x28] sm:$0xff] %v1083
        %1108 = vst [vmem:[%s645 + $0x30] sm:$0xff] %v1084
        %1109 = vst [vmem:[%s645 + $0x38] sm:$0xff] %v1085
        %1110 = vst [vmem:[%s645 + $0x40] sm:$0xff] %v1086
        %1111 = vst [vmem:[%s645 + $0x48] sm:$0xff] %v1087
        %1112 = vst [vmem:[%s645 + $0x50] sm:$0xff] %v1088
        %1113 = vst [vmem:[%s645 + $0x58] sm:$0xff] %v1089
        %1114 = vst [vmem:[%s645 + $0x60] sm:$0xff] %v1090
        %1115 = vst [vmem:[%s645 + $0x68] sm:$0xff] %v1091
        %1116 = vst [vmem:[%s645 + $0x70] sm:$0xff] %v1092
        %1117 = vst [vmem:[%s645 + $0x78] sm:$0xff] %v1093
        %1118 = vst [vmem:[%s645 + $0x80] sm:$0xff] %v1094
        %1119 = vst [vmem:[%s645 + $0x88] sm:$0xff] %v1095
        %1120 = vst [vmem:[%s645 + $0x90] sm:$0xff] %v1096
        %1121 = vst [vmem:[%s645 + $0x98] sm:$0xff] %v1097
        %1122 = vst [vmem:[%s645 + $0xa0] sm:$0xff] %v1098
        %1123 = vst [vmem:[%s645 + $0xa8] sm:$0xff] %v1099
        %1124 = vst [vmem:[%s645 + $0xb0] sm:$0xff] %v1100
        %1125 = vst [vmem:[%s645 + $0xb8] sm:$0xff] %v1101
        %p1126 = scmp.eq.s32.totalorder %s31, 0
        // Predicated region
        $region119: #{neck_forward.1} parent=113 // pred_check
          %p1127 = pneg %p1126
        $region120: #{neck_forward.1} parent=113 // pred_check_branch
          %1129 = sbr.rel (%p1127) target = $region122
        $region121: #{neck_forward.1} parent=113 // pred_region
          %v1130 = vld [vmem:[%s650] sm:$0xff]
          %v1131 = vld [vmem:[%s650 + $0x8] sm:$0xff]
          %v1132 = vld [vmem:[%s650 + $0x10] sm:$0xff]
          %v1133 = vld [vmem:[%s650 + $0x18] sm:$0xff]
          %v1134 = vld [vmem:[%s650 + $0x20] sm:$0xff]
          %v1135 = vld [vmem:[%s650 + $0x28] sm:$0xff]
          %v1136 = vld [vmem:[%s650 + $0x30] sm:$0xff]
          %v1137 = vld [vmem:[%s650 + $0x38] sm:$0xff]
          %v1138 = vld [vmem:[%s650 + $0x40] sm:$0xff]
          %v1139 = vld [vmem:[%s650 + $0x48] sm:$0xff]
          %v1140 = vld [vmem:[%s650 + $0x50] sm:$0xff]
          %v1141 = vld [vmem:[%s650 + $0x58] sm:$0xff]
          %v1142 = vld [vmem:[%s650 + $0x60] sm:$0xff]
          %v1143 = vld [vmem:[%s650 + $0x68] sm:$0xff]
          %v1144 = vld [vmem:[%s650 + $0x70] sm:$0xff]
          %v1145 = vld [vmem:[%s650 + $0x78] sm:$0xff]
          %v1146 = vld [vmem:[%s650 + $0x80] sm:$0xff]
          %v1147 = vld [vmem:[%s650 + $0x88] sm:$0xff]
          %v1148 = vld [vmem:[%s650 + $0x90] sm:$0xff]
          %v1149 = vld [vmem:[%s650 + $0x98] sm:$0xff]
          %v1150 = vld [vmem:[%s650 + $0xa0] sm:$0xff]
          %v1151 = vld [vmem:[%s650 + $0xa8] sm:$0xff]
          %v1152 = vld [vmem:[%s650 + $0xb0] sm:$0xff]
          %v1153 = vld [vmem:[%s650 + $0xb8] sm:$0xff]
          %v1154 = vld [vmem:[%s650 + $0xc0] sm:$0xff]
          %v1155 = vld [vmem:[%s650 + $0xc8] sm:$0xff]
          %v1156 = vld [vmem:[%s650 + $0xd0] sm:$0xff]
          %v1157 = vld [vmem:[%s650 + $0xd8] sm:$0xff]
          %v1158 = vld [vmem:[%s650 + $0xe0] sm:$0xff]
          %v1159 = vld [vmem:[%s650 + $0xe8] sm:$0xff]
          %v1160 = vld [vmem:[%s650 + $0xf0] sm:$0xff]
          %v1161 = vld [vmem:[%s650 + $0xf8] sm:$0xff]
          %v1162 = vld [vmem:[%s5] sm:$0xff]
          %v1163 = vld [vmem:[%s5 + $0x8] sm:$0xff]
          %v1164 = vld [vmem:[%s5 + $0x10] sm:$0xff]
          %v1165 = vld [vmem:[%s5 + $0x18] sm:$0xff]
          %v1166 = vld [vmem:[%s5 + $0x20] sm:$0xff]
          %v1167 = vld [vmem:[%s5 + $0x28] sm:$0xff]
          %v1168 = vld [vmem:[%s5 + $0x30] sm:$0xff]
          %v1169 = vld [vmem:[%s5 + $0x38] sm:$0xff]
          %v1170 = vld [vmem:[%s5 + $0x40] sm:$0xff]
          %v1171 = vld [vmem:[%s5 + $0x48] sm:$0xff]
          %v1172 = vld [vmem:[%s5 + $0x50] sm:$0xff]
          %v1173 = vld [vmem:[%s5 + $0x58] sm:$0xff]
          %v1174 = vld [vmem:[%s5 + $0x60] sm:$0xff]
          %v1175 = vld [vmem:[%s5 + $0x68] sm:$0xff]
          %v1176 = vld [vmem:[%s5 + $0x70] sm:$0xff]
          %v1177 = vld [vmem:[%s5 + $0x78] sm:$0xff]
          %v1178 = vld [vmem:[%s5 + $0x80] sm:$0xff]
          %v1179 = vld [vmem:[%s5 + $0x88] sm:$0xff]
          %v1180 = vld [vmem:[%s5 + $0x90] sm:$0xff]
          %v1181 = vld [vmem:[%s5 + $0x98] sm:$0xff]
          %v1182 = vld [vmem:[%s5 + $0xa0] sm:$0xff]
          %v1183 = vld [vmem:[%s5 + $0xa8] sm:$0xff]
          %v1184 = vld [vmem:[%s5 + $0xb0] sm:$0xff]
          %v1185 = vld [vmem:[%s5 + $0xb8] sm:$0xff]
          %v1186 = vld [vmem:[%s5 + $0xc0] sm:$0xff]
          %v1187 = vld [vmem:[%s5 + $0xc8] sm:$0xff]
          %v1188 = vld [vmem:[%s5 + $0xd0] sm:$0xff]
          %v1189 = vld [vmem:[%s5 + $0xd8] sm:$0xff]
          %v1190 = vld [vmem:[%s5 + $0xe0] sm:$0xff]
          %v1191 = vld [vmem:[%s5 + $0xe8] sm:$0xff]
          %v1192 = vld [vmem:[%s5 + $0xf0] sm:$0xff]
          %v1193 = vld [vmem:[%s5 + $0xf8] sm:$0xff]
          %v1194 = vld [vmem:[%s5 + $0x100] sm:$0xff]
          %v1195 = vld [vmem:[%s5 + $0x108] sm:$0xff]
          %v1196 = vld [vmem:[%s5 + $0x110] sm:$0xff]
          %v1197 = vld [vmem:[%s5 + $0x118] sm:$0xff]
          %v1198 = vld [vmem:[%s5 + $0x120] sm:$0xff]
          %v1199 = vld [vmem:[%s5 + $0x128] sm:$0xff]
          %v1200 = vld [vmem:[%s5 + $0x130] sm:$0xff]
          %v1201 = vld [vmem:[%s5 + $0x138] sm:$0xff]
          %v1202 = vld [vmem:[%s5 + $0x140] sm:$0xff]
          %v1203 = vld [vmem:[%s5 + $0x148] sm:$0xff]
          %v1204 = vld [vmem:[%s5 + $0x150] sm:$0xff]
          %v1205 = vld [vmem:[%s5 + $0x158] sm:$0xff]
          %v1206 = vld [vmem:[%s5 + $0x160] sm:$0xff]
          %v1207 = vld [vmem:[%s5 + $0x168] sm:$0xff]
          %v1208 = vld [vmem:[%s5 + $0x170] sm:$0xff]
          %v1209 = vld [vmem:[%s5 + $0x178] sm:$0xff]
          %v1210 = vld [vmem:[%s9] sm:$0xff]
          %v1211 = vld [vmem:[%s9 + $0x8] sm:$0xff]
          %v1212 = vld [vmem:[%s9 + $0x10] sm:$0xff]
          %v1213 = vld [vmem:[%s9 + $0x18] sm:$0xff]
          %v1214 = vld [vmem:[%s9 + $0x20] sm:$0xff]
          %v1215 = vld [vmem:[%s9 + $0x28] sm:$0xff]
          %v1216 = vld [vmem:[%s9 + $0x30] sm:$0xff]
          %v1217 = vld [vmem:[%s9 + $0x38] sm:$0xff]
          %v1218 = vld [vmem:[%s9 + $0x40] sm:$0xff]
          %v1219 = vld [vmem:[%s9 + $0x48] sm:$0xff]
          %v1220 = vld [vmem:[%s9 + $0x50] sm:$0xff]
          %v1221 = vld [vmem:[%s9 + $0x58] sm:$0xff]
          %v1222 = vld [vmem:[%s9 + $0x60] sm:$0xff]
          %v1223 = vld [vmem:[%s9 + $0x68] sm:$0xff]
          %v1224 = vld [vmem:[%s9 + $0x70] sm:$0xff]
          %v1225 = vld [vmem:[%s9 + $0x78] sm:$0xff]
          %v1226 = vld [vmem:[%s9 + $0x80] sm:$0xff]
          %v1227 = vld [vmem:[%s9 + $0x88] sm:$0xff]
          %v1228 = vld [vmem:[%s9 + $0x90] sm:$0xff]
          %v1229 = vld [vmem:[%s9 + $0x98] sm:$0xff]
          %v1230 = vld [vmem:[%s9 + $0xa0] sm:$0xff]
          %v1231 = vld [vmem:[%s9 + $0xa8] sm:$0xff]
          %v1232 = vld [vmem:[%s9 + $0xb0] sm:$0xff]
          %v1233 = vld [vmem:[%s9 + $0xb8] sm:$0xff]
          %1235 = vset.pattern.permute.xlu0 0
          %1236 = vperm.xlu0 %1235, %v1210
          %v1237 = vpop.permute.xlu0 %1236
          %1240 = vset.pattern.permute.xlu0 0
          %1241 = vperm.xlu0 %1240, %v1211
          %v1242 = vpop.permute.xlu0 %1241
          %1245 = vset.pattern.permute.xlu0 0
          %1246 = vperm.xlu0 %1245, %v1212
          %v1247 = vpop.permute.xlu0 %1246
          %1250 = vset.pattern.permute.xlu0 0
          %1251 = vperm.xlu0 %1250, %v1213
          %v1252 = vpop.permute.xlu0 %1251
          %1255 = vset.pattern.permute.xlu0 0
          %1256 = vperm.xlu0 %1255, %v1214
          %v1257 = vpop.permute.xlu0 %1256
          %1260 = vset.pattern.permute.xlu0 0
          %1261 = vperm.xlu0 %1260, %v1215
          %v1262 = vpop.permute.xlu0 %1261
          %1265 = vset.pattern.permute.xlu0 0
          %1266 = vperm.xlu0 %1265, %v1216
          %v1267 = vpop.permute.xlu0 %1266
          %1270 = vset.pattern.permute.xlu0 0
          %1271 = vperm.xlu0 %1270, %v1217
          %v1272 = vpop.permute.xlu0 %1271
          %1275 = vset.pattern.permute.xlu0 0
          %1276 = vperm.xlu0 %1275, %v1218
          %v1277 = vpop.permute.xlu0 %1276
          %1280 = vset.pattern.permute.xlu0 0
          %1281 = vperm.xlu0 %1280, %v1219
          %v1282 = vpop.permute.xlu0 %1281
          %1285 = vset.pattern.permute.xlu0 0
          %1286 = vperm.xlu0 %1285, %v1220
          %v1287 = vpop.permute.xlu0 %1286
          %1290 = vset.pattern.permute.xlu0 0
          %1291 = vperm.xlu0 %1290, %v1221
          %v1292 = vpop.permute.xlu0 %1291
          %1295 = vset.pattern.permute.xlu0 0
          %1296 = vperm.xlu0 %1295, %v1222
          %v1297 = vpop.permute.xlu0 %1296
          %1300 = vset.pattern.permute.xlu0 0
          %1301 = vperm.xlu0 %1300, %v1223
          %v1302 = vpop.permute.xlu0 %1301
          %1305 = vset.pattern.permute.xlu0 0
          %1306 = vperm.xlu0 %1305, %v1224
          %v1307 = vpop.permute.xlu0 %1306
          %1310 = vset.pattern.permute.xlu0 0
          %1311 = vperm.xlu0 %1310, %v1225
          %v1312 = vpop.permute.xlu0 %1311
          %1315 = vset.pattern.permute.xlu0 0
          %1316 = vperm.xlu0 %1315, %v1226
          %v1317 = vpop.permute.xlu0 %1316
          %1320 = vset.pattern.permute.xlu0 0
          %1321 = vperm.xlu0 %1320, %v1227
          %v1322 = vpop.permute.xlu0 %1321
          %1325 = vset.pattern.permute.xlu0 0
          %1326 = vperm.xlu0 %1325, %v1228
          %v1327 = vpop.permute.xlu0 %1326
          %1330 = vset.pattern.permute.xlu0 0
          %1331 = vperm.xlu0 %1330, %v1229
          %v1332 = vpop.permute.xlu0 %1331
          %1335 = vset.pattern.permute.xlu0 0
          %1336 = vperm.xlu0 %1335, %v1230
          %v1337 = vpop.permute.xlu0 %1336
          %1340 = vset.pattern.permute.xlu0 0
          %1341 = vperm.xlu0 %1340, %v1231
          %v1342 = vpop.permute.xlu0 %1341
          %1345 = vset.pattern.permute.xlu0 0
          %1346 = vperm.xlu0 %1345, %v1232
          %v1347 = vpop.permute.xlu0 %1346
          %1350 = vset.pattern.permute.xlu0 0
          %1351 = vperm.xlu0 %1350, %v1233
          %v1352 = vpop.permute.xlu0 %1351
          %1354 = vmatprep.subr.mxu0 0.0
          %1355 = vmatpush1.msra.mxu0 %v1130
          %1356 = vmatprep.subr.mxu0 0.0
          %1357 = vmatpush1.msra.mxu0 %v1131
          %1358 = vmatprep.subr.mxu0 0.0
          %1359 = vmatpush1.msra.mxu0 %v1132
          %1360 = vmatprep.subr.mxu0 0.0
          %1361 = vmatpush1.msra.mxu0 %v1133
          %1362 = vmatprep.subr.mxu0 0.0
          %1363 = vmatpush1.msra.mxu0 %v1134
          %1364 = vmatprep.subr.mxu0 0.0
          %1365 = vmatpush1.msra.mxu0 %v1135
          %1366 = vmatprep.subr.mxu0 0.0
          %1367 = vmatpush1.msra.mxu0 %v1136
          %1368 = vmatprep.subr.mxu0 0.0
          %1369 = vmatpush1.msra.mxu0 %v1137
          %1370 = vmatprep.subr.mxu0 0.0
          %1371 = vmatpush1.msra.mxu0 %v1138
          %1372 = vmatprep.subr.mxu0 0.0
          %1373 = vmatpush1.msra.mxu0 %v1139
          %1374 = vmatprep.subr.mxu0 0.0
          %1375 = vmatpush1.msra.mxu0 %v1140
          %1376 = vmatprep.subr.mxu0 0.0
          %1377 = vmatpush1.msra.mxu0 %v1141
          %1378 = vmatprep.subr.mxu0 0.0
          %1379 = vmatpush1.msra.mxu0 %v1142
          %1380 = vmatprep.subr.mxu0 0.0
          %1381 = vmatpush1.msra.mxu0 %v1143
          %1382 = vmatprep.subr.mxu0 0.0
          %1383 = vmatpush1.msra.mxu0 %v1144
          %1384 = vmatprep.subr.mxu0 0.0
          %1385 = vmatpush1.msra.mxu0 %v1145
          %1386 = vmatprep.subr.mxu0 0.0
          %1387 = vmatpush1.msra.mxu0 %v1146
          %1388 = vmatprep.subr.mxu0 0.0
          %1389 = vmatpush1.msra.mxu0 %v1147
          %1390 = vmatprep.subr.mxu0 0.0
          %1391 = vmatpush1.msra.mxu0 %v1148
          %1392 = vmatprep.subr.mxu0 0.0
          %1393 = vmatpush1.msra.mxu0 %v1149
          %1394 = vmatprep.subr.mxu0 0.0
          %1395 = vmatpush1.msra.mxu0 %v1150
          %1396 = vmatprep.subr.mxu0 0.0
          %1397 = vmatpush1.msra.mxu0 %v1151
          %1398 = vmatprep.subr.mxu0 0.0
          %1399 = vmatpush1.msra.mxu0 %v1152
          %1400 = vmatprep.subr.mxu0 0.0
          %1401 = vmatpush1.msra.mxu0 %v1153
          %1402 = vmatprep.subr.mxu0 0.0
          %1403 = vmatpush1.msra.mxu0 %v1154
          %1404 = vmatprep.subr.mxu0 0.0
          %1405 = vmatpush1.msra.mxu0 %v1155
          %1406 = vmatprep.subr.mxu0 0.0
          %1407 = vmatpush1.msra.mxu0 %v1156
          %1408 = vmatprep.subr.mxu0 0.0
          %1409 = vmatpush1.msra.mxu0 %v1157
          %1410 = vmatprep.subr.mxu0 0.0
          %1411 = vmatpush1.msra.mxu0 %v1158
          %1412 = vmatprep.subr.mxu0 0.0
          %1413 = vmatpush1.msra.mxu0 %v1159
          %1414 = vmatprep.subr.mxu0 0.0
          %1415 = vmatpush1.msra.mxu0 %v1160
          %1416 = vmatprep.subr.mxu0 0.0
          %1417 = vmatpush1.msra.mxu0 %v1161
          %1418 = vmatprep.mubr.f32.mxu0 %v1163
          %1419 = vmatmul.mubr.f32.gmra.mrb[0].mxu0 %v1162
          %v1420 = vpop.f32.mrb[0].mxu0
          %v1421 = vadd.f32 %v1237, %v1420
          %v1422 = vpop.f32.mrb[0].mxu0
          %1423 = vmatprep.mubr.f32.mxu0 %v1165
          %1424 = vmatmul.mubr.f32.gmra.mrb[0].mxu0 %v1164
          %v1425 = vpop.f32.mrb[0].mxu0
          %v1426 = vadd.f32 %v1242, %v1425
          %v1427 = vpop.f32.mrb[0].mxu0
          %1428 = vmatprep.mubr.f32.mxu0 %v1167
          %1429 = vmatmul.mubr.f32.gmra.mrb[0].mxu0 %v1166
          %v1430 = vpop.f32.mrb[0].mxu0
          %v1431 = vadd.f32 %v1247, %v1430
          %v1432 = vpop.f32.mrb[0].mxu0
          %1433 = vmatprep.mubr.f32.mxu0 %v1169
          %1434 = vmatmul.mubr.f32.gmra.mrb[0].mxu0 %v1168
          %v1435 = vpop.f32.mrb[0].mxu0
          %v1436 = vadd.f32 %v1252, %v1435
          %v1437 = vpop.f32.mrb[0].mxu0
          %1438 = vmatprep.mubr.f32.mxu0 %v1171
          %1439 = vmatmul.mubr.f32.gmra.mrb[0].mxu0 %v1170
          %v1440 = vpop.f32.mrb[0].mxu0
          %v1441 = vadd.f32 %v1257, %v1440
          %v1442 = vpop.f32.mrb[0].mxu0
          %1443 = vmatprep.mubr.f32.mxu0 %v1173
          %1444 = vmatmul.mubr.f32.gmra.mrb[0].mxu0 %v1172
          %v1445 = vpop.f32.mrb[0].mxu0
          %v1446 = vadd.f32 %v1262, %v1445
          %v1447 = vpop.f32.mrb[0].mxu0
          %1448 = vmatprep.mubr.f32.mxu0 %v1175
          %1449 = vmatmul.mubr.f32.gmra.mrb[0].mxu0 %v1174
          %v1450 = vpop.f32.mrb[0].mxu0
          %v1451 = vadd.f32 %v1267, %v1450
          %v1452 = vpop.f32.mrb[0].mxu0
          %1453 = vmatprep.mubr.f32.mxu0 %v1177
          %1454 = vmatmul.mubr.f32.gmra.mrb[0].mxu0 %v1176
          %v1455 = vpop.f32.mrb[0].mxu0
          %v1456 = vadd.f32 %v1272, %v1455
          %v1457 = vpop.f32.mrb[0].mxu0
          %1458 = vmatprep.mubr.f32.mxu0 %v1179
          %1459 = vmatmul.mubr.f32.gmra.mrb[0].mxu0 %v1178
          %v1460 = vpop.f32.mrb[0].mxu0
          %v1461 = vadd.f32 %v1277, %v1460
          %v1462 = vpop.f32.mrb[0].mxu0
          %1463 = vmatprep.mubr.f32.mxu0 %v1181
          %1464 = vmatmul.mubr.f32.gmra.mrb[0].mxu0 %v1180
          %v1465 = vpop.f32.mrb[0].mxu0
          %v1466 = vadd.f32 %v1282, %v1465
          %v1467 = vpop.f32.mrb[0].mxu0
          %1468 = vmatprep.mubr.f32.mxu0 %v1183
          %1469 = vmatmul.mubr.f32.gmra.mrb[0].mxu0 %v1182
          %v1470 = vpop.f32.mrb[0].mxu0
          %v1471 = vadd.f32 %v1287, %v1470
          %v1472 = vpop.f32.mrb[0].mxu0
          %1473 = vmatprep.mubr.f32.mxu0 %v1185
          %1474 = vmatmul.mubr.f32.gmra.mrb[0].mxu0 %v1184
          %v1475 = vpop.f32.mrb[0].mxu0
          %v1476 = vadd.f32 %v1292, %v1475
          %v1477 = vpop.f32.mrb[0].mxu0
          %1478 = vmatprep.mubr.f32.mxu0 %v1187
          %1479 = vmatmul.mubr.f32.gmra.mrb[0].mxu0 %v1186
          %v1480 = vpop.f32.mrb[0].mxu0
          %v1481 = vadd.f32 %v1297, %v1480
          %v1482 = vpop.f32.mrb[0].mxu0
          %1483 = vmatprep.mubr.f32.mxu0 %v1189
          %1484 = vmatmul.mubr.f32.gmra.mrb[0].mxu0 %v1188
          %v1485 = vpop.f32.mrb[0].mxu0
          %v1486 = vadd.f32 %v1302, %v1485
          %v1487 = vpop.f32.mrb[0].mxu0
          %1488 = vmatprep.mubr.f32.mxu0 %v1191
          %1489 = vmatmul.mubr.f32.gmra.mrb[0].mxu0 %v1190
          %v1490 = vpop.f32.mrb[0].mxu0
          %v1491 = vadd.f32 %v1307, %v1490
          %v1492 = vpop.f32.mrb[0].mxu0
          %1493 = vmatprep.mubr.f32.mxu0 %v1193
          %1494 = vmatmul.mubr.f32.gmra.mrb[0].mxu0 %v1192
          %v1495 = vpop.f32.mrb[0].mxu0
          %v1496 = vadd.f32 %v1312, %v1495
          %v1497 = vpop.f32.mrb[0].mxu0
          %1498 = vmatprep.mubr.f32.mxu0 %v1195
          %1499 = vmatmul.mubr.f32.gmra.mrb[0].mxu0 %v1194
          %v1500 = vpop.f32.mrb[0].mxu0
          %v1501 = vadd.f32 %v1317, %v1500
          %v1502 = vpop.f32.mrb[0].mxu0
          %1503 = vmatprep.mubr.f32.mxu0 %v1197
          %1504 = vmatmul.mubr.f32.gmra.mrb[0].mxu0 %v1196
          %v1505 = vpop.f32.mrb[0].mxu0
          %v1506 = vadd.f32 %v1322, %v1505
          %v1507 = vpop.f32.mrb[0].mxu0
          %1508 = vmatprep.mubr.f32.mxu0 %v1199
          %1509 = vmatmul.mubr.f32.gmra.mrb[0].mxu0 %v1198
          %v1510 = vpop.f32.mrb[0].mxu0
          %v1511 = vadd.f32 %v1327, %v1510
          %v1512 = vpop.f32.mrb[0].mxu0
          %1513 = vmatprep.mubr.f32.mxu0 %v1201
          %1514 = vmatmul.mubr.f32.gmra.mrb[0].mxu0 %v1200
          %v1515 = vpop.f32.mrb[0].mxu0
          %v1516 = vadd.f32 %v1332, %v1515
          %v1517 = vpop.f32.mrb[0].mxu0
          %1518 = vmatprep.mubr.f32.mxu0 %v1203
          %1519 = vmatmul.mubr.f32.gmra.mrb[0].mxu0 %v1202
          %v1520 = vpop.f32.mrb[0].mxu0
          %v1521 = vadd.f32 %v1337, %v1520
          %v1522 = vpop.f32.mrb[0].mxu0
          %1523 = vmatprep.mubr.f32.mxu0 %v1205
          %1524 = vmatmul.mubr.f32.gmra.mrb[0].mxu0 %v1204
          %v1525 = vpop.f32.mrb[0].mxu0
          %v1526 = vadd.f32 %v1342, %v1525
          %v1527 = vpop.f32.mrb[0].mxu0
          %1528 = vmatprep.mubr.f32.mxu0 %v1207
          %1529 = vmatmul.mubr.f32.gmra.mrb[0].mxu0 %v1206
          %v1530 = vpop.f32.mrb[0].mxu0
          %v1531 = vadd.f32 %v1347, %v1530
          %v1532 = vpop.f32.mrb[0].mxu0
          %1533 = vmatprep.mubr.f32.mxu0 %v1209
          %1534 = vmatmul.mubr.f32.gmra.mrb[0].mxu0 %v1208
          %v1535 = vpop.f32.mrb[0].mxu0
          %v1536 = vadd.f32 %v1352, %v1535
          %v1537 = vpop.f32.mrb[0].mxu0
          %1538 = vdwg.mxu0
          %vm1539 = vcmp.ge.f32.partialorder %v1421, 0.0
          %vm1540 = vcmp.ge.f32.partialorder %v1426, 0.0
          %vm1541 = vcmp.ge.f32.partialorder %v1431, 0.0
          %vm1542 = vcmp.ge.f32.partialorder %v1436, 0.0
          %vm1543 = vcmp.ge.f32.partialorder %v1441, 0.0
          %vm1544 = vcmp.ge.f32.partialorder %v1446, 0.0
          %vm1545 = vcmp.ge.f32.partialorder %v1451, 0.0
          %vm1546 = vcmp.ge.f32.partialorder %v1456, 0.0
          %vm1547 = vcmp.ge.f32.partialorder %v1461, 0.0
          %vm1548 = vcmp.ge.f32.partialorder %v1466, 0.0
          %vm1549 = vcmp.ge.f32.partialorder %v1471, 0.0
          %vm1550 = vcmp.ge.f32.partialorder %v1476, 0.0
          %vm1551 = vcmp.ge.f32.partialorder %v1481, 0.0
          %vm1552 = vcmp.ge.f32.partialorder %v1486, 0.0
          %vm1553 = vcmp.ge.f32.partialorder %v1491, 0.0
          %vm1554 = vcmp.ge.f32.partialorder %v1496, 0.0
          %vm1555 = vcmp.ge.f32.partialorder %v1501, 0.0
          %vm1556 = vcmp.ge.f32.partialorder %v1506, 0.0
          %vm1557 = vcmp.ge.f32.partialorder %v1511, 0.0
          %vm1558 = vcmp.ge.f32.partialorder %v1516, 0.0
          %vm1559 = vcmp.ge.f32.partialorder %v1521, 0.0
          %vm1560 = vcmp.ge.f32.partialorder %v1526, 0.0
          %vm1561 = vcmp.ge.f32.partialorder %v1531, 0.0
          %vm1562 = vcmp.ge.f32.partialorder %v1536, 0.0
          %v1563 = vmul.f32 %v1421, 0.1
          %v1564 = vmul.f32 %v1426, 0.1
          %v1565 = vmul.f32 %v1431, 0.1
          %v1566 = vmul.f32 %v1436, 0.1
          %v1567 = vmul.f32 %v1441, 0.1
          %v1568 = vmul.f32 %v1446, 0.1
          %v1569 = vmul.f32 %v1451, 0.1
          %v1570 = vmul.f32 %v1456, 0.1
          %v1571 = vmul.f32 %v1461, 0.1
          %v1572 = vmul.f32 %v1466, 0.1
          %v1573 = vmul.f32 %v1471, 0.1
          %v1574 = vmul.f32 %v1476, 0.1
          %v1575 = vmul.f32 %v1481, 0.1
          %v1576 = vmul.f32 %v1486, 0.1
          %v1577 = vmul.f32 %v1491, 0.1
          %v1578 = vmul.f32 %v1496, 0.1
          %v1579 = vmul.f32 %v1501, 0.1
          %v1580 = vmul.f32 %v1506, 0.1
          %v1581 = vmul.f32 %v1511, 0.1
          %v1582 = vmul.f32 %v1516, 0.1
          %v1583 = vmul.f32 %v1521, 0.1
          %v1584 = vmul.f32 %v1526, 0.1
          %v1585 = vmul.f32 %v1531, 0.1
          %v1586 = vmul.f32 %v1536, 0.1
          %v1587 = vsel %vm1539, %v1421, %v1563
          %v1588 = vsel %vm1540, %v1426, %v1564
          %v1589 = vsel %vm1541, %v1431, %v1565
          %v1590 = vsel %vm1542, %v1436, %v1566
          %v1591 = vsel %vm1543, %v1441, %v1567
          %v1592 = vsel %vm1544, %v1446, %v1568
          %v1593 = vsel %vm1545, %v1451, %v1569
          %v1594 = vsel %vm1546, %v1456, %v1570
          %v1595 = vsel %vm1547, %v1461, %v1571
          %v1596 = vsel %vm1548, %v1466, %v1572
          %v1597 = vsel %vm1549, %v1471, %v1573
          %v1598 = vsel %vm1550, %v1476, %v1574
          %v1599 = vsel %vm1551, %v1481, %v1575
          %v1600 = vsel %vm1552, %v1486, %v1576
          %v1601 = vsel %vm1553, %v1491, %v1577
          %v1602 = vsel %vm1554, %v1496, %v1578
          %v1603 = vsel %vm1555, %v1501, %v1579
          %v1604 = vsel %vm1556, %v1506, %v1580
          %v1605 = vsel %vm1557, %v1511, %v1581
          %v1606 = vsel %vm1558, %v1516, %v1582
          %v1607 = vsel %vm1559, %v1521, %v1583
          %v1608 = vsel %vm1560, %v1526, %v1584
          %v1609 = vsel %vm1561, %v1531, %v1585
          %v1610 = vsel %vm1562, %v1536, %v1586
          %vm1611 = vcmask 261120
          %1612 = vst.msk [vmem:[#allocation2] sm:$0xff] %vm1611, %v1587
          %1613 = vst.msk [vmem:[#allocation2 + $0x8] sm:$0xff] %vm1611, %v1588
          %1614 = vst.msk [vmem:[#allocation2 + $0x10] sm:$0xff] %vm1611, %v1589
          %1615 = vst.msk [vmem:[#allocation2 + $0x18] sm:$0xff] %vm1611, %v1590
          %1616 = vst.msk [vmem:[#allocation2 + $0x20] sm:$0xff] %vm1611, %v1591
          %1617 = vst.msk [vmem:[#allocation2 + $0x28] sm:$0xff] %vm1611, %v1592
          %1618 = vst.msk [vmem:[#allocation2 + $0x30] sm:$0xff] %vm1611, %v1593
          %1619 = vst.msk [vmem:[#allocation2 + $0x38] sm:$0xff] %vm1611, %v1594
          %1620 = vst.msk [vmem:[#allocation2 + $0x40] sm:$0xff] %vm1611, %v1595
          %1621 = vst.msk [vmem:[#allocation2 + $0x48] sm:$0xff] %vm1611, %v1596
          %1622 = vst.msk [vmem:[#allocation2 + $0x50] sm:$0xff] %vm1611, %v1597
          %1623 = vst.msk [vmem:[#allocation2 + $0x58] sm:$0xff] %vm1611, %v1598
          %1624 = vst.msk [vmem:[#allocation2 + $0x60] sm:$0xff] %vm1611, %v1599
          %1625 = vst.msk [vmem:[#allocation2 + $0x68] sm:$0xff] %vm1611, %v1600
          %1626 = vst.msk [vmem:[#allocation2 + $0x70] sm:$0xff] %vm1611, %v1601
          %1627 = vst.msk [vmem:[#allocation2 + $0x78] sm:$0xff] %vm1611, %v1602
          %1628 = vst.msk [vmem:[#allocation2 + $0x80] sm:$0xff] %vm1611, %v1603
          %1629 = vst.msk [vmem:[#allocation2 + $0x88] sm:$0xff] %vm1611, %v1604
          %1630 = vst.msk [vmem:[#allocation2 + $0x90] sm:$0xff] %vm1611, %v1605
          %1631 = vst.msk [vmem:[#allocation2 + $0x98] sm:$0xff] %vm1611, %v1606
          %1632 = vst.msk [vmem:[#allocation2 + $0xa0] sm:$0xff] %vm1611, %v1607
          %1633 = vst.msk [vmem:[#allocation2 + $0xa8] sm:$0xff] %vm1611, %v1608
          %1634 = vst.msk [vmem:[#allocation2 + $0xb0] sm:$0xff] %vm1611, %v1609
          %1635 = vst.msk [vmem:[#allocation2 + $0xb8] sm:$0xff] %vm1611, %v1610
          %1660 = vrot.lane.b32.xlu0 %v1587, 96
          %v1661 = vpop.permute.xlu0 %1660
          %1662 = vrot.lane.b32.xlu0 %v1588, 96
          %v1663 = vpop.permute.xlu0 %1662
          %1664 = vrot.lane.b32.xlu0 %v1589, 96
          %v1665 = vpop.permute.xlu0 %1664
          %1666 = vrot.lane.b32.xlu0 %v1590, 96
          %v1667 = vpop.permute.xlu0 %1666
          %1668 = vrot.lane.b32.xlu0 %v1591, 96
          %v1669 = vpop.permute.xlu0 %1668
          %1670 = vrot.lane.b32.xlu0 %v1592, 96
          %v1671 = vpop.permute.xlu0 %1670
          %1672 = vrot.lane.b32.xlu0 %v1593, 96
          %v1673 = vpop.permute.xlu0 %1672
          %1674 = vrot.lane.b32.xlu0 %v1594, 96
          %v1675 = vpop.permute.xlu0 %1674
          %1676 = vrot.lane.b32.xlu0 %v1595, 96
          %v1677 = vpop.permute.xlu0 %1676
          %1678 = vrot.lane.b32.xlu0 %v1596, 96
          %v1679 = vpop.permute.xlu0 %1678
          %1680 = vrot.lane.b32.xlu0 %v1597, 96
          %v1681 = vpop.permute.xlu0 %1680
          %1682 = vrot.lane.b32.xlu0 %v1598, 96
          %v1683 = vpop.permute.xlu0 %1682
          %1684 = vrot.lane.b32.xlu0 %v1599, 96
          %v1685 = vpop.permute.xlu0 %1684
          %1686 = vrot.lane.b32.xlu0 %v1600, 96
          %v1687 = vpop.permute.xlu0 %1686
          %1688 = vrot.lane.b32.xlu0 %v1601, 96
          %v1689 = vpop.permute.xlu0 %1688
          %1690 = vrot.lane.b32.xlu0 %v1602, 96
          %v1691 = vpop.permute.xlu0 %1690
          %1692 = vrot.lane.b32.xlu0 %v1603, 96
          %v1693 = vpop.permute.xlu0 %1692
          %1694 = vrot.lane.b32.xlu0 %v1604, 96
          %v1695 = vpop.permute.xlu0 %1694
          %1696 = vrot.lane.b32.xlu0 %v1605, 96
          %v1697 = vpop.permute.xlu0 %1696
          %1698 = vrot.lane.b32.xlu0 %v1606, 96
          %v1699 = vpop.permute.xlu0 %1698
          %1700 = vrot.lane.b32.xlu0 %v1607, 96
          %v1701 = vpop.permute.xlu0 %1700
          %1702 = vrot.lane.b32.xlu0 %v1608, 96
          %v1703 = vpop.permute.xlu0 %1702
          %1704 = vrot.lane.b32.xlu0 %v1609, 96
          %v1705 = vpop.permute.xlu0 %1704
          %1706 = vrot.lane.b32.xlu0 %v1610, 96
          %v1707 = vpop.permute.xlu0 %1706
          %s1732 = scalar_lea.vmem [#allocation2], 192
          %1733 = vst.msk [vmem:[%s1732] sm:$0xff] %vm1611, %v1661
          %1734 = vst.msk [vmem:[%s1732 + $0x8] sm:$0xff] %vm1611, %v1663
          %1735 = vst.msk [vmem:[%s1732 + $0x10] sm:$0xff] %vm1611, %v1665
          %1736 = vst.msk [vmem:[%s1732 + $0x18] sm:$0xff] %vm1611, %v1667
          %1737 = vst.msk [vmem:[%s1732 + $0x20] sm:$0xff] %vm1611, %v1669
          %1738 = vst.msk [vmem:[%s1732 + $0x28] sm:$0xff] %vm1611, %v1671
          %1739 = vst.msk [vmem:[%s1732 + $0x30] sm:$0xff] %vm1611, %v1673
          %1740 = vst.msk [vmem:[%s1732 + $0x38] sm:$0xff] %vm1611, %v1675
          %1741 = vst.msk [vmem:[%s1732 + $0x40] sm:$0xff] %vm1611, %v1677
          %1742 = vst.msk [vmem:[%s1732 + $0x48] sm:$0xff] %vm1611, %v1679
          %1743 = vst.msk [vmem:[%s1732 + $0x50] sm:$0xff] %vm1611, %v1681
          %1744 = vst.msk [vmem:[%s1732 + $0x58] sm:$0xff] %vm1611, %v1683
          %1745 = vst.msk [vmem:[%s1732 + $0x60] sm:$0xff] %vm1611, %v1685
          %1746 = vst.msk [vmem:[%s1732 + $0x68] sm:$0xff] %vm1611, %v1687
          %1747 = vst.msk [vmem:[%s1732 + $0x70] sm:$0xff] %vm1611, %v1689
          %1748 = vst.msk [vmem:[%s1732 + $0x78] sm:$0xff] %vm1611, %v1691
          %1749 = vst.msk [vmem:[%s1732 + $0x80] sm:$0xff] %vm1611, %v1693
          %1750 = vst.msk [vmem:[%s1732 + $0x88] sm:$0xff] %vm1611, %v1695
          %1751 = vst.msk [vmem:[%s1732 + $0x90] sm:$0xff] %vm1611, %v1697
          %1752 = vst.msk [vmem:[%s1732 + $0x98] sm:$0xff] %vm1611, %v1699
          %1753 = vst.msk [vmem:[%s1732 + $0xa0] sm:$0xff] %vm1611, %v1701
          %1754 = vst.msk [vmem:[%s1732 + $0xa8] sm:$0xff] %vm1611, %v1703
          %1755 = vst.msk [vmem:[%s1732 + $0xb0] sm:$0xff] %vm1611, %v1705
          %1756 = vst.msk [vmem:[%s1732 + $0xb8] sm:$0xff] %vm1611, %v1707
        $region122: #{neck_forward.1} parent=113 // pred_fallthru
          _
        %s1757 = smul.u32 %s31, 192
        %s1758 = scalar_lea.vmem [#allocation2], %s1757
        %v1759 = vld [vmem:[%s1758] sm:$0xff]
        %v1760 = vld [vmem:[%s1758 + $0x8] sm:$0xff]
        %v1761 = vld [vmem:[%s1758 + $0x10] sm:$0xff]
        %v1762 = vld [vmem:[%s1758 + $0x18] sm:$0xff]
        %v1763 = vld [vmem:[%s1758 + $0x20] sm:$0xff]
        %v1764 = vld [vmem:[%s1758 + $0x28] sm:$0xff]
        %v1765 = vld [vmem:[%s1758 + $0x30] sm:$0xff]
        %v1766 = vld [vmem:[%s1758 + $0x38] sm:$0xff]
        %v1767 = vld [vmem:[%s1758 + $0x40] sm:$0xff]
        %v1768 = vld [vmem:[%s1758 + $0x48] sm:$0xff]
        %v1769 = vld [vmem:[%s1758 + $0x50] sm:$0xff]
        %v1770 = vld [vmem:[%s1758 + $0x58] sm:$0xff]
        %v1771 = vld [vmem:[%s1758 + $0x60] sm:$0xff]
        %v1772 = vld [vmem:[%s1758 + $0x68] sm:$0xff]
        %v1773 = vld [vmem:[%s1758 + $0x70] sm:$0xff]
        %v1774 = vld [vmem:[%s1758 + $0x78] sm:$0xff]
        %v1775 = vld [vmem:[%s1758 + $0x80] sm:$0xff]
        %v1776 = vld [vmem:[%s1758 + $0x88] sm:$0xff]
        %v1777 = vld [vmem:[%s1758 + $0x90] sm:$0xff]
        %v1778 = vld [vmem:[%s1758 + $0x98] sm:$0xff]
        %v1779 = vld [vmem:[%s1758 + $0xa0] sm:$0xff]
        %v1780 = vld [vmem:[%s1758 + $0xa8] sm:$0xff]
        %v1781 = vld [vmem:[%s1758 + $0xb0] sm:$0xff]
        %v1782 = vld [vmem:[%s1758 + $0xb8] sm:$0xff]
        %v1783 = vld [vmem:[%s12] sm:$0xff]
        %vm1784 = vcmask 64512
        %v1786 = vsel %vm1784, %v1759, 0
        %v1789 = vsel %vm1784, %v1760, 0
        %v1792 = vsel %vm1784, %v1761, 0
        %v1795 = vsel %vm1784, %v1762, 0
        %v1798 = vsel %vm1784, %v1763, 0
        %v1801 = vsel %vm1784, %v1764, 0
        %v1804 = vsel %vm1784, %v1765, 0
        %v1807 = vsel %vm1784, %v1766, 0
        %v1810 = vsel %vm1784, %v1767, 0
        %v1813 = vsel %vm1784, %v1768, 0
        %v1816 = vsel %vm1784, %v1769, 0
        %v1819 = vsel %vm1784, %v1770, 0
        %v1822 = vsel %vm1784, %v1771, 0
        %v1825 = vsel %vm1784, %v1772, 0
        %v1828 = vsel %vm1784, %v1773, 0
        %v1831 = vsel %vm1784, %v1774, 0
        %v1834 = vsel %vm1784, %v1775, 0
        %v1837 = vsel %vm1784, %v1776, 0
        %v1840 = vsel %vm1784, %v1777, 0
        %v1843 = vsel %vm1784, %v1778, 0
        %v1846 = vsel %vm1784, %v1779, 0
        %v1849 = vsel %vm1784, %v1780, 0
        %v1852 = vsel %vm1784, %v1781, 0
        %v1855 = vsel %vm1784, %v1782, 0
        %1857 = vmatprep.subr.mxu0 0.0
        %1858 = vmatpush1.msra.mxu0 %v1783
        %1859 = vmatprep.subr.mxu0 0.0
        %1860 = vmatpush1.msra.mxu0 0.0
        %1861 = vmatprep.subr.mxu0 0.0
        %1862 = vmatpush1.msra.mxu0 0.0
        %1863 = vmatprep.subr.mxu0 0.0
        %1864 = vmatpush1.msra.mxu0 0.0
        %1865 = vmatprep.subr.mxu0 0.0
        %1866 = vmatpush1.msra.mxu0 0.0
        %1867 = vmatprep.subr.mxu0 0.0
        %1868 = vmatpush1.msra.mxu0 0.0
        %1869 = vmatprep.subr.mxu0 0.0
        %1870 = vmatpush1.msra.mxu0 0.0
        %1871 = vmatprep.subr.mxu0 0.0
        %1872 = vmatpush1.msra.mxu0 0.0
        %1873 = vmatprep.subr.mxu0 0.0
        %1874 = vmatpush1.msra.mxu0 0.0
        %1875 = vmatprep.subr.mxu0 0.0
        %1876 = vmatpush1.msra.mxu0 0.0
        %1877 = vmatprep.subr.mxu0 0.0
        %1878 = vmatpush1.msra.mxu0 0.0
        %1879 = vmatprep.subr.mxu0 0.0
        %1880 = vmatpush1.msra.mxu0 0.0
        %1881 = vmatprep.subr.mxu0 0.0
        %1882 = vmatpush1.msra.mxu0 0.0
        %1883 = vmatprep.subr.mxu0 0.0
        %1884 = vmatpush1.msra.mxu0 0.0
        %1885 = vmatprep.subr.mxu0 0.0
        %1886 = vmatpush1.msra.mxu0 0.0
        %1887 = vmatprep.subr.mxu0 0.0
        %1888 = vmatpush1.msra.mxu0 0.0
        %1889 = vmatprep.subr.mxu0 0.0
        %1890 = vmatpush1.msra.mxu0 0.0
        %1891 = vmatprep.subr.mxu0 0.0
        %1892 = vmatpush1.msra.mxu0 0.0
        %1893 = vmatprep.subr.mxu0 0.0
        %1894 = vmatpush1.msra.mxu0 0.0
        %1895 = vmatprep.subr.mxu0 0.0
        %1896 = vmatpush1.msra.mxu0 0.0
        %1897 = vmatprep.subr.mxu0 0.0
        %1898 = vmatpush1.msra.mxu0 0.0
        %1899 = vmatprep.subr.mxu0 0.0
        %1900 = vmatpush1.msra.mxu0 0.0
        %1901 = vmatprep.subr.mxu0 0.0
        %1902 = vmatpush1.msra.mxu0 0.0
        %1903 = vmatprep.subr.mxu0 0.0
        %1904 = vmatpush1.msra.mxu0 0.0
        %1905 = vmatprep.subr.mxu0 0.0
        %1906 = vmatpush1.msra.mxu0 0.0
        %1907 = vmatprep.subr.mxu0 0.0
        %1908 = vmatpush1.msra.mxu0 0.0
        %1909 = vmatprep.subr.mxu0 0.0
        %1910 = vmatpush1.msra.mxu0 0.0
        %1911 = vmatprep.subr.mxu0 0.0
        %1912 = vmatpush1.msra.mxu0 0.0
        %1913 = vmatprep.subr.mxu0 0.0
        %1914 = vmatpush1.msra.mxu0 0.0
        %1915 = vmatprep.subr.mxu0 0.0
        %1916 = vmatpush1.msra.mxu0 0.0
        %1917 = vmatprep.subr.mxu0 0.0
        %1918 = vmatpush1.msra.mxu0 0.0
        %1919 = vmatprep.subr.mxu0 0.0
        %1920 = vmatpush1.msra.mxu0 0.0
        %1921 = vmatprep.mubr.f32.mxu0 0.0
        %1922 = vmatmul.mubr.f32.gmra.mrb[0].mxu0 %v1786
        %v1923 = vpop.f32.mrb[0].mxu0
        %v1924 = vadd.f32 0.0, %v1923
        %v1925 = vpop.f32.mrb[0].mxu0
        %1926 = vmatprep.mubr.f32.mxu0 0.0
        %1927 = vmatmul.mubr.f32.gmra.mrb[0].mxu0 %v1789
        %v1928 = vpop.f32.mrb[0].mxu0
        %v1929 = vadd.f32 0.0, %v1928
        %v1930 = vpop.f32.mrb[0].mxu0
        %1931 = vmatprep.mubr.f32.mxu0 0.0
        %1932 = vmatmul.mubr.f32.gmra.mrb[0].mxu0 %v1792
        %v1933 = vpop.f32.mrb[0].mxu0
        %v1934 = vadd.f32 0.0, %v1933
        %v1935 = vpop.f32.mrb[0].mxu0
        %1936 = vmatprep.mubr.f32.mxu0 0.0
        %1937 = vmatmul.mubr.f32.gmra.mrb[0].mxu0 %v1795
        %v1938 = vpop.f32.mrb[0].mxu0
        %v1939 = vadd.f32 0.0, %v1938
        %v1940 = vpop.f32.mrb[0].mxu0
        %1941 = vmatprep.mubr.f32.mxu0 0.0
        %1942 = vmatmul.mubr.f32.gmra.mrb[0].mxu0 %v1798
        %v1943 = vpop.f32.mrb[0].mxu0
        %v1944 = vadd.f32 0.0, %v1943
        %v1945 = vpop.f32.mrb[0].mxu0
        %1946 = vmatprep.mubr.f32.mxu0 0.0
        %1947 = vmatmul.mubr.f32.gmra.mrb[0].mxu0 %v1801
        %v1948 = vpop.f32.mrb[0].mxu0
        %v1949 = vadd.f32 0.0, %v1948
        %v1950 = vpop.f32.mrb[0].mxu0
        %1951 = vmatprep.mubr.f32.mxu0 0.0
        %1952 = vmatmul.mubr.f32.gmra.mrb[0].mxu0 %v1804
        %v1953 = vpop.f32.mrb[0].mxu0
        %v1954 = vadd.f32 0.0, %v1953
        %v1955 = vpop.f32.mrb[0].mxu0
        %1956 = vmatprep.mubr.f32.mxu0 0.0
        %1957 = vmatmul.mubr.f32.gmra.mrb[0].mxu0 %v1807
        %v1958 = vpop.f32.mrb[0].mxu0
        %v1959 = vadd.f32 0.0, %v1958
        %v1960 = vpop.f32.mrb[0].mxu0
        %1961 = vmatprep.mubr.f32.mxu0 0.0
        %1962 = vmatmul.mubr.f32.gmra.mrb[0].mxu0 %v1810
        %v1963 = vpop.f32.mrb[0].mxu0
        %v1964 = vadd.f32 0.0, %v1963
        %v1965 = vpop.f32.mrb[0].mxu0
        %1966 = vmatprep.mubr.f32.mxu0 0.0
        %1967 = vmatmul.mubr.f32.gmra.mrb[0].mxu0 %v1813
        %v1968 = vpop.f32.mrb[0].mxu0
        %v1969 = vadd.f32 0.0, %v1968
        %v1970 = vpop.f32.mrb[0].mxu0
        %1971 = vmatprep.mubr.f32.mxu0 0.0
        %1972 = vmatmul.mubr.f32.gmra.mrb[0].mxu0 %v1816
        %v1973 = vpop.f32.mrb[0].mxu0
        %v1974 = vadd.f32 0.0, %v1973
        %v1975 = vpop.f32.mrb[0].mxu0
        %1976 = vmatprep.mubr.f32.mxu0 0.0
        %1977 = vmatmul.mubr.f32.gmra.mrb[0].mxu0 %v1819
        %v1978 = vpop.f32.mrb[0].mxu0
        %v1979 = vadd.f32 0.0, %v1978
        %v1980 = vpop.f32.mrb[0].mxu0
        %1981 = vmatprep.mubr.f32.mxu0 0.0
        %1982 = vmatmul.mubr.f32.gmra.mrb[0].mxu0 %v1822
        %v1983 = vpop.f32.mrb[0].mxu0
        %v1984 = vadd.f32 0.0, %v1983
        %v1985 = vpop.f32.mrb[0].mxu0
        %1986 = vmatprep.mubr.f32.mxu0 0.0
        %1987 = vmatmul.mubr.f32.gmra.mrb[0].mxu0 %v1825
        %v1988 = vpop.f32.mrb[0].mxu0
        %v1989 = vadd.f32 0.0, %v1988
        %v1990 = vpop.f32.mrb[0].mxu0
        %1991 = vmatprep.mubr.f32.mxu0 0.0
        %1992 = vmatmul.mubr.f32.gmra.mrb[0].mxu0 %v1828
        %v1993 = vpop.f32.mrb[0].mxu0
        %v1994 = vadd.f32 0.0, %v1993
        %v1995 = vpop.f32.mrb[0].mxu0
        %1996 = vmatprep.mubr.f32.mxu0 0.0
        %1997 = vmatmul.mubr.f32.gmra.mrb[0].mxu0 %v1831
        %v1998 = vpop.f32.mrb[0].mxu0
        %v1999 = vadd.f32 0.0, %v1998
        %v2000 = vpop.f32.mrb[0].mxu0
        %2001 = vmatprep.mubr.f32.mxu0 0.0
        %2002 = vmatmul.mubr.f32.gmra.mrb[0].mxu0 %v1834
        %v2003 = vpop.f32.mrb[0].mxu0
        %v2004 = vadd.f32 0.0, %v2003
        %v2005 = vpop.f32.mrb[0].mxu0
        %2006 = vmatprep.mubr.f32.mxu0 0.0
        %2007 = vmatmul.mubr.f32.gmra.mrb[0].mxu0 %v1837
        %v2008 = vpop.f32.mrb[0].mxu0
        %v2009 = vadd.f32 0.0, %v2008
        %v2010 = vpop.f32.mrb[0].mxu0
        %2011 = vmatprep.mubr.f32.mxu0 0.0
        %2012 = vmatmul.mubr.f32.gmra.mrb[0].mxu0 %v1840
        %v2013 = vpop.f32.mrb[0].mxu0
        %v2014 = vadd.f32 0.0, %v2013
        %v2015 = vpop.f32.mrb[0].mxu0
        %2016 = vmatprep.mubr.f32.mxu0 0.0
        %2017 = vmatmul.mubr.f32.gmra.mrb[0].mxu0 %v1843
        %v2018 = vpop.f32.mrb[0].mxu0
        %v2019 = vadd.f32 0.0, %v2018
        %v2020 = vpop.f32.mrb[0].mxu0
        %2021 = vmatprep.mubr.f32.mxu0 0.0
        %2022 = vmatmul.mubr.f32.gmra.mrb[0].mxu0 %v1846
        %v2023 = vpop.f32.mrb[0].mxu0
        %v2024 = vadd.f32 0.0, %v2023
        %v2025 = vpop.f32.mrb[0].mxu0
        %2026 = vmatprep.mubr.f32.mxu0 0.0
        %2027 = vmatmul.mubr.f32.gmra.mrb[0].mxu0 %v1849
        %v2028 = vpop.f32.mrb[0].mxu0
        %v2029 = vadd.f32 0.0, %v2028
        %v2030 = vpop.f32.mrb[0].mxu0
        %2031 = vmatprep.mubr.f32.mxu0 0.0
        %2032 = vmatmul.mubr.f32.gmra.mrb[0].mxu0 %v1852
        %v2033 = vpop.f32.mrb[0].mxu0
        %v2034 = vadd.f32 0.0, %v2033
        %v2035 = vpop.f32.mrb[0].mxu0
        %2036 = vmatprep.mubr.f32.mxu0 0.0
        %2037 = vmatmul.mubr.f32.gmra.mrb[0].mxu0 %v1855
        %v2038 = vpop.f32.mrb[0].mxu0
        %v2039 = vadd.f32 0.0, %v2038
        %v2040 = vpop.f32.mrb[0].mxu0
        %2041 = vdwg.mxu0
        %vm2042 = vcmask 130048
        %2043 = vst.msk [vmem:[%s645 + $0xc0] sm:$0xff] %vm2042, %v1924
        %2044 = vst.msk [vmem:[%s645 + $0xc8] sm:$0xff] %vm2042, %v1929
        %2045 = vst.msk [vmem:[%s645 + $0xd0] sm:$0xff] %vm2042, %v1934
        %2046 = vst.msk [vmem:[%s645 + $0xd8] sm:$0xff] %vm2042, %v1939
        %2047 = vst.msk [vmem:[%s645 + $0xe0] sm:$0xff] %vm2042, %v1944
        %2048 = vst.msk [vmem:[%s645 + $0xe8] sm:$0xff] %vm2042, %v1949
        %2049 = vst.msk [vmem:[%s645 + $0xf0] sm:$0xff] %vm2042, %v1954
        %2050 = vst.msk [vmem:[%s645 + $0xf8] sm:$0xff] %vm2042, %v1959
        %2051 = vst.msk [vmem:[%s645 + $0x100] sm:$0xff] %vm2042, %v1964
        %2052 = vst.msk [vmem:[%s645 + $0x108] sm:$0xff] %vm2042, %v1969
        %2053 = vst.msk [vmem:[%s645 + $0x110] sm:$0xff] %vm2042, %v1974
        %2054 = vst.msk [vmem:[%s645 + $0x118] sm:$0xff] %vm2042, %v1979
        %2055 = vst.msk [vmem:[%s645 + $0x120] sm:$0xff] %vm2042, %v1984
        %2056 = vst.msk [vmem:[%s645 + $0x128] sm:$0xff] %vm2042, %v1989
        %2057 = vst.msk [vmem:[%s645 + $0x130] sm:$0xff] %vm2042, %v1994
        %2058 = vst.msk [vmem:[%s645 + $0x138] sm:$0xff] %vm2042, %v1999
        %2059 = vst.msk [vmem:[%s645 + $0x140] sm:$0xff] %vm2042, %v2004
        %2060 = vst.msk [vmem:[%s645 + $0x148] sm:$0xff] %vm2042, %v2009
        %2061 = vst.msk [vmem:[%s645 + $0x150] sm:$0xff] %vm2042, %v2014
        %2062 = vst.msk [vmem:[%s645 + $0x158] sm:$0xff] %vm2042, %v2019
        %2063 = vst.msk [vmem:[%s645 + $0x160] sm:$0xff] %vm2042, %v2024
        %2064 = vst.msk [vmem:[%s645 + $0x168] sm:$0xff] %vm2042, %v2029
        %2065 = vst.msk [vmem:[%s645 + $0x170] sm:$0xff] %vm2042, %v2034
        %2066 = vst.msk [vmem:[%s645 + $0x178] sm:$0xff] %vm2042, %v2039
        %2091 = vrot.lane.b32.xlu0 %v1924, 16
        %v2092 = vpop.permute.xlu0 %2091
        %2093 = vrot.lane.b32.xlu0 %v1929, 16
        %v2094 = vpop.permute.xlu0 %2093
        %2095 = vrot.lane.b32.xlu0 %v1934, 16
        %v2096 = vpop.permute.xlu0 %2095
        %2097 = vrot.lane.b32.xlu0 %v1939, 16
        %v2098 = vpop.permute.xlu0 %2097
        %2099 = vrot.lane.b32.xlu0 %v1944, 16
        %v2100 = vpop.permute.xlu0 %2099
        %2101 = vrot.lane.b32.xlu0 %v1949, 16
        %v2102 = vpop.permute.xlu0 %2101
        %2103 = vrot.lane.b32.xlu0 %v1954, 16
        %v2104 = vpop.permute.xlu0 %2103
        %2105 = vrot.lane.b32.xlu0 %v1959, 16
        %v2106 = vpop.permute.xlu0 %2105
        %2107 = vrot.lane.b32.xlu0 %v1964, 16
        %v2108 = vpop.permute.xlu0 %2107
        %2109 = vrot.lane.b32.xlu0 %v1969, 16
        %v2110 = vpop.permute.xlu0 %2109
        %2111 = vrot.lane.b32.xlu0 %v1974, 16
        %v2112 = vpop.permute.xlu0 %2111
        %2113 = vrot.lane.b32.xlu0 %v1979, 16
        %v2114 = vpop.permute.xlu0 %2113
        %2115 = vrot.lane.b32.xlu0 %v1984, 16
        %v2116 = vpop.permute.xlu0 %2115
        %2117 = vrot.lane.b32.xlu0 %v1989, 16
        %v2118 = vpop.permute.xlu0 %2117
        %2119 = vrot.lane.b32.xlu0 %v1994, 16
        %v2120 = vpop.permute.xlu0 %2119
        %2121 = vrot.lane.b32.xlu0 %v1999, 16
        %v2122 = vpop.permute.xlu0 %2121
        %2123 = vrot.lane.b32.xlu0 %v2004, 16
        %v2124 = vpop.permute.xlu0 %2123
        %2125 = vrot.lane.b32.xlu0 %v2009, 16
        %v2126 = vpop.permute.xlu0 %2125
        %2127 = vrot.lane.b32.xlu0 %v2014, 16
        %v2128 = vpop.permute.xlu0 %2127
        %2129 = vrot.lane.b32.xlu0 %v2019, 16
        %v2130 = vpop.permute.xlu0 %2129
        %2131 = vrot.lane.b32.xlu0 %v2024, 16
        %v2132 = vpop.permute.xlu0 %2131
        %2133 = vrot.lane.b32.xlu0 %v2029, 16
        %v2134 = vpop.permute.xlu0 %2133
        %2135 = vrot.lane.b32.xlu0 %v2034, 16
        %v2136 = vpop.permute.xlu0 %2135
        %2137 = vrot.lane.b32.xlu0 %v2039, 16
        %v2138 = vpop.permute.xlu0 %2137
        %vm2163 = vcmask 261248
        %2164 = vst.msk [vmem:[%s645 + $0xc0] sm:$0xff] %vm2163, %v2092
        %2165 = vst.msk [vmem:[%s645 + $0xc8] sm:$0xff] %vm2163, %v2094
        %2166 = vst.msk [vmem:[%s645 + $0xd0] sm:$0xff] %vm2163, %v2096
        %2167 = vst.msk [vmem:[%s645 + $0xd8] sm:$0xff] %vm2163, %v2098
        %2168 = vst.msk [vmem:[%s645 + $0xe0] sm:$0xff] %vm2163, %v2100
        %2169 = vst.msk [vmem:[%s645 + $0xe8] sm:$0xff] %vm2163, %v2102
        %2170 = vst.msk [vmem:[%s645 + $0xf0] sm:$0xff] %vm2163, %v2104
        %2171 = vst.msk [vmem:[%s645 + $0xf8] sm:$0xff] %vm2163, %v2106
        %2172 = vst.msk [vmem:[%s645 + $0x100] sm:$0xff] %vm2163, %v2108
        %2173 = vst.msk [vmem:[%s645 + $0x108] sm:$0xff] %vm2163, %v2110
        %2174 = vst.msk [vmem:[%s645 + $0x110] sm:$0xff] %vm2163, %v2112
        %2175 = vst.msk [vmem:[%s645 + $0x118] sm:$0xff] %vm2163, %v2114
        %2176 = vst.msk [vmem:[%s645 + $0x120] sm:$0xff] %vm2163, %v2116
        %2177 = vst.msk [vmem:[%s645 + $0x128] sm:$0xff] %vm2163, %v2118
        %2178 = vst.msk [vmem:[%s645 + $0x130] sm:$0xff] %vm2163, %v2120
        %2179 = vst.msk [vmem:[%s645 + $0x138] sm:$0xff] %vm2163, %v2122
        %2180 = vst.msk [vmem:[%s645 + $0x140] sm:$0xff] %vm2163, %v2124
        %2181 = vst.msk [vmem:[%s645 + $0x148] sm:$0xff] %vm2163, %v2126
        %2182 = vst.msk [vmem:[%s645 + $0x150] sm:$0xff] %vm2163, %v2128
        %2183 = vst.msk [vmem:[%s645 + $0x158] sm:$0xff] %vm2163, %v2130
        %2184 = vst.msk [vmem:[%s645 + $0x160] sm:$0xff] %vm2163, %v2132
        %2185 = vst.msk [vmem:[%s645 + $0x168] sm:$0xff] %vm2163, %v2134
        %2186 = vst.msk [vmem:[%s645 + $0x170] sm:$0xff] %vm2163, %v2136
        %2187 = vst.msk [vmem:[%s645 + $0x178] sm:$0xff] %vm2163, %v2138
        %2188 = vrot.lane.b32.xlu0 %v1759, 120
        %v2189 = vpop.permute.xlu0 %2188
        %2190 = vrot.lane.b32.xlu0 %v1760, 120
        %v2191 = vpop.permute.xlu0 %2190
        %2192 = vrot.lane.b32.xlu0 %v1761, 120
        %v2193 = vpop.permute.xlu0 %2192
        %2194 = vrot.lane.b32.xlu0 %v1762, 120
        %v2195 = vpop.permute.xlu0 %2194
        %2196 = vrot.lane.b32.xlu0 %v1763, 120
        %v2197 = vpop.permute.xlu0 %2196
        %2198 = vrot.lane.b32.xlu0 %v1764, 120
        %v2199 = vpop.permute.xlu0 %2198
        %2200 = vrot.lane.b32.xlu0 %v1765, 120
        %v2201 = vpop.permute.xlu0 %2200
        %2202 = vrot.lane.b32.xlu0 %v1766, 120
        %v2203 = vpop.permute.xlu0 %2202
        %2204 = vrot.lane.b32.xlu0 %v1767, 120
        %v2205 = vpop.permute.xlu0 %2204
        %2206 = vrot.lane.b32.xlu0 %v1768, 120
        %v2207 = vpop.permute.xlu0 %2206
        %2208 = vrot.lane.b32.xlu0 %v1769, 120
        %v2209 = vpop.permute.xlu0 %2208
        %2210 = vrot.lane.b32.xlu0 %v1770, 120
        %v2211 = vpop.permute.xlu0 %2210
        %2212 = vrot.lane.b32.xlu0 %v1771, 120
        %v2213 = vpop.permute.xlu0 %2212
        %2214 = vrot.lane.b32.xlu0 %v1772, 120
        %v2215 = vpop.permute.xlu0 %2214
        %2216 = vrot.lane.b32.xlu0 %v1773, 120
        %v2217 = vpop.permute.xlu0 %2216
        %2218 = vrot.lane.b32.xlu0 %v1774, 120
        %v2219 = vpop.permute.xlu0 %2218
        %2220 = vrot.lane.b32.xlu0 %v1775, 120
        %v2221 = vpop.permute.xlu0 %2220
        %2222 = vrot.lane.b32.xlu0 %v1776, 120
        %v2223 = vpop.permute.xlu0 %2222
        %2224 = vrot.lane.b32.xlu0 %v1777, 120
        %v2225 = vpop.permute.xlu0 %2224
        %2226 = vrot.lane.b32.xlu0 %v1778, 120
        %v2227 = vpop.permute.xlu0 %2226
        %2228 = vrot.lane.b32.xlu0 %v1779, 120
        %v2229 = vpop.permute.xlu0 %2228
        %2230 = vrot.lane.b32.xlu0 %v1780, 120
        %v2231 = vpop.permute.xlu0 %2230
        %2232 = vrot.lane.b32.xlu0 %v1781, 120
        %v2233 = vpop.permute.xlu0 %2232
        %2234 = vrot.lane.b32.xlu0 %v1782, 120
        %v2235 = vpop.permute.xlu0 %2234
        %v2236 = vsel %vm1784, %v2189, 0
        %v2238 = vsel %vm1784, %v2191, 0
        %v2240 = vsel %vm1784, %v2193, 0
        %v2242 = vsel %vm1784, %v2195, 0
        %v2244 = vsel %vm1784, %v2197, 0
        %v2246 = vsel %vm1784, %v2199, 0
        %v2248 = vsel %vm1784, %v2201, 0
        %v2250 = vsel %vm1784, %v2203, 0
        %v2252 = vsel %vm1784, %v2205, 0
        %v2254 = vsel %vm1784, %v2207, 0
        %v2256 = vsel %vm1784, %v2209, 0
        %v2258 = vsel %vm1784, %v2211, 0
        %v2260 = vsel %vm1784, %v2213, 0
        %v2262 = vsel %vm1784, %v2215, 0
        %v2264 = vsel %vm1784, %v2217, 0
        %v2266 = vsel %vm1784, %v2219, 0
        %v2268 = vsel %vm1784, %v2221, 0
        %v2270 = vsel %vm1784, %v2223, 0
        %v2272 = vsel %vm1784, %v2225, 0
        %v2274 = vsel %vm1784, %v2227, 0
        %v2276 = vsel %vm1784, %v2229, 0
        %v2278 = vsel %vm1784, %v2231, 0
        %v2280 = vsel %vm1784, %v2233, 0
        %v2282 = vsel %vm1784, %v2235, 0
        %2284 = vmatprep.subr.mxu0 0.0
        %2285 = vmatpush1.msra.mxu0 %v1783
        %2286 = vmatprep.subr.mxu0 0.0
        %2287 = vmatpush1.msra.mxu0 0.0
        %2288 = vmatprep.subr.mxu0 0.0
        %2289 = vmatpush1.msra.mxu0 0.0
        %2290 = vmatprep.subr.mxu0 0.0
        %2291 = vmatpush1.msra.mxu0 0.0
        %2292 = vmatprep.subr.mxu0 0.0
        %2293 = vmatpush1.msra.mxu0 0.0
        %2294 = vmatprep.subr.mxu0 0.0
        %2295 = vmatpush1.msra.mxu0 0.0
        %2296 = vmatprep.subr.mxu0 0.0
        %2297 = vmatpush1.msra.mxu0 0.0
        %2298 = vmatprep.subr.mxu0 0.0
        %2299 = vmatpush1.msra.mxu0 0.0
        %2300 = vmatprep.subr.mxu0 0.0
        %2301 = vmatpush1.msra.mxu0 0.0
        %2302 = vmatprep.subr.mxu0 0.0
        %2303 = vmatpush1.msra.mxu0 0.0
        %2304 = vmatprep.subr.mxu0 0.0
        %2305 = vmatpush1.msra.mxu0 0.0
        %2306 = vmatprep.subr.mxu0 0.0
        %2307 = vmatpush1.msra.mxu0 0.0
        %2308 = vmatprep.subr.mxu0 0.0
        %2309 = vmatpush1.msra.mxu0 0.0
        %2310 = vmatprep.subr.mxu0 0.0
        %2311 = vmatpush1.msra.mxu0 0.0
        %2312 = vmatprep.subr.mxu0 0.0
        %2313 = vmatpush1.msra.mxu0 0.0
        %2314 = vmatprep.subr.mxu0 0.0
        %2315 = vmatpush1.msra.mxu0 0.0
        %2316 = vmatprep.subr.mxu0 0.0
        %2317 = vmatpush1.msra.mxu0 0.0
        %2318 = vmatprep.subr.mxu0 0.0
        %2319 = vmatpush1.msra.mxu0 0.0
        %2320 = vmatprep.subr.mxu0 0.0
        %2321 = vmatpush1.msra.mxu0 0.0
        %2322 = vmatprep.subr.mxu0 0.0
        %2323 = vmatpush1.msra.mxu0 0.0
        %2324 = vmatprep.subr.mxu0 0.0
        %2325 = vmatpush1.msra.mxu0 0.0
        %2326 = vmatprep.subr.mxu0 0.0
        %2327 = vmatpush1.msra.mxu0 0.0
        %2328 = vmatprep.subr.mxu0 0.0
        %2329 = vmatpush1.msra.mxu0 0.0
        %2330 = vmatprep.subr.mxu0 0.0
        %2331 = vmatpush1.msra.mxu0 0.0
        %2332 = vmatprep.subr.mxu0 0.0
        %2333 = vmatpush1.msra.mxu0 0.0
        %2334 = vmatprep.subr.mxu0 0.0
        %2335 = vmatpush1.msra.mxu0 0.0
        %2336 = vmatprep.subr.mxu0 0.0
        %2337 = vmatpush1.msra.mxu0 0.0
        %2338 = vmatprep.subr.mxu0 0.0
        %2339 = vmatpush1.msra.mxu0 0.0
        %2340 = vmatprep.subr.mxu0 0.0
        %2341 = vmatpush1.msra.mxu0 0.0
        %2342 = vmatprep.subr.mxu0 0.0
        %2343 = vmatpush1.msra.mxu0 0.0
        %2344 = vmatprep.subr.mxu0 0.0
        %2345 = vmatpush1.msra.mxu0 0.0
        %2346 = vmatprep.subr.mxu0 0.0
        %2347 = vmatpush1.msra.mxu0 0.0
        %2348 = vmatprep.mubr.f32.mxu0 0.0
        %2349 = vmatmul.mubr.f32.gmra.mrb[0].mxu0 %v2236
        %v2350 = vpop.f32.mrb[0].mxu0
        %v2351 = vadd.f32 0.0, %v2350
        %v2352 = vpop.f32.mrb[0].mxu0
        %2353 = vmatprep.mubr.f32.mxu0 0.0
        %2354 = vmatmul.mubr.f32.gmra.mrb[0].mxu0 %v2238
        %v2355 = vpop.f32.mrb[0].mxu0
        %v2356 = vadd.f32 0.0, %v2355
        %v2357 = vpop.f32.mrb[0].mxu0
        %2358 = vmatprep.mubr.f32.mxu0 0.0
        %2359 = vmatmul.mubr.f32.gmra.mrb[0].mxu0 %v2240
        %v2360 = vpop.f32.mrb[0].mxu0
        %v2361 = vadd.f32 0.0, %v2360
        %v2362 = vpop.f32.mrb[0].mxu0
        %2363 = vmatprep.mubr.f32.mxu0 0.0
        %2364 = vmatmul.mubr.f32.gmra.mrb[0].mxu0 %v2242
        %v2365 = vpop.f32.mrb[0].mxu0
        %v2366 = vadd.f32 0.0, %v2365
        %v2367 = vpop.f32.mrb[0].mxu0
        %2368 = vmatprep.mubr.f32.mxu0 0.0
        %2369 = vmatmul.mubr.f32.gmra.mrb[0].mxu0 %v2244
        %v2370 = vpop.f32.mrb[0].mxu0
        %v2371 = vadd.f32 0.0, %v2370
        %v2372 = vpop.f32.mrb[0].mxu0
        %2373 = vmatprep.mubr.f32.mxu0 0.0
        %2374 = vmatmul.mubr.f32.gmra.mrb[0].mxu0 %v2246
        %v2375 = vpop.f32.mrb[0].mxu0
        %v2376 = vadd.f32 0.0, %v2375
        %v2377 = vpop.f32.mrb[0].mxu0
        %2378 = vmatprep.mubr.f32.mxu0 0.0
        %2379 = vmatmul.mubr.f32.gmra.mrb[0].mxu0 %v2248
        %v2380 = vpop.f32.mrb[0].mxu0
        %v2381 = vadd.f32 0.0, %v2380
        %v2382 = vpop.f32.mrb[0].mxu0
        %2383 = vmatprep.mubr.f32.mxu0 0.0
        %2384 = vmatmul.mubr.f32.gmra.mrb[0].mxu0 %v2250
        %v2385 = vpop.f32.mrb[0].mxu0
        %v2386 = vadd.f32 0.0, %v2385
        %v2387 = vpop.f32.mrb[0].mxu0
        %2388 = vmatprep.mubr.f32.mxu0 0.0
        %2389 = vmatmul.mubr.f32.gmra.mrb[0].mxu0 %v2252
        %v2390 = vpop.f32.mrb[0].mxu0
        %v2391 = vadd.f32 0.0, %v2390
        %v2392 = vpop.f32.mrb[0].mxu0
        %2393 = vmatprep.mubr.f32.mxu0 0.0
        %2394 = vmatmul.mubr.f32.gmra.mrb[0].mxu0 %v2254
        %v2395 = vpop.f32.mrb[0].mxu0
        %v2396 = vadd.f32 0.0, %v2395
        %v2397 = vpop.f32.mrb[0].mxu0
        %2398 = vmatprep.mubr.f32.mxu0 0.0
        %2399 = vmatmul.mubr.f32.gmra.mrb[0].mxu0 %v2256
        %v2400 = vpop.f32.mrb[0].mxu0
        %v2401 = vadd.f32 0.0, %v2400
        %v2402 = vpop.f32.mrb[0].mxu0
        %2403 = vmatprep.mubr.f32.mxu0 0.0
        %2404 = vmatmul.mubr.f32.gmra.mrb[0].mxu0 %v2258
        %v2405 = vpop.f32.mrb[0].mxu0
        %v2406 = vadd.f32 0.0, %v2405
        %v2407 = vpop.f32.mrb[0].mxu0
        %2408 = vmatprep.mubr.f32.mxu0 0.0
        %2409 = vmatmul.mubr.f32.gmra.mrb[0].mxu0 %v2260
        %v2410 = vpop.f32.mrb[0].mxu0
        %v2411 = vadd.f32 0.0, %v2410
        %v2412 = vpop.f32.mrb[0].mxu0
        %2413 = vmatprep.mubr.f32.mxu0 0.0
        %2414 = vmatmul.mubr.f32.gmra.mrb[0].mxu0 %v2262
        %v2415 = vpop.f32.mrb[0].mxu0
        %v2416 = vadd.f32 0.0, %v2415
        %v2417 = vpop.f32.mrb[0].mxu0
        %2418 = vmatprep.mubr.f32.mxu0 0.0
        %2419 = vmatmul.mubr.f32.gmra.mrb[0].mxu0 %v2264
        %v2420 = vpop.f32.mrb[0].mxu0
        %v2421 = vadd.f32 0.0, %v2420
        %v2422 = vpop.f32.mrb[0].mxu0
        %2423 = vmatprep.mubr.f32.mxu0 0.0
        %2424 = vmatmul.mubr.f32.gmra.mrb[0].mxu0 %v2266
        %v2425 = vpop.f32.mrb[0].mxu0
        %v2426 = vadd.f32 0.0, %v2425
        %v2427 = vpop.f32.mrb[0].mxu0
        %2428 = vmatprep.mubr.f32.mxu0 0.0
        %2429 = vmatmul.mubr.f32.gmra.mrb[0].mxu0 %v2268
        %v2430 = vpop.f32.mrb[0].mxu0
        %v2431 = vadd.f32 0.0, %v2430
        %v2432 = vpop.f32.mrb[0].mxu0
        %2433 = vmatprep.mubr.f32.mxu0 0.0
        %2434 = vmatmul.mubr.f32.gmra.mrb[0].mxu0 %v2270
        %v2435 = vpop.f32.mrb[0].mxu0
        %v2436 = vadd.f32 0.0, %v2435
        %v2437 = vpop.f32.mrb[0].mxu0
        %2438 = vmatprep.mubr.f32.mxu0 0.0
        %2439 = vmatmul.mubr.f32.gmra.mrb[0].mxu0 %v2272
        %v2440 = vpop.f32.mrb[0].mxu0
        %v2441 = vadd.f32 0.0, %v2440
        %v2442 = vpop.f32.mrb[0].mxu0
        %2443 = vmatprep.mubr.f32.mxu0 0.0
        %2444 = vmatmul.mubr.f32.gmra.mrb[0].mxu0 %v2274
        %v2445 = vpop.f32.mrb[0].mxu0
        %v2446 = vadd.f32 0.0, %v2445
        %v2447 = vpop.f32.mrb[0].mxu0
        %2448 = vmatprep.mubr.f32.mxu0 0.0
        %2449 = vmatmul.mubr.f32.gmra.mrb[0].mxu0 %v2276
        %v2450 = vpop.f32.mrb[0].mxu0
        %v2451 = vadd.f32 0.0, %v2450
        %v2452 = vpop.f32.mrb[0].mxu0
        %2453 = vmatprep.mubr.f32.mxu0 0.0
        %2454 = vmatmul.mubr.f32.gmra.mrb[0].mxu0 %v2278
        %v2455 = vpop.f32.mrb[0].mxu0
        %v2456 = vadd.f32 0.0, %v2455
        %v2457 = vpop.f32.mrb[0].mxu0
        %2458 = vmatprep.mubr.f32.mxu0 0.0
        %2459 = vmatmul.mubr.f32.gmra.mrb[0].mxu0 %v2280
        %v2460 = vpop.f32.mrb[0].mxu0
        %v2461 = vadd.f32 0.0, %v2460
        %v2462 = vpop.f32.mrb[0].mxu0
        %2463 = vmatprep.mubr.f32.mxu0 0.0
        %2464 = vmatmul.mubr.f32.gmra.mrb[0].mxu0 %v2282
        %v2465 = vpop.f32.mrb[0].mxu0
        %v2466 = vadd.f32 0.0, %v2465
        %v2467 = vpop.f32.mrb[0].mxu0
        %2468 = vdwg.mxu0
        %2493 = vrot.lane.b32.xlu0 %v2351, 32
        %v2494 = vpop.permute.xlu0 %2493
        %2495 = vrot.lane.b32.xlu0 %v2356, 32
        %v2496 = vpop.permute.xlu0 %2495
        %2497 = vrot.lane.b32.xlu0 %v2361, 32
        %v2498 = vpop.permute.xlu0 %2497
        %2499 = vrot.lane.b32.xlu0 %v2366, 32
        %v2500 = vpop.permute.xlu0 %2499
        %2501 = vrot.lane.b32.xlu0 %v2371, 32
        %v2502 = vpop.permute.xlu0 %2501
        %2503 = vrot.lane.b32.xlu0 %v2376, 32
        %v2504 = vpop.permute.xlu0 %2503
        %2505 = vrot.lane.b32.xlu0 %v2381, 32
        %v2506 = vpop.permute.xlu0 %2505
        %2507 = vrot.lane.b32.xlu0 %v2386, 32
        %v2508 = vpop.permute.xlu0 %2507
        %2509 = vrot.lane.b32.xlu0 %v2391, 32
        %v2510 = vpop.permute.xlu0 %2509
        %2511 = vrot.lane.b32.xlu0 %v2396, 32
        %v2512 = vpop.permute.xlu0 %2511
        %2513 = vrot.lane.b32.xlu0 %v2401, 32
        %v2514 = vpop.permute.xlu0 %2513
        %2515 = vrot.lane.b32.xlu0 %v2406, 32
        %v2516 = vpop.permute.xlu0 %2515
        %2517 = vrot.lane.b32.xlu0 %v2411, 32
        %v2518 = vpop.permute.xlu0 %2517
        %2519 = vrot.lane.b32.xlu0 %v2416, 32
        %v2520 = vpop.permute.xlu0 %2519
        %2521 = vrot.lane.b32.xlu0 %v2421, 32
        %v2522 = vpop.permute.xlu0 %2521
        %2523 = vrot.lane.b32.xlu0 %v2426, 32
        %v2524 = vpop.permute.xlu0 %2523
        %2525 = vrot.lane.b32.xlu0 %v2431, 32
        %v2526 = vpop.permute.xlu0 %2525
        %2527 = vrot.lane.b32.xlu0 %v2436, 32
        %v2528 = vpop.permute.xlu0 %2527
        %2529 = vrot.lane.b32.xlu0 %v2441, 32
        %v2530 = vpop.permute.xlu0 %2529
        %2531 = vrot.lane.b32.xlu0 %v2446, 32
        %v2532 = vpop.permute.xlu0 %2531
        %2533 = vrot.lane.b32.xlu0 %v2451, 32
        %v2534 = vpop.permute.xlu0 %2533
        %2535 = vrot.lane.b32.xlu0 %v2456, 32
        %v2536 = vpop.permute.xlu0 %2535
        %2537 = vrot.lane.b32.xlu0 %v2461, 32
        %v2538 = vpop.permute.xlu0 %2537
        %2539 = vrot.lane.b32.xlu0 %v2466, 32
        %v2540 = vpop.permute.xlu0 %2539
        %vm2565 = vcmask 392448
        %2566 = vst.msk [vmem:[%s645 + $0xc0] sm:$0xff] %vm2565, %v2494
        %2567 = vst.msk [vmem:[%s645 + $0xc8] sm:$0xff] %vm2565, %v2496
        %2568 = vst.msk [vmem:[%s645 + $0xd0] sm:$0xff] %vm2565, %v2498
        %2569 = vst.msk [vmem:[%s645 + $0xd8] sm:$0xff] %vm2565, %v2500
        %2570 = vst.msk [vmem:[%s645 + $0xe0] sm:$0xff] %vm2565, %v2502
        %2571 = vst.msk [vmem:[%s645 + $0xe8] sm:$0xff] %vm2565, %v2504
        %2572 = vst.msk [vmem:[%s645 + $0xf0] sm:$0xff] %vm2565, %v2506
        %2573 = vst.msk [vmem:[%s645 + $0xf8] sm:$0xff] %vm2565, %v2508
        %2574 = vst.msk [vmem:[%s645 + $0x100] sm:$0xff] %vm2565, %v2510
        %2575 = vst.msk [vmem:[%s645 + $0x108] sm:$0xff] %vm2565, %v2512
        %2576 = vst.msk [vmem:[%s645 + $0x110] sm:$0xff] %vm2565, %v2514
        %2577 = vst.msk [vmem:[%s645 + $0x118] sm:$0xff] %vm2565, %v2516
        %2578 = vst.msk [vmem:[%s645 + $0x120] sm:$0xff] %vm2565, %v2518
        %2579 = vst.msk [vmem:[%s645 + $0x128] sm:$0xff] %vm2565, %v2520
        %2580 = vst.msk [vmem:[%s645 + $0x130] sm:$0xff] %vm2565, %v2522
        %2581 = vst.msk [vmem:[%s645 + $0x138] sm:$0xff] %vm2565, %v2524
        %2582 = vst.msk [vmem:[%s645 + $0x140] sm:$0xff] %vm2565, %v2526
        %2583 = vst.msk [vmem:[%s645 + $0x148] sm:$0xff] %vm2565, %v2528
        %2584 = vst.msk [vmem:[%s645 + $0x150] sm:$0xff] %vm2565, %v2530
        %2585 = vst.msk [vmem:[%s645 + $0x158] sm:$0xff] %vm2565, %v2532
        %2586 = vst.msk [vmem:[%s645 + $0x160] sm:$0xff] %vm2565, %v2534
        %2587 = vst.msk [vmem:[%s645 + $0x168] sm:$0xff] %vm2565, %v2536
        %2588 = vst.msk [vmem:[%s645 + $0x170] sm:$0xff] %vm2565, %v2538
        %2589 = vst.msk [vmem:[%s645 + $0x178] sm:$0xff] %vm2565, %v2540
        %2590 = vrot.lane.b32.xlu0 %v2351, 48
        %v2591 = vpop.permute.xlu0 %2590
        %2592 = vrot.lane.b32.xlu0 %v2356, 48
        %v2593 = vpop.permute.xlu0 %2592
        %2594 = vrot.lane.b32.xlu0 %v2361, 48
        %v2595 = vpop.permute.xlu0 %2594
        %2596 = vrot.lane.b32.xlu0 %v2366, 48
        %v2597 = vpop.permute.xlu0 %2596
        %2598 = vrot.lane.b32.xlu0 %v2371, 48
        %v2599 = vpop.permute.xlu0 %2598
        %2600 = vrot.lane.b32.xlu0 %v2376, 48
        %v2601 = vpop.permute.xlu0 %2600
        %2602 = vrot.lane.b32.xlu0 %v2381, 48
        %v2603 = vpop.permute.xlu0 %2602
        %2604 = vrot.lane.b32.xlu0 %v2386, 48
        %v2605 = vpop.permute.xlu0 %2604
        %2606 = vrot.lane.b32.xlu0 %v2391, 48
        %v2607 = vpop.permute.xlu0 %2606
        %2608 = vrot.lane.b32.xlu0 %v2396, 48
        %v2609 = vpop.permute.xlu0 %2608
        %2610 = vrot.lane.b32.xlu0 %v2401, 48
        %v2611 = vpop.permute.xlu0 %2610
        %2612 = vrot.lane.b32.xlu0 %v2406, 48
        %v2613 = vpop.permute.xlu0 %2612
        %2614 = vrot.lane.b32.xlu0 %v2411, 48
        %v2615 = vpop.permute.xlu0 %2614
        %2616 = vrot.lane.b32.xlu0 %v2416, 48
        %v2617 = vpop.permute.xlu0 %2616
        %2618 = vrot.lane.b32.xlu0 %v2421, 48
        %v2619 = vpop.permute.xlu0 %2618
        %2620 = vrot.lane.b32.xlu0 %v2426, 48
        %v2621 = vpop.permute.xlu0 %2620
        %2622 = vrot.lane.b32.xlu0 %v2431, 48
        %v2623 = vpop.permute.xlu0 %2622
        %2624 = vrot.lane.b32.xlu0 %v2436, 48
        %v2625 = vpop.permute.xlu0 %2624
        %2626 = vrot.lane.b32.xlu0 %v2441, 48
        %v2627 = vpop.permute.xlu0 %2626
        %2628 = vrot.lane.b32.xlu0 %v2446, 48
        %v2629 = vpop.permute.xlu0 %2628
        %2630 = vrot.lane.b32.xlu0 %v2451, 48
        %v2631 = vpop.permute.xlu0 %2630
        %2632 = vrot.lane.b32.xlu0 %v2456, 48
        %v2633 = vpop.permute.xlu0 %2632
        %2634 = vrot.lane.b32.xlu0 %v2461, 48
        %v2635 = vpop.permute.xlu0 %2634
        %2636 = vrot.lane.b32.xlu0 %v2466, 48
        %v2637 = vpop.permute.xlu0 %2636
        %vm2662 = vcmask 523648
        %2663 = vst.msk [vmem:[%s645 + $0xc0] sm:$0xff] %vm2662, %v2591
        %2664 = vst.msk [vmem:[%s645 + $0xc8] sm:$0xff] %vm2662, %v2593
        %2665 = vst.msk [vmem:[%s645 + $0xd0] sm:$0xff] %vm2662, %v2595
        %2666 = vst.msk [vmem:[%s645 + $0xd8] sm:$0xff] %vm2662, %v2597
        %2667 = vst.msk [vmem:[%s645 + $0xe0] sm:$0xff] %vm2662, %v2599
        %2668 = vst.msk [vmem:[%s645 + $0xe8] sm:$0xff] %vm2662, %v2601
        %2669 = vst.msk [vmem:[%s645 + $0xf0] sm:$0xff] %vm2662, %v2603
        %2670 = vst.msk [vmem:[%s645 + $0xf8] sm:$0xff] %vm2662, %v2605
        %2671 = vst.msk [vmem:[%s645 + $0x100] sm:$0xff] %vm2662, %v2607
        %2672 = vst.msk [vmem:[%s645 + $0x108] sm:$0xff] %vm2662, %v2609
        %2673 = vst.msk [vmem:[%s645 + $0x110] sm:$0xff] %vm2662, %v2611
        %2674 = vst.msk [vmem:[%s645 + $0x118] sm:$0xff] %vm2662, %v2613
        %2675 = vst.msk [vmem:[%s645 + $0x120] sm:$0xff] %vm2662, %v2615
        %2676 = vst.msk [vmem:[%s645 + $0x128] sm:$0xff] %vm2662, %v2617
        %2677 = vst.msk [vmem:[%s645 + $0x130] sm:$0xff] %vm2662, %v2619
        %2678 = vst.msk [vmem:[%s645 + $0x138] sm:$0xff] %vm2662, %v2621
        %2679 = vst.msk [vmem:[%s645 + $0x140] sm:$0xff] %vm2662, %v2623
        %2680 = vst.msk [vmem:[%s645 + $0x148] sm:$0xff] %vm2662, %v2625
        %2681 = vst.msk [vmem:[%s645 + $0x150] sm:$0xff] %vm2662, %v2627
        %2682 = vst.msk [vmem:[%s645 + $0x158] sm:$0xff] %vm2662, %v2629
        %2683 = vst.msk [vmem:[%s645 + $0x160] sm:$0xff] %vm2662, %v2631
        %2684 = vst.msk [vmem:[%s645 + $0x168] sm:$0xff] %vm2662, %v2633
        %2685 = vst.msk [vmem:[%s645 + $0x170] sm:$0xff] %vm2662, %v2635
        %2686 = vst.msk [vmem:[%s645 + $0x178] sm:$0xff] %vm2662, %v2637
        %2687 = vrot.lane.b32.xlu0 %v1759, 112
        %v2688 = vpop.permute.xlu0 %2687
        %2689 = vrot.lane.b32.xlu0 %v1760, 112
        %v2690 = vpop.permute.xlu0 %2689
        %2691 = vrot.lane.b32.xlu0 %v1761, 112
        %v2692 = vpop.permute.xlu0 %2691
        %2693 = vrot.lane.b32.xlu0 %v1762, 112
        %v2694 = vpop.permute.xlu0 %2693
        %2695 = vrot.lane.b32.xlu0 %v1763, 112
        %v2696 = vpop.permute.xlu0 %2695
        %2697 = vrot.lane.b32.xlu0 %v1764, 112
        %v2698 = vpop.permute.xlu0 %2697
        %2699 = vrot.lane.b32.xlu0 %v1765, 112
        %v2700 = vpop.permute.xlu0 %2699
        %2701 = vrot.lane.b32.xlu0 %v1766, 112
        %v2702 = vpop.permute.xlu0 %2701
        %2703 = vrot.lane.b32.xlu0 %v1767, 112
        %v2704 = vpop.permute.xlu0 %2703
        %2705 = vrot.lane.b32.xlu0 %v1768, 112
        %v2706 = vpop.permute.xlu0 %2705
        %2707 = vrot.lane.b32.xlu0 %v1769, 112
        %v2708 = vpop.permute.xlu0 %2707
        %2709 = vrot.lane.b32.xlu0 %v1770, 112
        %v2710 = vpop.permute.xlu0 %2709
        %2711 = vrot.lane.b32.xlu0 %v1771, 112
        %v2712 = vpop.permute.xlu0 %2711
        %2713 = vrot.lane.b32.xlu0 %v1772, 112
        %v2714 = vpop.permute.xlu0 %2713
        %2715 = vrot.lane.b32.xlu0 %v1773, 112
        %v2716 = vpop.permute.xlu0 %2715
        %2717 = vrot.lane.b32.xlu0 %v1774, 112
        %v2718 = vpop.permute.xlu0 %2717
        %2719 = vrot.lane.b32.xlu0 %v1775, 112
        %v2720 = vpop.permute.xlu0 %2719
        %2721 = vrot.lane.b32.xlu0 %v1776, 112
        %v2722 = vpop.permute.xlu0 %2721
        %2723 = vrot.lane.b32.xlu0 %v1777, 112
        %v2724 = vpop.permute.xlu0 %2723
        %2725 = vrot.lane.b32.xlu0 %v1778, 112
        %v2726 = vpop.permute.xlu0 %2725
        %2727 = vrot.lane.b32.xlu0 %v1779, 112
        %v2728 = vpop.permute.xlu0 %2727
        %2729 = vrot.lane.b32.xlu0 %v1780, 112
        %v2730 = vpop.permute.xlu0 %2729
        %2731 = vrot.lane.b32.xlu0 %v1781, 112
        %v2732 = vpop.permute.xlu0 %2731
        %2733 = vrot.lane.b32.xlu0 %v1782, 112
        %v2734 = vpop.permute.xlu0 %2733
        %v2735 = vsel %vm1784, %v2688, 0
        %v2737 = vsel %vm1784, %v2690, 0
        %v2739 = vsel %vm1784, %v2692, 0
        %v2741 = vsel %vm1784, %v2694, 0
        %v2743 = vsel %vm1784, %v2696, 0
        %v2745 = vsel %vm1784, %v2698, 0
        %v2747 = vsel %vm1784, %v2700, 0
        %v2749 = vsel %vm1784, %v2702, 0
        %v2751 = vsel %vm1784, %v2704, 0
        %v2753 = vsel %vm1784, %v2706, 0
        %v2755 = vsel %vm1784, %v2708, 0
        %v2757 = vsel %vm1784, %v2710, 0
        %v2759 = vsel %vm1784, %v2712, 0
        %v2761 = vsel %vm1784, %v2714, 0
        %v2763 = vsel %vm1784, %v2716, 0
        %v2765 = vsel %vm1784, %v2718, 0
        %v2767 = vsel %vm1784, %v2720, 0
        %v2769 = vsel %vm1784, %v2722, 0
        %v2771 = vsel %vm1784, %v2724, 0
        %v2773 = vsel %vm1784, %v2726, 0
        %v2775 = vsel %vm1784, %v2728, 0
        %v2777 = vsel %vm1784, %v2730, 0
        %v2779 = vsel %vm1784, %v2732, 0
        %v2781 = vsel %vm1784, %v2734, 0
        %2783 = vmatprep.subr.mxu0 0.0
        %2784 = vmatpush1.msra.mxu0 %v1783
        %2785 = vmatprep.subr.mxu0 0.0
        %2786 = vmatpush1.msra.mxu0 0.0
        %2787 = vmatprep.subr.mxu0 0.0
        %2788 = vmatpush1.msra.mxu0 0.0
        %2789 = vmatprep.subr.mxu0 0.0
        %2790 = vmatpush1.msra.mxu0 0.0
        %2791 = vmatprep.subr.mxu0 0.0
        %2792 = vmatpush1.msra.mxu0 0.0
        %2793 = vmatprep.subr.mxu0 0.0
        %2794 = vmatpush1.msra.mxu0 0.0
        %2795 = vmatprep.subr.mxu0 0.0
        %2796 = vmatpush1.msra.mxu0 0.0
        %2797 = vmatprep.subr.mxu0 0.0
        %2798 = vmatpush1.msra.mxu0 0.0
        %2799 = vmatprep.subr.mxu0 0.0
        %2800 = vmatpush1.msra.mxu0 0.0
        %2801 = vmatprep.subr.mxu0 0.0
        %2802 = vmatpush1.msra.mxu0 0.0
        %2803 = vmatprep.subr.mxu0 0.0
        %2804 = vmatpush1.msra.mxu0 0.0
        %2805 = vmatprep.subr.mxu0 0.0
        %2806 = vmatpush1.msra.mxu0 0.0
        %2807 = vmatprep.subr.mxu0 0.0
        %2808 = vmatpush1.msra.mxu0 0.0
        %2809 = vmatprep.subr.mxu0 0.0
        %2810 = vmatpush1.msra.mxu0 0.0
        %2811 = vmatprep.subr.mxu0 0.0
        %2812 = vmatpush1.msra.mxu0 0.0
        %2813 = vmatprep.subr.mxu0 0.0
        %2814 = vmatpush1.msra.mxu0 0.0
        %2815 = vmatprep.subr.mxu0 0.0
        %2816 = vmatpush1.msra.mxu0 0.0
        %2817 = vmatprep.subr.mxu0 0.0
        %2818 = vmatpush1.msra.mxu0 0.0
        %2819 = vmatprep.subr.mxu0 0.0
        %2820 = vmatpush1.msra.mxu0 0.0
        %2821 = vmatprep.subr.mxu0 0.0
        %2822 = vmatpush1.msra.mxu0 0.0
        %2823 = vmatprep.subr.mxu0 0.0
        %2824 = vmatpush1.msra.mxu0 0.0
        %2825 = vmatprep.subr.mxu0 0.0
        %2826 = vmatpush1.msra.mxu0 0.0
        %2827 = vmatprep.subr.mxu0 0.0
        %2828 = vmatpush1.msra.mxu0 0.0
        %2829 = vmatprep.subr.mxu0 0.0
        %2830 = vmatpush1.msra.mxu0 0.0
        %2831 = vmatprep.subr.mxu0 0.0
        %2832 = vmatpush1.msra.mxu0 0.0
        %2833 = vmatprep.subr.mxu0 0.0
        %2834 = vmatpush1.msra.mxu0 0.0
        %2835 = vmatprep.subr.mxu0 0.0
        %2836 = vmatpush1.msra.mxu0 0.0
        %2837 = vmatprep.subr.mxu0 0.0
        %2838 = vmatpush1.msra.mxu0 0.0
        %2839 = vmatprep.subr.mxu0 0.0
        %2840 = vmatpush1.msra.mxu0 0.0
        %2841 = vmatprep.subr.mxu0 0.0
        %2842 = vmatpush1.msra.mxu0 0.0
        %2843 = vmatprep.subr.mxu0 0.0
        %2844 = vmatpush1.msra.mxu0 0.0
        %2845 = vmatprep.subr.mxu0 0.0
        %2846 = vmatpush1.msra.mxu0 0.0
        %2847 = vmatprep.mubr.f32.mxu0 0.0
        %2848 = vmatmul.mubr.f32.gmra.mrb[0].mxu0 %v2735
        %v2849 = vpop.f32.mrb[0].mxu0
        %v2850 = vadd.f32 0.0, %v2849
        %v2851 = vpop.f32.mrb[0].mxu0
        %2852 = vmatprep.mubr.f32.mxu0 0.0
        %2853 = vmatmul.mubr.f32.gmra.mrb[0].mxu0 %v2737
        %v2854 = vpop.f32.mrb[0].mxu0
        %v2855 = vadd.f32 0.0, %v2854
        %v2856 = vpop.f32.mrb[0].mxu0
        %2857 = vmatprep.mubr.f32.mxu0 0.0
        %2858 = vmatmul.mubr.f32.gmra.mrb[0].mxu0 %v2739
        %v2859 = vpop.f32.mrb[0].mxu0
        %v2860 = vadd.f32 0.0, %v2859
        %v2861 = vpop.f32.mrb[0].mxu0
        %2862 = vmatprep.mubr.f32.mxu0 0.0
        %2863 = vmatmul.mubr.f32.gmra.mrb[0].mxu0 %v2741
        %v2864 = vpop.f32.mrb[0].mxu0
        %v2865 = vadd.f32 0.0, %v2864
        %v2866 = vpop.f32.mrb[0].mxu0
        %2867 = vmatprep.mubr.f32.mxu0 0.0
        %2868 = vmatmul.mubr.f32.gmra.mrb[0].mxu0 %v2743
        %v2869 = vpop.f32.mrb[0].mxu0
        %v2870 = vadd.f32 0.0, %v2869
        %v2871 = vpop.f32.mrb[0].mxu0
        %2872 = vmatprep.mubr.f32.mxu0 0.0
        %2873 = vmatmul.mubr.f32.gmra.mrb[0].mxu0 %v2745
        %v2874 = vpop.f32.mrb[0].mxu0
        %v2875 = vadd.f32 0.0, %v2874
        %v2876 = vpop.f32.mrb[0].mxu0
        %2877 = vmatprep.mubr.f32.mxu0 0.0
        %2878 = vmatmul.mubr.f32.gmra.mrb[0].mxu0 %v2747
        %v2879 = vpop.f32.mrb[0].mxu0
        %v2880 = vadd.f32 0.0, %v2879
        %v2881 = vpop.f32.mrb[0].mxu0
        %2882 = vmatprep.mubr.f32.mxu0 0.0
        %2883 = vmatmul.mubr.f32.gmra.mrb[0].mxu0 %v2749
        %v2884 = vpop.f32.mrb[0].mxu0
        %v2885 = vadd.f32 0.0, %v2884
        %v2886 = vpop.f32.mrb[0].mxu0
        %2887 = vmatprep.mubr.f32.mxu0 0.0
        %2888 = vmatmul.mubr.f32.gmra.mrb[0].mxu0 %v2751
        %v2889 = vpop.f32.mrb[0].mxu0
        %v2890 = vadd.f32 0.0, %v2889
        %v2891 = vpop.f32.mrb[0].mxu0
        %2892 = vmatprep.mubr.f32.mxu0 0.0
        %2893 = vmatmul.mubr.f32.gmra.mrb[0].mxu0 %v2753
        %v2894 = vpop.f32.mrb[0].mxu0
        %v2895 = vadd.f32 0.0, %v2894
        %v2896 = vpop.f32.mrb[0].mxu0
        %2897 = vmatprep.mubr.f32.mxu0 0.0
        %2898 = vmatmul.mubr.f32.gmra.mrb[0].mxu0 %v2755
        %v2899 = vpop.f32.mrb[0].mxu0
        %v2900 = vadd.f32 0.0, %v2899
        %v2901 = vpop.f32.mrb[0].mxu0
        %2902 = vmatprep.mubr.f32.mxu0 0.0
        %2903 = vmatmul.mubr.f32.gmra.mrb[0].mxu0 %v2757
        %v2904 = vpop.f32.mrb[0].mxu0
        %v2905 = vadd.f32 0.0, %v2904
        %v2906 = vpop.f32.mrb[0].mxu0
        %2907 = vmatprep.mubr.f32.mxu0 0.0
        %2908 = vmatmul.mubr.f32.gmra.mrb[0].mxu0 %v2759
        %v2909 = vpop.f32.mrb[0].mxu0
        %v2910 = vadd.f32 0.0, %v2909
        %v2911 = vpop.f32.mrb[0].mxu0
        %2912 = vmatprep.mubr.f32.mxu0 0.0
        %2913 = vmatmul.mubr.f32.gmra.mrb[0].mxu0 %v2761
        %v2914 = vpop.f32.mrb[0].mxu0
        %v2915 = vadd.f32 0.0, %v2914
        %v2916 = vpop.f32.mrb[0].mxu0
        %2917 = vmatprep.mubr.f32.mxu0 0.0
        %2918 = vmatmul.mubr.f32.gmra.mrb[0].mxu0 %v2763
        %v2919 = vpop.f32.mrb[0].mxu0
        %v2920 = vadd.f32 0.0, %v2919
        %v2921 = vpop.f32.mrb[0].mxu0
        %2922 = vmatprep.mubr.f32.mxu0 0.0
        %2923 = vmatmul.mubr.f32.gmra.mrb[0].mxu0 %v2765
        %v2924 = vpop.f32.mrb[0].mxu0
        %v2925 = vadd.f32 0.0, %v2924
        %v2926 = vpop.f32.mrb[0].mxu0
        %2927 = vmatprep.mubr.f32.mxu0 0.0
        %2928 = vmatmul.mubr.f32.gmra.mrb[0].mxu0 %v2767
        %v2929 = vpop.f32.mrb[0].mxu0
        %v2930 = vadd.f32 0.0, %v2929
        %v2931 = vpop.f32.mrb[0].mxu0
        %2932 = vmatprep.mubr.f32.mxu0 0.0
        %2933 = vmatmul.mubr.f32.gmra.mrb[0].mxu0 %v2769
        %v2934 = vpop.f32.mrb[0].mxu0
        %v2935 = vadd.f32 0.0, %v2934
        %v2936 = vpop.f32.mrb[0].mxu0
        %2937 = vmatprep.mubr.f32.mxu0 0.0
        %2938 = vmatmul.mubr.f32.gmra.mrb[0].mxu0 %v2771
        %v2939 = vpop.f32.mrb[0].mxu0
        %v2940 = vadd.f32 0.0, %v2939
        %v2941 = vpop.f32.mrb[0].mxu0
        %2942 = vmatprep.mubr.f32.mxu0 0.0
        %2943 = vmatmul.mubr.f32.gmra.mrb[0].mxu0 %v2773
        %v2944 = vpop.f32.mrb[0].mxu0
        %v2945 = vadd.f32 0.0, %v2944
        %v2946 = vpop.f32.mrb[0].mxu0
        %2947 = vmatprep.mubr.f32.mxu0 0.0
        %2948 = vmatmul.mubr.f32.gmra.mrb[0].mxu0 %v2775
        %v2949 = vpop.f32.mrb[0].mxu0
        %v2950 = vadd.f32 0.0, %v2949
        %v2951 = vpop.f32.mrb[0].mxu0
        %2952 = vmatprep.mubr.f32.mxu0 0.0
        %2953 = vmatmul.mubr.f32.gmra.mrb[0].mxu0 %v2777
        %v2954 = vpop.f32.mrb[0].mxu0
        %v2955 = vadd.f32 0.0, %v2954
        %v2956 = vpop.f32.mrb[0].mxu0
        %2957 = vmatprep.mubr.f32.mxu0 0.0
        %2958 = vmatmul.mubr.f32.gmra.mrb[0].mxu0 %v2779
        %v2959 = vpop.f32.mrb[0].mxu0
        %v2960 = vadd.f32 0.0, %v2959
        %v2961 = vpop.f32.mrb[0].mxu0
        %2962 = vmatprep.mubr.f32.mxu0 0.0
        %2963 = vmatmul.mubr.f32.gmra.mrb[0].mxu0 %v2781
        %v2964 = vpop.f32.mrb[0].mxu0
        %v2965 = vadd.f32 0.0, %v2964
        %v2966 = vpop.f32.mrb[0].mxu0
        %2967 = vdwg.mxu0
        %2992 = vrot.lane.b32.xlu0 %v2850, 64
        %v2993 = vpop.permute.xlu0 %2992
        %2994 = vrot.lane.b32.xlu0 %v2855, 64
        %v2995 = vpop.permute.xlu0 %2994
        %2996 = vrot.lane.b32.xlu0 %v2860, 64
        %v2997 = vpop.permute.xlu0 %2996
        %2998 = vrot.lane.b32.xlu0 %v2865, 64
        %v2999 = vpop.permute.xlu0 %2998
        %3000 = vrot.lane.b32.xlu0 %v2870, 64
        %v3001 = vpop.permute.xlu0 %3000
        %3002 = vrot.lane.b32.xlu0 %v2875, 64
        %v3003 = vpop.permute.xlu0 %3002
        %3004 = vrot.lane.b32.xlu0 %v2880, 64
        %v3005 = vpop.permute.xlu0 %3004
        %3006 = vrot.lane.b32.xlu0 %v2885, 64
        %v3007 = vpop.permute.xlu0 %3006
        %3008 = vrot.lane.b32.xlu0 %v2890, 64
        %v3009 = vpop.permute.xlu0 %3008
        %3010 = vrot.lane.b32.xlu0 %v2895, 64
        %v3011 = vpop.permute.xlu0 %3010
        %3012 = vrot.lane.b32.xlu0 %v2900, 64
        %v3013 = vpop.permute.xlu0 %3012
        %3014 = vrot.lane.b32.xlu0 %v2905, 64
        %v3015 = vpop.permute.xlu0 %3014
        %3016 = vrot.lane.b32.xlu0 %v2910, 64
        %v3017 = vpop.permute.xlu0 %3016
        %3018 = vrot.lane.b32.xlu0 %v2915, 64
        %v3019 = vpop.permute.xlu0 %3018
        %3020 = vrot.lane.b32.xlu0 %v2920, 64
        %v3021 = vpop.permute.xlu0 %3020
        %3022 = vrot.lane.b32.xlu0 %v2925, 64
        %v3023 = vpop.permute.xlu0 %3022
        %3024 = vrot.lane.b32.xlu0 %v2930, 64
        %v3025 = vpop.permute.xlu0 %3024
        %3026 = vrot.lane.b32.xlu0 %v2935, 64
        %v3027 = vpop.permute.xlu0 %3026
        %3028 = vrot.lane.b32.xlu0 %v2940, 64
        %v3029 = vpop.permute.xlu0 %3028
        %3030 = vrot.lane.b32.xlu0 %v2945, 64
        %v3031 = vpop.permute.xlu0 %3030
        %3032 = vrot.lane.b32.xlu0 %v2950, 64
        %v3033 = vpop.permute.xlu0 %3032
        %3034 = vrot.lane.b32.xlu0 %v2955, 64
        %v3035 = vpop.permute.xlu0 %3034
        %3036 = vrot.lane.b32.xlu0 %v2960, 64
        %v3037 = vpop.permute.xlu0 %3036
        %3038 = vrot.lane.b32.xlu0 %v2965, 64
        %v3039 = vpop.permute.xlu0 %3038
        %vm3064 = vcmask 654848
        %3065 = vst.msk [vmem:[%s645 + $0xc0] sm:$0xff] %vm3064, %v2993
        %3066 = vst.msk [vmem:[%s645 + $0xc8] sm:$0xff] %vm3064, %v2995
        %3067 = vst.msk [vmem:[%s645 + $0xd0] sm:$0xff] %vm3064, %v2997
        %3068 = vst.msk [vmem:[%s645 + $0xd8] sm:$0xff] %vm3064, %v2999
        %3069 = vst.msk [vmem:[%s645 + $0xe0] sm:$0xff] %vm3064, %v3001
        %3070 = vst.msk [vmem:[%s645 + $0xe8] sm:$0xff] %vm3064, %v3003
        %3071 = vst.msk [vmem:[%s645 + $0xf0] sm:$0xff] %vm3064, %v3005
        %3072 = vst.msk [vmem:[%s645 + $0xf8] sm:$0xff] %vm3064, %v3007
        %3073 = vst.msk [vmem:[%s645 + $0x100] sm:$0xff] %vm3064, %v3009
        %3074 = vst.msk [vmem:[%s645 + $0x108] sm:$0xff] %vm3064, %v3011
        %3075 = vst.msk [vmem:[%s645 + $0x110] sm:$0xff] %vm3064, %v3013
        %3076 = vst.msk [vmem:[%s645 + $0x118] sm:$0xff] %vm3064, %v3015
        %3077 = vst.msk [vmem:[%s645 + $0x120] sm:$0xff] %vm3064, %v3017
        %3078 = vst.msk [vmem:[%s645 + $0x128] sm:$0xff] %vm3064, %v3019
        %3079 = vst.msk [vmem:[%s645 + $0x130] sm:$0xff] %vm3064, %v3021
        %3080 = vst.msk [vmem:[%s645 + $0x138] sm:$0xff] %vm3064, %v3023
        %3081 = vst.msk [vmem:[%s645 + $0x140] sm:$0xff] %vm3064, %v3025
        %3082 = vst.msk [vmem:[%s645 + $0x148] sm:$0xff] %vm3064, %v3027
        %3083 = vst.msk [vmem:[%s645 + $0x150] sm:$0xff] %vm3064, %v3029
        %3084 = vst.msk [vmem:[%s645 + $0x158] sm:$0xff] %vm3064, %v3031
        %3085 = vst.msk [vmem:[%s645 + $0x160] sm:$0xff] %vm3064, %v3033
        %3086 = vst.msk [vmem:[%s645 + $0x168] sm:$0xff] %vm3064, %v3035
        %3087 = vst.msk [vmem:[%s645 + $0x170] sm:$0xff] %vm3064, %v3037
        %3088 = vst.msk [vmem:[%s645 + $0x178] sm:$0xff] %vm3064, %v3039
        %3089 = vrot.lane.b32.xlu0 %v2850, 80
        %v3090 = vpop.permute.xlu0 %3089
        %3091 = vrot.lane.b32.xlu0 %v2855, 80
        %v3092 = vpop.permute.xlu0 %3091
        %3093 = vrot.lane.b32.xlu0 %v2860, 80
        %v3094 = vpop.permute.xlu0 %3093
        %3095 = vrot.lane.b32.xlu0 %v2865, 80
        %v3096 = vpop.permute.xlu0 %3095
        %3097 = vrot.lane.b32.xlu0 %v2870, 80
        %v3098 = vpop.permute.xlu0 %3097
        %3099 = vrot.lane.b32.xlu0 %v2875, 80
        %v3100 = vpop.permute.xlu0 %3099
        %3101 = vrot.lane.b32.xlu0 %v2880, 80
        %v3102 = vpop.permute.xlu0 %3101
        %3103 = vrot.lane.b32.xlu0 %v2885, 80
        %v3104 = vpop.permute.xlu0 %3103
        %3105 = vrot.lane.b32.xlu0 %v2890, 80
        %v3106 = vpop.permute.xlu0 %3105
        %3107 = vrot.lane.b32.xlu0 %v2895, 80
        %v3108 = vpop.permute.xlu0 %3107
        %3109 = vrot.lane.b32.xlu0 %v2900, 80
        %v3110 = vpop.permute.xlu0 %3109
        %3111 = vrot.lane.b32.xlu0 %v2905, 80
        %v3112 = vpop.permute.xlu0 %3111
        %3113 = vrot.lane.b32.xlu0 %v2910, 80
        %v3114 = vpop.permute.xlu0 %3113
        %3115 = vrot.lane.b32.xlu0 %v2915, 80
        %v3116 = vpop.permute.xlu0 %3115
        %3117 = vrot.lane.b32.xlu0 %v2920, 80
        %v3118 = vpop.permute.xlu0 %3117
        %3119 = vrot.lane.b32.xlu0 %v2925, 80
        %v3120 = vpop.permute.xlu0 %3119
        %3121 = vrot.lane.b32.xlu0 %v2930, 80
        %v3122 = vpop.permute.xlu0 %3121
        %3123 = vrot.lane.b32.xlu0 %v2935, 80
        %v3124 = vpop.permute.xlu0 %3123
        %3125 = vrot.lane.b32.xlu0 %v2940, 80
        %v3126 = vpop.permute.xlu0 %3125
        %3127 = vrot.lane.b32.xlu0 %v2945, 80
        %v3128 = vpop.permute.xlu0 %3127
        %3129 = vrot.lane.b32.xlu0 %v2950, 80
        %v3130 = vpop.permute.xlu0 %3129
        %3131 = vrot.lane.b32.xlu0 %v2955, 80
        %v3132 = vpop.permute.xlu0 %3131
        %3133 = vrot.lane.b32.xlu0 %v2960, 80
        %v3134 = vpop.permute.xlu0 %3133
        %3135 = vrot.lane.b32.xlu0 %v2965, 80
        %v3136 = vpop.permute.xlu0 %3135
        %vm3161 = vcmask 786048
        %3162 = vst.msk [vmem:[%s645 + $0xc0] sm:$0xff] %vm3161, %v3090
        %3163 = vst.msk [vmem:[%s645 + $0xc8] sm:$0xff] %vm3161, %v3092
        %3164 = vst.msk [vmem:[%s645 + $0xd0] sm:$0xff] %vm3161, %v3094
        %3165 = vst.msk [vmem:[%s645 + $0xd8] sm:$0xff] %vm3161, %v3096
        %3166 = vst.msk [vmem:[%s645 + $0xe0] sm:$0xff] %vm3161, %v3098
        %3167 = vst.msk [vmem:[%s645 + $0xe8] sm:$0xff] %vm3161, %v3100
        %3168 = vst.msk [vmem:[%s645 + $0xf0] sm:$0xff] %vm3161, %v3102
        %3169 = vst.msk [vmem:[%s645 + $0xf8] sm:$0xff] %vm3161, %v3104
        %3170 = vst.msk [vmem:[%s645 + $0x100] sm:$0xff] %vm3161, %v3106
        %3171 = vst.msk [vmem:[%s645 + $0x108] sm:$0xff] %vm3161, %v3108
        %3172 = vst.msk [vmem:[%s645 + $0x110] sm:$0xff] %vm3161, %v3110
        %3173 = vst.msk [vmem:[%s645 + $0x118] sm:$0xff] %vm3161, %v3112
        %3174 = vst.msk [vmem:[%s645 + $0x120] sm:$0xff] %vm3161, %v3114
        %3175 = vst.msk [vmem:[%s645 + $0x128] sm:$0xff] %vm3161, %v3116
        %3176 = vst.msk [vmem:[%s645 + $0x130] sm:$0xff] %vm3161, %v3118
        %3177 = vst.msk [vmem:[%s645 + $0x138] sm:$0xff] %vm3161, %v3120
        %3178 = vst.msk [vmem:[%s645 + $0x140] sm:$0xff] %vm3161, %v3122
        %3179 = vst.msk [vmem:[%s645 + $0x148] sm:$0xff] %vm3161, %v3124
        %3180 = vst.msk [vmem:[%s645 + $0x150] sm:$0xff] %vm3161, %v3126
        %3181 = vst.msk [vmem:[%s645 + $0x158] sm:$0xff] %vm3161, %v3128
        %3182 = vst.msk [vmem:[%s645 + $0x160] sm:$0xff] %vm3161, %v3130
        %3183 = vst.msk [vmem:[%s645 + $0x168] sm:$0xff] %vm3161, %v3132
        %3184 = vst.msk [vmem:[%s645 + $0x170] sm:$0xff] %vm3161, %v3134
        %3185 = vst.msk [vmem:[%s645 + $0x178] sm:$0xff] %vm3161, %v3136
        %3186 = vrot.lane.b32.xlu0 %v1759, 104
        %v3187 = vpop.permute.xlu0 %3186
        %3188 = vrot.lane.b32.xlu0 %v1760, 104
        %v3189 = vpop.permute.xlu0 %3188
        %3190 = vrot.lane.b32.xlu0 %v1761, 104
        %v3191 = vpop.permute.xlu0 %3190
        %3192 = vrot.lane.b32.xlu0 %v1762, 104
        %v3193 = vpop.permute.xlu0 %3192
        %3194 = vrot.lane.b32.xlu0 %v1763, 104
        %v3195 = vpop.permute.xlu0 %3194
        %3196 = vrot.lane.b32.xlu0 %v1764, 104
        %v3197 = vpop.permute.xlu0 %3196
        %3198 = vrot.lane.b32.xlu0 %v1765, 104
        %v3199 = vpop.permute.xlu0 %3198
        %3200 = vrot.lane.b32.xlu0 %v1766, 104
        %v3201 = vpop.permute.xlu0 %3200
        %3202 = vrot.lane.b32.xlu0 %v1767, 104
        %v3203 = vpop.permute.xlu0 %3202
        %3204 = vrot.lane.b32.xlu0 %v1768, 104
        %v3205 = vpop.permute.xlu0 %3204
        %3206 = vrot.lane.b32.xlu0 %v1769, 104
        %v3207 = vpop.permute.xlu0 %3206
        %3208 = vrot.lane.b32.xlu0 %v1770, 104
        %v3209 = vpop.permute.xlu0 %3208
        %3210 = vrot.lane.b32.xlu0 %v1771, 104
        %v3211 = vpop.permute.xlu0 %3210
        %3212 = vrot.lane.b32.xlu0 %v1772, 104
        %v3213 = vpop.permute.xlu0 %3212
        %3214 = vrot.lane.b32.xlu0 %v1773, 104
        %v3215 = vpop.permute.xlu0 %3214
        %3216 = vrot.lane.b32.xlu0 %v1774, 104
        %v3217 = vpop.permute.xlu0 %3216
        %3218 = vrot.lane.b32.xlu0 %v1775, 104
        %v3219 = vpop.permute.xlu0 %3218
        %3220 = vrot.lane.b32.xlu0 %v1776, 104
        %v3221 = vpop.permute.xlu0 %3220
        %3222 = vrot.lane.b32.xlu0 %v1777, 104
        %v3223 = vpop.permute.xlu0 %3222
        %3224 = vrot.lane.b32.xlu0 %v1778, 104
        %v3225 = vpop.permute.xlu0 %3224
        %3226 = vrot.lane.b32.xlu0 %v1779, 104
        %v3227 = vpop.permute.xlu0 %3226
        %3228 = vrot.lane.b32.xlu0 %v1780, 104
        %v3229 = vpop.permute.xlu0 %3228
        %3230 = vrot.lane.b32.xlu0 %v1781, 104
        %v3231 = vpop.permute.xlu0 %3230
        %3232 = vrot.lane.b32.xlu0 %v1782, 104
        %v3233 = vpop.permute.xlu0 %3232
        %v3234 = vsel %vm1784, %v3187, 0
        %v3236 = vsel %vm1784, %v3189, 0
        %v3238 = vsel %vm1784, %v3191, 0
        %v3240 = vsel %vm1784, %v3193, 0
        %v3242 = vsel %vm1784, %v3195, 0
        %v3244 = vsel %vm1784, %v3197, 0
        %v3246 = vsel %vm1784, %v3199, 0
        %v3248 = vsel %vm1784, %v3201, 0
        %v3250 = vsel %vm1784, %v3203, 0
        %v3252 = vsel %vm1784, %v3205, 0
        %v3254 = vsel %vm1784, %v3207, 0
        %v3256 = vsel %vm1784, %v3209, 0
        %v3258 = vsel %vm1784, %v3211, 0
        %v3260 = vsel %vm1784, %v3213, 0
        %v3262 = vsel %vm1784, %v3215, 0
        %v3264 = vsel %vm1784, %v3217, 0
        %v3266 = vsel %vm1784, %v3219, 0
        %v3268 = vsel %vm1784, %v3221, 0
        %v3270 = vsel %vm1784, %v3223, 0
        %v3272 = vsel %vm1784, %v3225, 0
        %v3274 = vsel %vm1784, %v3227, 0
        %v3276 = vsel %vm1784, %v3229, 0
        %v3278 = vsel %vm1784, %v3231, 0
        %v3280 = vsel %vm1784, %v3233, 0
        %3282 = vmatprep.subr.mxu0 0.0
        %3283 = vmatpush1.msra.mxu0 %v1783
        %3284 = vmatprep.subr.mxu0 0.0
        %3285 = vmatpush1.msra.mxu0 0.0
        %3286 = vmatprep.subr.mxu0 0.0
        %3287 = vmatpush1.msra.mxu0 0.0
        %3288 = vmatprep.subr.mxu0 0.0
        %3289 = vmatpush1.msra.mxu0 0.0
        %3290 = vmatprep.subr.mxu0 0.0
        %3291 = vmatpush1.msra.mxu0 0.0
        %3292 = vmatprep.subr.mxu0 0.0
        %3293 = vmatpush1.msra.mxu0 0.0
        %3294 = vmatprep.subr.mxu0 0.0
        %3295 = vmatpush1.msra.mxu0 0.0
        %3296 = vmatprep.subr.mxu0 0.0
        %3297 = vmatpush1.msra.mxu0 0.0
        %3298 = vmatprep.subr.mxu0 0.0
        %3299 = vmatpush1.msra.mxu0 0.0
        %3300 = vmatprep.subr.mxu0 0.0
        %3301 = vmatpush1.msra.mxu0 0.0
        %3302 = vmatprep.subr.mxu0 0.0
        %3303 = vmatpush1.msra.mxu0 0.0
        %3304 = vmatprep.subr.mxu0 0.0
        %3305 = vmatpush1.msra.mxu0 0.0
        %3306 = vmatprep.subr.mxu0 0.0
        %3307 = vmatpush1.msra.mxu0 0.0
        %3308 = vmatprep.subr.mxu0 0.0
        %3309 = vmatpush1.msra.mxu0 0.0
        %3310 = vmatprep.subr.mxu0 0.0
        %3311 = vmatpush1.msra.mxu0 0.0
        %3312 = vmatprep.subr.mxu0 0.0
        %3313 = vmatpush1.msra.mxu0 0.0
        %3314 = vmatprep.subr.mxu0 0.0
        %3315 = vmatpush1.msra.mxu0 0.0
        %3316 = vmatprep.subr.mxu0 0.0
        %3317 = vmatpush1.msra.mxu0 0.0
        %3318 = vmatprep.subr.mxu0 0.0
        %3319 = vmatpush1.msra.mxu0 0.0
        %3320 = vmatprep.subr.mxu0 0.0
        %3321 = vmatpush1.msra.mxu0 0.0
        %3322 = vmatprep.subr.mxu0 0.0
        %3323 = vmatpush1.msra.mxu0 0.0
        %3324 = vmatprep.subr.mxu0 0.0
        %3325 = vmatpush1.msra.mxu0 0.0
        %3326 = vmatprep.subr.mxu0 0.0
        %3327 = vmatpush1.msra.mxu0 0.0
        %3328 = vmatprep.subr.mxu0 0.0
        %3329 = vmatpush1.msra.mxu0 0.0
        %3330 = vmatprep.subr.mxu0 0.0
        %3331 = vmatpush1.msra.mxu0 0.0
        %3332 = vmatprep.subr.mxu0 0.0
        %3333 = vmatpush1.msra.mxu0 0.0
        %3334 = vmatprep.subr.mxu0 0.0
        %3335 = vmatpush1.msra.mxu0 0.0
        %3336 = vmatprep.subr.mxu0 0.0
        %3337 = vmatpush1.msra.mxu0 0.0
        %3338 = vmatprep.subr.mxu0 0.0
        %3339 = vmatpush1.msra.mxu0 0.0
        %3340 = vmatprep.subr.mxu0 0.0
        %3341 = vmatpush1.msra.mxu0 0.0
        %3342 = vmatprep.subr.mxu0 0.0
        %3343 = vmatpush1.msra.mxu0 0.0
        %3344 = vmatprep.subr.mxu0 0.0
        %3345 = vmatpush1.msra.mxu0 0.0
        %3346 = vmatprep.mubr.f32.mxu0 0.0
        %3347 = vmatmul.mubr.f32.gmra.mrb[0].mxu0 %v3234
        %v3348 = vpop.f32.mrb[0].mxu0
        %v3349 = vadd.f32 0.0, %v3348
        %v3350 = vpop.f32.mrb[0].mxu0
        %3351 = vmatprep.mubr.f32.mxu0 0.0
        %3352 = vmatmul.mubr.f32.gmra.mrb[0].mxu0 %v3236
        %v3353 = vpop.f32.mrb[0].mxu0
        %v3354 = vadd.f32 0.0, %v3353
        %v3355 = vpop.f32.mrb[0].mxu0
        %3356 = vmatprep.mubr.f32.mxu0 0.0
        %3357 = vmatmul.mubr.f32.gmra.mrb[0].mxu0 %v3238
        %v3358 = vpop.f32.mrb[0].mxu0
        %v3359 = vadd.f32 0.0, %v3358
        %v3360 = vpop.f32.mrb[0].mxu0
        %3361 = vmatprep.mubr.f32.mxu0 0.0
        %3362 = vmatmul.mubr.f32.gmra.mrb[0].mxu0 %v3240
        %v3363 = vpop.f32.mrb[0].mxu0
        %v3364 = vadd.f32 0.0, %v3363
        %v3365 = vpop.f32.mrb[0].mxu0
        %3366 = vmatprep.mubr.f32.mxu0 0.0
        %3367 = vmatmul.mubr.f32.gmra.mrb[0].mxu0 %v3242
        %v3368 = vpop.f32.mrb[0].mxu0
        %v3369 = vadd.f32 0.0, %v3368
        %v3370 = vpop.f32.mrb[0].mxu0
        %3371 = vmatprep.mubr.f32.mxu0 0.0
        %3372 = vmatmul.mubr.f32.gmra.mrb[0].mxu0 %v3244
        %v3373 = vpop.f32.mrb[0].mxu0
        %v3374 = vadd.f32 0.0, %v3373
        %v3375 = vpop.f32.mrb[0].mxu0
        %3376 = vmatprep.mubr.f32.mxu0 0.0
        %3377 = vmatmul.mubr.f32.gmra.mrb[0].mxu0 %v3246
        %v3378 = vpop.f32.mrb[0].mxu0
        %v3379 = vadd.f32 0.0, %v3378
        %v3380 = vpop.f32.mrb[0].mxu0
        %3381 = vmatprep.mubr.f32.mxu0 0.0
        %3382 = vmatmul.mubr.f32.gmra.mrb[0].mxu0 %v3248
        %v3383 = vpop.f32.mrb[0].mxu0
        %v3384 = vadd.f32 0.0, %v3383
        %v3385 = vpop.f32.mrb[0].mxu0
        %3386 = vmatprep.mubr.f32.mxu0 0.0
        %3387 = vmatmul.mubr.f32.gmra.mrb[0].mxu0 %v3250
        %v3388 = vpop.f32.mrb[0].mxu0
        %v3389 = vadd.f32 0.0, %v3388
        %v3390 = vpop.f32.mrb[0].mxu0
        %3391 = vmatprep.mubr.f32.mxu0 0.0
        %3392 = vmatmul.mubr.f32.gmra.mrb[0].mxu0 %v3252
        %v3393 = vpop.f32.mrb[0].mxu0
        %v3394 = vadd.f32 0.0, %v3393
        %v3395 = vpop.f32.mrb[0].mxu0
        %3396 = vmatprep.mubr.f32.mxu0 0.0
        %3397 = vmatmul.mubr.f32.gmra.mrb[0].mxu0 %v3254
        %v3398 = vpop.f32.mrb[0].mxu0
        %v3399 = vadd.f32 0.0, %v3398
        %v3400 = vpop.f32.mrb[0].mxu0
        %3401 = vmatprep.mubr.f32.mxu0 0.0
        %3402 = vmatmul.mubr.f32.gmra.mrb[0].mxu0 %v3256
        %v3403 = vpop.f32.mrb[0].mxu0
        %v3404 = vadd.f32 0.0, %v3403
        %v3405 = vpop.f32.mrb[0].mxu0
        %3406 = vmatprep.mubr.f32.mxu0 0.0
        %3407 = vmatmul.mubr.f32.gmra.mrb[0].mxu0 %v3258
        %v3408 = vpop.f32.mrb[0].mxu0
        %v3409 = vadd.f32 0.0, %v3408
        %v3410 = vpop.f32.mrb[0].mxu0
        %3411 = vmatprep.mubr.f32.mxu0 0.0
        %3412 = vmatmul.mubr.f32.gmra.mrb[0].mxu0 %v3260
        %v3413 = vpop.f32.mrb[0].mxu0
        %v3414 = vadd.f32 0.0, %v3413
        %v3415 = vpop.f32.mrb[0].mxu0
        %3416 = vmatprep.mubr.f32.mxu0 0.0
        %3417 = vmatmul.mubr.f32.gmra.mrb[0].mxu0 %v3262
        %v3418 = vpop.f32.mrb[0].mxu0
        %v3419 = vadd.f32 0.0, %v3418
        %v3420 = vpop.f32.mrb[0].mxu0
        %3421 = vmatprep.mubr.f32.mxu0 0.0
        %3422 = vmatmul.mubr.f32.gmra.mrb[0].mxu0 %v3264
        %v3423 = vpop.f32.mrb[0].mxu0
        %v3424 = vadd.f32 0.0, %v3423
        %v3425 = vpop.f32.mrb[0].mxu0
        %3426 = vmatprep.mubr.f32.mxu0 0.0
        %3427 = vmatmul.mubr.f32.gmra.mrb[0].mxu0 %v3266
        %v3428 = vpop.f32.mrb[0].mxu0
        %v3429 = vadd.f32 0.0, %v3428
        %v3430 = vpop.f32.mrb[0].mxu0
        %3431 = vmatprep.mubr.f32.mxu0 0.0
        %3432 = vmatmul.mubr.f32.gmra.mrb[0].mxu0 %v3268
        %v3433 = vpop.f32.mrb[0].mxu0
        %v3434 = vadd.f32 0.0, %v3433
        %v3435 = vpop.f32.mrb[0].mxu0
        %3436 = vmatprep.mubr.f32.mxu0 0.0
        %3437 = vmatmul.mubr.f32.gmra.mrb[0].mxu0 %v3270
        %v3438 = vpop.f32.mrb[0].mxu0
        %v3439 = vadd.f32 0.0, %v3438
        %v3440 = vpop.f32.mrb[0].mxu0
        %3441 = vmatprep.mubr.f32.mxu0 0.0
        %3442 = vmatmul.mubr.f32.gmra.mrb[0].mxu0 %v3272
        %v3443 = vpop.f32.mrb[0].mxu0
        %v3444 = vadd.f32 0.0, %v3443
        %v3445 = vpop.f32.mrb[0].mxu0
        %3446 = vmatprep.mubr.f32.mxu0 0.0
        %3447 = vmatmul.mubr.f32.gmra.mrb[0].mxu0 %v3274
        %v3448 = vpop.f32.mrb[0].mxu0
        %v3449 = vadd.f32 0.0, %v3448
        %v3450 = vpop.f32.mrb[0].mxu0
        %3451 = vmatprep.mubr.f32.mxu0 0.0
        %3452 = vmatmul.mubr.f32.gmra.mrb[0].mxu0 %v3276
        %v3453 = vpop.f32.mrb[0].mxu0
        %v3454 = vadd.f32 0.0, %v3453
        %v3455 = vpop.f32.mrb[0].mxu0
        %3456 = vmatprep.mubr.f32.mxu0 0.0
        %3457 = vmatmul.mubr.f32.gmra.mrb[0].mxu0 %v3278
        %v3458 = vpop.f32.mrb[0].mxu0
        %v3459 = vadd.f32 0.0, %v3458
        %v3460 = vpop.f32.mrb[0].mxu0
        %3461 = vmatprep.mubr.f32.mxu0 0.0
        %3462 = vmatmul.mubr.f32.gmra.mrb[0].mxu0 %v3280
        %v3463 = vpop.f32.mrb[0].mxu0
        %v3464 = vadd.f32 0.0, %v3463
        %v3465 = vpop.f32.mrb[0].mxu0
        %3466 = vdwg.mxu0
        %3491 = vrot.lane.b32.xlu0 %v3349, 96
        %v3492 = vpop.permute.xlu0 %3491
        %3493 = vrot.lane.b32.xlu0 %v3354, 96
        %v3494 = vpop.permute.xlu0 %3493
        %3495 = vrot.lane.b32.xlu0 %v3359, 96
        %v3496 = vpop.permute.xlu0 %3495
        %3497 = vrot.lane.b32.xlu0 %v3364, 96
        %v3498 = vpop.permute.xlu0 %3497
        %3499 = vrot.lane.b32.xlu0 %v3369, 96
        %v3500 = vpop.permute.xlu0 %3499
        %3501 = vrot.lane.b32.xlu0 %v3374, 96
        %v3502 = vpop.permute.xlu0 %3501
        %3503 = vrot.lane.b32.xlu0 %v3379, 96
        %v3504 = vpop.permute.xlu0 %3503
        %3505 = vrot.lane.b32.xlu0 %v3384, 96
        %v3506 = vpop.permute.xlu0 %3505
        %3507 = vrot.lane.b32.xlu0 %v3389, 96
        %v3508 = vpop.permute.xlu0 %3507
        %3509 = vrot.lane.b32.xlu0 %v3394, 96
        %v3510 = vpop.permute.xlu0 %3509
        %3511 = vrot.lane.b32.xlu0 %v3399, 96
        %v3512 = vpop.permute.xlu0 %3511
        %3513 = vrot.lane.b32.xlu0 %v3404, 96
        %v3514 = vpop.permute.xlu0 %3513
        %3515 = vrot.lane.b32.xlu0 %v3409, 96
        %v3516 = vpop.permute.xlu0 %3515
        %3517 = vrot.lane.b32.xlu0 %v3414, 96
        %v3518 = vpop.permute.xlu0 %3517
        %3519 = vrot.lane.b32.xlu0 %v3419, 96
        %v3520 = vpop.permute.xlu0 %3519
        %3521 = vrot.lane.b32.xlu0 %v3424, 96
        %v3522 = vpop.permute.xlu0 %3521
        %3523 = vrot.lane.b32.xlu0 %v3429, 96
        %v3524 = vpop.permute.xlu0 %3523
        %3525 = vrot.lane.b32.xlu0 %v3434, 96
        %v3526 = vpop.permute.xlu0 %3525
        %3527 = vrot.lane.b32.xlu0 %v3439, 96
        %v3528 = vpop.permute.xlu0 %3527
        %3529 = vrot.lane.b32.xlu0 %v3444, 96
        %v3530 = vpop.permute.xlu0 %3529
        %3531 = vrot.lane.b32.xlu0 %v3449, 96
        %v3532 = vpop.permute.xlu0 %3531
        %3533 = vrot.lane.b32.xlu0 %v3454, 96
        %v3534 = vpop.permute.xlu0 %3533
        %3535 = vrot.lane.b32.xlu0 %v3459, 96
        %v3536 = vpop.permute.xlu0 %3535
        %3537 = vrot.lane.b32.xlu0 %v3464, 96
        %v3538 = vpop.permute.xlu0 %3537
        %vm3563 = vcmask 917248
        %3564 = vst.msk [vmem:[%s645 + $0xc0] sm:$0xff] %vm3563, %v3492
        %3565 = vst.msk [vmem:[%s645 + $0xc8] sm:$0xff] %vm3563, %v3494
        %3566 = vst.msk [vmem:[%s645 + $0xd0] sm:$0xff] %vm3563, %v3496
        %3567 = vst.msk [vmem:[%s645 + $0xd8] sm:$0xff] %vm3563, %v3498
        %3568 = vst.msk [vmem:[%s645 + $0xe0] sm:$0xff] %vm3563, %v3500
        %3569 = vst.msk [vmem:[%s645 + $0xe8] sm:$0xff] %vm3563, %v3502
        %3570 = vst.msk [vmem:[%s645 + $0xf0] sm:$0xff] %vm3563, %v3504
        %3571 = vst.msk [vmem:[%s645 + $0xf8] sm:$0xff] %vm3563, %v3506
        %3572 = vst.msk [vmem:[%s645 + $0x100] sm:$0xff] %vm3563, %v3508
        %3573 = vst.msk [vmem:[%s645 + $0x108] sm:$0xff] %vm3563, %v3510
        %3574 = vst.msk [vmem:[%s645 + $0x110] sm:$0xff] %vm3563, %v3512
        %3575 = vst.msk [vmem:[%s645 + $0x118] sm:$0xff] %vm3563, %v3514
        %3576 = vst.msk [vmem:[%s645 + $0x120] sm:$0xff] %vm3563, %v3516
        %3577 = vst.msk [vmem:[%s645 + $0x128] sm:$0xff] %vm3563, %v3518
        %3578 = vst.msk [vmem:[%s645 + $0x130] sm:$0xff] %vm3563, %v3520
        %3579 = vst.msk [vmem:[%s645 + $0x138] sm:$0xff] %vm3563, %v3522
        %3580 = vst.msk [vmem:[%s645 + $0x140] sm:$0xff] %vm3563, %v3524
        %3581 = vst.msk [vmem:[%s645 + $0x148] sm:$0xff] %vm3563, %v3526
        %3582 = vst.msk [vmem:[%s645 + $0x150] sm:$0xff] %vm3563, %v3528
        %3583 = vst.msk [vmem:[%s645 + $0x158] sm:$0xff] %vm3563, %v3530
        %3584 = vst.msk [vmem:[%s645 + $0x160] sm:$0xff] %vm3563, %v3532
        %3585 = vst.msk [vmem:[%s645 + $0x168] sm:$0xff] %vm3563, %v3534
        %3586 = vst.msk [vmem:[%s645 + $0x170] sm:$0xff] %vm3563, %v3536
        %3587 = vst.msk [vmem:[%s645 + $0x178] sm:$0xff] %vm3563, %v3538
        %3588 = vrot.lane.b32.xlu0 %v3349, 112
        %v3589 = vpop.permute.xlu0 %3588
        %3590 = vrot.lane.b32.xlu0 %v3354, 112
        %v3591 = vpop.permute.xlu0 %3590
        %3592 = vrot.lane.b32.xlu0 %v3359, 112
        %v3593 = vpop.permute.xlu0 %3592
        %3594 = vrot.lane.b32.xlu0 %v3364, 112
        %v3595 = vpop.permute.xlu0 %3594
        %3596 = vrot.lane.b32.xlu0 %v3369, 112
        %v3597 = vpop.permute.xlu0 %3596
        %3598 = vrot.lane.b32.xlu0 %v3374, 112
        %v3599 = vpop.permute.xlu0 %3598
        %3600 = vrot.lane.b32.xlu0 %v3379, 112
        %v3601 = vpop.permute.xlu0 %3600
        %3602 = vrot.lane.b32.xlu0 %v3384, 112
        %v3603 = vpop.permute.xlu0 %3602
        %3604 = vrot.lane.b32.xlu0 %v3389, 112
        %v3605 = vpop.permute.xlu0 %3604
        %3606 = vrot.lane.b32.xlu0 %v3394, 112
        %v3607 = vpop.permute.xlu0 %3606
        %3608 = vrot.lane.b32.xlu0 %v3399, 112
        %v3609 = vpop.permute.xlu0 %3608
        %3610 = vrot.lane.b32.xlu0 %v3404, 112
        %v3611 = vpop.permute.xlu0 %3610
        %3612 = vrot.lane.b32.xlu0 %v3409, 112
        %v3613 = vpop.permute.xlu0 %3612
        %3614 = vrot.lane.b32.xlu0 %v3414, 112
        %v3615 = vpop.permute.xlu0 %3614
        %3616 = vrot.lane.b32.xlu0 %v3419, 112
        %v3617 = vpop.permute.xlu0 %3616
        %3618 = vrot.lane.b32.xlu0 %v3424, 112
        %v3619 = vpop.permute.xlu0 %3618
        %3620 = vrot.lane.b32.xlu0 %v3429, 112
        %v3621 = vpop.permute.xlu0 %3620
        %3622 = vrot.lane.b32.xlu0 %v3434, 112
        %v3623 = vpop.permute.xlu0 %3622
        %3624 = vrot.lane.b32.xlu0 %v3439, 112
        %v3625 = vpop.permute.xlu0 %3624
        %3626 = vrot.lane.b32.xlu0 %v3444, 112
        %v3627 = vpop.permute.xlu0 %3626
        %3628 = vrot.lane.b32.xlu0 %v3449, 112
        %v3629 = vpop.permute.xlu0 %3628
        %3630 = vrot.lane.b32.xlu0 %v3454, 112
        %v3631 = vpop.permute.xlu0 %3630
        %3632 = vrot.lane.b32.xlu0 %v3459, 112
        %v3633 = vpop.permute.xlu0 %3632
        %3634 = vrot.lane.b32.xlu0 %v3464, 112
        %v3635 = vpop.permute.xlu0 %3634
        %vm3660 = vcmask 1048448
        %3661 = vst.msk [vmem:[%s645 + $0xc0] sm:$0xff] %vm3660, %v3589
        %3662 = vst.msk [vmem:[%s645 + $0xc8] sm:$0xff] %vm3660, %v3591
        %3663 = vst.msk [vmem:[%s645 + $0xd0] sm:$0xff] %vm3660, %v3593
        %3664 = vst.msk [vmem:[%s645 + $0xd8] sm:$0xff] %vm3660, %v3595
        %3665 = vst.msk [vmem:[%s645 + $0xe0] sm:$0xff] %vm3660, %v3597
        %3666 = vst.msk [vmem:[%s645 + $0xe8] sm:$0xff] %vm3660, %v3599
        %3667 = vst.msk [vmem:[%s645 + $0xf0] sm:$0xff] %vm3660, %v3601
        %3668 = vst.msk [vmem:[%s645 + $0xf8] sm:$0xff] %vm3660, %v3603
        %3669 = vst.msk [vmem:[%s645 + $0x100] sm:$0xff] %vm3660, %v3605
        %3670 = vst.msk [vmem:[%s645 + $0x108] sm:$0xff] %vm3660, %v3607
        %3671 = vst.msk [vmem:[%s645 + $0x110] sm:$0xff] %vm3660, %v3609
        %3672 = vst.msk [vmem:[%s645 + $0x118] sm:$0xff] %vm3660, %v3611
        %3673 = vst.msk [vmem:[%s645 + $0x120] sm:$0xff] %vm3660, %v3613
        %3674 = vst.msk [vmem:[%s645 + $0x128] sm:$0xff] %vm3660, %v3615
        %3675 = vst.msk [vmem:[%s645 + $0x130] sm:$0xff] %vm3660, %v3617
        %3676 = vst.msk [vmem:[%s645 + $0x138] sm:$0xff] %vm3660, %v3619
        %3677 = vst.msk [vmem:[%s645 + $0x140] sm:$0xff] %vm3660, %v3621
        %3678 = vst.msk [vmem:[%s645 + $0x148] sm:$0xff] %vm3660, %v3623
        %3679 = vst.msk [vmem:[%s645 + $0x150] sm:$0xff] %vm3660, %v3625
        %3680 = vst.msk [vmem:[%s645 + $0x158] sm:$0xff] %vm3660, %v3627
        %3681 = vst.msk [vmem:[%s645 + $0x160] sm:$0xff] %vm3660, %v3629
        %3682 = vst.msk [vmem:[%s645 + $0x168] sm:$0xff] %vm3660, %v3631
        %3683 = vst.msk [vmem:[%s645 + $0x170] sm:$0xff] %vm3660, %v3633
        %3684 = vst.msk [vmem:[%s645 + $0x178] sm:$0xff] %vm3660, %v3635
        // Predicated region
        $region123: #{neck_forward.1} parent=113 // pred_check
          %p3685 = pneg %p1126
        $region124: #{neck_forward.1} parent=113 // pred_check_branch
          %3687 = sbr.rel (%p3685) target = $region126
        $region125: #{neck_forward.1} parent=113 // pred_region
          %v3688 = vld [vmem:[%s655] sm:$0xff]
          %v3689 = vld [vmem:[%s655 + $0x8] sm:$0xff]
          %v3690 = vld [vmem:[%s655 + $0x10] sm:$0xff]
          %v3691 = vld [vmem:[%s655 + $0x18] sm:$0xff]
          %v3692 = vld [vmem:[%s655 + $0x20] sm:$0xff]
          %v3693 = vld [vmem:[%s655 + $0x28] sm:$0xff]
          %v3694 = vld [vmem:[%s655 + $0x30] sm:$0xff]
          %v3695 = vld [vmem:[%s655 + $0x38] sm:$0xff]
          %v3696 = vld [vmem:[%s655 + $0x40] sm:$0xff]
          %v3697 = vld [vmem:[%s655 + $0x48] sm:$0xff]
          %v3698 = vld [vmem:[%s655 + $0x50] sm:$0xff]
          %v3699 = vld [vmem:[%s655 + $0x58] sm:$0xff]
          %v3700 = vld [vmem:[%s655 + $0x60] sm:$0xff]
          %v3701 = vld [vmem:[%s655 + $0x68] sm:$0xff]
          %v3702 = vld [vmem:[%s655 + $0x70] sm:$0xff]
          %v3703 = vld [vmem:[%s655 + $0x78] sm:$0xff]
          %v3704 = vld [vmem:[%s655 + $0x80] sm:$0xff]
          %v3705 = vld [vmem:[%s655 + $0x88] sm:$0xff]
          %v3706 = vld [vmem:[%s655 + $0x90] sm:$0xff]
          %v3707 = vld [vmem:[%s655 + $0x98] sm:$0xff]
          %v3708 = vld [vmem:[%s655 + $0xa0] sm:$0xff]
          %v3709 = vld [vmem:[%s655 + $0xa8] sm:$0xff]
          %v3710 = vld [vmem:[%s655 + $0xb0] sm:$0xff]
          %v3711 = vld [vmem:[%s655 + $0xb8] sm:$0xff]
          %v3712 = vld [vmem:[%s655 + $0xc0] sm:$0xff]
          %v3713 = vld [vmem:[%s655 + $0xc8] sm:$0xff]
          %v3714 = vld [vmem:[%s655 + $0xd0] sm:$0xff]
          %v3715 = vld [vmem:[%s655 + $0xd8] sm:$0xff]
          %v3716 = vld [vmem:[%s655 + $0xe0] sm:$0xff]
          %v3717 = vld [vmem:[%s655 + $0xe8] sm:$0xff]
          %v3718 = vld [vmem:[%s655 + $0xf0] sm:$0xff]
          %v3719 = vld [vmem:[%s655 + $0xf8] sm:$0xff]
          %v3720 = vld [vmem:[%s655 + $0x100] sm:$0xff]
          %v3721 = vld [vmem:[%s655 + $0x108] sm:$0xff]
          %v3722 = vld [vmem:[%s655 + $0x110] sm:$0xff]
          %v3723 = vld [vmem:[%s655 + $0x118] sm:$0xff]
          %v3724 = vld [vmem:[%s655 + $0x120] sm:$0xff]
          %v3725 = vld [vmem:[%s655 + $0x128] sm:$0xff]
          %v3726 = vld [vmem:[%s655 + $0x130] sm:$0xff]
          %v3727 = vld [vmem:[%s655 + $0x138] sm:$0xff]
          %v3728 = vld [vmem:[%s655 + $0x140] sm:$0xff]
          %v3729 = vld [vmem:[%s655 + $0x148] sm:$0xff]
          %v3730 = vld [vmem:[%s655 + $0x150] sm:$0xff]
          %v3731 = vld [vmem:[%s655 + $0x158] sm:$0xff]
          %v3732 = vld [vmem:[%s655 + $0x160] sm:$0xff]
          %v3733 = vld [vmem:[%s655 + $0x168] sm:$0xff]
          %v3734 = vld [vmem:[%s655 + $0x170] sm:$0xff]
          %v3735 = vld [vmem:[%s655 + $0x178] sm:$0xff]
          %v3736 = vld [vmem:[%s655 + $0x180] sm:$0xff]
          %v3737 = vld [vmem:[%s655 + $0x188] sm:$0xff]
          %v3738 = vld [vmem:[%s655 + $0x190] sm:$0xff]
          %v3739 = vld [vmem:[%s655 + $0x198] sm:$0xff]
          %v3740 = vld [vmem:[%s655 + $0x1a0] sm:$0xff]
          %v3741 = vld [vmem:[%s655 + $0x1a8] sm:$0xff]
          %v3742 = vld [vmem:[%s655 + $0x1b0] sm:$0xff]
          %v3743 = vld [vmem:[%s655 + $0x1b8] sm:$0xff]
          %v3744 = vld [vmem:[%s655 + $0x1c0] sm:$0xff]
          %v3745 = vld [vmem:[%s655 + $0x1c8] sm:$0xff]
          %v3746 = vld [vmem:[%s655 + $0x1d0] sm:$0xff]
          %v3747 = vld [vmem:[%s655 + $0x1d8] sm:$0xff]
          %v3748 = vld [vmem:[%s655 + $0x1e0] sm:$0xff]
          %v3749 = vld [vmem:[%s655 + $0x1e8] sm:$0xff]
          %v3750 = vld [vmem:[%s655 + $0x1f0] sm:$0xff]
          %v3751 = vld [vmem:[%s655 + $0x1f8] sm:$0xff]
          %v3752 = vld [vmem:[%s6] sm:$0xff]
          %v3753 = vld [vmem:[%s6 + $0x8] sm:$0xff]
          %v3754 = vld [vmem:[%s6 + $0x10] sm:$0xff]
          %v3755 = vld [vmem:[%s6 + $0x18] sm:$0xff]
          %v3756 = vld [vmem:[%s6 + $0x20] sm:$0xff]
          %v3757 = vld [vmem:[%s6 + $0x28] sm:$0xff]
          %v3758 = vld [vmem:[%s6 + $0x30] sm:$0xff]
          %v3759 = vld [vmem:[%s6 + $0x38] sm:$0xff]
          %v3760 = vld [vmem:[%s6 + $0x40] sm:$0xff]
          %v3761 = vld [vmem:[%s6 + $0x48] sm:$0xff]
          %v3762 = vld [vmem:[%s6 + $0x50] sm:$0xff]
          %v3763 = vld [vmem:[%s6 + $0x58] sm:$0xff]
          %v3764 = vld [vmem:[%s6 + $0x60] sm:$0xff]
          %v3765 = vld [vmem:[%s6 + $0x68] sm:$0xff]
          %v3766 = vld [vmem:[%s6 + $0x70] sm:$0xff]
          %v3767 = vld [vmem:[%s6 + $0x78] sm:$0xff]
          %v3768 = vld [vmem:[%s6 + $0x80] sm:$0xff]
          %v3769 = vld [vmem:[%s6 + $0x88] sm:$0xff]
          %v3770 = vld [vmem:[%s6 + $0x90] sm:$0xff]
          %v3771 = vld [vmem:[%s6 + $0x98] sm:$0xff]
          %v3772 = vld [vmem:[%s6 + $0xa0] sm:$0xff]
          %v3773 = vld [vmem:[%s6 + $0xa8] sm:$0xff]
          %v3774 = vld [vmem:[%s6 + $0xb0] sm:$0xff]
          %v3775 = vld [vmem:[%s6 + $0xb8] sm:$0xff]
          %v3776 = vld [vmem:[%s6 + $0xc0] sm:$0xff]
          %v3777 = vld [vmem:[%s6 + $0xc8] sm:$0xff]
          %v3778 = vld [vmem:[%s6 + $0xd0] sm:$0xff]
          %v3779 = vld [vmem:[%s6 + $0xd8] sm:$0xff]
          %v3780 = vld [vmem:[%s6 + $0xe0] sm:$0xff]
          %v3781 = vld [vmem:[%s6 + $0xe8] sm:$0xff]
          %v3782 = vld [vmem:[%s6 + $0xf0] sm:$0xff]
          %v3783 = vld [vmem:[%s6 + $0xf8] sm:$0xff]
          %v3784 = vld [vmem:[%s6 + $0x100] sm:$0xff]
          %v3785 = vld [vmem:[%s6 + $0x108] sm:$0xff]
          %v3786 = vld [vmem:[%s6 + $0x110] sm:$0xff]
          %v3787 = vld [vmem:[%s6 + $0x118] sm:$0xff]
          %v3788 = vld [vmem:[%s6 + $0x120] sm:$0xff]
          %v3789 = vld [vmem:[%s6 + $0x128] sm:$0xff]
          %v3790 = vld [vmem:[%s6 + $0x130] sm:$0xff]
          %v3791 = vld [vmem:[%s6 + $0x138] sm:$0xff]
          %v3792 = vld [vmem:[%s6 + $0x140] sm:$0xff]
          %v3793 = vld [vmem:[%s6 + $0x148] sm:$0xff]
          %v3794 = vld [vmem:[%s6 + $0x150] sm:$0xff]
          %v3795 = vld [vmem:[%s6 + $0x158] sm:$0xff]
          %v3796 = vld [vmem:[%s6 + $0x160] sm:$0xff]
          %v3797 = vld [vmem:[%s6 + $0x168] sm:$0xff]
          %v3798 = vld [vmem:[%s6 + $0x170] sm:$0xff]
          %v3799 = vld [vmem:[%s6 + $0x178] sm:$0xff]
          %v3800 = vld [vmem:[%s6 + $0x180] sm:$0xff]
          %v3801 = vld [vmem:[%s6 + $0x188] sm:$0xff]
          %v3802 = vld [vmem:[%s6 + $0x190] sm:$0xff]
          %v3803 = vld [vmem:[%s6 + $0x198] sm:$0xff]
          %v3804 = vld [vmem:[%s6 + $0x1a0] sm:$0xff]
          %v3805 = vld [vmem:[%s6 + $0x1a8] sm:$0xff]
          %v3806 = vld [vmem:[%s6 + $0x1b0] sm:$0xff]
          %v3807 = vld [vmem:[%s6 + $0x1b8] sm:$0xff]
          %v3808 = vld [vmem:[%s6 + $0x1c0] sm:$0xff]
          %v3809 = vld [vmem:[%s6 + $0x1c8] sm:$0xff]
          %v3810 = vld [vmem:[%s6 + $0x1d0] sm:$0xff]
          %v3811 = vld [vmem:[%s6 + $0x1d8] sm:$0xff]
          %v3812 = vld [vmem:[%s6 + $0x1e0] sm:$0xff]
          %v3813 = vld [vmem:[%s6 + $0x1e8] sm:$0xff]
          %v3814 = vld [vmem:[%s6 + $0x1f0] sm:$0xff]
          %v3815 = vld [vmem:[%s6 + $0x1f8] sm:$0xff]
          %v3816 = vld [vmem:[%s6 + $0x200] sm:$0xff]
          %v3817 = vld [vmem:[%s6 + $0x208] sm:$0xff]
          %v3818 = vld [vmem:[%s6 + $0x210] sm:$0xff]
          %v3819 = vld [vmem:[%s6 + $0x218] sm:$0xff]
          %v3820 = vld [vmem:[%s6 + $0x220] sm:$0xff]
          %v3821 = vld [vmem:[%s6 + $0x228] sm:$0xff]
          %v3822 = vld [vmem:[%s6 + $0x230] sm:$0xff]
          %v3823 = vld [vmem:[%s6 + $0x238] sm:$0xff]
          %v3824 = vld [vmem:[%s6 + $0x240] sm:$0xff]
          %v3825 = vld [vmem:[%s6 + $0x248] sm:$0xff]
          %v3826 = vld [vmem:[%s6 + $0x250] sm:$0xff]
          %v3827 = vld [vmem:[%s6 + $0x258] sm:$0xff]
          %v3828 = vld [vmem:[%s6 + $0x260] sm:$0xff]
          %v3829 = vld [vmem:[%s6 + $0x268] sm:$0xff]
          %v3830 = vld [vmem:[%s6 + $0x270] sm:$0xff]
          %v3831 = vld [vmem:[%s6 + $0x278] sm:$0xff]
          %v3832 = vld [vmem:[%s6 + $0x280] sm:$0xff]
          %v3833 = vld [vmem:[%s6 + $0x288] sm:$0xff]
          %v3834 = vld [vmem:[%s6 + $0x290] sm:$0xff]
          %v3835 = vld [vmem:[%s6 + $0x298] sm:$0xff]
          %v3836 = vld [vmem:[%s6 + $0x2a0] sm:$0xff]
          %v3837 = vld [vmem:[%s6 + $0x2a8] sm:$0xff]
          %v3838 = vld [vmem:[%s6 + $0x2b0] sm:$0xff]
          %v3839 = vld [vmem:[%s6 + $0x2b8] sm:$0xff]
          %v3840 = vld [vmem:[%s6 + $0x2c0] sm:$0xff]
          %v3841 = vld [vmem:[%s6 + $0x2c8] sm:$0xff]
          %v3842 = vld [vmem:[%s6 + $0x2d0] sm:$0xff]
          %v3843 = vld [vmem:[%s6 + $0x2d8] sm:$0xff]
          %v3844 = vld [vmem:[%s6 + $0x2e0] sm:$0xff]
          %v3845 = vld [vmem:[%s6 + $0x2e8] sm:$0xff]
          %v3846 = vld [vmem:[%s6 + $0x2f0] sm:$0xff]
          %v3847 = vld [vmem:[%s6 + $0x2f8] sm:$0xff]
          %v3848 = vld [vmem:[%s10] sm:$0xff]
          %v3849 = vld [vmem:[%s10 + $0x8] sm:$0xff]
          %v3850 = vld [vmem:[%s10 + $0x10] sm:$0xff]
          %v3851 = vld [vmem:[%s10 + $0x18] sm:$0xff]
          %v3852 = vld [vmem:[%s10 + $0x20] sm:$0xff]
          %v3853 = vld [vmem:[%s10 + $0x28] sm:$0xff]
          %v3854 = vld [vmem:[%s10 + $0x30] sm:$0xff]
          %v3855 = vld [vmem:[%s10 + $0x38] sm:$0xff]
          %v3856 = vld [vmem:[%s10 + $0x40] sm:$0xff]
          %v3857 = vld [vmem:[%s10 + $0x48] sm:$0xff]
          %v3858 = vld [vmem:[%s10 + $0x50] sm:$0xff]
          %v3859 = vld [vmem:[%s10 + $0x58] sm:$0xff]
          %v3860 = vld [vmem:[%s10 + $0x60] sm:$0xff]
          %v3861 = vld [vmem:[%s10 + $0x68] sm:$0xff]
          %v3862 = vld [vmem:[%s10 + $0x70] sm:$0xff]
          %v3863 = vld [vmem:[%s10 + $0x78] sm:$0xff]
          %v3864 = vld [vmem:[%s10 + $0x80] sm:$0xff]
          %v3865 = vld [vmem:[%s10 + $0x88] sm:$0xff]
          %v3866 = vld [vmem:[%s10 + $0x90] sm:$0xff]
          %v3867 = vld [vmem:[%s10 + $0x98] sm:$0xff]
          %v3868 = vld [vmem:[%s10 + $0xa0] sm:$0xff]
          %v3869 = vld [vmem:[%s10 + $0xa8] sm:$0xff]
          %v3870 = vld [vmem:[%s10 + $0xb0] sm:$0xff]
          %v3871 = vld [vmem:[%s10 + $0xb8] sm:$0xff]
          %3873 = vset.pattern.permute.xlu0 0
          %3874 = vperm.xlu0 %3873, %v3848
          %v3875 = vpop.permute.xlu0 %3874
          %3878 = vset.pattern.permute.xlu0 0
          %3879 = vperm.xlu0 %3878, %v3849
          %v3880 = vpop.permute.xlu0 %3879
          %3883 = vset.pattern.permute.xlu0 0
          %3884 = vperm.xlu0 %3883, %v3850
          %v3885 = vpop.permute.xlu0 %3884
          %3888 = vset.pattern.permute.xlu0 0
          %3889 = vperm.xlu0 %3888, %v3851
          %v3890 = vpop.permute.xlu0 %3889
          %3893 = vset.pattern.permute.xlu0 0
          %3894 = vperm.xlu0 %3893, %v3852
          %v3895 = vpop.permute.xlu0 %3894
          %3898 = vset.pattern.permute.xlu0 0
          %3899 = vperm.xlu0 %3898, %v3853
          %v3900 = vpop.permute.xlu0 %3899
          %3903 = vset.pattern.permute.xlu0 0
          %3904 = vperm.xlu0 %3903, %v3854
          %v3905 = vpop.permute.xlu0 %3904
          %3908 = vset.pattern.permute.xlu0 0
          %3909 = vperm.xlu0 %3908, %v3855
          %v3910 = vpop.permute.xlu0 %3909
          %3913 = vset.pattern.permute.xlu0 0
          %3914 = vperm.xlu0 %3913, %v3856
          %v3915 = vpop.permute.xlu0 %3914
          %3918 = vset.pattern.permute.xlu0 0
          %3919 = vperm.xlu0 %3918, %v3857
          %v3920 = vpop.permute.xlu0 %3919
          %3923 = vset.pattern.permute.xlu0 0
          %3924 = vperm.xlu0 %3923, %v3858
          %v3925 = vpop.permute.xlu0 %3924
          %3928 = vset.pattern.permute.xlu0 0
          %3929 = vperm.xlu0 %3928, %v3859
          %v3930 = vpop.permute.xlu0 %3929
          %3933 = vset.pattern.permute.xlu0 0
          %3934 = vperm.xlu0 %3933, %v3860
          %v3935 = vpop.permute.xlu0 %3934
          %3938 = vset.pattern.permute.xlu0 0
          %3939 = vperm.xlu0 %3938, %v3861
          %v3940 = vpop.permute.xlu0 %3939
          %3943 = vset.pattern.permute.xlu0 0
          %3944 = vperm.xlu0 %3943, %v3862
          %v3945 = vpop.permute.xlu0 %3944
          %3948 = vset.pattern.permute.xlu0 0
          %3949 = vperm.xlu0 %3948, %v3863
          %v3950 = vpop.permute.xlu0 %3949
          %3953 = vset.pattern.permute.xlu0 0
          %3954 = vperm.xlu0 %3953, %v3864
          %v3955 = vpop.permute.xlu0 %3954
          %3958 = vset.pattern.permute.xlu0 0
          %3959 = vperm.xlu0 %3958, %v3865
          %v3960 = vpop.permute.xlu0 %3959
          %3963 = vset.pattern.permute.xlu0 0
          %3964 = vperm.xlu0 %3963, %v3866
          %v3965 = vpop.permute.xlu0 %3964
          %3968 = vset.pattern.permute.xlu0 0
          %3969 = vperm.xlu0 %3968, %v3867
          %v3970 = vpop.permute.xlu0 %3969
          %3973 = vset.pattern.permute.xlu0 0
          %3974 = vperm.xlu0 %3973, %v3868
          %v3975 = vpop.permute.xlu0 %3974
          %3978 = vset.pattern.permute.xlu0 0
          %3979 = vperm.xlu0 %3978, %v3869
          %v3980 = vpop.permute.xlu0 %3979
          %3983 = vset.pattern.permute.xlu0 0
          %3984 = vperm.xlu0 %3983, %v3870
          %v3985 = vpop.permute.xlu0 %3984
          %3988 = vset.pattern.permute.xlu0 0
          %3989 = vperm.xlu0 %3988, %v3871
          %v3990 = vpop.permute.xlu0 %3989
          %3992 = vmatprep.subr.mxu0 0.0
          %3993 = vmatpush1.msra.mxu0 %v3688
          %3994 = vmatprep.subr.mxu0 0.0
          %3995 = vmatpush1.msra.mxu0 %v3689
          %3996 = vmatprep.subr.mxu0 0.0
          %3997 = vmatpush1.msra.mxu0 %v3690
          %3998 = vmatprep.subr.mxu0 0.0
          %3999 = vmatpush1.msra.mxu0 %v3691
          %4000 = vmatprep.subr.mxu0 0.0
          %4001 = vmatpush1.msra.mxu0 %v3692
          %4002 = vmatprep.subr.mxu0 0.0
          %4003 = vmatpush1.msra.mxu0 %v3693
          %4004 = vmatprep.subr.mxu0 0.0
          %4005 = vmatpush1.msra.mxu0 %v3694
          %4006 = vmatprep.subr.mxu0 0.0
          %4007 = vmatpush1.msra.mxu0 %v3695
          %4008 = vmatprep.subr.mxu0 0.0
          %4009 = vmatpush1.msra.mxu0 %v3696
          %4010 = vmatprep.subr.mxu0 0.0
          %4011 = vmatpush1.msra.mxu0 %v3697
          %4012 = vmatprep.subr.mxu0 0.0
          %4013 = vmatpush1.msra.mxu0 %v3698
          %4014 = vmatprep.subr.mxu0 0.0
          %4015 = vmatpush1.msra.mxu0 %v3699
          %4016 = vmatprep.subr.mxu0 0.0
          %4017 = vmatpush1.msra.mxu0 %v3700
          %4018 = vmatprep.subr.mxu0 0.0
          %4019 = vmatpush1.msra.mxu0 %v3701
          %4020 = vmatprep.subr.mxu0 0.0
          %4021 = vmatpush1.msra.mxu0 %v3702
          %4022 = vmatprep.subr.mxu0 0.0
          %4023 = vmatpush1.msra.mxu0 %v3703
          %4024 = vmatprep.subr.mxu0 0.0
          %4025 = vmatpush1.msra.mxu0 %v3704
          %4026 = vmatprep.subr.mxu0 0.0
          %4027 = vmatpush1.msra.mxu0 %v3705
          %4028 = vmatprep.subr.mxu0 0.0
          %4029 = vmatpush1.msra.mxu0 %v3706
          %4030 = vmatprep.subr.mxu0 0.0
          %4031 = vmatpush1.msra.mxu0 %v3707
          %4032 = vmatprep.subr.mxu0 0.0
          %4033 = vmatpush1.msra.mxu0 %v3708
          %4034 = vmatprep.subr.mxu0 0.0
          %4035 = vmatpush1.msra.mxu0 %v3709
          %4036 = vmatprep.subr.mxu0 0.0
          %4037 = vmatpush1.msra.mxu0 %v3710
          %4038 = vmatprep.subr.mxu0 0.0
          %4039 = vmatpush1.msra.mxu0 %v3711
          %4040 = vmatprep.subr.mxu0 0.0
          %4041 = vmatpush1.msra.mxu0 %v3712
          %4042 = vmatprep.subr.mxu0 0.0
          %4043 = vmatpush1.msra.mxu0 %v3713
          %4044 = vmatprep.subr.mxu0 0.0
          %4045 = vmatpush1.msra.mxu0 %v3714
          %4046 = vmatprep.subr.mxu0 0.0
          %4047 = vmatpush1.msra.mxu0 %v3715
          %4048 = vmatprep.subr.mxu0 0.0
          %4049 = vmatpush1.msra.mxu0 %v3716
          %4050 = vmatprep.subr.mxu0 0.0
          %4051 = vmatpush1.msra.mxu0 %v3717
          %4052 = vmatprep.subr.mxu0 0.0
          %4053 = vmatpush1.msra.mxu0 %v3718
          %4054 = vmatprep.subr.mxu0 0.0
          %4055 = vmatpush1.msra.mxu0 %v3719
          %4056 = vmatprep.mubr.f32.mxu0 %v3753
          %4057 = vmatmul.mubr.f32.gmra.mrb[0].mxu0 %v3752
          %v4058 = vpop.f32.mrb[0].mxu0
          %v4059 = vadd.f32 %v3875, %v4058
          %v4060 = vpop.f32.mrb[0].mxu0
          %4061 = vmatprep.mubr.f32.mxu0 %v3757
          %4062 = vmatmul.mubr.f32.gmra.mrb[0].mxu0 %v3756
          %v4063 = vpop.f32.mrb[0].mxu0
          %v4064 = vadd.f32 %v3880, %v4063
          %v4065 = vpop.f32.mrb[0].mxu0
          %4066 = vmatprep.mubr.f32.mxu0 %v3761
          %4067 = vmatmul.mubr.f32.gmra.mrb[0].mxu0 %v3760
          %v4068 = vpop.f32.mrb[0].mxu0
          %v4069 = vadd.f32 %v3885, %v4068
          %v4070 = vpop.f32.mrb[0].mxu0
          %4071 = vmatprep.mubr.f32.mxu0 %v3765
          %4072 = vmatmul.mubr.f32.gmra.mrb[0].mxu0 %v3764
          %v4073 = vpop.f32.mrb[0].mxu0
          %v4074 = vadd.f32 %v3890, %v4073
          %v4075 = vpop.f32.mrb[0].mxu0
          %4076 = vmatprep.mubr.f32.mxu0 %v3769
          %4077 = vmatmul.mubr.f32.gmra.mrb[0].mxu0 %v3768
          %v4078 = vpop.f32.mrb[0].mxu0
          %v4079 = vadd.f32 %v3895, %v4078
          %v4080 = vpop.f32.mrb[0].mxu0
          %4081 = vmatprep.mubr.f32.mxu0 %v3773
          %4082 = vmatmul.mubr.f32.gmra.mrb[0].mxu0 %v3772
          %v4083 = vpop.f32.mrb[0].mxu0
          %v4084 = vadd.f32 %v3900, %v4083
          %v4085 = vpop.f32.mrb[0].mxu0
          %4086 = vmatprep.mubr.f32.mxu0 %v3777
          %4087 = vmatmul.mubr.f32.gmra.mrb[0].mxu0 %v3776
          %v4088 = vpop.f32.mrb[0].mxu0
          %v4089 = vadd.f32 %v3905, %v4088
          %v4090 = vpop.f32.mrb[0].mxu0
          %4091 = vmatprep.mubr.f32.mxu0 %v3781
          %4092 = vmatmul.mubr.f32.gmra.mrb[0].mxu0 %v3780
          %v4093 = vpop.f32.mrb[0].mxu0
          %v4094 = vadd.f32 %v3910, %v4093
          %v4095 = vpop.f32.mrb[0].mxu0
          %4096 = vmatprep.mubr.f32.mxu0 %v3785
          %4097 = vmatmul.mubr.f32.gmra.mrb[0].mxu0 %v3784
          %v4098 = vpop.f32.mrb[0].mxu0
          %v4099 = vadd.f32 %v3915, %v4098
          %v4100 = vpop.f32.mrb[0].mxu0
          %4101 = vmatprep.mubr.f32.mxu0 %v3789
          %4102 = vmatmul.mubr.f32.gmra.mrb[0].mxu0 %v3788
          %v4103 = vpop.f32.mrb[0].mxu0
          %v4104 = vadd.f32 %v3920, %v4103
          %v4105 = vpop.f32.mrb[0].mxu0
          %4106 = vmatprep.mubr.f32.mxu0 %v3793
          %4107 = vmatmul.mubr.f32.gmra.mrb[0].mxu0 %v3792
          %v4108 = vpop.f32.mrb[0].mxu0
          %v4109 = vadd.f32 %v3925, %v4108
          %v4110 = vpop.f32.mrb[0].mxu0
          %4111 = vmatprep.mubr.f32.mxu0 %v3797
          %4112 = vmatmul.mubr.f32.gmra.mrb[0].mxu0 %v3796
          %v4113 = vpop.f32.mrb[0].mxu0
          %v4114 = vadd.f32 %v3930, %v4113
          %v4115 = vpop.f32.mrb[0].mxu0
          %4116 = vmatprep.mubr.f32.mxu0 %v3801
          %4117 = vmatmul.mubr.f32.gmra.mrb[0].mxu0 %v3800
          %v4118 = vpop.f32.mrb[0].mxu0
          %v4119 = vadd.f32 %v3935, %v4118
          %v4120 = vpop.f32.mrb[0].mxu0
          %4121 = vmatprep.mubr.f32.mxu0 %v3805
          %4122 = vmatmul.mubr.f32.gmra.mrb[0].mxu0 %v3804
          %v4123 = vpop.f32.mrb[0].mxu0
          %v4124 = vadd.f32 %v3940, %v4123
          %v4125 = vpop.f32.mrb[0].mxu0
          %4126 = vmatprep.mubr.f32.mxu0 %v3809
          %4127 = vmatmul.mubr.f32.gmra.mrb[0].mxu0 %v3808
          %v4128 = vpop.f32.mrb[0].mxu0
          %v4129 = vadd.f32 %v3945, %v4128
          %v4130 = vpop.f32.mrb[0].mxu0
          %4131 = vmatprep.mubr.f32.mxu0 %v3813
          %4132 = vmatmul.mubr.f32.gmra.mrb[0].mxu0 %v3812
          %v4133 = vpop.f32.mrb[0].mxu0
          %v4134 = vadd.f32 %v3950, %v4133
          %v4135 = vpop.f32.mrb[0].mxu0
          %4136 = vmatprep.mubr.f32.mxu0 %v3817
          %4137 = vmatmul.mubr.f32.gmra.mrb[0].mxu0 %v3816
          %v4138 = vpop.f32.mrb[0].mxu0
          %v4139 = vadd.f32 %v3955, %v4138
          %v4140 = vpop.f32.mrb[0].mxu0
          %4141 = vmatprep.mubr.f32.mxu0 %v3821
          %4142 = vmatmul.mubr.f32.gmra.mrb[0].mxu0 %v3820
          %v4143 = vpop.f32.mrb[0].mxu0
          %v4144 = vadd.f32 %v3960, %v4143
          %v4145 = vpop.f32.mrb[0].mxu0
          %4146 = vmatprep.mubr.f32.mxu0 %v3825
          %4147 = vmatmul.mubr.f32.gmra.mrb[0].mxu0 %v3824
          %v4148 = vpop.f32.mrb[0].mxu0
          %v4149 = vadd.f32 %v3965, %v4148
          %v4150 = vpop.f32.mrb[0].mxu0
          %4151 = vmatprep.mubr.f32.mxu0 %v3829
          %4152 = vmatmul.mubr.f32.gmra.mrb[0].mxu0 %v3828
          %v4153 = vpop.f32.mrb[0].mxu0
          %v4154 = vadd.f32 %v3970, %v4153
          %v4155 = vpop.f32.mrb[0].mxu0
          %4156 = vmatprep.mubr.f32.mxu0 %v3833
          %4157 = vmatmul.mubr.f32.gmra.mrb[0].mxu0 %v3832
          %v4158 = vpop.f32.mrb[0].mxu0
          %v4159 = vadd.f32 %v3975, %v4158
          %v4160 = vpop.f32.mrb[0].mxu0
          %4161 = vmatprep.mubr.f32.mxu0 %v3837
          %4162 = vmatmul.mubr.f32.gmra.mrb[0].mxu0 %v3836
          %v4163 = vpop.f32.mrb[0].mxu0
          %v4164 = vadd.f32 %v3980, %v4163
          %v4165 = vpop.f32.mrb[0].mxu0
          %4166 = vmatprep.mubr.f32.mxu0 %v3841
          %4167 = vmatmul.mubr.f32.gmra.mrb[0].mxu0 %v3840
          %v4168 = vpop.f32.mrb[0].mxu0
          %v4169 = vadd.f32 %v3985, %v4168
          %v4170 = vpop.f32.mrb[0].mxu0
          %4171 = vmatprep.mubr.f32.mxu0 %v3845
          %4172 = vmatmul.mubr.f32.gmra.mrb[0].mxu0 %v3844
          %v4173 = vpop.f32.mrb[0].mxu0
          %v4174 = vadd.f32 %v3990, %v4173
          %v4175 = vpop.f32.mrb[0].mxu0
          %4176 = vdwg.mxu0
          %4177 = vmatprep.subr.mxu0 0.0
          %4178 = vmatpush1.msra.mxu0 %v3720
          %4179 = vmatprep.subr.mxu0 0.0
          %4180 = vmatpush1.msra.mxu0 %v3721
          %4181 = vmatprep.subr.mxu0 0.0
          %4182 = vmatpush1.msra.mxu0 %v3722
          %4183 = vmatprep.subr.mxu0 0.0
          %4184 = vmatpush1.msra.mxu0 %v3723
          %4185 = vmatprep.subr.mxu0 0.0
          %4186 = vmatpush1.msra.mxu0 %v3724
          %4187 = vmatprep.subr.mxu0 0.0
          %4188 = vmatpush1.msra.mxu0 %v3725
          %4189 = vmatprep.subr.mxu0 0.0
          %4190 = vmatpush1.msra.mxu0 %v3726
          %4191 = vmatprep.subr.mxu0 0.0
          %4192 = vmatpush1.msra.mxu0 %v3727
          %4193 = vmatprep.subr.mxu0 0.0
          %4194 = vmatpush1.msra.mxu0 %v3728
          %4195 = vmatprep.subr.mxu0 0.0
          %4196 = vmatpush1.msra.mxu0 %v3729
          %4197 = vmatprep.subr.mxu0 0.0
          %4198 = vmatpush1.msra.mxu0 %v3730
          %4199 = vmatprep.subr.mxu0 0.0
          %4200 = vmatpush1.msra.mxu0 %v3731
          %4201 = vmatprep.subr.mxu0 0.0
          %4202 = vmatpush1.msra.mxu0 %v3732
          %4203 = vmatprep.subr.mxu0 0.0
          %4204 = vmatpush1.msra.mxu0 %v3733
          %4205 = vmatprep.subr.mxu0 0.0
          %4206 = vmatpush1.msra.mxu0 %v3734
          %4207 = vmatprep.subr.mxu0 0.0
          %4208 = vmatpush1.msra.mxu0 %v3735
          %4209 = vmatprep.subr.mxu0 0.0
          %4210 = vmatpush1.msra.mxu0 %v3736
          %4211 = vmatprep.subr.mxu0 0.0
          %4212 = vmatpush1.msra.mxu0 %v3737
          %4213 = vmatprep.subr.mxu0 0.0
          %4214 = vmatpush1.msra.mxu0 %v3738
          %4215 = vmatprep.subr.mxu0 0.0
          %4216 = vmatpush1.msra.mxu0 %v3739
          %4217 = vmatprep.subr.mxu0 0.0
          %4218 = vmatpush1.msra.mxu0 %v3740
          %4219 = vmatprep.subr.mxu0 0.0
          %4220 = vmatpush1.msra.mxu0 %v3741
          %4221 = vmatprep.subr.mxu0 0.0
          %4222 = vmatpush1.msra.mxu0 %v3742
          %4223 = vmatprep.subr.mxu0 0.0
          %4224 = vmatpush1.msra.mxu0 %v3743
          %4225 = vmatprep.subr.mxu0 0.0
          %4226 = vmatpush1.msra.mxu0 %v3744
          %4227 = vmatprep.subr.mxu0 0.0
          %4228 = vmatpush1.msra.mxu0 %v3745
          %4229 = vmatprep.subr.mxu0 0.0
          %4230 = vmatpush1.msra.mxu0 %v3746
          %4231 = vmatprep.subr.mxu0 0.0
          %4232 = vmatpush1.msra.mxu0 %v3747
          %4233 = vmatprep.subr.mxu0 0.0
          %4234 = vmatpush1.msra.mxu0 %v3748
          %4235 = vmatprep.subr.mxu0 0.0
          %4236 = vmatpush1.msra.mxu0 %v3749
          %4237 = vmatprep.subr.mxu0 0.0
          %4238 = vmatpush1.msra.mxu0 %v3750
          %4239 = vmatprep.subr.mxu0 0.0
          %4240 = vmatpush1.msra.mxu0 %v3751
          %4241 = vmatprep.mubr.f32.mxu0 %v3755
          %4242 = vmatmul.mubr.f32.gmra.mrb[0].mxu0 %v3754
          %v4243 = vpop.f32.mrb[0].mxu0
          %v4244 = vadd.f32 %v4059, %v4243
          %v4245 = vpop.f32.mrb[0].mxu0
          %4246 = vmatprep.mubr.f32.mxu0 %v3759
          %4247 = vmatmul.mubr.f32.gmra.mrb[0].mxu0 %v3758
          %v4248 = vpop.f32.mrb[0].mxu0
          %v4249 = vadd.f32 %v4064, %v4248
          %v4250 = vpop.f32.mrb[0].mxu0
          %4251 = vmatprep.mubr.f32.mxu0 %v3763
          %4252 = vmatmul.mubr.f32.gmra.mrb[0].mxu0 %v3762
          %v4253 = vpop.f32.mrb[0].mxu0
          %v4254 = vadd.f32 %v4069, %v4253
          %v4255 = vpop.f32.mrb[0].mxu0
          %4256 = vmatprep.mubr.f32.mxu0 %v3767
          %4257 = vmatmul.mubr.f32.gmra.mrb[0].mxu0 %v3766
          %v4258 = vpop.f32.mrb[0].mxu0
          %v4259 = vadd.f32 %v4074, %v4258
          %v4260 = vpop.f32.mrb[0].mxu0
          %4261 = vmatprep.mubr.f32.mxu0 %v3771
          %4262 = vmatmul.mubr.f32.gmra.mrb[0].mxu0 %v3770
          %v4263 = vpop.f32.mrb[0].mxu0
          %v4264 = vadd.f32 %v4079, %v4263
          %v4265 = vpop.f32.mrb[0].mxu0
          %4266 = vmatprep.mubr.f32.mxu0 %v3775
          %4267 = vmatmul.mubr.f32.gmra.mrb[0].mxu0 %v3774
          %v4268 = vpop.f32.mrb[0].mxu0
          %v4269 = vadd.f32 %v4084, %v4268
          %v4270 = vpop.f32.mrb[0].mxu0
          %4271 = vmatprep.mubr.f32.mxu0 %v3779
          %4272 = vmatmul.mubr.f32.gmra.mrb[0].mxu0 %v3778
          %v4273 = vpop.f32.mrb[0].mxu0
          %v4274 = vadd.f32 %v4089, %v4273
          %v4275 = vpop.f32.mrb[0].mxu0
          %4276 = vmatprep.mubr.f32.mxu0 %v3783
          %4277 = vmatmul.mubr.f32.gmra.mrb[0].mxu0 %v3782
          %v4278 = vpop.f32.mrb[0].mxu0
          %v4279 = vadd.f32 %v4094, %v4278
          %v4280 = vpop.f32.mrb[0].mxu0
          %4281 = vmatprep.mubr.f32.mxu0 %v3787
          %4282 = vmatmul.mubr.f32.gmra.mrb[0].mxu0 %v3786
          %v4283 = vpop.f32.mrb[0].mxu0
          %v4284 = vadd.f32 %v4099, %v4283
          %v4285 = vpop.f32.mrb[0].mxu0
          %4286 = vmatprep.mubr.f32.mxu0 %v3791
          %4287 = vmatmul.mubr.f32.gmra.mrb[0].mxu0 %v3790
          %v4288 = vpop.f32.mrb[0].mxu0
          %v4289 = vadd.f32 %v4104, %v4288
          %v4290 = vpop.f32.mrb[0].mxu0
          %4291 = vmatprep.mubr.f32.mxu0 %v3795
          %4292 = vmatmul.mubr.f32.gmra.mrb[0].mxu0 %v3794
          %v4293 = vpop.f32.mrb[0].mxu0
          %v4294 = vadd.f32 %v4109, %v4293
          %v4295 = vpop.f32.mrb[0].mxu0
          %4296 = vmatprep.mubr.f32.mxu0 %v3799
          %4297 = vmatmul.mubr.f32.gmra.mrb[0].mxu0 %v3798
          %v4298 = vpop.f32.mrb[0].mxu0
          %v4299 = vadd.f32 %v4114, %v4298
          %v4300 = vpop.f32.mrb[0].mxu0
          %4301 = vmatprep.mubr.f32.mxu0 %v3803
          %4302 = vmatmul.mubr.f32.gmra.mrb[0].mxu0 %v3802
          %v4303 = vpop.f32.mrb[0].mxu0
          %v4304 = vadd.f32 %v4119, %v4303
          %v4305 = vpop.f32.mrb[0].mxu0
          %4306 = vmatprep.mubr.f32.mxu0 %v3807
          %4307 = vmatmul.mubr.f32.gmra.mrb[0].mxu0 %v3806
          %v4308 = vpop.f32.mrb[0].mxu0
          %v4309 = vadd.f32 %v4124, %v4308
          %v4310 = vpop.f32.mrb[0].mxu0
          %4311 = vmatprep.mubr.f32.mxu0 %v3811
          %4312 = vmatmul.mubr.f32.gmra.mrb[0].mxu0 %v3810
          %v4313 = vpop.f32.mrb[0].mxu0
          %v4314 = vadd.f32 %v4129, %v4313
          %v4315 = vpop.f32.mrb[0].mxu0
          %4316 = vmatprep.mubr.f32.mxu0 %v3815
          %4317 = vmatmul.mubr.f32.gmra.mrb[0].mxu0 %v3814
          %v4318 = vpop.f32.mrb[0].mxu0
          %v4319 = vadd.f32 %v4134, %v4318
          %v4320 = vpop.f32.mrb[0].mxu0
          %4321 = vmatprep.mubr.f32.mxu0 %v3819
          %4322 = vmatmul.mubr.f32.gmra.mrb[0].mxu0 %v3818
          %v4323 = vpop.f32.mrb[0].mxu0
          %v4324 = vadd.f32 %v4139, %v4323
          %v4325 = vpop.f32.mrb[0].mxu0
          %4326 = vmatprep.mubr.f32.mxu0 %v3823
          %4327 = vmatmul.mubr.f32.gmra.mrb[0].mxu0 %v3822
          %v4328 = vpop.f32.mrb[0].mxu0
          %v4329 = vadd.f32 %v4144, %v4328
          %v4330 = vpop.f32.mrb[0].mxu0
          %4331 = vmatprep.mubr.f32.mxu0 %v3827
          %4332 = vmatmul.mubr.f32.gmra.mrb[0].mxu0 %v3826
          %v4333 = vpop.f32.mrb[0].mxu0
          %v4334 = vadd.f32 %v4149, %v4333
          %v4335 = vpop.f32.mrb[0].mxu0
          %4336 = vmatprep.mubr.f32.mxu0 %v3831
          %4337 = vmatmul.mubr.f32.gmra.mrb[0].mxu0 %v3830
          %v4338 = vpop.f32.mrb[0].mxu0
          %v4339 = vadd.f32 %v4154, %v4338
          %v4340 = vpop.f32.mrb[0].mxu0
          %4341 = vmatprep.mubr.f32.mxu0 %v3835
          %4342 = vmatmul.mubr.f32.gmra.mrb[0].mxu0 %v3834
          %v4343 = vpop.f32.mrb[0].mxu0
          %v4344 = vadd.f32 %v4159, %v4343
          %v4345 = vpop.f32.mrb[0].mxu0
          %4346 = vmatprep.mubr.f32.mxu0 %v3839
          %4347 = vmatmul.mubr.f32.gmra.mrb[0].mxu0 %v3838
          %v4348 = vpop.f32.mrb[0].mxu0
          %v4349 = vadd.f32 %v4164, %v4348
          %v4350 = vpop.f32.mrb[0].mxu0
          %4351 = vmatprep.mubr.f32.mxu0 %v3843
          %4352 = vmatmul.mubr.f32.gmra.mrb[0].mxu0 %v3842
          %v4353 = vpop.f32.mrb[0].mxu0
          %v4354 = vadd.f32 %v4169, %v4353
          %v4355 = vpop.f32.mrb[0].mxu0
          %4356 = vmatprep.mubr.f32.mxu0 %v3847
          %4357 = vmatmul.mubr.f32.gmra.mrb[0].mxu0 %v3846
          %v4358 = vpop.f32.mrb[0].mxu0
          %v4359 = vadd.f32 %v4174, %v4358
          %v4360 = vpop.f32.mrb[0].mxu0
          %4361 = vdwg.mxu0
          %vm4362 = vcmp.ge.f32.partialorder %v4244, 0.0
          %vm4363 = vcmp.ge.f32.partialorder %v4249, 0.0
          %vm4364 = vcmp.ge.f32.partialorder %v4254, 0.0
          %vm4365 = vcmp.ge.f32.partialorder %v4259, 0.0
          %vm4366 = vcmp.ge.f32.partialorder %v4264, 0.0
          %vm4367 = vcmp.ge.f32.partialorder %v4269, 0.0
          %vm4368 = vcmp.ge.f32.partialorder %v4274, 0.0
          %vm4369 = vcmp.ge.f32.partialorder %v4279, 0.0
          %vm4370 = vcmp.ge.f32.partialorder %v4284, 0.0
          %vm4371 = vcmp.ge.f32.partialorder %v4289, 0.0
          %vm4372 = vcmp.ge.f32.partialorder %v4294, 0.0
          %vm4373 = vcmp.ge.f32.partialorder %v4299, 0.0
          %vm4374 = vcmp.ge.f32.partialorder %v4304, 0.0
          %vm4375 = vcmp.ge.f32.partialorder %v4309, 0.0
          %vm4376 = vcmp.ge.f32.partialorder %v4314, 0.0
          %vm4377 = vcmp.ge.f32.partialorder %v4319, 0.0
          %vm4378 = vcmp.ge.f32.partialorder %v4324, 0.0
          %vm4379 = vcmp.ge.f32.partialorder %v4329, 0.0
          %vm4380 = vcmp.ge.f32.partialorder %v4334, 0.0
          %vm4381 = vcmp.ge.f32.partialorder %v4339, 0.0
          %vm4382 = vcmp.ge.f32.partialorder %v4344, 0.0
          %vm4383 = vcmp.ge.f32.partialorder %v4349, 0.0
          %vm4384 = vcmp.ge.f32.partialorder %v4354, 0.0
          %vm4385 = vcmp.ge.f32.partialorder %v4359, 0.0
          %v4386 = vmul.f32 %v4244, 0.1
          %v4387 = vmul.f32 %v4249, 0.1
          %v4388 = vmul.f32 %v4254, 0.1
          %v4389 = vmul.f32 %v4259, 0.1
          %v4390 = vmul.f32 %v4264, 0.1
          %v4391 = vmul.f32 %v4269, 0.1
          %v4392 = vmul.f32 %v4274, 0.1
          %v4393 = vmul.f32 %v4279, 0.1
          %v4394 = vmul.f32 %v4284, 0.1
          %v4395 = vmul.f32 %v4289, 0.1
          %v4396 = vmul.f32 %v4294, 0.1
          %v4397 = vmul.f32 %v4299, 0.1
          %v4398 = vmul.f32 %v4304, 0.1
          %v4399 = vmul.f32 %v4309, 0.1
          %v4400 = vmul.f32 %v4314, 0.1
          %v4401 = vmul.f32 %v4319, 0.1
          %v4402 = vmul.f32 %v4324, 0.1
          %v4403 = vmul.f32 %v4329, 0.1
          %v4404 = vmul.f32 %v4334, 0.1
          %v4405 = vmul.f32 %v4339, 0.1
          %v4406 = vmul.f32 %v4344, 0.1
          %v4407 = vmul.f32 %v4349, 0.1
          %v4408 = vmul.f32 %v4354, 0.1
          %v4409 = vmul.f32 %v4359, 0.1
          %v4410 = vsel %vm4362, %v4244, %v4386
          %v4411 = vsel %vm4363, %v4249, %v4387
          %v4412 = vsel %vm4364, %v4254, %v4388
          %v4413 = vsel %vm4365, %v4259, %v4389
          %v4414 = vsel %vm4366, %v4264, %v4390
          %v4415 = vsel %vm4367, %v4269, %v4391
          %v4416 = vsel %vm4368, %v4274, %v4392
          %v4417 = vsel %vm4369, %v4279, %v4393
          %v4418 = vsel %vm4370, %v4284, %v4394
          %v4419 = vsel %vm4371, %v4289, %v4395
          %v4420 = vsel %vm4372, %v4294, %v4396
          %v4421 = vsel %vm4373, %v4299, %v4397
          %v4422 = vsel %vm4374, %v4304, %v4398
          %v4423 = vsel %vm4375, %v4309, %v4399
          %v4424 = vsel %vm4376, %v4314, %v4400
          %v4425 = vsel %vm4377, %v4319, %v4401
          %v4426 = vsel %vm4378, %v4324, %v4402
          %v4427 = vsel %vm4379, %v4329, %v4403
          %v4428 = vsel %vm4380, %v4334, %v4404
          %v4429 = vsel %vm4381, %v4339, %v4405
          %v4430 = vsel %vm4382, %v4344, %v4406
          %v4431 = vsel %vm4383, %v4349, %v4407
          %v4432 = vsel %vm4384, %v4354, %v4408
          %v4433 = vsel %vm4385, %v4359, %v4409
          %4434 = vst.msk [vmem:[#allocation3] sm:$0xff] %vm1784, %v4410
          %4435 = vst.msk [vmem:[#allocation3 + $0x8] sm:$0xff] %vm1784, %v4411
          %4436 = vst.msk [vmem:[#allocation3 + $0x10] sm:$0xff] %vm1784, %v4412
          %4437 = vst.msk [vmem:[#allocation3 + $0x18] sm:$0xff] %vm1784, %v4413
          %4438 = vst.msk [vmem:[#allocation3 + $0x20] sm:$0xff] %vm1784, %v4414
          %4439 = vst.msk [vmem:[#allocation3 + $0x28] sm:$0xff] %vm1784, %v4415
          %4440 = vst.msk [vmem:[#allocation3 + $0x30] sm:$0xff] %vm1784, %v4416
          %4441 = vst.msk [vmem:[#allocation3 + $0x38] sm:$0xff] %vm1784, %v4417
          %4442 = vst.msk [vmem:[#allocation3 + $0x40] sm:$0xff] %vm1784, %v4418
          %4443 = vst.msk [vmem:[#allocation3 + $0x48] sm:$0xff] %vm1784, %v4419
          %4444 = vst.msk [vmem:[#allocation3 + $0x50] sm:$0xff] %vm1784, %v4420
          %4445 = vst.msk [vmem:[#allocation3 + $0x58] sm:$0xff] %vm1784, %v4421
          %4446 = vst.msk [vmem:[#allocation3 + $0x60] sm:$0xff] %vm1784, %v4422
          %4447 = vst.msk [vmem:[#allocation3 + $0x68] sm:$0xff] %vm1784, %v4423
          %4448 = vst.msk [vmem:[#allocation3 + $0x70] sm:$0xff] %vm1784, %v4424
          %4449 = vst.msk [vmem:[#allocation3 + $0x78] sm:$0xff] %vm1784, %v4425
          %4450 = vst.msk [vmem:[#allocation3 + $0x80] sm:$0xff] %vm1784, %v4426
          %4451 = vst.msk [vmem:[#allocation3 + $0x88] sm:$0xff] %vm1784, %v4427
          %4452 = vst.msk [vmem:[#allocation3 + $0x90] sm:$0xff] %vm1784, %v4428
          %4453 = vst.msk [vmem:[#allocation3 + $0x98] sm:$0xff] %vm1784, %v4429
          %4454 = vst.msk [vmem:[#allocation3 + $0xa0] sm:$0xff] %vm1784, %v4430
          %4455 = vst.msk [vmem:[#allocation3 + $0xa8] sm:$0xff] %vm1784, %v4431
          %4456 = vst.msk [vmem:[#allocation3 + $0xb0] sm:$0xff] %vm1784, %v4432
          %4457 = vst.msk [vmem:[#allocation3 + $0xb8] sm:$0xff] %vm1784, %v4433
          %4482 = vrot.lane.b32.xlu0 %v4410, 120
          %v4483 = vpop.permute.xlu0 %4482
          %4484 = vrot.lane.b32.xlu0 %v4411, 120
          %v4485 = vpop.permute.xlu0 %4484
          %4486 = vrot.lane.b32.xlu0 %v4412, 120
          %v4487 = vpop.permute.xlu0 %4486
          %4488 = vrot.lane.b32.xlu0 %v4413, 120
          %v4489 = vpop.permute.xlu0 %4488
          %4490 = vrot.lane.b32.xlu0 %v4414, 120
          %v4491 = vpop.permute.xlu0 %4490
          %4492 = vrot.lane.b32.xlu0 %v4415, 120
          %v4493 = vpop.permute.xlu0 %4492
          %4494 = vrot.lane.b32.xlu0 %v4416, 120
          %v4495 = vpop.permute.xlu0 %4494
          %4496 = vrot.lane.b32.xlu0 %v4417, 120
          %v4497 = vpop.permute.xlu0 %4496
          %4498 = vrot.lane.b32.xlu0 %v4418, 120
          %v4499 = vpop.permute.xlu0 %4498
          %4500 = vrot.lane.b32.xlu0 %v4419, 120
          %v4501 = vpop.permute.xlu0 %4500
          %4502 = vrot.lane.b32.xlu0 %v4420, 120
          %v4503 = vpop.permute.xlu0 %4502
          %4504 = vrot.lane.b32.xlu0 %v4421, 120
          %v4505 = vpop.permute.xlu0 %4504
          %4506 = vrot.lane.b32.xlu0 %v4422, 120
          %v4507 = vpop.permute.xlu0 %4506
          %4508 = vrot.lane.b32.xlu0 %v4423, 120
          %v4509 = vpop.permute.xlu0 %4508
          %4510 = vrot.lane.b32.xlu0 %v4424, 120
          %v4511 = vpop.permute.xlu0 %4510
          %4512 = vrot.lane.b32.xlu0 %v4425, 120
          %v4513 = vpop.permute.xlu0 %4512
          %4514 = vrot.lane.b32.xlu0 %v4426, 120
          %v4515 = vpop.permute.xlu0 %4514
          %4516 = vrot.lane.b32.xlu0 %v4427, 120
          %v4517 = vpop.permute.xlu0 %4516
          %4518 = vrot.lane.b32.xlu0 %v4428, 120
          %v4519 = vpop.permute.xlu0 %4518
          %4520 = vrot.lane.b32.xlu0 %v4429, 120
          %v4521 = vpop.permute.xlu0 %4520
          %4522 = vrot.lane.b32.xlu0 %v4430, 120
          %v4523 = vpop.permute.xlu0 %4522
          %4524 = vrot.lane.b32.xlu0 %v4431, 120
          %v4525 = vpop.permute.xlu0 %4524
          %4526 = vrot.lane.b32.xlu0 %v4432, 120
          %v4527 = vpop.permute.xlu0 %4526
          %4528 = vrot.lane.b32.xlu0 %v4433, 120
          %v4529 = vpop.permute.xlu0 %4528
          %s4554 = scalar_lea.vmem [#allocation3], 192
          %4555 = vst.msk [vmem:[%s4554] sm:$0xff] %vm1784, %v4483
          %4556 = vst.msk [vmem:[%s4554 + $0x8] sm:$0xff] %vm1784, %v4485
          %4557 = vst.msk [vmem:[%s4554 + $0x10] sm:$0xff] %vm1784, %v4487
          %4558 = vst.msk [vmem:[%s4554 + $0x18] sm:$0xff] %vm1784, %v4489
          %4559 = vst.msk [vmem:[%s4554 + $0x20] sm:$0xff] %vm1784, %v4491
          %4560 = vst.msk [vmem:[%s4554 + $0x28] sm:$0xff] %vm1784, %v4493
          %4561 = vst.msk [vmem:[%s4554 + $0x30] sm:$0xff] %vm1784, %v4495
          %4562 = vst.msk [vmem:[%s4554 + $0x38] sm:$0xff] %vm1784, %v4497
          %4563 = vst.msk [vmem:[%s4554 + $0x40] sm:$0xff] %vm1784, %v4499
          %4564 = vst.msk [vmem:[%s4554 + $0x48] sm:$0xff] %vm1784, %v4501
          %4565 = vst.msk [vmem:[%s4554 + $0x50] sm:$0xff] %vm1784, %v4503
          %4566 = vst.msk [vmem:[%s4554 + $0x58] sm:$0xff] %vm1784, %v4505
          %4567 = vst.msk [vmem:[%s4554 + $0x60] sm:$0xff] %vm1784, %v4507
          %4568 = vst.msk [vmem:[%s4554 + $0x68] sm:$0xff] %vm1784, %v4509
          %4569 = vst.msk [vmem:[%s4554 + $0x70] sm:$0xff] %vm1784, %v4511
          %4570 = vst.msk [vmem:[%s4554 + $0x78] sm:$0xff] %vm1784, %v4513
          %4571 = vst.msk [vmem:[%s4554 + $0x80] sm:$0xff] %vm1784, %v4515
          %4572 = vst.msk [vmem:[%s4554 + $0x88] sm:$0xff] %vm1784, %v4517
          %4573 = vst.msk [vmem:[%s4554 + $0x90] sm:$0xff] %vm1784, %v4519
          %4574 = vst.msk [vmem:[%s4554 + $0x98] sm:$0xff] %vm1784, %v4521
          %4575 = vst.msk [vmem:[%s4554 + $0xa0] sm:$0xff] %vm1784, %v4523
          %4576 = vst.msk [vmem:[%s4554 + $0xa8] sm:$0xff] %vm1784, %v4525
          %4577 = vst.msk [vmem:[%s4554 + $0xb0] sm:$0xff] %vm1784, %v4527
          %4578 = vst.msk [vmem:[%s4554 + $0xb8] sm:$0xff] %vm1784, %v4529
        $region126: #{neck_forward.1} parent=113 // pred_fallthru
          _
        %s4579 = scalar_lea.vmem [#allocation3], %s1757
        %v4580 = vld [vmem:[%s4579] sm:$0xff]
        %v4581 = vld [vmem:[%s4579 + $0x8] sm:$0xff]
        %v4582 = vld [vmem:[%s4579 + $0x10] sm:$0xff]
        %v4583 = vld [vmem:[%s4579 + $0x18] sm:$0xff]
        %v4584 = vld [vmem:[%s4579 + $0x20] sm:$0xff]
        %v4585 = vld [vmem:[%s4579 + $0x28] sm:$0xff]
        %v4586 = vld [vmem:[%s4579 + $0x30] sm:$0xff]
        %v4587 = vld [vmem:[%s4579 + $0x38] sm:$0xff]
        %v4588 = vld [vmem:[%s4579 + $0x40] sm:$0xff]
        %v4589 = vld [vmem:[%s4579 + $0x48] sm:$0xff]
        %v4590 = vld [vmem:[%s4579 + $0x50] sm:$0xff]
        %v4591 = vld [vmem:[%s4579 + $0x58] sm:$0xff]
        %v4592 = vld [vmem:[%s4579 + $0x60] sm:$0xff]
        %v4593 = vld [vmem:[%s4579 + $0x68] sm:$0xff]
        %v4594 = vld [vmem:[%s4579 + $0x70] sm:$0xff]
        %v4595 = vld [vmem:[%s4579 + $0x78] sm:$0xff]
        %v4596 = vld [vmem:[%s4579 + $0x80] sm:$0xff]
        %v4597 = vld [vmem:[%s4579 + $0x88] sm:$0xff]
        %v4598 = vld [vmem:[%s4579 + $0x90] sm:$0xff]
        %v4599 = vld [vmem:[%s4579 + $0x98] sm:$0xff]
        %v4600 = vld [vmem:[%s4579 + $0xa0] sm:$0xff]
        %v4601 = vld [vmem:[%s4579 + $0xa8] sm:$0xff]
        %v4602 = vld [vmem:[%s4579 + $0xb0] sm:$0xff]
        %v4603 = vld [vmem:[%s4579 + $0xb8] sm:$0xff]
        %v4604 = vld [vmem:[%s13] sm:$0xf]
        %vm4605 = vcmask 31744
        %v4607 = vsel %vm4605, %v4580, 0
        %v4610 = vsel %vm4605, %v4581, 0
        %v4613 = vsel %vm4605, %v4582, 0
        %v4616 = vsel %vm4605, %v4583, 0
        %v4619 = vsel %vm4605, %v4584, 0
        %v4622 = vsel %vm4605, %v4585, 0
        %v4625 = vsel %vm4605, %v4586, 0
        %v4628 = vsel %vm4605, %v4587, 0
        %v4631 = vsel %vm4605, %v4588, 0
        %v4634 = vsel %vm4605, %v4589, 0
        %v4637 = vsel %vm4605, %v4590, 0
        %v4640 = vsel %vm4605, %v4591, 0
        %v4643 = vsel %vm4605, %v4592, 0
        %v4646 = vsel %vm4605, %v4593, 0
        %v4649 = vsel %vm4605, %v4594, 0
        %v4652 = vsel %vm4605, %v4595, 0
        %v4655 = vsel %vm4605, %v4596, 0
        %v4658 = vsel %vm4605, %v4597, 0
        %v4661 = vsel %vm4605, %v4598, 0
        %v4664 = vsel %vm4605, %v4599, 0
        %v4667 = vsel %vm4605, %v4600, 0
        %v4670 = vsel %vm4605, %v4601, 0
        %v4673 = vsel %vm4605, %v4602, 0
        %v4676 = vsel %vm4605, %v4603, 0
        %vm4678 = vcmask 1043456
        %v4680 = vsel %vm4678, %v4604, 0
        %4682 = vmatprep.subr.mxu0 0.0
        %4683 = vmatpush1.msra.mxu0 %v4680
        %4684 = vmatprep.subr.mxu0 0.0
        %4685 = vmatpush1.msra.mxu0 0.0
        %4686 = vmatprep.subr.mxu0 0.0
        %4687 = vmatpush1.msra.mxu0 0.0
        %4688 = vmatprep.subr.mxu0 0.0
        %4689 = vmatpush1.msra.mxu0 0.0
        %4690 = vmatprep.subr.mxu0 0.0
        %4691 = vmatpush1.msra.mxu0 0.0
        %4692 = vmatprep.subr.mxu0 0.0
        %4693 = vmatpush1.msra.mxu0 0.0
        %4694 = vmatprep.subr.mxu0 0.0
        %4695 = vmatpush1.msra.mxu0 0.0
        %4696 = vmatprep.subr.mxu0 0.0
        %4697 = vmatpush1.msra.mxu0 0.0
        %4698 = vmatprep.subr.mxu0 0.0
        %4699 = vmatpush1.msra.mxu0 0.0
        %4700 = vmatprep.subr.mxu0 0.0
        %4701 = vmatpush1.msra.mxu0 0.0
        %4702 = vmatprep.subr.mxu0 0.0
        %4703 = vmatpush1.msra.mxu0 0.0
        %4704 = vmatprep.subr.mxu0 0.0
        %4705 = vmatpush1.msra.mxu0 0.0
        %4706 = vmatprep.subr.mxu0 0.0
        %4707 = vmatpush1.msra.mxu0 0.0
        %4708 = vmatprep.subr.mxu0 0.0
        %4709 = vmatpush1.msra.mxu0 0.0
        %4710 = vmatprep.subr.mxu0 0.0
        %4711 = vmatpush1.msra.mxu0 0.0
        %4712 = vmatprep.subr.mxu0 0.0
        %4713 = vmatpush1.msra.mxu0 0.0
        %4714 = vmatprep.subr.mxu0 0.0
        %4715 = vmatpush1.msra.mxu0 0.0
        %4716 = vmatprep.subr.mxu0 0.0
        %4717 = vmatpush1.msra.mxu0 0.0
        %4718 = vmatprep.subr.mxu0 0.0
        %4719 = vmatpush1.msra.mxu0 0.0
        %4720 = vmatprep.subr.mxu0 0.0
        %4721 = vmatpush1.msra.mxu0 0.0
        %4722 = vmatprep.subr.mxu0 0.0
        %4723 = vmatpush1.msra.mxu0 0.0
        %4724 = vmatprep.subr.mxu0 0.0
        %4725 = vmatpush1.msra.mxu0 0.0
        %4726 = vmatprep.subr.mxu0 0.0
        %4727 = vmatpush1.msra.mxu0 0.0
        %4728 = vmatprep.subr.mxu0 0.0
        %4729 = vmatpush1.msra.mxu0 0.0
        %4730 = vmatprep.subr.mxu0 0.0
        %4731 = vmatpush1.msra.mxu0 0.0
        %4732 = vmatprep.subr.mxu0 0.0
        %4733 = vmatpush1.msra.mxu0 0.0
        %4734 = vmatprep.subr.mxu0 0.0
        %4735 = vmatpush1.msra.mxu0 0.0
        %4736 = vmatprep.subr.mxu0 0.0
        %4737 = vmatpush1.msra.mxu0 0.0
        %4738 = vmatprep.subr.mxu0 0.0
        %4739 = vmatpush1.msra.mxu0 0.0
        %4740 = vmatprep.subr.mxu0 0.0
        %4741 = vmatpush1.msra.mxu0 0.0
        %4742 = vmatprep.subr.mxu0 0.0
        %4743 = vmatpush1.msra.mxu0 0.0
        %4744 = vmatprep.subr.mxu0 0.0
        %4745 = vmatpush1.msra.mxu0 0.0
        %4746 = vmatprep.mubr.f32.mxu0 0.0
        %4747 = vmatmul.mubr.f32.gmra.mrb[0].mxu0 %v4607
        %v4748 = vpop.f32.mrb[0].mxu0
        %v4749 = vadd.f32 0.0, %v4748
        %v4750 = vpop.f32.mrb[0].mxu0
        %4751 = vmatprep.mubr.f32.mxu0 0.0
        %4752 = vmatmul.mubr.f32.gmra.mrb[0].mxu0 %v4610
        %v4753 = vpop.f32.mrb[0].mxu0
        %v4754 = vadd.f32 0.0, %v4753
        %v4755 = vpop.f32.mrb[0].mxu0
        %4756 = vmatprep.mubr.f32.mxu0 0.0
        %4757 = vmatmul.mubr.f32.gmra.mrb[0].mxu0 %v4613
        %v4758 = vpop.f32.mrb[0].mxu0
        %v4759 = vadd.f32 0.0, %v4758
        %v4760 = vpop.f32.mrb[0].mxu0
        %4761 = vmatprep.mubr.f32.mxu0 0.0
        %4762 = vmatmul.mubr.f32.gmra.mrb[0].mxu0 %v4616
        %v4763 = vpop.f32.mrb[0].mxu0
        %v4764 = vadd.f32 0.0, %v4763
        %v4765 = vpop.f32.mrb[0].mxu0
        %4766 = vmatprep.mubr.f32.mxu0 0.0
        %4767 = vmatmul.mubr.f32.gmra.mrb[0].mxu0 %v4619
        %v4768 = vpop.f32.mrb[0].mxu0
        %v4769 = vadd.f32 0.0, %v4768
        %v4770 = vpop.f32.mrb[0].mxu0
        %4771 = vmatprep.mubr.f32.mxu0 0.0
        %4772 = vmatmul.mubr.f32.gmra.mrb[0].mxu0 %v4622
        %v4773 = vpop.f32.mrb[0].mxu0
        %v4774 = vadd.f32 0.0, %v4773
        %v4775 = vpop.f32.mrb[0].mxu0
        %4776 = vmatprep.mubr.f32.mxu0 0.0
        %4777 = vmatmul.mubr.f32.gmra.mrb[0].mxu0 %v4625
        %v4778 = vpop.f32.mrb[0].mxu0
        %v4779 = vadd.f32 0.0, %v4778
        %v4780 = vpop.f32.mrb[0].mxu0
        %4781 = vmatprep.mubr.f32.mxu0 0.0
        %4782 = vmatmul.mubr.f32.gmra.mrb[0].mxu0 %v4628
        %v4783 = vpop.f32.mrb[0].mxu0
        %v4784 = vadd.f32 0.0, %v4783
        %v4785 = vpop.f32.mrb[0].mxu0
        %4786 = vmatprep.mubr.f32.mxu0 0.0
        %4787 = vmatmul.mubr.f32.gmra.mrb[0].mxu0 %v4631
        %v4788 = vpop.f32.mrb[0].mxu0
        %v4789 = vadd.f32 0.0, %v4788
        %v4790 = vpop.f32.mrb[0].mxu0
        %4791 = vmatprep.mubr.f32.mxu0 0.0
        %4792 = vmatmul.mubr.f32.gmra.mrb[0].mxu0 %v4634
        %v4793 = vpop.f32.mrb[0].mxu0
        %v4794 = vadd.f32 0.0, %v4793
        %v4795 = vpop.f32.mrb[0].mxu0
        %4796 = vmatprep.mubr.f32.mxu0 0.0
        %4797 = vmatmul.mubr.f32.gmra.mrb[0].mxu0 %v4637
        %v4798 = vpop.f32.mrb[0].mxu0
        %v4799 = vadd.f32 0.0, %v4798
        %v4800 = vpop.f32.mrb[0].mxu0
        %4801 = vmatprep.mubr.f32.mxu0 0.0
        %4802 = vmatmul.mubr.f32.gmra.mrb[0].mxu0 %v4640
        %v4803 = vpop.f32.mrb[0].mxu0
        %v4804 = vadd.f32 0.0, %v4803
        %v4805 = vpop.f32.mrb[0].mxu0
        %4806 = vmatprep.mubr.f32.mxu0 0.0
        %4807 = vmatmul.mubr.f32.gmra.mrb[0].mxu0 %v4643
        %v4808 = vpop.f32.mrb[0].mxu0
        %v4809 = vadd.f32 0.0, %v4808
        %v4810 = vpop.f32.mrb[0].mxu0
        %4811 = vmatprep.mubr.f32.mxu0 0.0
        %4812 = vmatmul.mubr.f32.gmra.mrb[0].mxu0 %v4646
        %v4813 = vpop.f32.mrb[0].mxu0
        %v4814 = vadd.f32 0.0, %v4813
        %v4815 = vpop.f32.mrb[0].mxu0
        %4816 = vmatprep.mubr.f32.mxu0 0.0
        %4817 = vmatmul.mubr.f32.gmra.mrb[0].mxu0 %v4649
        %v4818 = vpop.f32.mrb[0].mxu0
        %v4819 = vadd.f32 0.0, %v4818
        %v4820 = vpop.f32.mrb[0].mxu0
        %4821 = vmatprep.mubr.f32.mxu0 0.0
        %4822 = vmatmul.mubr.f32.gmra.mrb[0].mxu0 %v4652
        %v4823 = vpop.f32.mrb[0].mxu0
        %v4824 = vadd.f32 0.0, %v4823
        %v4825 = vpop.f32.mrb[0].mxu0
        %4826 = vmatprep.mubr.f32.mxu0 0.0
        %4827 = vmatmul.mubr.f32.gmra.mrb[0].mxu0 %v4655
        %v4828 = vpop.f32.mrb[0].mxu0
        %v4829 = vadd.f32 0.0, %v4828
        %v4830 = vpop.f32.mrb[0].mxu0
        %4831 = vmatprep.mubr.f32.mxu0 0.0
        %4832 = vmatmul.mubr.f32.gmra.mrb[0].mxu0 %v4658
        %v4833 = vpop.f32.mrb[0].mxu0
        %v4834 = vadd.f32 0.0, %v4833
        %v4835 = vpop.f32.mrb[0].mxu0
        %4836 = vmatprep.mubr.f32.mxu0 0.0
        %4837 = vmatmul.mubr.f32.gmra.mrb[0].mxu0 %v4661
        %v4838 = vpop.f32.mrb[0].mxu0
        %v4839 = vadd.f32 0.0, %v4838
        %v4840 = vpop.f32.mrb[0].mxu0
        %4841 = vmatprep.mubr.f32.mxu0 0.0
        %4842 = vmatmul.mubr.f32.gmra.mrb[0].mxu0 %v4664
        %v4843 = vpop.f32.mrb[0].mxu0
        %v4844 = vadd.f32 0.0, %v4843
        %v4845 = vpop.f32.mrb[0].mxu0
        %4846 = vmatprep.mubr.f32.mxu0 0.0
        %4847 = vmatmul.mubr.f32.gmra.mrb[0].mxu0 %v4667
        %v4848 = vpop.f32.mrb[0].mxu0
        %v4849 = vadd.f32 0.0, %v4848
        %v4850 = vpop.f32.mrb[0].mxu0
        %4851 = vmatprep.mubr.f32.mxu0 0.0
        %4852 = vmatmul.mubr.f32.gmra.mrb[0].mxu0 %v4670
        %v4853 = vpop.f32.mrb[0].mxu0
        %v4854 = vadd.f32 0.0, %v4853
        %v4855 = vpop.f32.mrb[0].mxu0
        %4856 = vmatprep.mubr.f32.mxu0 0.0
        %4857 = vmatmul.mubr.f32.gmra.mrb[0].mxu0 %v4673
        %v4858 = vpop.f32.mrb[0].mxu0
        %v4859 = vadd.f32 0.0, %v4858
        %v4860 = vpop.f32.mrb[0].mxu0
        %4861 = vmatprep.mubr.f32.mxu0 0.0
        %4862 = vmatmul.mubr.f32.gmra.mrb[0].mxu0 %v4676
        %v4863 = vpop.f32.mrb[0].mxu0
        %v4864 = vadd.f32 0.0, %v4863
        %v4865 = vpop.f32.mrb[0].mxu0
        %4866 = vdwg.mxu0
        %4867 = vst.msk [vmem:[%s645 + $0x180] sm:$0xff] %vm2042, %v4749
        %4868 = vst.msk [vmem:[%s645 + $0x188] sm:$0xff] %vm2042, %v4754
        %4869 = vst.msk [vmem:[%s645 + $0x190] sm:$0xff] %vm2042, %v4759
        %4870 = vst.msk [vmem:[%s645 + $0x198] sm:$0xff] %vm2042, %v4764
        %4871 = vst.msk [vmem:[%s645 + $0x1a0] sm:$0xff] %vm2042, %v4769
        %4872 = vst.msk [vmem:[%s645 + $0x1a8] sm:$0xff] %vm2042, %v4774
        %4873 = vst.msk [vmem:[%s645 + $0x1b0] sm:$0xff] %vm2042, %v4779
        %4874 = vst.msk [vmem:[%s645 + $0x1b8] sm:$0xff] %vm2042, %v4784
        %4875 = vst.msk [vmem:[%s645 + $0x1c0] sm:$0xff] %vm2042, %v4789
        %4876 = vst.msk [vmem:[%s645 + $0x1c8] sm:$0xff] %vm2042, %v4794
        %4877 = vst.msk [vmem:[%s645 + $0x1d0] sm:$0xff] %vm2042, %v4799
        %4878 = vst.msk [vmem:[%s645 + $0x1d8] sm:$0xff] %vm2042, %v4804
        %4879 = vst.msk [vmem:[%s645 + $0x1e0] sm:$0xff] %vm2042, %v4809
        %4880 = vst.msk [vmem:[%s645 + $0x1e8] sm:$0xff] %vm2042, %v4814
        %4881 = vst.msk [vmem:[%s645 + $0x1f0] sm:$0xff] %vm2042, %v4819
        %4882 = vst.msk [vmem:[%s645 + $0x1f8] sm:$0xff] %vm2042, %v4824
        %4883 = vst.msk [vmem:[%s645 + $0x200] sm:$0xff] %vm2042, %v4829
        %4884 = vst.msk [vmem:[%s645 + $0x208] sm:$0xff] %vm2042, %v4834
        %4885 = vst.msk [vmem:[%s645 + $0x210] sm:$0xff] %vm2042, %v4839
        %4886 = vst.msk [vmem:[%s645 + $0x218] sm:$0xff] %vm2042, %v4844
        %4887 = vst.msk [vmem:[%s645 + $0x220] sm:$0xff] %vm2042, %v4849
        %4888 = vst.msk [vmem:[%s645 + $0x228] sm:$0xff] %vm2042, %v4854
        %4889 = vst.msk [vmem:[%s645 + $0x230] sm:$0xff] %vm2042, %v4859
        %4890 = vst.msk [vmem:[%s645 + $0x238] sm:$0xff] %vm2042, %v4864
        %4915 = vrot.lane.b32.xlu0 %v4749, 16
        %v4916 = vpop.permute.xlu0 %4915
        %4917 = vrot.lane.b32.xlu0 %v4754, 16
        %v4918 = vpop.permute.xlu0 %4917
        %4919 = vrot.lane.b32.xlu0 %v4759, 16
        %v4920 = vpop.permute.xlu0 %4919
        %4921 = vrot.lane.b32.xlu0 %v4764, 16
        %v4922 = vpop.permute.xlu0 %4921
        %4923 = vrot.lane.b32.xlu0 %v4769, 16
        %v4924 = vpop.permute.xlu0 %4923
        %4925 = vrot.lane.b32.xlu0 %v4774, 16
        %v4926 = vpop.permute.xlu0 %4925
        %4927 = vrot.lane.b32.xlu0 %v4779, 16
        %v4928 = vpop.permute.xlu0 %4927
        %4929 = vrot.lane.b32.xlu0 %v4784, 16
        %v4930 = vpop.permute.xlu0 %4929
        %4931 = vrot.lane.b32.xlu0 %v4789, 16
        %v4932 = vpop.permute.xlu0 %4931
        %4933 = vrot.lane.b32.xlu0 %v4794, 16
        %v4934 = vpop.permute.xlu0 %4933
        %4935 = vrot.lane.b32.xlu0 %v4799, 16
        %v4936 = vpop.permute.xlu0 %4935
        %4937 = vrot.lane.b32.xlu0 %v4804, 16
        %v4938 = vpop.permute.xlu0 %4937
        %4939 = vrot.lane.b32.xlu0 %v4809, 16
        %v4940 = vpop.permute.xlu0 %4939
        %4941 = vrot.lane.b32.xlu0 %v4814, 16
        %v4942 = vpop.permute.xlu0 %4941
        %4943 = vrot.lane.b32.xlu0 %v4819, 16
        %v4944 = vpop.permute.xlu0 %4943
        %4945 = vrot.lane.b32.xlu0 %v4824, 16
        %v4946 = vpop.permute.xlu0 %4945
        %4947 = vrot.lane.b32.xlu0 %v4829, 16
        %v4948 = vpop.permute.xlu0 %4947
        %4949 = vrot.lane.b32.xlu0 %v4834, 16
        %v4950 = vpop.permute.xlu0 %4949
        %4951 = vrot.lane.b32.xlu0 %v4839, 16
        %v4952 = vpop.permute.xlu0 %4951
        %4953 = vrot.lane.b32.xlu0 %v4844, 16
        %v4954 = vpop.permute.xlu0 %4953
        %4955 = vrot.lane.b32.xlu0 %v4849, 16
        %v4956 = vpop.permute.xlu0 %4955
        %4957 = vrot.lane.b32.xlu0 %v4854, 16
        %v4958 = vpop.permute.xlu0 %4957
        %4959 = vrot.lane.b32.xlu0 %v4859, 16
        %v4960 = vpop.permute.xlu0 %4959
        %4961 = vrot.lane.b32.xlu0 %v4864, 16
        %v4962 = vpop.permute.xlu0 %4961
        %4987 = vst.msk [vmem:[%s645 + $0x180] sm:$0xff] %vm2163, %v4916
        %4988 = vst.msk [vmem:[%s645 + $0x188] sm:$0xff] %vm2163, %v4918
        %4989 = vst.msk [vmem:[%s645 + $0x190] sm:$0xff] %vm2163, %v4920
        %4990 = vst.msk [vmem:[%s645 + $0x198] sm:$0xff] %vm2163, %v4922
        %4991 = vst.msk [vmem:[%s645 + $0x1a0] sm:$0xff] %vm2163, %v4924
        %4992 = vst.msk [vmem:[%s645 + $0x1a8] sm:$0xff] %vm2163, %v4926
        %4993 = vst.msk [vmem:[%s645 + $0x1b0] sm:$0xff] %vm2163, %v4928
        %4994 = vst.msk [vmem:[%s645 + $0x1b8] sm:$0xff] %vm2163, %v4930
        %4995 = vst.msk [vmem:[%s645 + $0x1c0] sm:$0xff] %vm2163, %v4932
        %4996 = vst.msk [vmem:[%s645 + $0x1c8] sm:$0xff] %vm2163, %v4934
        %4997 = vst.msk [vmem:[%s645 + $0x1d0] sm:$0xff] %vm2163, %v4936
        %4998 = vst.msk [vmem:[%s645 + $0x1d8] sm:$0xff] %vm2163, %v4938
        %4999 = vst.msk [vmem:[%s645 + $0x1e0] sm:$0xff] %vm2163, %v4940
        %5000 = vst.msk [vmem:[%s645 + $0x1e8] sm:$0xff] %vm2163, %v4942
        %5001 = vst.msk [vmem:[%s645 + $0x1f0] sm:$0xff] %vm2163, %v4944
        %5002 = vst.msk [vmem:[%s645 + $0x1f8] sm:$0xff] %vm2163, %v4946
        %5003 = vst.msk [vmem:[%s645 + $0x200] sm:$0xff] %vm2163, %v4948
        %5004 = vst.msk [vmem:[%s645 + $0x208] sm:$0xff] %vm2163, %v4950
        %5005 = vst.msk [vmem:[%s645 + $0x210] sm:$0xff] %vm2163, %v4952
        %5006 = vst.msk [vmem:[%s645 + $0x218] sm:$0xff] %vm2163, %v4954
        %5007 = vst.msk [vmem:[%s645 + $0x220] sm:$0xff] %vm2163, %v4956
        %5008 = vst.msk [vmem:[%s645 + $0x228] sm:$0xff] %vm2163, %v4958
        %5009 = vst.msk [vmem:[%s645 + $0x230] sm:$0xff] %vm2163, %v4960
        %5010 = vst.msk [vmem:[%s645 + $0x238] sm:$0xff] %vm2163, %v4962
        %5011 = vrot.lane.b32.xlu0 %v4749, 32
        %v5012 = vpop.permute.xlu0 %5011
        %5013 = vrot.lane.b32.xlu0 %v4754, 32
        %v5014 = vpop.permute.xlu0 %5013
        %5015 = vrot.lane.b32.xlu0 %v4759, 32
        %v5016 = vpop.permute.xlu0 %5015
        %5017 = vrot.lane.b32.xlu0 %v4764, 32
        %v5018 = vpop.permute.xlu0 %5017
        %5019 = vrot.lane.b32.xlu0 %v4769, 32
        %v5020 = vpop.permute.xlu0 %5019
        %5021 = vrot.lane.b32.xlu0 %v4774, 32
        %v5022 = vpop.permute.xlu0 %5021
        %5023 = vrot.lane.b32.xlu0 %v4779, 32
        %v5024 = vpop.permute.xlu0 %5023
        %5025 = vrot.lane.b32.xlu0 %v4784, 32
        %v5026 = vpop.permute.xlu0 %5025
        %5027 = vrot.lane.b32.xlu0 %v4789, 32
        %v5028 = vpop.permute.xlu0 %5027
        %5029 = vrot.lane.b32.xlu0 %v4794, 32
        %v5030 = vpop.permute.xlu0 %5029
        %5031 = vrot.lane.b32.xlu0 %v4799, 32
        %v5032 = vpop.permute.xlu0 %5031
        %5033 = vrot.lane.b32.xlu0 %v4804, 32
        %v5034 = vpop.permute.xlu0 %5033
        %5035 = vrot.lane.b32.xlu0 %v4809, 32
        %v5036 = vpop.permute.xlu0 %5035
        %5037 = vrot.lane.b32.xlu0 %v4814, 32
        %v5038 = vpop.permute.xlu0 %5037
        %5039 = vrot.lane.b32.xlu0 %v4819, 32
        %v5040 = vpop.permute.xlu0 %5039
        %5041 = vrot.lane.b32.xlu0 %v4824, 32
        %v5042 = vpop.permute.xlu0 %5041
        %5043 = vrot.lane.b32.xlu0 %v4829, 32
        %v5044 = vpop.permute.xlu0 %5043
        %5045 = vrot.lane.b32.xlu0 %v4834, 32
        %v5046 = vpop.permute.xlu0 %5045
        %5047 = vrot.lane.b32.xlu0 %v4839, 32
        %v5048 = vpop.permute.xlu0 %5047
        %5049 = vrot.lane.b32.xlu0 %v4844, 32
        %v5050 = vpop.permute.xlu0 %5049
        %5051 = vrot.lane.b32.xlu0 %v4849, 32
        %v5052 = vpop.permute.xlu0 %5051
        %5053 = vrot.lane.b32.xlu0 %v4854, 32
        %v5054 = vpop.permute.xlu0 %5053
        %5055 = vrot.lane.b32.xlu0 %v4859, 32
        %v5056 = vpop.permute.xlu0 %5055
        %5057 = vrot.lane.b32.xlu0 %v4864, 32
        %v5058 = vpop.permute.xlu0 %5057
        %5083 = vst.msk [vmem:[%s645 + $0x180] sm:$0xff] %vm2565, %v5012
        %5084 = vst.msk [vmem:[%s645 + $0x188] sm:$0xff] %vm2565, %v5014
        %5085 = vst.msk [vmem:[%s645 + $0x190] sm:$0xff] %vm2565, %v5016
        %5086 = vst.msk [vmem:[%s645 + $0x198] sm:$0xff] %vm2565, %v5018
        %5087 = vst.msk [vmem:[%s645 + $0x1a0] sm:$0xff] %vm2565, %v5020
        %5088 = vst.msk [vmem:[%s645 + $0x1a8] sm:$0xff] %vm2565, %v5022
        %5089 = vst.msk [vmem:[%s645 + $0x1b0] sm:$0xff] %vm2565, %v5024
        %5090 = vst.msk [vmem:[%s645 + $0x1b8] sm:$0xff] %vm2565, %v5026
        %5091 = vst.msk [vmem:[%s645 + $0x1c0] sm:$0xff] %vm2565, %v5028
        %5092 = vst.msk [vmem:[%s645 + $0x1c8] sm:$0xff] %vm2565, %v5030
        %5093 = vst.msk [vmem:[%s645 + $0x1d0] sm:$0xff] %vm2565, %v5032
        %5094 = vst.msk [vmem:[%s645 + $0x1d8] sm:$0xff] %vm2565, %v5034
        %5095 = vst.msk [vmem:[%s645 + $0x1e0] sm:$0xff] %vm2565, %v5036
        %5096 = vst.msk [vmem:[%s645 + $0x1e8] sm:$0xff] %vm2565, %v5038
        %5097 = vst.msk [vmem:[%s645 + $0x1f0] sm:$0xff] %vm2565, %v5040
        %5098 = vst.msk [vmem:[%s645 + $0x1f8] sm:$0xff] %vm2565, %v5042
        %5099 = vst.msk [vmem:[%s645 + $0x200] sm:$0xff] %vm2565, %v5044
        %5100 = vst.msk [vmem:[%s645 + $0x208] sm:$0xff] %vm2565, %v5046
        %5101 = vst.msk [vmem:[%s645 + $0x210] sm:$0xff] %vm2565, %v5048
        %5102 = vst.msk [vmem:[%s645 + $0x218] sm:$0xff] %vm2565, %v5050
        %5103 = vst.msk [vmem:[%s645 + $0x220] sm:$0xff] %vm2565, %v5052
        %5104 = vst.msk [vmem:[%s645 + $0x228] sm:$0xff] %vm2565, %v5054
        %5105 = vst.msk [vmem:[%s645 + $0x230] sm:$0xff] %vm2565, %v5056
        %5106 = vst.msk [vmem:[%s645 + $0x238] sm:$0xff] %vm2565, %v5058
        %5107 = vrot.lane.b32.xlu0 %v4749, 48
        %v5108 = vpop.permute.xlu0 %5107
        %5109 = vrot.lane.b32.xlu0 %v4754, 48
        %v5110 = vpop.permute.xlu0 %5109
        %5111 = vrot.lane.b32.xlu0 %v4759, 48
        %v5112 = vpop.permute.xlu0 %5111
        %5113 = vrot.lane.b32.xlu0 %v4764, 48
        %v5114 = vpop.permute.xlu0 %5113
        %5115 = vrot.lane.b32.xlu0 %v4769, 48
        %v5116 = vpop.permute.xlu0 %5115
        %5117 = vrot.lane.b32.xlu0 %v4774, 48
        %v5118 = vpop.permute.xlu0 %5117
        %5119 = vrot.lane.b32.xlu0 %v4779, 48
        %v5120 = vpop.permute.xlu0 %5119
        %5121 = vrot.lane.b32.xlu0 %v4784, 48
        %v5122 = vpop.permute.xlu0 %5121
        %5123 = vrot.lane.b32.xlu0 %v4789, 48
        %v5124 = vpop.permute.xlu0 %5123
        %5125 = vrot.lane.b32.xlu0 %v4794, 48
        %v5126 = vpop.permute.xlu0 %5125
        %5127 = vrot.lane.b32.xlu0 %v4799, 48
        %v5128 = vpop.permute.xlu0 %5127
        %5129 = vrot.lane.b32.xlu0 %v4804, 48
        %v5130 = vpop.permute.xlu0 %5129
        %5131 = vrot.lane.b32.xlu0 %v4809, 48
        %v5132 = vpop.permute.xlu0 %5131
        %5133 = vrot.lane.b32.xlu0 %v4814, 48
        %v5134 = vpop.permute.xlu0 %5133
        %5135 = vrot.lane.b32.xlu0 %v4819, 48
        %v5136 = vpop.permute.xlu0 %5135
        %5137 = vrot.lane.b32.xlu0 %v4824, 48
        %v5138 = vpop.permute.xlu0 %5137
        %5139 = vrot.lane.b32.xlu0 %v4829, 48
        %v5140 = vpop.permute.xlu0 %5139
        %5141 = vrot.lane.b32.xlu0 %v4834, 48
        %v5142 = vpop.permute.xlu0 %5141
        %5143 = vrot.lane.b32.xlu0 %v4839, 48
        %v5144 = vpop.permute.xlu0 %5143
        %5145 = vrot.lane.b32.xlu0 %v4844, 48
        %v5146 = vpop.permute.xlu0 %5145
        %5147 = vrot.lane.b32.xlu0 %v4849, 48
        %v5148 = vpop.permute.xlu0 %5147
        %5149 = vrot.lane.b32.xlu0 %v4854, 48
        %v5150 = vpop.permute.xlu0 %5149
        %5151 = vrot.lane.b32.xlu0 %v4859, 48
        %v5152 = vpop.permute.xlu0 %5151
        %5153 = vrot.lane.b32.xlu0 %v4864, 48
        %v5154 = vpop.permute.xlu0 %5153
        %5179 = vst.msk [vmem:[%s645 + $0x180] sm:$0xff] %vm2662, %v5108
        %5180 = vst.msk [vmem:[%s645 + $0x188] sm:$0xff] %vm2662, %v5110
        %5181 = vst.msk [vmem:[%s645 + $0x190] sm:$0xff] %vm2662, %v5112
        %5182 = vst.msk [vmem:[%s645 + $0x198] sm:$0xff] %vm2662, %v5114
        %5183 = vst.msk [vmem:[%s645 + $0x1a0] sm:$0xff] %vm2662, %v5116
        %5184 = vst.msk [vmem:[%s645 + $0x1a8] sm:$0xff] %vm2662, %v5118
        %5185 = vst.msk [vmem:[%s645 + $0x1b0] sm:$0xff] %vm2662, %v5120
        %5186 = vst.msk [vmem:[%s645 + $0x1b8] sm:$0xff] %vm2662, %v5122
        %5187 = vst.msk [vmem:[%s645 + $0x1c0] sm:$0xff] %vm2662, %v5124
        %5188 = vst.msk [vmem:[%s645 + $0x1c8] sm:$0xff] %vm2662, %v5126
        %5189 = vst.msk [vmem:[%s645 + $0x1d0] sm:$0xff] %vm2662, %v5128
        %5190 = vst.msk [vmem:[%s645 + $0x1d8] sm:$0xff] %vm2662, %v5130
        %5191 = vst.msk [vmem:[%s645 + $0x1e0] sm:$0xff] %vm2662, %v5132
        %5192 = vst.msk [vmem:[%s645 + $0x1e8] sm:$0xff] %vm2662, %v5134
        %5193 = vst.msk [vmem:[%s645 + $0x1f0] sm:$0xff] %vm2662, %v5136
        %5194 = vst.msk [vmem:[%s645 + $0x1f8] sm:$0xff] %vm2662, %v5138
        %5195 = vst.msk [vmem:[%s645 + $0x200] sm:$0xff] %vm2662, %v5140
        %5196 = vst.msk [vmem:[%s645 + $0x208] sm:$0xff] %vm2662, %v5142
        %5197 = vst.msk [vmem:[%s645 + $0x210] sm:$0xff] %vm2662, %v5144
        %5198 = vst.msk [vmem:[%s645 + $0x218] sm:$0xff] %vm2662, %v5146
        %5199 = vst.msk [vmem:[%s645 + $0x220] sm:$0xff] %vm2662, %v5148
        %5200 = vst.msk [vmem:[%s645 + $0x228] sm:$0xff] %vm2662, %v5150
        %5201 = vst.msk [vmem:[%s645 + $0x230] sm:$0xff] %vm2662, %v5152
        %5202 = vst.msk [vmem:[%s645 + $0x238] sm:$0xff] %vm2662, %v5154
        %5203 = vrot.lane.b32.xlu0 %v4580, 124
        %v5204 = vpop.permute.xlu0 %5203
        %5205 = vrot.lane.b32.xlu0 %v4581, 124
        %v5206 = vpop.permute.xlu0 %5205
        %5207 = vrot.lane.b32.xlu0 %v4582, 124
        %v5208 = vpop.permute.xlu0 %5207
        %5209 = vrot.lane.b32.xlu0 %v4583, 124
        %v5210 = vpop.permute.xlu0 %5209
        %5211 = vrot.lane.b32.xlu0 %v4584, 124
        %v5212 = vpop.permute.xlu0 %5211
        %5213 = vrot.lane.b32.xlu0 %v4585, 124
        %v5214 = vpop.permute.xlu0 %5213
        %5215 = vrot.lane.b32.xlu0 %v4586, 124
        %v5216 = vpop.permute.xlu0 %5215
        %5217 = vrot.lane.b32.xlu0 %v4587, 124
        %v5218 = vpop.permute.xlu0 %5217
        %5219 = vrot.lane.b32.xlu0 %v4588, 124
        %v5220 = vpop.permute.xlu0 %5219
        %5221 = vrot.lane.b32.xlu0 %v4589, 124
        %v5222 = vpop.permute.xlu0 %5221
        %5223 = vrot.lane.b32.xlu0 %v4590, 124
        %v5224 = vpop.permute.xlu0 %5223
        %5225 = vrot.lane.b32.xlu0 %v4591, 124
        %v5226 = vpop.permute.xlu0 %5225
        %5227 = vrot.lane.b32.xlu0 %v4592, 124
        %v5228 = vpop.permute.xlu0 %5227
        %5229 = vrot.lane.b32.xlu0 %v4593, 124
        %v5230 = vpop.permute.xlu0 %5229
        %5231 = vrot.lane.b32.xlu0 %v4594, 124
        %v5232 = vpop.permute.xlu0 %5231
        %5233 = vrot.lane.b32.xlu0 %v4595, 124
        %v5234 = vpop.permute.xlu0 %5233
        %5235 = vrot.lane.b32.xlu0 %v4596, 124
        %v5236 = vpop.permute.xlu0 %5235
        %5237 = vrot.lane.b32.xlu0 %v4597, 124
        %v5238 = vpop.permute.xlu0 %5237
        %5239 = vrot.lane.b32.xlu0 %v4598, 124
        %v5240 = vpop.permute.xlu0 %5239
        %5241 = vrot.lane.b32.xlu0 %v4599, 124
        %v5242 = vpop.permute.xlu0 %5241
        %5243 = vrot.lane.b32.xlu0 %v4600, 124
        %v5244 = vpop.permute.xlu0 %5243
        %5245 = vrot.lane.b32.xlu0 %v4601, 124
        %v5246 = vpop.permute.xlu0 %5245
        %5247 = vrot.lane.b32.xlu0 %v4602, 124
        %v5248 = vpop.permute.xlu0 %5247
        %5249 = vrot.lane.b32.xlu0 %v4603, 124
        %v5250 = vpop.permute.xlu0 %5249
        %v5251 = vsel %vm4605, %v5204, 0
        %v5253 = vsel %vm4605, %v5206, 0
        %v5255 = vsel %vm4605, %v5208, 0
        %v5257 = vsel %vm4605, %v5210, 0
        %v5259 = vsel %vm4605, %v5212, 0
        %v5261 = vsel %vm4605, %v5214, 0
        %v5263 = vsel %vm4605, %v5216, 0
        %v5265 = vsel %vm4605, %v5218, 0
        %v5267 = vsel %vm4605, %v5220, 0
        %v5269 = vsel %vm4605, %v5222, 0
        %v5271 = vsel %vm4605, %v5224, 0
        %v5273 = vsel %vm4605, %v5226, 0
        %v5275 = vsel %vm4605, %v5228, 0
        %v5277 = vsel %vm4605, %v5230, 0
        %v5279 = vsel %vm4605, %v5232, 0
        %v5281 = vsel %vm4605, %v5234, 0
        %v5283 = vsel %vm4605, %v5236, 0
        %v5285 = vsel %vm4605, %v5238, 0
        %v5287 = vsel %vm4605, %v5240, 0
        %v5289 = vsel %vm4605, %v5242, 0
        %v5291 = vsel %vm4605, %v5244, 0
        %v5293 = vsel %vm4605, %v5246, 0
        %v5295 = vsel %vm4605, %v5248, 0
        %v5297 = vsel %vm4605, %v5250, 0
        %5299 = vmatprep.subr.mxu0 0.0
        %5300 = vmatpush1.msra.mxu0 %v4680
        %5301 = vmatprep.subr.mxu0 0.0
        %5302 = vmatpush1.msra.mxu0 0.0
        %5303 = vmatprep.subr.mxu0 0.0
        %5304 = vmatpush1.msra.mxu0 0.0
        %5305 = vmatprep.subr.mxu0 0.0
        %5306 = vmatpush1.msra.mxu0 0.0
        %5307 = vmatprep.subr.mxu0 0.0
        %5308 = vmatpush1.msra.mxu0 0.0
        %5309 = vmatprep.subr.mxu0 0.0
        %5310 = vmatpush1.msra.mxu0 0.0
        %5311 = vmatprep.subr.mxu0 0.0
        %5312 = vmatpush1.msra.mxu0 0.0
        %5313 = vmatprep.subr.mxu0 0.0
        %5314 = vmatpush1.msra.mxu0 0.0
        %5315 = vmatprep.subr.mxu0 0.0
        %5316 = vmatpush1.msra.mxu0 0.0
        %5317 = vmatprep.subr.mxu0 0.0
        %5318 = vmatpush1.msra.mxu0 0.0
        %5319 = vmatprep.subr.mxu0 0.0
        %5320 = vmatpush1.msra.mxu0 0.0
        %5321 = vmatprep.subr.mxu0 0.0
        %5322 = vmatpush1.msra.mxu0 0.0
        %5323 = vmatprep.subr.mxu0 0.0
        %5324 = vmatpush1.msra.mxu0 0.0
        %5325 = vmatprep.subr.mxu0 0.0
        %5326 = vmatpush1.msra.mxu0 0.0
        %5327 = vmatprep.subr.mxu0 0.0
        %5328 = vmatpush1.msra.mxu0 0.0
        %5329 = vmatprep.subr.mxu0 0.0
        %5330 = vmatpush1.msra.mxu0 0.0
        %5331 = vmatprep.subr.mxu0 0.0
        %5332 = vmatpush1.msra.mxu0 0.0
        %5333 = vmatprep.subr.mxu0 0.0
        %5334 = vmatpush1.msra.mxu0 0.0
        %5335 = vmatprep.subr.mxu0 0.0
        %5336 = vmatpush1.msra.mxu0 0.0
        %5337 = vmatprep.subr.mxu0 0.0
        %5338 = vmatpush1.msra.mxu0 0.0
        %5339 = vmatprep.subr.mxu0 0.0
        %5340 = vmatpush1.msra.mxu0 0.0
        %5341 = vmatprep.subr.mxu0 0.0
        %5342 = vmatpush1.msra.mxu0 0.0
        %5343 = vmatprep.subr.mxu0 0.0
        %5344 = vmatpush1.msra.mxu0 0.0
        %5345 = vmatprep.subr.mxu0 0.0
        %5346 = vmatpush1.msra.mxu0 0.0
        %5347 = vmatprep.subr.mxu0 0.0
        %5348 = vmatpush1.msra.mxu0 0.0
        %5349 = vmatprep.subr.mxu0 0.0
        %5350 = vmatpush1.msra.mxu0 0.0
        %5351 = vmatprep.subr.mxu0 0.0
        %5352 = vmatpush1.msra.mxu0 0.0
        %5353 = vmatprep.subr.mxu0 0.0
        %5354 = vmatpush1.msra.mxu0 0.0
        %5355 = vmatprep.subr.mxu0 0.0
        %5356 = vmatpush1.msra.mxu0 0.0
        %5357 = vmatprep.subr.mxu0 0.0
        %5358 = vmatpush1.msra.mxu0 0.0
        %5359 = vmatprep.subr.mxu0 0.0
        %5360 = vmatpush1.msra.mxu0 0.0
        %5361 = vmatprep.subr.mxu0 0.0
        %5362 = vmatpush1.msra.mxu0 0.0
        %5363 = vmatprep.mubr.f32.mxu0 0.0
        %5364 = vmatmul.mubr.f32.gmra.mrb[0].mxu0 %v5251
        %v5365 = vpop.f32.mrb[0].mxu0
        %v5366 = vadd.f32 0.0, %v5365
        %v5367 = vpop.f32.mrb[0].mxu0
        %5368 = vmatprep.mubr.f32.mxu0 0.0
        %5369 = vmatmul.mubr.f32.gmra.mrb[0].mxu0 %v5253
        %v5370 = vpop.f32.mrb[0].mxu0
        %v5371 = vadd.f32 0.0, %v5370
        %v5372 = vpop.f32.mrb[0].mxu0
        %5373 = vmatprep.mubr.f32.mxu0 0.0
        %5374 = vmatmul.mubr.f32.gmra.mrb[0].mxu0 %v5255
        %v5375 = vpop.f32.mrb[0].mxu0
        %v5376 = vadd.f32 0.0, %v5375
        %v5377 = vpop.f32.mrb[0].mxu0
        %5378 = vmatprep.mubr.f32.mxu0 0.0
        %5379 = vmatmul.mubr.f32.gmra.mrb[0].mxu0 %v5257
        %v5380 = vpop.f32.mrb[0].mxu0
        %v5381 = vadd.f32 0.0, %v5380
        %v5382 = vpop.f32.mrb[0].mxu0
        %5383 = vmatprep.mubr.f32.mxu0 0.0
        %5384 = vmatmul.mubr.f32.gmra.mrb[0].mxu0 %v5259
        %v5385 = vpop.f32.mrb[0].mxu0
        %v5386 = vadd.f32 0.0, %v5385
        %v5387 = vpop.f32.mrb[0].mxu0
        %5388 = vmatprep.mubr.f32.mxu0 0.0
        %5389 = vmatmul.mubr.f32.gmra.mrb[0].mxu0 %v5261
        %v5390 = vpop.f32.mrb[0].mxu0
        %v5391 = vadd.f32 0.0, %v5390
        %v5392 = vpop.f32.mrb[0].mxu0
        %5393 = vmatprep.mubr.f32.mxu0 0.0
        %5394 = vmatmul.mubr.f32.gmra.mrb[0].mxu0 %v5263
        %v5395 = vpop.f32.mrb[0].mxu0
        %v5396 = vadd.f32 0.0, %v5395
        %v5397 = vpop.f32.mrb[0].mxu0
        %5398 = vmatprep.mubr.f32.mxu0 0.0
        %5399 = vmatmul.mubr.f32.gmra.mrb[0].mxu0 %v5265
        %v5400 = vpop.f32.mrb[0].mxu0
        %v5401 = vadd.f32 0.0, %v5400
        %v5402 = vpop.f32.mrb[0].mxu0
        %5403 = vmatprep.mubr.f32.mxu0 0.0
        %5404 = vmatmul.mubr.f32.gmra.mrb[0].mxu0 %v5267
        %v5405 = vpop.f32.mrb[0].mxu0
        %v5406 = vadd.f32 0.0, %v5405
        %v5407 = vpop.f32.mrb[0].mxu0
        %5408 = vmatprep.mubr.f32.mxu0 0.0
        %5409 = vmatmul.mubr.f32.gmra.mrb[0].mxu0 %v5269
        %v5410 = vpop.f32.mrb[0].mxu0
        %v5411 = vadd.f32 0.0, %v5410
        %v5412 = vpop.f32.mrb[0].mxu0
        %5413 = vmatprep.mubr.f32.mxu0 0.0
        %5414 = vmatmul.mubr.f32.gmra.mrb[0].mxu0 %v5271
        %v5415 = vpop.f32.mrb[0].mxu0
        %v5416 = vadd.f32 0.0, %v5415
        %v5417 = vpop.f32.mrb[0].mxu0
        %5418 = vmatprep.mubr.f32.mxu0 0.0
        %5419 = vmatmul.mubr.f32.gmra.mrb[0].mxu0 %v5273
        %v5420 = vpop.f32.mrb[0].mxu0
        %v5421 = vadd.f32 0.0, %v5420
        %v5422 = vpop.f32.mrb[0].mxu0
        %5423 = vmatprep.mubr.f32.mxu0 0.0
        %5424 = vmatmul.mubr.f32.gmra.mrb[0].mxu0 %v5275
        %v5425 = vpop.f32.mrb[0].mxu0
        %v5426 = vadd.f32 0.0, %v5425
        %v5427 = vpop.f32.mrb[0].mxu0
        %5428 = vmatprep.mubr.f32.mxu0 0.0
        %5429 = vmatmul.mubr.f32.gmra.mrb[0].mxu0 %v5277
        %v5430 = vpop.f32.mrb[0].mxu0
        %v5431 = vadd.f32 0.0, %v5430
        %v5432 = vpop.f32.mrb[0].mxu0
        %5433 = vmatprep.mubr.f32.mxu0 0.0
        %5434 = vmatmul.mubr.f32.gmra.mrb[0].mxu0 %v5279
        %v5435 = vpop.f32.mrb[0].mxu0
        %v5436 = vadd.f32 0.0, %v5435
        %v5437 = vpop.f32.mrb[0].mxu0
        %5438 = vmatprep.mubr.f32.mxu0 0.0
        %5439 = vmatmul.mubr.f32.gmra.mrb[0].mxu0 %v5281
        %v5440 = vpop.f32.mrb[0].mxu0
        %v5441 = vadd.f32 0.0, %v5440
        %v5442 = vpop.f32.mrb[0].mxu0
        %5443 = vmatprep.mubr.f32.mxu0 0.0
        %5444 = vmatmul.mubr.f32.gmra.mrb[0].mxu0 %v5283
        %v5445 = vpop.f32.mrb[0].mxu0
        %v5446 = vadd.f32 0.0, %v5445
        %v5447 = vpop.f32.mrb[0].mxu0
        %5448 = vmatprep.mubr.f32.mxu0 0.0
        %5449 = vmatmul.mubr.f32.gmra.mrb[0].mxu0 %v5285
        %v5450 = vpop.f32.mrb[0].mxu0
        %v5451 = vadd.f32 0.0, %v5450
        %v5452 = vpop.f32.mrb[0].mxu0
        %5453 = vmatprep.mubr.f32.mxu0 0.0
        %5454 = vmatmul.mubr.f32.gmra.mrb[0].mxu0 %v5287
        %v5455 = vpop.f32.mrb[0].mxu0
        %v5456 = vadd.f32 0.0, %v5455
        %v5457 = vpop.f32.mrb[0].mxu0
        %5458 = vmatprep.mubr.f32.mxu0 0.0
        %5459 = vmatmul.mubr.f32.gmra.mrb[0].mxu0 %v5289
        %v5460 = vpop.f32.mrb[0].mxu0
        %v5461 = vadd.f32 0.0, %v5460
        %v5462 = vpop.f32.mrb[0].mxu0
        %5463 = vmatprep.mubr.f32.mxu0 0.0
        %5464 = vmatmul.mubr.f32.gmra.mrb[0].mxu0 %v5291
        %v5465 = vpop.f32.mrb[0].mxu0
        %v5466 = vadd.f32 0.0, %v5465
        %v5467 = vpop.f32.mrb[0].mxu0
        %5468 = vmatprep.mubr.f32.mxu0 0.0
        %5469 = vmatmul.mubr.f32.gmra.mrb[0].mxu0 %v5293
        %v5470 = vpop.f32.mrb[0].mxu0
        %v5471 = vadd.f32 0.0, %v5470
        %v5472 = vpop.f32.mrb[0].mxu0
        %5473 = vmatprep.mubr.f32.mxu0 0.0
        %5474 = vmatmul.mubr.f32.gmra.mrb[0].mxu0 %v5295
        %v5475 = vpop.f32.mrb[0].mxu0
        %v5476 = vadd.f32 0.0, %v5475
        %v5477 = vpop.f32.mrb[0].mxu0
        %5478 = vmatprep.mubr.f32.mxu0 0.0
        %5479 = vmatmul.mubr.f32.gmra.mrb[0].mxu0 %v5297
        %v5480 = vpop.f32.mrb[0].mxu0
        %v5481 = vadd.f32 0.0, %v5480
        %v5482 = vpop.f32.mrb[0].mxu0
        %5483 = vdwg.mxu0
        %5508 = vrot.lane.b32.xlu0 %v5366, 64
        %v5509 = vpop.permute.xlu0 %5508
        %5510 = vrot.lane.b32.xlu0 %v5371, 64
        %v5511 = vpop.permute.xlu0 %5510
        %5512 = vrot.lane.b32.xlu0 %v5376, 64
        %v5513 = vpop.permute.xlu0 %5512
        %5514 = vrot.lane.b32.xlu0 %v5381, 64
        %v5515 = vpop.permute.xlu0 %5514
        %5516 = vrot.lane.b32.xlu0 %v5386, 64
        %v5517 = vpop.permute.xlu0 %5516
        %5518 = vrot.lane.b32.xlu0 %v5391, 64
        %v5519 = vpop.permute.xlu0 %5518
        %5520 = vrot.lane.b32.xlu0 %v5396, 64
        %v5521 = vpop.permute.xlu0 %5520
        %5522 = vrot.lane.b32.xlu0 %v5401, 64
        %v5523 = vpop.permute.xlu0 %5522
        %5524 = vrot.lane.b32.xlu0 %v5406, 64
        %v5525 = vpop.permute.xlu0 %5524
        %5526 = vrot.lane.b32.xlu0 %v5411, 64
        %v5527 = vpop.permute.xlu0 %5526
        %5528 = vrot.lane.b32.xlu0 %v5416, 64
        %v5529 = vpop.permute.xlu0 %5528
        %5530 = vrot.lane.b32.xlu0 %v5421, 64
        %v5531 = vpop.permute.xlu0 %5530
        %5532 = vrot.lane.b32.xlu0 %v5426, 64
        %v5533 = vpop.permute.xlu0 %5532
        %5534 = vrot.lane.b32.xlu0 %v5431, 64
        %v5535 = vpop.permute.xlu0 %5534
        %5536 = vrot.lane.b32.xlu0 %v5436, 64
        %v5537 = vpop.permute.xlu0 %5536
        %5538 = vrot.lane.b32.xlu0 %v5441, 64
        %v5539 = vpop.permute.xlu0 %5538
        %5540 = vrot.lane.b32.xlu0 %v5446, 64
        %v5541 = vpop.permute.xlu0 %5540
        %5542 = vrot.lane.b32.xlu0 %v5451, 64
        %v5543 = vpop.permute.xlu0 %5542
        %5544 = vrot.lane.b32.xlu0 %v5456, 64
        %v5545 = vpop.permute.xlu0 %5544
        %5546 = vrot.lane.b32.xlu0 %v5461, 64
        %v5547 = vpop.permute.xlu0 %5546
        %5548 = vrot.lane.b32.xlu0 %v5466, 64
        %v5549 = vpop.permute.xlu0 %5548
        %5550 = vrot.lane.b32.xlu0 %v5471, 64
        %v5551 = vpop.permute.xlu0 %5550
        %5552 = vrot.lane.b32.xlu0 %v5476, 64
        %v5553 = vpop.permute.xlu0 %5552
        %5554 = vrot.lane.b32.xlu0 %v5481, 64
        %v5555 = vpop.permute.xlu0 %5554
        %5580 = vst.msk [vmem:[%s645 + $0x180] sm:$0xff] %vm3064, %v5509
        %5581 = vst.msk [vmem:[%s645 + $0x188] sm:$0xff] %vm3064, %v5511
        %5582 = vst.msk [vmem:[%s645 + $0x190] sm:$0xff] %vm3064, %v5513
        %5583 = vst.msk [vmem:[%s645 + $0x198] sm:$0xff] %vm3064, %v5515
        %5584 = vst.msk [vmem:[%s645 + $0x1a0] sm:$0xff] %vm3064, %v5517
        %5585 = vst.msk [vmem:[%s645 + $0x1a8] sm:$0xff] %vm3064, %v5519
        %5586 = vst.msk [vmem:[%s645 + $0x1b0] sm:$0xff] %vm3064, %v5521
        %5587 = vst.msk [vmem:[%s645 + $0x1b8] sm:$0xff] %vm3064, %v5523
        %5588 = vst.msk [vmem:[%s645 + $0x1c0] sm:$0xff] %vm3064, %v5525
        %5589 = vst.msk [vmem:[%s645 + $0x1c8] sm:$0xff] %vm3064, %v5527
        %5590 = vst.msk [vmem:[%s645 + $0x1d0] sm:$0xff] %vm3064, %v5529
        %5591 = vst.msk [vmem:[%s645 + $0x1d8] sm:$0xff] %vm3064, %v5531
        %5592 = vst.msk [vmem:[%s645 + $0x1e0] sm:$0xff] %vm3064, %v5533
        %5593 = vst.msk [vmem:[%s645 + $0x1e8] sm:$0xff] %vm3064, %v5535
        %5594 = vst.msk [vmem:[%s645 + $0x1f0] sm:$0xff] %vm3064, %v5537
        %5595 = vst.msk [vmem:[%s645 + $0x1f8] sm:$0xff] %vm3064, %v5539
        %5596 = vst.msk [vmem:[%s645 + $0x200] sm:$0xff] %vm3064, %v5541
        %5597 = vst.msk [vmem:[%s645 + $0x208] sm:$0xff] %vm3064, %v5543
        %5598 = vst.msk [vmem:[%s645 + $0x210] sm:$0xff] %vm3064, %v5545
        %5599 = vst.msk [vmem:[%s645 + $0x218] sm:$0xff] %vm3064, %v5547
        %5600 = vst.msk [vmem:[%s645 + $0x220] sm:$0xff] %vm3064, %v5549
        %5601 = vst.msk [vmem:[%s645 + $0x228] sm:$0xff] %vm3064, %v5551
        %5602 = vst.msk [vmem:[%s645 + $0x230] sm:$0xff] %vm3064, %v5553
        %5603 = vst.msk [vmem:[%s645 + $0x238] sm:$0xff] %vm3064, %v5555
        %5604 = vrot.lane.b32.xlu0 %v5366, 80
        %v5605 = vpop.permute.xlu0 %5604
        %5606 = vrot.lane.b32.xlu0 %v5371, 80
        %v5607 = vpop.permute.xlu0 %5606
        %5608 = vrot.lane.b32.xlu0 %v5376, 80
        %v5609 = vpop.permute.xlu0 %5608
        %5610 = vrot.lane.b32.xlu0 %v5381, 80
        %v5611 = vpop.permute.xlu0 %5610
        %5612 = vrot.lane.b32.xlu0 %v5386, 80
        %v5613 = vpop.permute.xlu0 %5612
        %5614 = vrot.lane.b32.xlu0 %v5391, 80
        %v5615 = vpop.permute.xlu0 %5614
        %5616 = vrot.lane.b32.xlu0 %v5396, 80
        %v5617 = vpop.permute.xlu0 %5616
        %5618 = vrot.lane.b32.xlu0 %v5401, 80
        %v5619 = vpop.permute.xlu0 %5618
        %5620 = vrot.lane.b32.xlu0 %v5406, 80
        %v5621 = vpop.permute.xlu0 %5620
        %5622 = vrot.lane.b32.xlu0 %v5411, 80
        %v5623 = vpop.permute.xlu0 %5622
        %5624 = vrot.lane.b32.xlu0 %v5416, 80
        %v5625 = vpop.permute.xlu0 %5624
        %5626 = vrot.lane.b32.xlu0 %v5421, 80
        %v5627 = vpop.permute.xlu0 %5626
        %5628 = vrot.lane.b32.xlu0 %v5426, 80
        %v5629 = vpop.permute.xlu0 %5628
        %5630 = vrot.lane.b32.xlu0 %v5431, 80
        %v5631 = vpop.permute.xlu0 %5630
        %5632 = vrot.lane.b32.xlu0 %v5436, 80
        %v5633 = vpop.permute.xlu0 %5632
        %5634 = vrot.lane.b32.xlu0 %v5441, 80
        %v5635 = vpop.permute.xlu0 %5634
        %5636 = vrot.lane.b32.xlu0 %v5446, 80
        %v5637 = vpop.permute.xlu0 %5636
        %5638 = vrot.lane.b32.xlu0 %v5451, 80
        %v5639 = vpop.permute.xlu0 %5638
        %5640 = vrot.lane.b32.xlu0 %v5456, 80
        %v5641 = vpop.permute.xlu0 %5640
        %5642 = vrot.lane.b32.xlu0 %v5461, 80
        %v5643 = vpop.permute.xlu0 %5642
        %5644 = vrot.lane.b32.xlu0 %v5466, 80
        %v5645 = vpop.permute.xlu0 %5644
        %5646 = vrot.lane.b32.xlu0 %v5471, 80
        %v5647 = vpop.permute.xlu0 %5646
        %5648 = vrot.lane.b32.xlu0 %v5476, 80
        %v5649 = vpop.permute.xlu0 %5648
        %5650 = vrot.lane.b32.xlu0 %v5481, 80
        %v5651 = vpop.permute.xlu0 %5650
        %5676 = vst.msk [vmem:[%s645 + $0x180] sm:$0xff] %vm3161, %v5605
        %5677 = vst.msk [vmem:[%s645 + $0x188] sm:$0xff] %vm3161, %v5607
        %5678 = vst.msk [vmem:[%s645 + $0x190] sm:$0xff] %vm3161, %v5609
        %5679 = vst.msk [vmem:[%s645 + $0x198] sm:$0xff] %vm3161, %v5611
        %5680 = vst.msk [vmem:[%s645 + $0x1a0] sm:$0xff] %vm3161, %v5613
        %5681 = vst.msk [vmem:[%s645 + $0x1a8] sm:$0xff] %vm3161, %v5615
        %5682 = vst.msk [vmem:[%s645 + $0x1b0] sm:$0xff] %vm3161, %v5617
        %5683 = vst.msk [vmem:[%s645 + $0x1b8] sm:$0xff] %vm3161, %v5619
        %5684 = vst.msk [vmem:[%s645 + $0x1c0] sm:$0xff] %vm3161, %v5621
        %5685 = vst.msk [vmem:[%s645 + $0x1c8] sm:$0xff] %vm3161, %v5623
        %5686 = vst.msk [vmem:[%s645 + $0x1d0] sm:$0xff] %vm3161, %v5625
        %5687 = vst.msk [vmem:[%s645 + $0x1d8] sm:$0xff] %vm3161, %v5627
        %5688 = vst.msk [vmem:[%s645 + $0x1e0] sm:$0xff] %vm3161, %v5629
        %5689 = vst.msk [vmem:[%s645 + $0x1e8] sm:$0xff] %vm3161, %v5631
        %5690 = vst.msk [vmem:[%s645 + $0x1f0] sm:$0xff] %vm3161, %v5633
        %5691 = vst.msk [vmem:[%s645 + $0x1f8] sm:$0xff] %vm3161, %v5635
        %5692 = vst.msk [vmem:[%s645 + $0x200] sm:$0xff] %vm3161, %v5637
        %5693 = vst.msk [vmem:[%s645 + $0x208] sm:$0xff] %vm3161, %v5639
        %5694 = vst.msk [vmem:[%s645 + $0x210] sm:$0xff] %vm3161, %v5641
        %5695 = vst.msk [vmem:[%s645 + $0x218] sm:$0xff] %vm3161, %v5643
        %5696 = vst.msk [vmem:[%s645 + $0x220] sm:$0xff] %vm3161, %v5645
        %5697 = vst.msk [vmem:[%s645 + $0x228] sm:$0xff] %vm3161, %v5647
        %5698 = vst.msk [vmem:[%s645 + $0x230] sm:$0xff] %vm3161, %v5649
        %5699 = vst.msk [vmem:[%s645 + $0x238] sm:$0xff] %vm3161, %v5651
        %5700 = vrot.lane.b32.xlu0 %v5366, 96
        %v5701 = vpop.permute.xlu0 %5700
        %5702 = vrot.lane.b32.xlu0 %v5371, 96
        %v5703 = vpop.permute.xlu0 %5702
        %5704 = vrot.lane.b32.xlu0 %v5376, 96
        %v5705 = vpop.permute.xlu0 %5704
        %5706 = vrot.lane.b32.xlu0 %v5381, 96
        %v5707 = vpop.permute.xlu0 %5706
        %5708 = vrot.lane.b32.xlu0 %v5386, 96
        %v5709 = vpop.permute.xlu0 %5708
        %5710 = vrot.lane.b32.xlu0 %v5391, 96
        %v5711 = vpop.permute.xlu0 %5710
        %5712 = vrot.lane.b32.xlu0 %v5396, 96
        %v5713 = vpop.permute.xlu0 %5712
        %5714 = vrot.lane.b32.xlu0 %v5401, 96
        %v5715 = vpop.permute.xlu0 %5714
        %5716 = vrot.lane.b32.xlu0 %v5406, 96
        %v5717 = vpop.permute.xlu0 %5716
        %5718 = vrot.lane.b32.xlu0 %v5411, 96
        %v5719 = vpop.permute.xlu0 %5718
        %5720 = vrot.lane.b32.xlu0 %v5416, 96
        %v5721 = vpop.permute.xlu0 %5720
        %5722 = vrot.lane.b32.xlu0 %v5421, 96
        %v5723 = vpop.permute.xlu0 %5722
        %5724 = vrot.lane.b32.xlu0 %v5426, 96
        %v5725 = vpop.permute.xlu0 %5724
        %5726 = vrot.lane.b32.xlu0 %v5431, 96
        %v5727 = vpop.permute.xlu0 %5726
        %5728 = vrot.lane.b32.xlu0 %v5436, 96
        %v5729 = vpop.permute.xlu0 %5728
        %5730 = vrot.lane.b32.xlu0 %v5441, 96
        %v5731 = vpop.permute.xlu0 %5730
        %5732 = vrot.lane.b32.xlu0 %v5446, 96
        %v5733 = vpop.permute.xlu0 %5732
        %5734 = vrot.lane.b32.xlu0 %v5451, 96
        %v5735 = vpop.permute.xlu0 %5734
        %5736 = vrot.lane.b32.xlu0 %v5456, 96
        %v5737 = vpop.permute.xlu0 %5736
        %5738 = vrot.lane.b32.xlu0 %v5461, 96
        %v5739 = vpop.permute.xlu0 %5738
        %5740 = vrot.lane.b32.xlu0 %v5466, 96
        %v5741 = vpop.permute.xlu0 %5740
        %5742 = vrot.lane.b32.xlu0 %v5471, 96
        %v5743 = vpop.permute.xlu0 %5742
        %5744 = vrot.lane.b32.xlu0 %v5476, 96
        %v5745 = vpop.permute.xlu0 %5744
        %5746 = vrot.lane.b32.xlu0 %v5481, 96
        %v5747 = vpop.permute.xlu0 %5746
        %5772 = vst.msk [vmem:[%s645 + $0x180] sm:$0xff] %vm3563, %v5701
        %5773 = vst.msk [vmem:[%s645 + $0x188] sm:$0xff] %vm3563, %v5703
        %5774 = vst.msk [vmem:[%s645 + $0x190] sm:$0xff] %vm3563, %v5705
        %5775 = vst.msk [vmem:[%s645 + $0x198] sm:$0xff] %vm3563, %v5707
        %5776 = vst.msk [vmem:[%s645 + $0x1a0] sm:$0xff] %vm3563, %v5709
        %5777 = vst.msk [vmem:[%s645 + $0x1a8] sm:$0xff] %vm3563, %v5711
        %5778 = vst.msk [vmem:[%s645 + $0x1b0] sm:$0xff] %vm3563, %v5713
        %5779 = vst.msk [vmem:[%s645 + $0x1b8] sm:$0xff] %vm3563, %v5715
        %5780 = vst.msk [vmem:[%s645 + $0x1c0] sm:$0xff] %vm3563, %v5717
        %5781 = vst.msk [vmem:[%s645 + $0x1c8] sm:$0xff] %vm3563, %v5719
        %5782 = vst.msk [vmem:[%s645 + $0x1d0] sm:$0xff] %vm3563, %v5721
        %5783 = vst.msk [vmem:[%s645 + $0x1d8] sm:$0xff] %vm3563, %v5723
        %5784 = vst.msk [vmem:[%s645 + $0x1e0] sm:$0xff] %vm3563, %v5725
        %5785 = vst.msk [vmem:[%s645 + $0x1e8] sm:$0xff] %vm3563, %v5727
        %5786 = vst.msk [vmem:[%s645 + $0x1f0] sm:$0xff] %vm3563, %v5729
        %5787 = vst.msk [vmem:[%s645 + $0x1f8] sm:$0xff] %vm3563, %v5731
        %5788 = vst.msk [vmem:[%s645 + $0x200] sm:$0xff] %vm3563, %v5733
        %5789 = vst.msk [vmem:[%s645 + $0x208] sm:$0xff] %vm3563, %v5735
        %5790 = vst.msk [vmem:[%s645 + $0x210] sm:$0xff] %vm3563, %v5737
        %5791 = vst.msk [vmem:[%s645 + $0x218] sm:$0xff] %vm3563, %v5739
        %5792 = vst.msk [vmem:[%s645 + $0x220] sm:$0xff] %vm3563, %v5741
        %5793 = vst.msk [vmem:[%s645 + $0x228] sm:$0xff] %vm3563, %v5743
        %5794 = vst.msk [vmem:[%s645 + $0x230] sm:$0xff] %vm3563, %v5745
        %5795 = vst.msk [vmem:[%s645 + $0x238] sm:$0xff] %vm3563, %v5747
        %5796 = vrot.lane.b32.xlu0 %v5366, 112
        %v5797 = vpop.permute.xlu0 %5796
        %5798 = vrot.lane.b32.xlu0 %v5371, 112
        %v5799 = vpop.permute.xlu0 %5798
        %5800 = vrot.lane.b32.xlu0 %v5376, 112
        %v5801 = vpop.permute.xlu0 %5800
        %5802 = vrot.lane.b32.xlu0 %v5381, 112
        %v5803 = vpop.permute.xlu0 %5802
        %5804 = vrot.lane.b32.xlu0 %v5386, 112
        %v5805 = vpop.permute.xlu0 %5804
        %5806 = vrot.lane.b32.xlu0 %v5391, 112
        %v5807 = vpop.permute.xlu0 %5806
        %5808 = vrot.lane.b32.xlu0 %v5396, 112
        %v5809 = vpop.permute.xlu0 %5808
        %5810 = vrot.lane.b32.xlu0 %v5401, 112
        %v5811 = vpop.permute.xlu0 %5810
        %5812 = vrot.lane.b32.xlu0 %v5406, 112
        %v5813 = vpop.permute.xlu0 %5812
        %5814 = vrot.lane.b32.xlu0 %v5411, 112
        %v5815 = vpop.permute.xlu0 %5814
        %5816 = vrot.lane.b32.xlu0 %v5416, 112
        %v5817 = vpop.permute.xlu0 %5816
        %5818 = vrot.lane.b32.xlu0 %v5421, 112
        %v5819 = vpop.permute.xlu0 %5818
        %5820 = vrot.lane.b32.xlu0 %v5426, 112
        %v5821 = vpop.permute.xlu0 %5820
        %5822 = vrot.lane.b32.xlu0 %v5431, 112
        %v5823 = vpop.permute.xlu0 %5822
        %5824 = vrot.lane.b32.xlu0 %v5436, 112
        %v5825 = vpop.permute.xlu0 %5824
        %5826 = vrot.lane.b32.xlu0 %v5441, 112
        %v5827 = vpop.permute.xlu0 %5826
        %5828 = vrot.lane.b32.xlu0 %v5446, 112
        %v5829 = vpop.permute.xlu0 %5828
        %5830 = vrot.lane.b32.xlu0 %v5451, 112
        %v5831 = vpop.permute.xlu0 %5830
        %5832 = vrot.lane.b32.xlu0 %v5456, 112
        %v5833 = vpop.permute.xlu0 %5832
        %5834 = vrot.lane.b32.xlu0 %v5461, 112
        %v5835 = vpop.permute.xlu0 %5834
        %5836 = vrot.lane.b32.xlu0 %v5466, 112
        %v5837 = vpop.permute.xlu0 %5836
        %5838 = vrot.lane.b32.xlu0 %v5471, 112
        %v5839 = vpop.permute.xlu0 %5838
        %5840 = vrot.lane.b32.xlu0 %v5476, 112
        %v5841 = vpop.permute.xlu0 %5840
        %5842 = vrot.lane.b32.xlu0 %v5481, 112
        %v5843 = vpop.permute.xlu0 %5842
        %5868 = vst.msk [vmem:[%s645 + $0x180] sm:$0xff] %vm3660, %v5797
        %5869 = vst.msk [vmem:[%s645 + $0x188] sm:$0xff] %vm3660, %v5799
        %5870 = vst.msk [vmem:[%s645 + $0x190] sm:$0xff] %vm3660, %v5801
        %5871 = vst.msk [vmem:[%s645 + $0x198] sm:$0xff] %vm3660, %v5803
        %5872 = vst.msk [vmem:[%s645 + $0x1a0] sm:$0xff] %vm3660, %v5805
        %5873 = vst.msk [vmem:[%s645 + $0x1a8] sm:$0xff] %vm3660, %v5807
        %5874 = vst.msk [vmem:[%s645 + $0x1b0] sm:$0xff] %vm3660, %v5809
        %5875 = vst.msk [vmem:[%s645 + $0x1b8] sm:$0xff] %vm3660, %v5811
        %5876 = vst.msk [vmem:[%s645 + $0x1c0] sm:$0xff] %vm3660, %v5813
        %5877 = vst.msk [vmem:[%s645 + $0x1c8] sm:$0xff] %vm3660, %v5815
        %5878 = vst.msk [vmem:[%s645 + $0x1d0] sm:$0xff] %vm3660, %v5817
        %5879 = vst.msk [vmem:[%s645 + $0x1d8] sm:$0xff] %vm3660, %v5819
        %5880 = vst.msk [vmem:[%s645 + $0x1e0] sm:$0xff] %vm3660, %v5821
        %5881 = vst.msk [vmem:[%s645 + $0x1e8] sm:$0xff] %vm3660, %v5823
        %5882 = vst.msk [vmem:[%s645 + $0x1f0] sm:$0xff] %vm3660, %v5825
        %5883 = vst.msk [vmem:[%s645 + $0x1f8] sm:$0xff] %vm3660, %v5827
        %5884 = vst.msk [vmem:[%s645 + $0x200] sm:$0xff] %vm3660, %v5829
        %5885 = vst.msk [vmem:[%s645 + $0x208] sm:$0xff] %vm3660, %v5831
        %5886 = vst.msk [vmem:[%s645 + $0x210] sm:$0xff] %vm3660, %v5833
        %5887 = vst.msk [vmem:[%s645 + $0x218] sm:$0xff] %vm3660, %v5835
        %5888 = vst.msk [vmem:[%s645 + $0x220] sm:$0xff] %vm3660, %v5837
        %5889 = vst.msk [vmem:[%s645 + $0x228] sm:$0xff] %vm3660, %v5839
        %5890 = vst.msk [vmem:[%s645 + $0x230] sm:$0xff] %vm3660, %v5841
        %5891 = vst.msk [vmem:[%s645 + $0x238] sm:$0xff] %vm3660, %v5843
        // Predicated region
        $region127: #{neck_forward.1} parent=113 // pred_check
          %p5892 = pneg %p1126
        $region128: #{neck_forward.1} parent=113 // pred_check_branch
          %5894 = sbr.rel (%p5892) target = $region130
        $region129: #{neck_forward.1} parent=113 // pred_region
          %v5895 = vld [vmem:[%s660] sm:$0xff]
          %v5896 = vld [vmem:[%s660 + $0x8] sm:$0xff]
          %v5897 = vld [vmem:[%s660 + $0x10] sm:$0xff]
          %v5898 = vld [vmem:[%s660 + $0x18] sm:$0xff]
          %v5899 = vld [vmem:[%s660 + $0x20] sm:$0xff]
          %v5900 = vld [vmem:[%s660 + $0x28] sm:$0xff]
          %v5901 = vld [vmem:[%s660 + $0x30] sm:$0xff]
          %v5902 = vld [vmem:[%s660 + $0x38] sm:$0xff]
          %v5903 = vld [vmem:[%s660 + $0x40] sm:$0xff]
          %v5904 = vld [vmem:[%s660 + $0x48] sm:$0xff]
          %v5905 = vld [vmem:[%s660 + $0x50] sm:$0xff]
          %v5906 = vld [vmem:[%s660 + $0x58] sm:$0xff]
          %v5907 = vld [vmem:[%s660 + $0x60] sm:$0xff]
          %v5908 = vld [vmem:[%s660 + $0x68] sm:$0xff]
          %v5909 = vld [vmem:[%s660 + $0x70] sm:$0xff]
          %v5910 = vld [vmem:[%s660 + $0x78] sm:$0xff]
          %v5911 = vld [vmem:[%s660 + $0x80] sm:$0xff]
          %v5912 = vld [vmem:[%s660 + $0x88] sm:$0xff]
          %v5913 = vld [vmem:[%s660 + $0x90] sm:$0xff]
          %v5914 = vld [vmem:[%s660 + $0x98] sm:$0xff]
          %v5915 = vld [vmem:[%s660 + $0xa0] sm:$0xff]
          %v5916 = vld [vmem:[%s660 + $0xa8] sm:$0xff]
          %v5917 = vld [vmem:[%s660 + $0xb0] sm:$0xff]
          %v5918 = vld [vmem:[%s660 + $0xb8] sm:$0xff]
          %v5919 = vld [vmem:[%s660 + $0xc0] sm:$0xff]
          %v5920 = vld [vmem:[%s660 + $0xc8] sm:$0xff]
          %v5921 = vld [vmem:[%s660 + $0xd0] sm:$0xff]
          %v5922 = vld [vmem:[%s660 + $0xd8] sm:$0xff]
          %v5923 = vld [vmem:[%s660 + $0xe0] sm:$0xff]
          %v5924 = vld [vmem:[%s660 + $0xe8] sm:$0xff]
          %v5925 = vld [vmem:[%s660 + $0xf0] sm:$0xff]
          %v5926 = vld [vmem:[%s660 + $0xf8] sm:$0xff]
          %v5927 = vld [vmem:[%s660 + $0x100] sm:$0xff]
          %v5928 = vld [vmem:[%s660 + $0x108] sm:$0xff]
          %v5929 = vld [vmem:[%s660 + $0x110] sm:$0xff]
          %v5930 = vld [vmem:[%s660 + $0x118] sm:$0xff]
          %v5931 = vld [vmem:[%s660 + $0x120] sm:$0xff]
          %v5932 = vld [vmem:[%s660 + $0x128] sm:$0xff]
          %v5933 = vld [vmem:[%s660 + $0x130] sm:$0xff]
          %v5934 = vld [vmem:[%s660 + $0x138] sm:$0xff]
          %v5935 = vld [vmem:[%s660 + $0x140] sm:$0xff]
          %v5936 = vld [vmem:[%s660 + $0x148] sm:$0xff]
          %v5937 = vld [vmem:[%s660 + $0x150] sm:$0xff]
          %v5938 = vld [vmem:[%s660 + $0x158] sm:$0xff]
          %v5939 = vld [vmem:[%s660 + $0x160] sm:$0xff]
          %v5940 = vld [vmem:[%s660 + $0x168] sm:$0xff]
          %v5941 = vld [vmem:[%s660 + $0x170] sm:$0xff]
          %v5942 = vld [vmem:[%s660 + $0x178] sm:$0xff]
          %v5943 = vld [vmem:[%s660 + $0x180] sm:$0xff]
          %v5944 = vld [vmem:[%s660 + $0x188] sm:$0xff]
          %v5945 = vld [vmem:[%s660 + $0x190] sm:$0xff]
          %v5946 = vld [vmem:[%s660 + $0x198] sm:$0xff]
          %v5947 = vld [vmem:[%s660 + $0x1a0] sm:$0xff]
          %v5948 = vld [vmem:[%s660 + $0x1a8] sm:$0xff]
          %v5949 = vld [vmem:[%s660 + $0x1b0] sm:$0xff]
          %v5950 = vld [vmem:[%s660 + $0x1b8] sm:$0xff]
          %v5951 = vld [vmem:[%s660 + $0x1c0] sm:$0xff]
          %v5952 = vld [vmem:[%s660 + $0x1c8] sm:$0xff]
          %v5953 = vld [vmem:[%s660 + $0x1d0] sm:$0xff]
          %v5954 = vld [vmem:[%s660 + $0x1d8] sm:$0xff]
          %v5955 = vld [vmem:[%s660 + $0x1e0] sm:$0xff]
          %v5956 = vld [vmem:[%s660 + $0x1e8] sm:$0xff]
          %v5957 = vld [vmem:[%s660 + $0x1f0] sm:$0xff]
          %v5958 = vld [vmem:[%s660 + $0x1f8] sm:$0xff]
          %v5959 = vld [vmem:[%s660 + $0x200] sm:$0xff]
          %v5960 = vld [vmem:[%s660 + $0x208] sm:$0xff]
          %v5961 = vld [vmem:[%s660 + $0x210] sm:$0xff]
          %v5962 = vld [vmem:[%s660 + $0x218] sm:$0xff]
          %v5963 = vld [vmem:[%s660 + $0x220] sm:$0xff]
          %v5964 = vld [vmem:[%s660 + $0x228] sm:$0xff]
          %v5965 = vld [vmem:[%s660 + $0x230] sm:$0xff]
          %v5966 = vld [vmem:[%s660 + $0x238] sm:$0xff]
          %v5967 = vld [vmem:[%s660 + $0x240] sm:$0xff]
          %v5968 = vld [vmem:[%s660 + $0x248] sm:$0xff]
          %v5969 = vld [vmem:[%s660 + $0x250] sm:$0xff]
          %v5970 = vld [vmem:[%s660 + $0x258] sm:$0xff]
          %v5971 = vld [vmem:[%s660 + $0x260] sm:$0xff]
          %v5972 = vld [vmem:[%s660 + $0x268] sm:$0xff]
          %v5973 = vld [vmem:[%s660 + $0x270] sm:$0xff]
          %v5974 = vld [vmem:[%s660 + $0x278] sm:$0xff]
          %v5975 = vld [vmem:[%s660 + $0x280] sm:$0xff]
          %v5976 = vld [vmem:[%s660 + $0x288] sm:$0xff]
          %v5977 = vld [vmem:[%s660 + $0x290] sm:$0xff]
          %v5978 = vld [vmem:[%s660 + $0x298] sm:$0xff]
          %v5979 = vld [vmem:[%s660 + $0x2a0] sm:$0xff]
          %v5980 = vld [vmem:[%s660 + $0x2a8] sm:$0xff]
          %v5981 = vld [vmem:[%s660 + $0x2b0] sm:$0xff]
          %v5982 = vld [vmem:[%s660 + $0x2b8] sm:$0xff]
          %v5983 = vld [vmem:[%s660 + $0x2c0] sm:$0xff]
          %v5984 = vld [vmem:[%s660 + $0x2c8] sm:$0xff]
          %v5985 = vld [vmem:[%s660 + $0x2d0] sm:$0xff]
          %v5986 = vld [vmem:[%s660 + $0x2d8] sm:$0xff]
          %v5987 = vld [vmem:[%s660 + $0x2e0] sm:$0xff]
          %v5988 = vld [vmem:[%s660 + $0x2e8] sm:$0xff]
          %v5989 = vld [vmem:[%s660 + $0x2f0] sm:$0xff]
          %v5990 = vld [vmem:[%s660 + $0x2f8] sm:$0xff]
          %v5991 = vld [vmem:[%s660 + $0x300] sm:$0xff]
          %v5992 = vld [vmem:[%s660 + $0x308] sm:$0xff]
          %v5993 = vld [vmem:[%s660 + $0x310] sm:$0xff]
          %v5994 = vld [vmem:[%s660 + $0x318] sm:$0xff]
          %v5995 = vld [vmem:[%s660 + $0x320] sm:$0xff]
          %v5996 = vld [vmem:[%s660 + $0x328] sm:$0xff]
          %v5997 = vld [vmem:[%s660 + $0x330] sm:$0xff]
          %v5998 = vld [vmem:[%s660 + $0x338] sm:$0xff]
          %v5999 = vld [vmem:[%s660 + $0x340] sm:$0xff]
          %v6000 = vld [vmem:[%s660 + $0x348] sm:$0xff]
          %v6001 = vld [vmem:[%s660 + $0x350] sm:$0xff]
          %v6002 = vld [vmem:[%s660 + $0x358] sm:$0xff]
          %v6003 = vld [vmem:[%s660 + $0x360] sm:$0xff]
          %v6004 = vld [vmem:[%s660 + $0x368] sm:$0xff]
          %v6005 = vld [vmem:[%s660 + $0x370] sm:$0xff]
          %v6006 = vld [vmem:[%s660 + $0x378] sm:$0xff]
          %v6007 = vld [vmem:[%s660 + $0x380] sm:$0xff]
          %v6008 = vld [vmem:[%s660 + $0x388] sm:$0xff]
          %v6009 = vld [vmem:[%s660 + $0x390] sm:$0xff]
          %v6010 = vld [vmem:[%s660 + $0x398] sm:$0xff]
          %v6011 = vld [vmem:[%s660 + $0x3a0] sm:$0xff]
          %v6012 = vld [vmem:[%s660 + $0x3a8] sm:$0xff]
          %v6013 = vld [vmem:[%s660 + $0x3b0] sm:$0xff]
          %v6014 = vld [vmem:[%s660 + $0x3b8] sm:$0xff]
          %v6015 = vld [vmem:[%s660 + $0x3c0] sm:$0xff]
          %v6016 = vld [vmem:[%s660 + $0x3c8] sm:$0xff]
          %v6017 = vld [vmem:[%s660 + $0x3d0] sm:$0xff]
          %v6018 = vld [vmem:[%s660 + $0x3d8] sm:$0xff]
          %v6019 = vld [vmem:[%s660 + $0x3e0] sm:$0xff]
          %v6020 = vld [vmem:[%s660 + $0x3e8] sm:$0xff]
          %v6021 = vld [vmem:[%s660 + $0x3f0] sm:$0xff]
          %v6022 = vld [vmem:[%s660 + $0x3f8] sm:$0xff]
          %v6023 = vld [vmem:[%s7] sm:$0xff]
          %v6024 = vld [vmem:[%s7 + $0x8] sm:$0xff]
          %v6025 = vld [vmem:[%s7 + $0x10] sm:$0xff]
          %v6026 = vld [vmem:[%s7 + $0x18] sm:$0xff]
          %v6027 = vld [vmem:[%s7 + $0x20] sm:$0xff]
          %v6028 = vld [vmem:[%s7 + $0x28] sm:$0xff]
          %v6029 = vld [vmem:[%s7 + $0x30] sm:$0xff]
          %v6030 = vld [vmem:[%s7 + $0x38] sm:$0xff]
          %v6031 = vld [vmem:[%s7 + $0x40] sm:$0xff]
          %v6032 = vld [vmem:[%s7 + $0x48] sm:$0xff]
          %v6033 = vld [vmem:[%s7 + $0x50] sm:$0xff]
          %v6034 = vld [vmem:[%s7 + $0x58] sm:$0xff]
          %v6035 = vld [vmem:[%s7 + $0x60] sm:$0xff]
          %v6036 = vld [vmem:[%s7 + $0x68] sm:$0xff]
          %v6037 = vld [vmem:[%s7 + $0x70] sm:$0xff]
          %v6038 = vld [vmem:[%s7 + $0x78] sm:$0xff]
          %v6039 = vld [vmem:[%s7 + $0x80] sm:$0xff]
          %v6040 = vld [vmem:[%s7 + $0x88] sm:$0xff]
          %v6041 = vld [vmem:[%s7 + $0x90] sm:$0xff]
          %v6042 = vld [vmem:[%s7 + $0x98] sm:$0xff]
          %v6043 = vld [vmem:[%s7 + $0xa0] sm:$0xff]
          %v6044 = vld [vmem:[%s7 + $0xa8] sm:$0xff]
          %v6045 = vld [vmem:[%s7 + $0xb0] sm:$0xff]
          %v6046 = vld [vmem:[%s7 + $0xb8] sm:$0xff]
          %v6047 = vld [vmem:[%s7 + $0xc0] sm:$0xff]
          %v6048 = vld [vmem:[%s7 + $0xc8] sm:$0xff]
          %v6049 = vld [vmem:[%s7 + $0xd0] sm:$0xff]
          %v6050 = vld [vmem:[%s7 + $0xd8] sm:$0xff]
          %v6051 = vld [vmem:[%s7 + $0xe0] sm:$0xff]
          %v6052 = vld [vmem:[%s7 + $0xe8] sm:$0xff]
          %v6053 = vld [vmem:[%s7 + $0xf0] sm:$0xff]
          %v6054 = vld [vmem:[%s7 + $0xf8] sm:$0xff]
          %v6055 = vld [vmem:[%s7 + $0x100] sm:$0xff]
          %v6056 = vld [vmem:[%s7 + $0x108] sm:$0xff]
          %v6057 = vld [vmem:[%s7 + $0x110] sm:$0xff]
          %v6058 = vld [vmem:[%s7 + $0x118] sm:$0xff]
          %v6059 = vld [vmem:[%s7 + $0x120] sm:$0xff]
          %v6060 = vld [vmem:[%s7 + $0x128] sm:$0xff]
          %v6061 = vld [vmem:[%s7 + $0x130] sm:$0xff]
          %v6062 = vld [vmem:[%s7 + $0x138] sm:$0xff]
          %v6063 = vld [vmem:[%s7 + $0x140] sm:$0xff]
          %v6064 = vld [vmem:[%s7 + $0x148] sm:$0xff]
          %v6065 = vld [vmem:[%s7 + $0x150] sm:$0xff]
          %v6066 = vld [vmem:[%s7 + $0x158] sm:$0xff]
          %v6067 = vld [vmem:[%s7 + $0x160] sm:$0xff]
          %v6068 = vld [vmem:[%s7 + $0x168] sm:$0xff]
          %v6069 = vld [vmem:[%s7 + $0x170] sm:$0xff]
          %v6070 = vld [vmem:[%s7 + $0x178] sm:$0xff]
          %v6071 = vld [vmem:[%s7 + $0x180] sm:$0xff]
          %v6072 = vld [vmem:[%s7 + $0x188] sm:$0xff]
          %v6073 = vld [vmem:[%s7 + $0x190] sm:$0xff]
          %v6074 = vld [vmem:[%s7 + $0x198] sm:$0xff]
          %v6075 = vld [vmem:[%s7 + $0x1a0] sm:$0xff]
          %v6076 = vld [vmem:[%s7 + $0x1a8] sm:$0xff]
          %v6077 = vld [vmem:[%s7 + $0x1b0] sm:$0xff]
          %v6078 = vld [vmem:[%s7 + $0x1b8] sm:$0xff]
          %v6079 = vld [vmem:[%s7 + $0x1c0] sm:$0xff]
          %v6080 = vld [vmem:[%s7 + $0x1c8] sm:$0xff]
          %v6081 = vld [vmem:[%s7 + $0x1d0] sm:$0xff]
          %v6082 = vld [vmem:[%s7 + $0x1d8] sm:$0xff]
          %v6083 = vld [vmem:[%s7 + $0x1e0] sm:$0xff]
          %v6084 = vld [vmem:[%s7 + $0x1e8] sm:$0xff]
          %v6085 = vld [vmem:[%s7 + $0x1f0] sm:$0xff]
          %v6086 = vld [vmem:[%s7 + $0x1f8] sm:$0xff]
          %v6087 = vld [vmem:[%s7 + $0x200] sm:$0xff]
          %v6088 = vld [vmem:[%s7 + $0x208] sm:$0xff]
          %v6089 = vld [vmem:[%s7 + $0x210] sm:$0xff]
          %v6090 = vld [vmem:[%s7 + $0x218] sm:$0xff]
          %v6091 = vld [vmem:[%s7 + $0x220] sm:$0xff]
          %v6092 = vld [vmem:[%s7 + $0x228] sm:$0xff]
          %v6093 = vld [vmem:[%s7 + $0x230] sm:$0xff]
          %v6094 = vld [vmem:[%s7 + $0x238] sm:$0xff]
          %v6095 = vld [vmem:[%s7 + $0x240] sm:$0xff]
          %v6096 = vld [vmem:[%s7 + $0x248] sm:$0xff]
          %v6097 = vld [vmem:[%s7 + $0x250] sm:$0xff]
          %v6098 = vld [vmem:[%s7 + $0x258] sm:$0xff]
          %v6099 = vld [vmem:[%s7 + $0x260] sm:$0xff]
          %v6100 = vld [vmem:[%s7 + $0x268] sm:$0xff]
          %v6101 = vld [vmem:[%s7 + $0x270] sm:$0xff]
          %v6102 = vld [vmem:[%s7 + $0x278] sm:$0xff]
          %v6103 = vld [vmem:[%s7 + $0x280] sm:$0xff]
          %v6104 = vld [vmem:[%s7 + $0x288] sm:$0xff]
          %v6105 = vld [vmem:[%s7 + $0x290] sm:$0xff]
          %v6106 = vld [vmem:[%s7 + $0x298] sm:$0xff]
          %v6107 = vld [vmem:[%s7 + $0x2a0] sm:$0xff]
          %v6108 = vld [vmem:[%s7 + $0x2a8] sm:$0xff]
          %v6109 = vld [vmem:[%s7 + $0x2b0] sm:$0xff]
          %v6110 = vld [vmem:[%s7 + $0x2b8] sm:$0xff]
          %v6111 = vld [vmem:[%s7 + $0x2c0] sm:$0xff]
          %v6112 = vld [vmem:[%s7 + $0x2c8] sm:$0xff]
          %v6113 = vld [vmem:[%s7 + $0x2d0] sm:$0xff]
          %v6114 = vld [vmem:[%s7 + $0x2d8] sm:$0xff]
          %v6115 = vld [vmem:[%s7 + $0x2e0] sm:$0xff]
          %v6116 = vld [vmem:[%s7 + $0x2e8] sm:$0xff]
          %v6117 = vld [vmem:[%s7 + $0x2f0] sm:$0xff]
          %v6118 = vld [vmem:[%s7 + $0x2f8] sm:$0xff]
          %v6119 = vld [vmem:[%s7 + $0x300] sm:$0xff]
          %v6120 = vld [vmem:[%s7 + $0x308] sm:$0xff]
          %v6121 = vld [vmem:[%s7 + $0x310] sm:$0xff]
          %v6122 = vld [vmem:[%s7 + $0x318] sm:$0xff]
          %v6123 = vld [vmem:[%s7 + $0x320] sm:$0xff]
          %v6124 = vld [vmem:[%s7 + $0x328] sm:$0xff]
          %v6125 = vld [vmem:[%s7 + $0x330] sm:$0xff]
          %v6126 = vld [vmem:[%s7 + $0x338] sm:$0xff]
          %v6127 = vld [vmem:[%s7 + $0x340] sm:$0xff]
          %v6128 = vld [vmem:[%s7 + $0x348] sm:$0xff]
          %v6129 = vld [vmem:[%s7 + $0x350] sm:$0xff]
          %v6130 = vld [vmem:[%s7 + $0x358] sm:$0xff]
          %v6131 = vld [vmem:[%s7 + $0x360] sm:$0xff]
          %v6132 = vld [vmem:[%s7 + $0x368] sm:$0xff]
          %v6133 = vld [vmem:[%s7 + $0x370] sm:$0xff]
          %v6134 = vld [vmem:[%s7 + $0x378] sm:$0xff]
          %v6135 = vld [vmem:[%s7 + $0x380] sm:$0xff]
          %v6136 = vld [vmem:[%s7 + $0x388] sm:$0xff]
          %v6137 = vld [vmem:[%s7 + $0x390] sm:$0xff]
          %v6138 = vld [vmem:[%s7 + $0x398] sm:$0xff]
          %v6139 = vld [vmem:[%s7 + $0x3a0] sm:$0xff]
          %v6140 = vld [vmem:[%s7 + $0x3a8] sm:$0xff]
          %v6141 = vld [vmem:[%s7 + $0x3b0] sm:$0xff]
          %v6142 = vld [vmem:[%s7 + $0x3b8] sm:$0xff]
          %v6143 = vld [vmem:[%s7 + $0x3c0] sm:$0xff]
          %v6144 = vld [vmem:[%s7 + $0x3c8] sm:$0xff]
          %v6145 = vld [vmem:[%s7 + $0x3d0] sm:$0xff]
          %v6146 = vld [vmem:[%s7 + $0x3d8] sm:$0xff]
          %v6147 = vld [vmem:[%s7 + $0x3e0] sm:$0xff]
          %v6148 = vld [vmem:[%s7 + $0x3e8] sm:$0xff]
          %v6149 = vld [vmem:[%s7 + $0x3f0] sm:$0xff]
          %v6150 = vld [vmem:[%s7 + $0x3f8] sm:$0xff]
          %v6151 = vld [vmem:[%s7 + $0x400] sm:$0xff]
          %v6152 = vld [vmem:[%s7 + $0x408] sm:$0xff]
          %v6153 = vld [vmem:[%s7 + $0x410] sm:$0xff]
          %v6154 = vld [vmem:[%s7 + $0x418] sm:$0xff]
          %v6155 = vld [vmem:[%s7 + $0x420] sm:$0xff]
          %v6156 = vld [vmem:[%s7 + $0x428] sm:$0xff]
          %v6157 = vld [vmem:[%s7 + $0x430] sm:$0xff]
          %v6158 = vld [vmem:[%s7 + $0x438] sm:$0xff]
          %v6159 = vld [vmem:[%s7 + $0x440] sm:$0xff]
          %v6160 = vld [vmem:[%s7 + $0x448] sm:$0xff]
          %v6161 = vld [vmem:[%s7 + $0x450] sm:$0xff]
          %v6162 = vld [vmem:[%s7 + $0x458] sm:$0xff]
          %v6163 = vld [vmem:[%s7 + $0x460] sm:$0xff]
          %v6164 = vld [vmem:[%s7 + $0x468] sm:$0xff]
          %v6165 = vld [vmem:[%s7 + $0x470] sm:$0xff]
          %v6166 = vld [vmem:[%s7 + $0x478] sm:$0xff]
          %v6167 = vld [vmem:[%s7 + $0x480] sm:$0xff]
          %v6168 = vld [vmem:[%s7 + $0x488] sm:$0xff]
          %v6169 = vld [vmem:[%s7 + $0x490] sm:$0xff]
          %v6170 = vld [vmem:[%s7 + $0x498] sm:$0xff]
          %v6171 = vld [vmem:[%s7 + $0x4a0] sm:$0xff]
          %v6172 = vld [vmem:[%s7 + $0x4a8] sm:$0xff]
          %v6173 = vld [vmem:[%s7 + $0x4b0] sm:$0xff]
          %v6174 = vld [vmem:[%s7 + $0x4b8] sm:$0xff]
          %v6175 = vld [vmem:[%s7 + $0x4c0] sm:$0xff]
          %v6176 = vld [vmem:[%s7 + $0x4c8] sm:$0xff]
          %v6177 = vld [vmem:[%s7 + $0x4d0] sm:$0xff]
          %v6178 = vld [vmem:[%s7 + $0x4d8] sm:$0xff]
          %v6179 = vld [vmem:[%s7 + $0x4e0] sm:$0xff]
          %v6180 = vld [vmem:[%s7 + $0x4e8] sm:$0xff]
          %v6181 = vld [vmem:[%s7 + $0x4f0] sm:$0xff]
          %v6182 = vld [vmem:[%s7 + $0x4f8] sm:$0xff]
          %v6183 = vld [vmem:[%s7 + $0x500] sm:$0xff]
          %v6184 = vld [vmem:[%s7 + $0x508] sm:$0xff]
          %v6185 = vld [vmem:[%s7 + $0x510] sm:$0xff]
          %v6186 = vld [vmem:[%s7 + $0x518] sm:$0xff]
          %v6187 = vld [vmem:[%s7 + $0x520] sm:$0xff]
          %v6188 = vld [vmem:[%s7 + $0x528] sm:$0xff]
          %v6189 = vld [vmem:[%s7 + $0x530] sm:$0xff]
          %v6190 = vld [vmem:[%s7 + $0x538] sm:$0xff]
          %v6191 = vld [vmem:[%s7 + $0x540] sm:$0xff]
          %v6192 = vld [vmem:[%s7 + $0x548] sm:$0xff]
          %v6193 = vld [vmem:[%s7 + $0x550] sm:$0xff]
          %v6194 = vld [vmem:[%s7 + $0x558] sm:$0xff]
          %v6195 = vld [vmem:[%s7 + $0x560] sm:$0xff]
          %v6196 = vld [vmem:[%s7 + $0x568] sm:$0xff]
          %v6197 = vld [vmem:[%s7 + $0x570] sm:$0xff]
          %v6198 = vld [vmem:[%s7 + $0x578] sm:$0xff]
          %v6199 = vld [vmem:[%s7 + $0x580] sm:$0xff]
          %v6200 = vld [vmem:[%s7 + $0x588] sm:$0xff]
          %v6201 = vld [vmem:[%s7 + $0x590] sm:$0xff]
          %v6202 = vld [vmem:[%s7 + $0x598] sm:$0xff]
          %v6203 = vld [vmem:[%s7 + $0x5a0] sm:$0xff]
          %v6204 = vld [vmem:[%s7 + $0x5a8] sm:$0xff]
          %v6205 = vld [vmem:[%s7 + $0x5b0] sm:$0xff]
          %v6206 = vld [vmem:[%s7 + $0x5b8] sm:$0xff]
          %v6207 = vld [vmem:[%s7 + $0x5c0] sm:$0xff]
          %v6208 = vld [vmem:[%s7 + $0x5c8] sm:$0xff]
          %v6209 = vld [vmem:[%s7 + $0x5d0] sm:$0xff]
          %v6210 = vld [vmem:[%s7 + $0x5d8] sm:$0xff]
          %v6211 = vld [vmem:[%s7 + $0x5e0] sm:$0xff]
          %v6212 = vld [vmem:[%s7 + $0x5e8] sm:$0xff]
          %v6213 = vld [vmem:[%s7 + $0x5f0] sm:$0xff]
          %v6214 = vld [vmem:[%s7 + $0x5f8] sm:$0xff]
          %v6215 = vld [vmem:[%s11] sm:$0xff]
          %v6216 = vld [vmem:[%s11 + $0x8] sm:$0xff]
          %v6217 = vld [vmem:[%s11 + $0x10] sm:$0xff]
          %v6218 = vld [vmem:[%s11 + $0x18] sm:$0xff]
          %v6219 = vld [vmem:[%s11 + $0x20] sm:$0xff]
          %v6220 = vld [vmem:[%s11 + $0x28] sm:$0xff]
          %v6221 = vld [vmem:[%s11 + $0x30] sm:$0xff]
          %v6222 = vld [vmem:[%s11 + $0x38] sm:$0xff]
          %v6223 = vld [vmem:[%s11 + $0x40] sm:$0xff]
          %v6224 = vld [vmem:[%s11 + $0x48] sm:$0xff]
          %v6225 = vld [vmem:[%s11 + $0x50] sm:$0xff]
          %v6226 = vld [vmem:[%s11 + $0x58] sm:$0xff]
          %v6227 = vld [vmem:[%s11 + $0x60] sm:$0xff]
          %v6228 = vld [vmem:[%s11 + $0x68] sm:$0xff]
          %v6229 = vld [vmem:[%s11 + $0x70] sm:$0xff]
          %v6230 = vld [vmem:[%s11 + $0x78] sm:$0xff]
          %v6231 = vld [vmem:[%s11 + $0x80] sm:$0xff]
          %v6232 = vld [vmem:[%s11 + $0x88] sm:$0xff]
          %v6233 = vld [vmem:[%s11 + $0x90] sm:$0xff]
          %v6234 = vld [vmem:[%s11 + $0x98] sm:$0xff]
          %v6235 = vld [vmem:[%s11 + $0xa0] sm:$0xff]
          %v6236 = vld [vmem:[%s11 + $0xa8] sm:$0xff]
          %v6237 = vld [vmem:[%s11 + $0xb0] sm:$0xff]
          %v6238 = vld [vmem:[%s11 + $0xb8] sm:$0xff]
          %6240 = vset.pattern.permute.xlu0 0
          %6241 = vperm.xlu0 %6240, %v6215
          %v6242 = vpop.permute.xlu0 %6241
          %6245 = vset.pattern.permute.xlu0 0
          %6246 = vperm.xlu0 %6245, %v6216
          %v6247 = vpop.permute.xlu0 %6246
          %6250 = vset.pattern.permute.xlu0 0
          %6251 = vperm.xlu0 %6250, %v6217
          %v6252 = vpop.permute.xlu0 %6251
          %6255 = vset.pattern.permute.xlu0 0
          %6256 = vperm.xlu0 %6255, %v6218
          %v6257 = vpop.permute.xlu0 %6256
          %6260 = vset.pattern.permute.xlu0 0
          %6261 = vperm.xlu0 %6260, %v6219
          %v6262 = vpop.permute.xlu0 %6261
          %6265 = vset.pattern.permute.xlu0 0
          %6266 = vperm.xlu0 %6265, %v6220
          %v6267 = vpop.permute.xlu0 %6266
          %6270 = vset.pattern.permute.xlu0 0
          %6271 = vperm.xlu0 %6270, %v6221
          %v6272 = vpop.permute.xlu0 %6271
          %6275 = vset.pattern.permute.xlu0 0
          %6276 = vperm.xlu0 %6275, %v6222
          %v6277 = vpop.permute.xlu0 %6276
          %6280 = vset.pattern.permute.xlu0 0
          %6281 = vperm.xlu0 %6280, %v6223
          %v6282 = vpop.permute.xlu0 %6281
          %6285 = vset.pattern.permute.xlu0 0
          %6286 = vperm.xlu0 %6285, %v6224
          %v6287 = vpop.permute.xlu0 %6286
          %6290 = vset.pattern.permute.xlu0 0
          %6291 = vperm.xlu0 %6290, %v6225
          %v6292 = vpop.permute.xlu0 %6291
          %6295 = vset.pattern.permute.xlu0 0
          %6296 = vperm.xlu0 %6295, %v6226
          %v6297 = vpop.permute.xlu0 %6296
          %6300 = vset.pattern.permute.xlu0 0
          %6301 = vperm.xlu0 %6300, %v6227
          %v6302 = vpop.permute.xlu0 %6301
          %6305 = vset.pattern.permute.xlu0 0
          %6306 = vperm.xlu0 %6305, %v6228
          %v6307 = vpop.permute.xlu0 %6306
          %6310 = vset.pattern.permute.xlu0 0
          %6311 = vperm.xlu0 %6310, %v6229
          %v6312 = vpop.permute.xlu0 %6311
          %6315 = vset.pattern.permute.xlu0 0
          %6316 = vperm.xlu0 %6315, %v6230
          %v6317 = vpop.permute.xlu0 %6316
          %6320 = vset.pattern.permute.xlu0 0
          %6321 = vperm.xlu0 %6320, %v6231
          %v6322 = vpop.permute.xlu0 %6321
          %6325 = vset.pattern.permute.xlu0 0
          %6326 = vperm.xlu0 %6325, %v6232
          %v6327 = vpop.permute.xlu0 %6326
          %6330 = vset.pattern.permute.xlu0 0
          %6331 = vperm.xlu0 %6330, %v6233
          %v6332 = vpop.permute.xlu0 %6331
          %6335 = vset.pattern.permute.xlu0 0
          %6336 = vperm.xlu0 %6335, %v6234
          %v6337 = vpop.permute.xlu0 %6336
          %6340 = vset.pattern.permute.xlu0 0
          %6341 = vperm.xlu0 %6340, %v6235
          %v6342 = vpop.permute.xlu0 %6341
          %6345 = vset.pattern.permute.xlu0 0
          %6346 = vperm.xlu0 %6345, %v6236
          %v6347 = vpop.permute.xlu0 %6346
          %6350 = vset.pattern.permute.xlu0 0
          %6351 = vperm.xlu0 %6350, %v6237
          %v6352 = vpop.permute.xlu0 %6351
          %6355 = vset.pattern.permute.xlu0 0
          %6356 = vperm.xlu0 %6355, %v6238
          %v6357 = vpop.permute.xlu0 %6356
          %6359 = vmatprep.subr.mxu0 0.0
          %6360 = vmatpush1.msra.mxu0 %v5895
          %6361 = vmatprep.subr.mxu0 0.0
          %6362 = vmatpush1.msra.mxu0 %v5896
          %6363 = vmatprep.subr.mxu0 0.0
          %6364 = vmatpush1.msra.mxu0 %v5897
          %6365 = vmatprep.subr.mxu0 0.0
          %6366 = vmatpush1.msra.mxu0 %v5898
          %6367 = vmatprep.subr.mxu0 0.0
          %6368 = vmatpush1.msra.mxu0 %v5899
          %6369 = vmatprep.subr.mxu0 0.0
          %6370 = vmatpush1.msra.mxu0 %v5900
          %6371 = vmatprep.subr.mxu0 0.0
          %6372 = vmatpush1.msra.mxu0 %v5901
          %6373 = vmatprep.subr.mxu0 0.0
          %6374 = vmatpush1.msra.mxu0 %v5902
          %6375 = vmatprep.subr.mxu0 0.0
          %6376 = vmatpush1.msra.mxu0 %v5903
          %6377 = vmatprep.subr.mxu0 0.0
          %6378 = vmatpush1.msra.mxu0 %v5904
          %6379 = vmatprep.subr.mxu0 0.0
          %6380 = vmatpush1.msra.mxu0 %v5905
          %6381 = vmatprep.subr.mxu0 0.0
          %6382 = vmatpush1.msra.mxu0 %v5906
          %6383 = vmatprep.subr.mxu0 0.0
          %6384 = vmatpush1.msra.mxu0 %v5907
          %6385 = vmatprep.subr.mxu0 0.0
          %6386 = vmatpush1.msra.mxu0 %v5908
          %6387 = vmatprep.subr.mxu0 0.0
          %6388 = vmatpush1.msra.mxu0 %v5909
          %6389 = vmatprep.subr.mxu0 0.0
          %6390 = vmatpush1.msra.mxu0 %v5910
          %6391 = vmatprep.subr.mxu0 0.0
          %6392 = vmatpush1.msra.mxu0 %v5911
          %6393 = vmatprep.subr.mxu0 0.0
          %6394 = vmatpush1.msra.mxu0 %v5912
          %6395 = vmatprep.subr.mxu0 0.0
          %6396 = vmatpush1.msra.mxu0 %v5913
          %6397 = vmatprep.subr.mxu0 0.0
          %6398 = vmatpush1.msra.mxu0 %v5914
          %6399 = vmatprep.subr.mxu0 0.0
          %6400 = vmatpush1.msra.mxu0 %v5915
          %6401 = vmatprep.subr.mxu0 0.0
          %6402 = vmatpush1.msra.mxu0 %v5916
          %6403 = vmatprep.subr.mxu0 0.0
          %6404 = vmatpush1.msra.mxu0 %v5917
          %6405 = vmatprep.subr.mxu0 0.0
          %6406 = vmatpush1.msra.mxu0 %v5918
          %6407 = vmatprep.subr.mxu0 0.0
          %6408 = vmatpush1.msra.mxu0 %v5919
          %6409 = vmatprep.subr.mxu0 0.0
          %6410 = vmatpush1.msra.mxu0 %v5920
          %6411 = vmatprep.subr.mxu0 0.0
          %6412 = vmatpush1.msra.mxu0 %v5921
          %6413 = vmatprep.subr.mxu0 0.0
          %6414 = vmatpush1.msra.mxu0 %v5922
          %6415 = vmatprep.subr.mxu0 0.0
          %6416 = vmatpush1.msra.mxu0 %v5923
          %6417 = vmatprep.subr.mxu0 0.0
          %6418 = vmatpush1.msra.mxu0 %v5924
          %6419 = vmatprep.subr.mxu0 0.0
          %6420 = vmatpush1.msra.mxu0 %v5925
          %6421 = vmatprep.subr.mxu0 0.0
          %6422 = vmatpush1.msra.mxu0 %v5926
          %6423 = vmatprep.mubr.f32.mxu0 %v6024
          %6424 = vmatmul.mubr.f32.gmra.mrb[0].mxu0 %v6023
          %v6425 = vpop.f32.mrb[0].mxu0
          %v6426 = vadd.f32 %v6242, %v6425
          %v6427 = vpop.f32.mrb[0].mxu0
          %6428 = vmatprep.mubr.f32.mxu0 %v6032
          %6429 = vmatmul.mubr.f32.gmra.mrb[0].mxu0 %v6031
          %v6430 = vpop.f32.mrb[0].mxu0
          %v6431 = vadd.f32 %v6247, %v6430
          %v6432 = vpop.f32.mrb[0].mxu0
          %6433 = vmatprep.mubr.f32.mxu0 %v6040
          %6434 = vmatmul.mubr.f32.gmra.mrb[0].mxu0 %v6039
          %v6435 = vpop.f32.mrb[0].mxu0
          %v6436 = vadd.f32 %v6252, %v6435
          %v6437 = vpop.f32.mrb[0].mxu0
          %6438 = vmatprep.mubr.f32.mxu0 %v6048
          %6439 = vmatmul.mubr.f32.gmra.mrb[0].mxu0 %v6047
          %v6440 = vpop.f32.mrb[0].mxu0
          %v6441 = vadd.f32 %v6257, %v6440
          %v6442 = vpop.f32.mrb[0].mxu0
          %6443 = vmatprep.mubr.f32.mxu0 %v6056
          %6444 = vmatmul.mubr.f32.gmra.mrb[0].mxu0 %v6055
          %v6445 = vpop.f32.mrb[0].mxu0
          %v6446 = vadd.f32 %v6262, %v6445
          %v6447 = vpop.f32.mrb[0].mxu0
          %6448 = vmatprep.mubr.f32.mxu0 %v6064
          %6449 = vmatmul.mubr.f32.gmra.mrb[0].mxu0 %v6063
          %v6450 = vpop.f32.mrb[0].mxu0
          %v6451 = vadd.f32 %v6267, %v6450
          %v6452 = vpop.f32.mrb[0].mxu0
          %6453 = vmatprep.mubr.f32.mxu0 %v6072
          %6454 = vmatmul.mubr.f32.gmra.mrb[0].mxu0 %v6071
          %v6455 = vpop.f32.mrb[0].mxu0
          %v6456 = vadd.f32 %v6272, %v6455
          %v6457 = vpop.f32.mrb[0].mxu0
          %6458 = vmatprep.mubr.f32.mxu0 %v6080
          %6459 = vmatmul.mubr.f32.gmra.mrb[0].mxu0 %v6079
          %v6460 = vpop.f32.mrb[0].mxu0
          %v6461 = vadd.f32 %v6277, %v6460
          %v6462 = vpop.f32.mrb[0].mxu0
          %6463 = vmatprep.mubr.f32.mxu0 %v6088
          %6464 = vmatmul.mubr.f32.gmra.mrb[0].mxu0 %v6087
          %v6465 = vpop.f32.mrb[0].mxu0
          %v6466 = vadd.f32 %v6282, %v6465
          %v6467 = vpop.f32.mrb[0].mxu0
          %6468 = vmatprep.mubr.f32.mxu0 %v6096
          %6469 = vmatmul.mubr.f32.gmra.mrb[0].mxu0 %v6095
          %v6470 = vpop.f32.mrb[0].mxu0
          %v6471 = vadd.f32 %v6287, %v6470
          %v6472 = vpop.f32.mrb[0].mxu0
          %6473 = vmatprep.mubr.f32.mxu0 %v6104
          %6474 = vmatmul.mubr.f32.gmra.mrb[0].mxu0 %v6103
          %v6475 = vpop.f32.mrb[0].mxu0
          %v6476 = vadd.f32 %v6292, %v6475
          %v6477 = vpop.f32.mrb[0].mxu0
          %6478 = vmatprep.mubr.f32.mxu0 %v6112
          %6479 = vmatmul.mubr.f32.gmra.mrb[0].mxu0 %v6111
          %v6480 = vpop.f32.mrb[0].mxu0
          %v6481 = vadd.f32 %v6297, %v6480
          %v6482 = vpop.f32.mrb[0].mxu0
          %6483 = vmatprep.mubr.f32.mxu0 %v6120
          %6484 = vmatmul.mubr.f32.gmra.mrb[0].mxu0 %v6119
          %v6485 = vpop.f32.mrb[0].mxu0
          %v6486 = vadd.f32 %v6302, %v6485
          %v6487 = vpop.f32.mrb[0].mxu0
          %6488 = vmatprep.mubr.f32.mxu0 %v6128
          %6489 = vmatmul.mubr.f32.gmra.mrb[0].mxu0 %v6127
          %v6490 = vpop.f32.mrb[0].mxu0
          %v6491 = vadd.f32 %v6307, %v6490
          %v6492 = vpop.f32.mrb[0].mxu0
          %6493 = vmatprep.mubr.f32.mxu0 %v6136
          %6494 = vmatmul.mubr.f32.gmra.mrb[0].mxu0 %v6135
          %v6495 = vpop.f32.mrb[0].mxu0
          %v6496 = vadd.f32 %v6312, %v6495
          %v6497 = vpop.f32.mrb[0].mxu0
          %6498 = vmatprep.mubr.f32.mxu0 %v6144
          %6499 = vmatmul.mubr.f32.gmra.mrb[0].mxu0 %v6143
          %v6500 = vpop.f32.mrb[0].mxu0
          %v6501 = vadd.f32 %v6317, %v6500
          %v6502 = vpop.f32.mrb[0].mxu0
          %6503 = vmatprep.mubr.f32.mxu0 %v6152
          %6504 = vmatmul.mubr.f32.gmra.mrb[0].mxu0 %v6151
          %v6505 = vpop.f32.mrb[0].mxu0
          %v6506 = vadd.f32 %v6322, %v6505
          %v6507 = vpop.f32.mrb[0].mxu0
          %6508 = vmatprep.mubr.f32.mxu0 %v6160
          %6509 = vmatmul.mubr.f32.gmra.mrb[0].mxu0 %v6159
          %v6510 = vpop.f32.mrb[0].mxu0
          %v6511 = vadd.f32 %v6327, %v6510
          %v6512 = vpop.f32.mrb[0].mxu0
          %6513 = vmatprep.mubr.f32.mxu0 %v6168
          %6514 = vmatmul.mubr.f32.gmra.mrb[0].mxu0 %v6167
          %v6515 = vpop.f32.mrb[0].mxu0
          %v6516 = vadd.f32 %v6332, %v6515
          %v6517 = vpop.f32.mrb[0].mxu0
          %6518 = vmatprep.mubr.f32.mxu0 %v6176
          %6519 = vmatmul.mubr.f32.gmra.mrb[0].mxu0 %v6175
          %v6520 = vpop.f32.mrb[0].mxu0
          %v6521 = vadd.f32 %v6337, %v6520
          %v6522 = vpop.f32.mrb[0].mxu0
          %6523 = vmatprep.mubr.f32.mxu0 %v6184
          %6524 = vmatmul.mubr.f32.gmra.mrb[0].mxu0 %v6183
          %v6525 = vpop.f32.mrb[0].mxu0
          %v6526 = vadd.f32 %v6342, %v6525
          %v6527 = vpop.f32.mrb[0].mxu0
          %6528 = vmatprep.mubr.f32.mxu0 %v6192
          %6529 = vmatmul.mubr.f32.gmra.mrb[0].mxu0 %v6191
          %v6530 = vpop.f32.mrb[0].mxu0
          %v6531 = vadd.f32 %v6347, %v6530
          %v6532 = vpop.f32.mrb[0].mxu0
          %6533 = vmatprep.mubr.f32.mxu0 %v6200
          %6534 = vmatmul.mubr.f32.gmra.mrb[0].mxu0 %v6199
          %v6535 = vpop.f32.mrb[0].mxu0
          %v6536 = vadd.f32 %v6352, %v6535
          %v6537 = vpop.f32.mrb[0].mxu0
          %6538 = vmatprep.mubr.f32.mxu0 %v6208
          %6539 = vmatmul.mubr.f32.gmra.mrb[0].mxu0 %v6207
          %v6540 = vpop.f32.mrb[0].mxu0
          %v6541 = vadd.f32 %v6357, %v6540
          %v6542 = vpop.f32.mrb[0].mxu0
          %6543 = vdwg.mxu0
          %6544 = vmatprep.subr.mxu0 0.0
          %6545 = vmatpush1.msra.mxu0 %v5927
          %6546 = vmatprep.subr.mxu0 0.0
          %6547 = vmatpush1.msra.mxu0 %v5928
          %6548 = vmatprep.subr.mxu0 0.0
          %6549 = vmatpush1.msra.mxu0 %v5929
          %6550 = vmatprep.subr.mxu0 0.0
          %6551 = vmatpush1.msra.mxu0 %v5930
          %6552 = vmatprep.subr.mxu0 0.0
          %6553 = vmatpush1.msra.mxu0 %v5931
          %6554 = vmatprep.subr.mxu0 0.0
          %6555 = vmatpush1.msra.mxu0 %v5932
          %6556 = vmatprep.subr.mxu0 0.0
          %6557 = vmatpush1.msra.mxu0 %v5933
          %6558 = vmatprep.subr.mxu0 0.0
          %6559 = vmatpush1.msra.mxu0 %v5934
          %6560 = vmatprep.subr.mxu0 0.0
          %6561 = vmatpush1.msra.mxu0 %v5935
          %6562 = vmatprep.subr.mxu0 0.0
          %6563 = vmatpush1.msra.mxu0 %v5936
          %6564 = vmatprep.subr.mxu0 0.0
          %6565 = vmatpush1.msra.mxu0 %v5937
          %6566 = vmatprep.subr.mxu0 0.0
          %6567 = vmatpush1.msra.mxu0 %v5938
          %6568 = vmatprep.subr.mxu0 0.0
          %6569 = vmatpush1.msra.mxu0 %v5939
          %6570 = vmatprep.subr.mxu0 0.0
          %6571 = vmatpush1.msra.mxu0 %v5940
          %6572 = vmatprep.subr.mxu0 0.0
          %6573 = vmatpush1.msra.mxu0 %v5941
          %6574 = vmatprep.subr.mxu0 0.0
          %6575 = vmatpush1.msra.mxu0 %v5942
          %6576 = vmatprep.subr.mxu0 0.0
          %6577 = vmatpush1.msra.mxu0 %v5943
          %6578 = vmatprep.subr.mxu0 0.0
          %6579 = vmatpush1.msra.mxu0 %v5944
          %6580 = vmatprep.subr.mxu0 0.0
          %6581 = vmatpush1.msra.mxu0 %v5945
          %6582 = vmatprep.subr.mxu0 0.0
          %6583 = vmatpush1.msra.mxu0 %v5946
          %6584 = vmatprep.subr.mxu0 0.0
          %6585 = vmatpush1.msra.mxu0 %v5947
          %6586 = vmatprep.subr.mxu0 0.0
          %6587 = vmatpush1.msra.mxu0 %v5948
          %6588 = vmatprep.subr.mxu0 0.0
          %6589 = vmatpush1.msra.mxu0 %v5949
          %6590 = vmatprep.subr.mxu0 0.0
          %6591 = vmatpush1.msra.mxu0 %v5950
          %6592 = vmatprep.subr.mxu0 0.0
          %6593 = vmatpush1.msra.mxu0 %v5951
          %6594 = vmatprep.subr.mxu0 0.0
          %6595 = vmatpush1.msra.mxu0 %v5952
          %6596 = vmatprep.subr.mxu0 0.0
          %6597 = vmatpush1.msra.mxu0 %v5953
          %6598 = vmatprep.subr.mxu0 0.0
          %6599 = vmatpush1.msra.mxu0 %v5954
          %6600 = vmatprep.subr.mxu0 0.0
          %6601 = vmatpush1.msra.mxu0 %v5955
          %6602 = vmatprep.subr.mxu0 0.0
          %6603 = vmatpush1.msra.mxu0 %v5956
          %6604 = vmatprep.subr.mxu0 0.0
          %6605 = vmatpush1.msra.mxu0 %v5957
          %6606 = vmatprep.subr.mxu0 0.0
          %6607 = vmatpush1.msra.mxu0 %v5958
          %6608 = vmatprep.mubr.f32.mxu0 %v6026
          %6609 = vmatmul.mubr.f32.gmra.mrb[0].mxu0 %v6025
          %v6610 = vpop.f32.mrb[0].mxu0
          %v6611 = vadd.f32 %v6426, %v6610
          %v6612 = vpop.f32.mrb[0].mxu0
          %6613 = vmatprep.mubr.f32.mxu0 %v6034
          %6614 = vmatmul.mubr.f32.gmra.mrb[0].mxu0 %v6033
          %v6615 = vpop.f32.mrb[0].mxu0
          %v6616 = vadd.f32 %v6431, %v6615
          %v6617 = vpop.f32.mrb[0].mxu0
          %6618 = vmatprep.mubr.f32.mxu0 %v6042
          %6619 = vmatmul.mubr.f32.gmra.mrb[0].mxu0 %v6041
          %v6620 = vpop.f32.mrb[0].mxu0
          %v6621 = vadd.f32 %v6436, %v6620
          %v6622 = vpop.f32.mrb[0].mxu0
          %6623 = vmatprep.mubr.f32.mxu0 %v6050
          %6624 = vmatmul.mubr.f32.gmra.mrb[0].mxu0 %v6049
          %v6625 = vpop.f32.mrb[0].mxu0
          %v6626 = vadd.f32 %v6441, %v6625
          %v6627 = vpop.f32.mrb[0].mxu0
          %6628 = vmatprep.mubr.f32.mxu0 %v6058
          %6629 = vmatmul.mubr.f32.gmra.mrb[0].mxu0 %v6057
          %v6630 = vpop.f32.mrb[0].mxu0
          %v6631 = vadd.f32 %v6446, %v6630
          %v6632 = vpop.f32.mrb[0].mxu0
          %6633 = vmatprep.mubr.f32.mxu0 %v6066
          %6634 = vmatmul.mubr.f32.gmra.mrb[0].mxu0 %v6065
          %v6635 = vpop.f32.mrb[0].mxu0
          %v6636 = vadd.f32 %v6451, %v6635
          %v6637 = vpop.f32.mrb[0].mxu0
          %6638 = vmatprep.mubr.f32.mxu0 %v6074
          %6639 = vmatmul.mubr.f32.gmra.mrb[0].mxu0 %v6073
          %v6640 = vpop.f32.mrb[0].mxu0
          %v6641 = vadd.f32 %v6456, %v6640
          %v6642 = vpop.f32.mrb[0].mxu0
          %6643 = vmatprep.mubr.f32.mxu0 %v6082
          %6644 = vmatmul.mubr.f32.gmra.mrb[0].mxu0 %v6081
          %v6645 = vpop.f32.mrb[0].mxu0
          %v6646 = vadd.f32 %v6461, %v6645
          %v6647 = vpop.f32.mrb[0].mxu0
          %6648 = vmatprep.mubr.f32.mxu0 %v6090
          %6649 = vmatmul.mubr.f32.gmra.mrb[0].mxu0 %v6089
          %v6650 = vpop.f32.mrb[0].mxu0
          %v6651 = vadd.f32 %v6466, %v6650
          %v6652 = vpop.f32.mrb[0].mxu0
          %6653 = vmatprep.mubr.f32.mxu0 %v6098
          %6654 = vmatmul.mubr.f32.gmra.mrb[0].mxu0 %v6097
          %v6655 = vpop.f32.mrb[0].mxu0
          %v6656 = vadd.f32 %v6471, %v6655
          %v6657 = vpop.f32.mrb[0].mxu0
          %6658 = vmatprep.mubr.f32.mxu0 %v6106
          %6659 = vmatmul.mubr.f32.gmra.mrb[0].mxu0 %v6105
          %v6660 = vpop.f32.mrb[0].mxu0
          %v6661 = vadd.f32 %v6476, %v6660
          %v6662 = vpop.f32.mrb[0].mxu0
          %6663 = vmatprep.mubr.f32.mxu0 %v6114
          %6664 = vmatmul.mubr.f32.gmra.mrb[0].mxu0 %v6113
          %v6665 = vpop.f32.mrb[0].mxu0
          %v6666 = vadd.f32 %v6481, %v6665
          %v6667 = vpop.f32.mrb[0].mxu0
          %6668 = vmatprep.mubr.f32.mxu0 %v6122
          %6669 = vmatmul.mubr.f32.gmra.mrb[0].mxu0 %v6121
          %v6670 = vpop.f32.mrb[0].mxu0
          %v6671 = vadd.f32 %v6486, %v6670
          %v6672 = vpop.f32.mrb[0].mxu0
          %6673 = vmatprep.mubr.f32.mxu0 %v6130
          %6674 = vmatmul.mubr.f32.gmra.mrb[0].mxu0 %v6129
          %v6675 = vpop.f32.mrb[0].mxu0
          %v6676 = vadd.f32 %v6491, %v6675
          %v6677 = vpop.f32.mrb[0].mxu0
          %6678 = vmatprep.mubr.f32.mxu0 %v6138
          %6679 = vmatmul.mubr.f32.gmra.mrb[0].mxu0 %v6137
          %v6680 = vpop.f32.mrb[0].mxu0
          %v6681 = vadd.f32 %v6496, %v6680
          %v6682 = vpop.f32.mrb[0].mxu0
          %6683 = vmatprep.mubr.f32.mxu0 %v6146
          %6684 = vmatmul.mubr.f32.gmra.mrb[0].mxu0 %v6145
          %v6685 = vpop.f32.mrb[0].mxu0
          %v6686 = vadd.f32 %v6501, %v6685
          %v6687 = vpop.f32.mrb[0].mxu0
          %6688 = vmatprep.mubr.f32.mxu0 %v6154
          %6689 = vmatmul.mubr.f32.gmra.mrb[0].mxu0 %v6153
          %v6690 = vpop.f32.mrb[0].mxu0
          %v6691 = vadd.f32 %v6506, %v6690
          %v6692 = vpop.f32.mrb[0].mxu0
          %6693 = vmatprep.mubr.f32.mxu0 %v6162
          %6694 = vmatmul.mubr.f32.gmra.mrb[0].mxu0 %v6161
          %v6695 = vpop.f32.mrb[0].mxu0
          %v6696 = vadd.f32 %v6511, %v6695
          %v6697 = vpop.f32.mrb[0].mxu0
          %6698 = vmatprep.mubr.f32.mxu0 %v6170
          %6699 = vmatmul.mubr.f32.gmra.mrb[0].mxu0 %v6169
          %v6700 = vpop.f32.mrb[0].mxu0
          %v6701 = vadd.f32 %v6516, %v6700
          %v6702 = vpop.f32.mrb[0].mxu0
          %6703 = vmatprep.mubr.f32.mxu0 %v6178
          %6704 = vmatmul.mubr.f32.gmra.mrb[0].mxu0 %v6177
          %v6705 = vpop.f32.mrb[0].mxu0
          %v6706 = vadd.f32 %v6521, %v6705
          %v6707 = vpop.f32.mrb[0].mxu0
          %6708 = vmatprep.mubr.f32.mxu0 %v6186
          %6709 = vmatmul.mubr.f32.gmra.mrb[0].mxu0 %v6185
          %v6710 = vpop.f32.mrb[0].mxu0
          %v6711 = vadd.f32 %v6526, %v6710
          %v6712 = vpop.f32.mrb[0].mxu0
          %6713 = vmatprep.mubr.f32.mxu0 %v6194
          %6714 = vmatmul.mubr.f32.gmra.mrb[0].mxu0 %v6193
          %v6715 = vpop.f32.mrb[0].mxu0
          %v6716 = vadd.f32 %v6531, %v6715
          %v6717 = vpop.f32.mrb[0].mxu0
          %6718 = vmatprep.mubr.f32.mxu0 %v6202
          %6719 = vmatmul.mubr.f32.gmra.mrb[0].mxu0 %v6201
          %v6720 = vpop.f32.mrb[0].mxu0
          %v6721 = vadd.f32 %v6536, %v6720
          %v6722 = vpop.f32.mrb[0].mxu0
          %6723 = vmatprep.mubr.f32.mxu0 %v6210
          %6724 = vmatmul.mubr.f32.gmra.mrb[0].mxu0 %v6209
          %v6725 = vpop.f32.mrb[0].mxu0
          %v6726 = vadd.f32 %v6541, %v6725
          %v6727 = vpop.f32.mrb[0].mxu0
          %6728 = vdwg.mxu0
          %6729 = vmatprep.subr.mxu0 0.0
          %6730 = vmatpush1.msra.mxu0 %v5959
          %6731 = vmatprep.subr.mxu0 0.0
          %6732 = vmatpush1.msra.mxu0 %v5960
          %6733 = vmatprep.subr.mxu0 0.0
          %6734 = vmatpush1.msra.mxu0 %v5961
          %6735 = vmatprep.subr.mxu0 0.0
          %6736 = vmatpush1.msra.mxu0 %v5962
          %6737 = vmatprep.subr.mxu0 0.0
          %6738 = vmatpush1.msra.mxu0 %v5963
          %6739 = vmatprep.subr.mxu0 0.0
          %6740 = vmatpush1.msra.mxu0 %v5964
          %6741 = vmatprep.subr.mxu0 0.0
          %6742 = vmatpush1.msra.mxu0 %v5965
          %6743 = vmatprep.subr.mxu0 0.0
          %6744 = vmatpush1.msra.mxu0 %v5966
          %6745 = vmatprep.subr.mxu0 0.0
          %6746 = vmatpush1.msra.mxu0 %v5967
          %6747 = vmatprep.subr.mxu0 0.0
          %6748 = vmatpush1.msra.mxu0 %v5968
          %6749 = vmatprep.subr.mxu0 0.0
          %6750 = vmatpush1.msra.mxu0 %v5969
          %6751 = vmatprep.subr.mxu0 0.0
          %6752 = vmatpush1.msra.mxu0 %v5970
          %6753 = vmatprep.subr.mxu0 0.0
          %6754 = vmatpush1.msra.mxu0 %v5971
          %6755 = vmatprep.subr.mxu0 0.0
          %6756 = vmatpush1.msra.mxu0 %v5972
          %6757 = vmatprep.subr.mxu0 0.0
          %6758 = vmatpush1.msra.mxu0 %v5973
          %6759 = vmatprep.subr.mxu0 0.0
          %6760 = vmatpush1.msra.mxu0 %v5974
          %6761 = vmatprep.subr.mxu0 0.0
          %6762 = vmatpush1.msra.mxu0 %v5975
          %6763 = vmatprep.subr.mxu0 0.0
          %6764 = vmatpush1.msra.mxu0 %v5976
          %6765 = vmatprep.subr.mxu0 0.0
          %6766 = vmatpush1.msra.mxu0 %v5977
          %6767 = vmatprep.subr.mxu0 0.0
          %6768 = vmatpush1.msra.mxu0 %v5978
          %6769 = vmatprep.subr.mxu0 0.0
          %6770 = vmatpush1.msra.mxu0 %v5979
          %6771 = vmatprep.subr.mxu0 0.0
          %6772 = vmatpush1.msra.mxu0 %v5980
          %6773 = vmatprep.subr.mxu0 0.0
          %6774 = vmatpush1.msra.mxu0 %v5981
          %6775 = vmatprep.subr.mxu0 0.0
          %6776 = vmatpush1.msra.mxu0 %v5982
          %6777 = vmatprep.subr.mxu0 0.0
          %6778 = vmatpush1.msra.mxu0 %v5983
          %6779 = vmatprep.subr.mxu0 0.0
          %6780 = vmatpush1.msra.mxu0 %v5984
          %6781 = vmatprep.subr.mxu0 0.0
          %6782 = vmatpush1.msra.mxu0 %v5985
          %6783 = vmatprep.subr.mxu0 0.0
          %6784 = vmatpush1.msra.mxu0 %v5986
          %6785 = vmatprep.subr.mxu0 0.0
          %6786 = vmatpush1.msra.mxu0 %v5987
          %6787 = vmatprep.subr.mxu0 0.0
          %6788 = vmatpush1.msra.mxu0 %v5988
          %6789 = vmatprep.subr.mxu0 0.0
          %6790 = vmatpush1.msra.mxu0 %v5989
          %6791 = vmatprep.subr.mxu0 0.0
          %6792 = vmatpush1.msra.mxu0 %v5990
          %6793 = vmatprep.mubr.f32.mxu0 %v6028
          %6794 = vmatmul.mubr.f32.gmra.mrb[0].mxu0 %v6027
          %v6795 = vpop.f32.mrb[0].mxu0
          %v6796 = vadd.f32 %v6611, %v6795
          %v6797 = vpop.f32.mrb[0].mxu0
          %6798 = vmatprep.mubr.f32.mxu0 %v6036
          %6799 = vmatmul.mubr.f32.gmra.mrb[0].mxu0 %v6035
          %v6800 = vpop.f32.mrb[0].mxu0
          %v6801 = vadd.f32 %v6616, %v6800
          %v6802 = vpop.f32.mrb[0].mxu0
          %6803 = vmatprep.mubr.f32.mxu0 %v6044
          %6804 = vmatmul.mubr.f32.gmra.mrb[0].mxu0 %v6043
          %v6805 = vpop.f32.mrb[0].mxu0
          %v6806 = vadd.f32 %v6621, %v6805
          %v6807 = vpop.f32.mrb[0].mxu0
          %6808 = vmatprep.mubr.f32.mxu0 %v6052
          %6809 = vmatmul.mubr.f32.gmra.mrb[0].mxu0 %v6051
          %v6810 = vpop.f32.mrb[0].mxu0
          %v6811 = vadd.f32 %v6626, %v6810
          %v6812 = vpop.f32.mrb[0].mxu0
          %6813 = vmatprep.mubr.f32.mxu0 %v6060
          %6814 = vmatmul.mubr.f32.gmra.mrb[0].mxu0 %v6059
          %v6815 = vpop.f32.mrb[0].mxu0
          %v6816 = vadd.f32 %v6631, %v6815
          %v6817 = vpop.f32.mrb[0].mxu0
          %6818 = vmatprep.mubr.f32.mxu0 %v6068
          %6819 = vmatmul.mubr.f32.gmra.mrb[0].mxu0 %v6067
          %v6820 = vpop.f32.mrb[0].mxu0
          %v6821 = vadd.f32 %v6636, %v6820
          %v6822 = vpop.f32.mrb[0].mxu0
          %6823 = vmatprep.mubr.f32.mxu0 %v6076
          %6824 = vmatmul.mubr.f32.gmra.mrb[0].mxu0 %v6075
          %v6825 = vpop.f32.mrb[0].mxu0
          %v6826 = vadd.f32 %v6641, %v6825
          %v6827 = vpop.f32.mrb[0].mxu0
          %6828 = vmatprep.mubr.f32.mxu0 %v6084
          %6829 = vmatmul.mubr.f32.gmra.mrb[0].mxu0 %v6083
          %v6830 = vpop.f32.mrb[0].mxu0
          %v6831 = vadd.f32 %v6646, %v6830
          %v6832 = vpop.f32.mrb[0].mxu0
          %6833 = vmatprep.mubr.f32.mxu0 %v6092
          %6834 = vmatmul.mubr.f32.gmra.mrb[0].mxu0 %v6091
          %v6835 = vpop.f32.mrb[0].mxu0
          %v6836 = vadd.f32 %v6651, %v6835
          %v6837 = vpop.f32.mrb[0].mxu0
          %6838 = vmatprep.mubr.f32.mxu0 %v6100
          %6839 = vmatmul.mubr.f32.gmra.mrb[0].mxu0 %v6099
          %v6840 = vpop.f32.mrb[0].mxu0
          %v6841 = vadd.f32 %v6656, %v6840
          %v6842 = vpop.f32.mrb[0].mxu0
          %6843 = vmatprep.mubr.f32.mxu0 %v6108
          %6844 = vmatmul.mubr.f32.gmra.mrb[0].mxu0 %v6107
          %v6845 = vpop.f32.mrb[0].mxu0
          %v6846 = vadd.f32 %v6661, %v6845
          %v6847 = vpop.f32.mrb[0].mxu0
          %6848 = vmatprep.mubr.f32.mxu0 %v6116
          %6849 = vmatmul.mubr.f32.gmra.mrb[0].mxu0 %v6115
          %v6850 = vpop.f32.mrb[0].mxu0
          %v6851 = vadd.f32 %v6666, %v6850
          %v6852 = vpop.f32.mrb[0].mxu0
          %6853 = vmatprep.mubr.f32.mxu0 %v6124
          %6854 = vmatmul.mubr.f32.gmra.mrb[0].mxu0 %v6123
          %v6855 = vpop.f32.mrb[0].mxu0
          %v6856 = vadd.f32 %v6671, %v6855
          %v6857 = vpop.f32.mrb[0].mxu0
          %6858 = vmatprep.mubr.f32.mxu0 %v6132
          %6859 = vmatmul.mubr.f32.gmra.mrb[0].mxu0 %v6131
          %v6860 = vpop.f32.mrb[0].mxu0
          %v6861 = vadd.f32 %v6676, %v6860
          %v6862 = vpop.f32.mrb[0].mxu0
          %6863 = vmatprep.mubr.f32.mxu0 %v6140
          %6864 = vmatmul.mubr.f32.gmra.mrb[0].mxu0 %v6139
          %v6865 = vpop.f32.mrb[0].mxu0
          %v6866 = vadd.f32 %v6681, %v6865
          %v6867 = vpop.f32.mrb[0].mxu0
          %6868 = vmatprep.mubr.f32.mxu0 %v6148
          %6869 = vmatmul.mubr.f32.gmra.mrb[0].mxu0 %v6147
          %v6870 = vpop.f32.mrb[0].mxu0
          %v6871 = vadd.f32 %v6686, %v6870
          %v6872 = vpop.f32.mrb[0].mxu0
          %6873 = vmatprep.mubr.f32.mxu0 %v6156
          %6874 = vmatmul.mubr.f32.gmra.mrb[0].mxu0 %v6155
          %v6875 = vpop.f32.mrb[0].mxu0
          %v6876 = vadd.f32 %v6691, %v6875
          %v6877 = vpop.f32.mrb[0].mxu0
          %6878 = vmatprep.mubr.f32.mxu0 %v6164
          %6879 = vmatmul.mubr.f32.gmra.mrb[0].mxu0 %v6163
          %v6880 = vpop.f32.mrb[0].mxu0
          %v6881 = vadd.f32 %v6696, %v6880
          %v6882 = vpop.f32.mrb[0].mxu0
          %6883 = vmatprep.mubr.f32.mxu0 %v6172
          %6884 = vmatmul.mubr.f32.gmra.mrb[0].mxu0 %v6171
          %v6885 = vpop.f32.mrb[0].mxu0
          %v6886 = vadd.f32 %v6701, %v6885
          %v6887 = vpop.f32.mrb[0].mxu0
          %6888 = vmatprep.mubr.f32.mxu0 %v6180
          %6889 = vmatmul.mubr.f32.gmra.mrb[0].mxu0 %v6179
          %v6890 = vpop.f32.mrb[0].mxu0
          %v6891 = vadd.f32 %v6706, %v6890
          %v6892 = vpop.f32.mrb[0].mxu0
          %6893 = vmatprep.mubr.f32.mxu0 %v6188
          %6894 = vmatmul.mubr.f32.gmra.mrb[0].mxu0 %v6187
          %v6895 = vpop.f32.mrb[0].mxu0
          %v6896 = vadd.f32 %v6711, %v6895
          %v6897 = vpop.f32.mrb[0].mxu0
          %6898 = vmatprep.mubr.f32.mxu0 %v6196
          %6899 = vmatmul.mubr.f32.gmra.mrb[0].mxu0 %v6195
          %v6900 = vpop.f32.mrb[0].mxu0
          %v6901 = vadd.f32 %v6716, %v6900
          %v6902 = vpop.f32.mrb[0].mxu0
          %6903 = vmatprep.mubr.f32.mxu0 %v6204
          %6904 = vmatmul.mubr.f32.gmra.mrb[0].mxu0 %v6203
          %v6905 = vpop.f32.mrb[0].mxu0
          %v6906 = vadd.f32 %v6721, %v6905
          %v6907 = vpop.f32.mrb[0].mxu0
          %6908 = vmatprep.mubr.f32.mxu0 %v6212
          %6909 = vmatmul.mubr.f32.gmra.mrb[0].mxu0 %v6211
          %v6910 = vpop.f32.mrb[0].mxu0
          %v6911 = vadd.f32 %v6726, %v6910
          %v6912 = vpop.f32.mrb[0].mxu0
          %6913 = vdwg.mxu0
          %6914 = vmatprep.subr.mxu0 0.0
          %6915 = vmatpush1.msra.mxu0 %v5991
          %6916 = vmatprep.subr.mxu0 0.0
          %6917 = vmatpush1.msra.mxu0 %v5992
          %6918 = vmatprep.subr.mxu0 0.0
          %6919 = vmatpush1.msra.mxu0 %v5993
          %6920 = vmatprep.subr.mxu0 0.0
          %6921 = vmatpush1.msra.mxu0 %v5994
          %6922 = vmatprep.subr.mxu0 0.0
          %6923 = vmatpush1.msra.mxu0 %v5995
          %6924 = vmatprep.subr.mxu0 0.0
          %6925 = vmatpush1.msra.mxu0 %v5996
          %6926 = vmatprep.subr.mxu0 0.0
          %6927 = vmatpush1.msra.mxu0 %v5997
          %6928 = vmatprep.subr.mxu0 0.0
          %6929 = vmatpush1.msra.mxu0 %v5998
          %6930 = vmatprep.subr.mxu0 0.0
          %6931 = vmatpush1.msra.mxu0 %v5999
          %6932 = vmatprep.subr.mxu0 0.0
          %6933 = vmatpush1.msra.mxu0 %v6000
          %6934 = vmatprep.subr.mxu0 0.0
          %6935 = vmatpush1.msra.mxu0 %v6001
          %6936 = vmatprep.subr.mxu0 0.0
          %6937 = vmatpush1.msra.mxu0 %v6002
          %6938 = vmatprep.subr.mxu0 0.0
          %6939 = vmatpush1.msra.mxu0 %v6003
          %6940 = vmatprep.subr.mxu0 0.0
          %6941 = vmatpush1.msra.mxu0 %v6004
          %6942 = vmatprep.subr.mxu0 0.0
          %6943 = vmatpush1.msra.mxu0 %v6005
          %6944 = vmatprep.subr.mxu0 0.0
          %6945 = vmatpush1.msra.mxu0 %v6006
          %6946 = vmatprep.subr.mxu0 0.0
          %6947 = vmatpush1.msra.mxu0 %v6007
          %6948 = vmatprep.subr.mxu0 0.0
          %6949 = vmatpush1.msra.mxu0 %v6008
          %6950 = vmatprep.subr.mxu0 0.0
          %6951 = vmatpush1.msra.mxu0 %v6009
          %6952 = vmatprep.subr.mxu0 0.0
          %6953 = vmatpush1.msra.mxu0 %v6010
          %6954 = vmatprep.subr.mxu0 0.0
          %6955 = vmatpush1.msra.mxu0 %v6011
          %6956 = vmatprep.subr.mxu0 0.0
          %6957 = vmatpush1.msra.mxu0 %v6012
          %6958 = vmatprep.subr.mxu0 0.0
          %6959 = vmatpush1.msra.mxu0 %v6013
          %6960 = vmatprep.subr.mxu0 0.0
          %6961 = vmatpush1.msra.mxu0 %v6014
          %6962 = vmatprep.subr.mxu0 0.0
          %6963 = vmatpush1.msra.mxu0 %v6015
          %6964 = vmatprep.subr.mxu0 0.0
          %6965 = vmatpush1.msra.mxu0 %v6016
          %6966 = vmatprep.subr.mxu0 0.0
          %6967 = vmatpush1.msra.mxu0 %v6017
          %6968 = vmatprep.subr.mxu0 0.0
          %6969 = vmatpush1.msra.mxu0 %v6018
          %6970 = vmatprep.subr.mxu0 0.0
          %6971 = vmatpush1.msra.mxu0 %v6019
          %6972 = vmatprep.subr.mxu0 0.0
          %6973 = vmatpush1.msra.mxu0 %v6020
          %6974 = vmatprep.subr.mxu0 0.0
          %6975 = vmatpush1.msra.mxu0 %v6021
          %6976 = vmatprep.subr.mxu0 0.0
          %6977 = vmatpush1.msra.mxu0 %v6022
          %6978 = vmatprep.mubr.f32.mxu0 %v6030
          %6979 = vmatmul.mubr.f32.gmra.mrb[0].mxu0 %v6029
          %v6980 = vpop.f32.mrb[0].mxu0
          %v6981 = vadd.f32 %v6796, %v6980
          %v6982 = vpop.f32.mrb[0].mxu0
          %6983 = vmatprep.mubr.f32.mxu0 %v6038
          %6984 = vmatmul.mubr.f32.gmra.mrb[0].mxu0 %v6037
          %v6985 = vpop.f32.mrb[0].mxu0
          %v6986 = vadd.f32 %v6801, %v6985
          %v6987 = vpop.f32.mrb[0].mxu0
          %6988 = vmatprep.mubr.f32.mxu0 %v6046
          %6989 = vmatmul.mubr.f32.gmra.mrb[0].mxu0 %v6045
          %v6990 = vpop.f32.mrb[0].mxu0
          %v6991 = vadd.f32 %v6806, %v6990
          %v6992 = vpop.f32.mrb[0].mxu0
          %6993 = vmatprep.mubr.f32.mxu0 %v6054
          %6994 = vmatmul.mubr.f32.gmra.mrb[0].mxu0 %v6053
          %v6995 = vpop.f32.mrb[0].mxu0
          %v6996 = vadd.f32 %v6811, %v6995
          %v6997 = vpop.f32.mrb[0].mxu0
          %6998 = vmatprep.mubr.f32.mxu0 %v6062
          %6999 = vmatmul.mubr.f32.gmra.mrb[0].mxu0 %v6061
          %v7000 = vpop.f32.mrb[0].mxu0
          %v7001 = vadd.f32 %v6816, %v7000
          %v7002 = vpop.f32.mrb[0].mxu0
          %7003 = vmatprep.mubr.f32.mxu0 %v6070
          %7004 = vmatmul.mubr.f32.gmra.mrb[0].mxu0 %v6069
          %v7005 = vpop.f32.mrb[0].mxu0
          %v7006 = vadd.f32 %v6821, %v7005
          %v7007 = vpop.f32.mrb[0].mxu0
          %7008 = vmatprep.mubr.f32.mxu0 %v6078
          %7009 = vmatmul.mubr.f32.gmra.mrb[0].mxu0 %v6077
          %v7010 = vpop.f32.mrb[0].mxu0
          %v7011 = vadd.f32 %v6826, %v7010
          %v7012 = vpop.f32.mrb[0].mxu0
          %7013 = vmatprep.mubr.f32.mxu0 %v6086
          %7014 = vmatmul.mubr.f32.gmra.mrb[0].mxu0 %v6085
          %v7015 = vpop.f32.mrb[0].mxu0
          %v7016 = vadd.f32 %v6831, %v7015
          %v7017 = vpop.f32.mrb[0].mxu0
          %7018 = vmatprep.mubr.f32.mxu0 %v6094
          %7019 = vmatmul.mubr.f32.gmra.mrb[0].mxu0 %v6093
          %v7020 = vpop.f32.mrb[0].mxu0
          %v7021 = vadd.f32 %v6836, %v7020
          %v7022 = vpop.f32.mrb[0].mxu0
          %7023 = vmatprep.mubr.f32.mxu0 %v6102
          %7024 = vmatmul.mubr.f32.gmra.mrb[0].mxu0 %v6101
          %v7025 = vpop.f32.mrb[0].mxu0
          %v7026 = vadd.f32 %v6841, %v7025
          %v7027 = vpop.f32.mrb[0].mxu0
          %7028 = vmatprep.mubr.f32.mxu0 %v6110
          %7029 = vmatmul.mubr.f32.gmra.mrb[0].mxu0 %v6109
          %v7030 = vpop.f32.mrb[0].mxu0
          %v7031 = vadd.f32 %v6846, %v7030
          %v7032 = vpop.f32.mrb[0].mxu0
          %7033 = vmatprep.mubr.f32.mxu0 %v6118
          %7034 = vmatmul.mubr.f32.gmra.mrb[0].mxu0 %v6117
          %v7035 = vpop.f32.mrb[0].mxu0
          %v7036 = vadd.f32 %v6851, %v7035
          %v7037 = vpop.f32.mrb[0].mxu0
          %7038 = vmatprep.mubr.f32.mxu0 %v6126
          %7039 = vmatmul.mubr.f32.gmra.mrb[0].mxu0 %v6125
          %v7040 = vpop.f32.mrb[0].mxu0
          %v7041 = vadd.f32 %v6856, %v7040
          %v7042 = vpop.f32.mrb[0].mxu0
          %7043 = vmatprep.mubr.f32.mxu0 %v6134
          %7044 = vmatmul.mubr.f32.gmra.mrb[0].mxu0 %v6133
          %v7045 = vpop.f32.mrb[0].mxu0
          %v7046 = vadd.f32 %v6861, %v7045
          %v7047 = vpop.f32.mrb[0].mxu0
          %7048 = vmatprep.mubr.f32.mxu0 %v6142
          %7049 = vmatmul.mubr.f32.gmra.mrb[0].mxu0 %v6141
          %v7050 = vpop.f32.mrb[0].mxu0
          %v7051 = vadd.f32 %v6866, %v7050
          %v7052 = vpop.f32.mrb[0].mxu0
          %7053 = vmatprep.mubr.f32.mxu0 %v6150
          %7054 = vmatmul.mubr.f32.gmra.mrb[0].mxu0 %v6149
          %v7055 = vpop.f32.mrb[0].mxu0
          %v7056 = vadd.f32 %v6871, %v7055
          %v7057 = vpop.f32.mrb[0].mxu0
          %7058 = vmatprep.mubr.f32.mxu0 %v6158
          %7059 = vmatmul.mubr.f32.gmra.mrb[0].mxu0 %v6157
          %v7060 = vpop.f32.mrb[0].mxu0
          %v7061 = vadd.f32 %v6876, %v7060
          %v7062 = vpop.f32.mrb[0].mxu0
          %7063 = vmatprep.mubr.f32.mxu0 %v6166
          %7064 = vmatmul.mubr.f32.gmra.mrb[0].mxu0 %v6165
          %v7065 = vpop.f32.mrb[0].mxu0
          %v7066 = vadd.f32 %v6881, %v7065
          %v7067 = vpop.f32.mrb[0].mxu0
          %7068 = vmatprep.mubr.f32.mxu0 %v6174
          %7069 = vmatmul.mubr.f32.gmra.mrb[0].mxu0 %v6173
          %v7070 = vpop.f32.mrb[0].mxu0
          %v7071 = vadd.f32 %v6886, %v7070
          %v7072 = vpop.f32.mrb[0].mxu0
          %7073 = vmatprep.mubr.f32.mxu0 %v6182
          %7074 = vmatmul.mubr.f32.gmra.mrb[0].mxu0 %v6181
          %v7075 = vpop.f32.mrb[0].mxu0
          %v7076 = vadd.f32 %v6891, %v7075
          %v7077 = vpop.f32.mrb[0].mxu0
          %7078 = vmatprep.mubr.f32.mxu0 %v6190
          %7079 = vmatmul.mubr.f32.gmra.mrb[0].mxu0 %v6189
          %v7080 = vpop.f32.mrb[0].mxu0
          %v7081 = vadd.f32 %v6896, %v7080
          %v7082 = vpop.f32.mrb[0].mxu0
          %7083 = vmatprep.mubr.f32.mxu0 %v6198
          %7084 = vmatmul.mubr.f32.gmra.mrb[0].mxu0 %v6197
          %v7085 = vpop.f32.mrb[0].mxu0
          %v7086 = vadd.f32 %v6901, %v7085
          %v7087 = vpop.f32.mrb[0].mxu0
          %7088 = vmatprep.mubr.f32.mxu0 %v6206
          %7089 = vmatmul.mubr.f32.gmra.mrb[0].mxu0 %v6205
          %v7090 = vpop.f32.mrb[0].mxu0
          %v7091 = vadd.f32 %v6906, %v7090
          %v7092 = vpop.f32.mrb[0].mxu0
          %7093 = vmatprep.mubr.f32.mxu0 %v6214
          %7094 = vmatmul.mubr.f32.gmra.mrb[0].mxu0 %v6213
          %v7095 = vpop.f32.mrb[0].mxu0
          %v7096 = vadd.f32 %v6911, %v7095
          %v7097 = vpop.f32.mrb[0].mxu0
          %7098 = vdwg.mxu0
          %vm7099 = vcmp.ge.f32.partialorder %v6981, 0.0
          %vm7100 = vcmp.ge.f32.partialorder %v6986, 0.0
          %vm7101 = vcmp.ge.f32.partialorder %v6991, 0.0
          %vm7102 = vcmp.ge.f32.partialorder %v6996, 0.0
          %vm7103 = vcmp.ge.f32.partialorder %v7001, 0.0
          %vm7104 = vcmp.ge.f32.partialorder %v7006, 0.0
          %vm7105 = vcmp.ge.f32.partialorder %v7011, 0.0
          %vm7106 = vcmp.ge.f32.partialorder %v7016, 0.0
          %vm7107 = vcmp.ge.f32.partialorder %v7021, 0.0
          %vm7108 = vcmp.ge.f32.partialorder %v7026, 0.0
          %vm7109 = vcmp.ge.f32.partialorder %v7031, 0.0
          %vm7110 = vcmp.ge.f32.partialorder %v7036, 0.0
          %vm7111 = vcmp.ge.f32.partialorder %v7041, 0.0
          %vm7112 = vcmp.ge.f32.partialorder %v7046, 0.0
          %vm7113 = vcmp.ge.f32.partialorder %v7051, 0.0
          %vm7114 = vcmp.ge.f32.partialorder %v7056, 0.0
          %vm7115 = vcmp.ge.f32.partialorder %v7061, 0.0
          %vm7116 = vcmp.ge.f32.partialorder %v7066, 0.0
          %vm7117 = vcmp.ge.f32.partialorder %v7071, 0.0
          %vm7118 = vcmp.ge.f32.partialorder %v7076, 0.0
          %vm7119 = vcmp.ge.f32.partialorder %v7081, 0.0
          %vm7120 = vcmp.ge.f32.partialorder %v7086, 0.0
          %vm7121 = vcmp.ge.f32.partialorder %v7091, 0.0
          %vm7122 = vcmp.ge.f32.partialorder %v7096, 0.0
          %v7123 = vmul.f32 %v6981, 0.1
          %v7124 = vmul.f32 %v6986, 0.1
          %v7125 = vmul.f32 %v6991, 0.1
          %v7126 = vmul.f32 %v6996, 0.1
          %v7127 = vmul.f32 %v7001, 0.1
          %v7128 = vmul.f32 %v7006, 0.1
          %v7129 = vmul.f32 %v7011, 0.1
          %v7130 = vmul.f32 %v7016, 0.1
          %v7131 = vmul.f32 %v7021, 0.1
          %v7132 = vmul.f32 %v7026, 0.1
          %v7133 = vmul.f32 %v7031, 0.1
          %v7134 = vmul.f32 %v7036, 0.1
          %v7135 = vmul.f32 %v7041, 0.1
          %v7136 = vmul.f32 %v7046, 0.1
          %v7137 = vmul.f32 %v7051, 0.1
          %v7138 = vmul.f32 %v7056, 0.1
          %v7139 = vmul.f32 %v7061, 0.1
          %v7140 = vmul.f32 %v7066, 0.1
          %v7141 = vmul.f32 %v7071, 0.1
          %v7142 = vmul.f32 %v7076, 0.1
          %v7143 = vmul.f32 %v7081, 0.1
          %v7144 = vmul.f32 %v7086, 0.1
          %v7145 = vmul.f32 %v7091, 0.1
          %v7146 = vmul.f32 %v7096, 0.1
          %v7147 = vsel %vm7099, %v6981, %v7123
          %v7148 = vsel %vm7100, %v6986, %v7124
          %v7149 = vsel %vm7101, %v6991, %v7125
          %v7150 = vsel %vm7102, %v6996, %v7126
          %v7151 = vsel %vm7103, %v7001, %v7127
          %v7152 = vsel %vm7104, %v7006, %v7128
          %v7153 = vsel %vm7105, %v7011, %v7129
          %v7154 = vsel %vm7106, %v7016, %v7130
          %v7155 = vsel %vm7107, %v7021, %v7131
          %v7156 = vsel %vm7108, %v7026, %v7132
          %v7157 = vsel %vm7109, %v7031, %v7133
          %v7158 = vsel %vm7110, %v7036, %v7134
          %v7159 = vsel %vm7111, %v7041, %v7135
          %v7160 = vsel %vm7112, %v7046, %v7136
          %v7161 = vsel %vm7113, %v7051, %v7137
          %v7162 = vsel %vm7114, %v7056, %v7138
          %v7163 = vsel %vm7115, %v7061, %v7139
          %v7164 = vsel %vm7116, %v7066, %v7140
          %v7165 = vsel %vm7117, %v7071, %v7141
          %v7166 = vsel %vm7118, %v7076, %v7142
          %v7167 = vsel %vm7119, %v7081, %v7143
          %v7168 = vsel %vm7120, %v7086, %v7144
          %v7169 = vsel %vm7121, %v7091, %v7145
          %v7170 = vsel %vm7122, %v7096, %v7146
          %vm7171 = vcmask 15360
          %7172 = vst.msk [vmem:[#allocation4] sm:$0xff] %vm7171, %v7147
          %7173 = vst.msk [vmem:[#allocation4 + $0x8] sm:$0xff] %vm7171, %v7148
          %7174 = vst.msk [vmem:[#allocation4 + $0x10] sm:$0xff] %vm7171, %v7149
          %7175 = vst.msk [vmem:[#allocation4 + $0x18] sm:$0xff] %vm7171, %v7150
          %7176 = vst.msk [vmem:[#allocation4 + $0x20] sm:$0xff] %vm7171, %v7151
          %7177 = vst.msk [vmem:[#allocation4 + $0x28] sm:$0xff] %vm7171, %v7152
          %7178 = vst.msk [vmem:[#allocation4 + $0x30] sm:$0xff] %vm7171, %v7153
          %7179 = vst.msk [vmem:[#allocation4 + $0x38] sm:$0xff] %vm7171, %v7154
          %7180 = vst.msk [vmem:[#allocation4 + $0x40] sm:$0xff] %vm7171, %v7155
          %7181 = vst.msk [vmem:[#allocation4 + $0x48] sm:$0xff] %vm7171, %v7156
          %7182 = vst.msk [vmem:[#allocation4 + $0x50] sm:$0xff] %vm7171, %v7157
          %7183 = vst.msk [vmem:[#allocation4 + $0x58] sm:$0xff] %vm7171, %v7158
          %7184 = vst.msk [vmem:[#allocation4 + $0x60] sm:$0xff] %vm7171, %v7159
          %7185 = vst.msk [vmem:[#allocation4 + $0x68] sm:$0xff] %vm7171, %v7160
          %7186 = vst.msk [vmem:[#allocation4 + $0x70] sm:$0xff] %vm7171, %v7161
          %7187 = vst.msk [vmem:[#allocation4 + $0x78] sm:$0xff] %vm7171, %v7162
          %7188 = vst.msk [vmem:[#allocation4 + $0x80] sm:$0xff] %vm7171, %v7163
          %7189 = vst.msk [vmem:[#allocation4 + $0x88] sm:$0xff] %vm7171, %v7164
          %7190 = vst.msk [vmem:[#allocation4 + $0x90] sm:$0xff] %vm7171, %v7165
          %7191 = vst.msk [vmem:[#allocation4 + $0x98] sm:$0xff] %vm7171, %v7166
          %7192 = vst.msk [vmem:[#allocation4 + $0xa0] sm:$0xff] %vm7171, %v7167
          %7193 = vst.msk [vmem:[#allocation4 + $0xa8] sm:$0xff] %vm7171, %v7168
          %7194 = vst.msk [vmem:[#allocation4 + $0xb0] sm:$0xff] %vm7171, %v7169
          %7195 = vst.msk [vmem:[#allocation4 + $0xb8] sm:$0xff] %vm7171, %v7170
          %7220 = vrot.lane.b32.xlu0 %v7147, 126
          %v7221 = vpop.permute.xlu0 %7220
          %7222 = vrot.lane.b32.xlu0 %v7148, 126
          %v7223 = vpop.permute.xlu0 %7222
          %7224 = vrot.lane.b32.xlu0 %v7149, 126
          %v7225 = vpop.permute.xlu0 %7224
          %7226 = vrot.lane.b32.xlu0 %v7150, 126
          %v7227 = vpop.permute.xlu0 %7226
          %7228 = vrot.lane.b32.xlu0 %v7151, 126
          %v7229 = vpop.permute.xlu0 %7228
          %7230 = vrot.lane.b32.xlu0 %v7152, 126
          %v7231 = vpop.permute.xlu0 %7230
          %7232 = vrot.lane.b32.xlu0 %v7153, 126
          %v7233 = vpop.permute.xlu0 %7232
          %7234 = vrot.lane.b32.xlu0 %v7154, 126
          %v7235 = vpop.permute.xlu0 %7234
          %7236 = vrot.lane.b32.xlu0 %v7155, 126
          %v7237 = vpop.permute.xlu0 %7236
          %7238 = vrot.lane.b32.xlu0 %v7156, 126
          %v7239 = vpop.permute.xlu0 %7238
          %7240 = vrot.lane.b32.xlu0 %v7157, 126
          %v7241 = vpop.permute.xlu0 %7240
          %7242 = vrot.lane.b32.xlu0 %v7158, 126
          %v7243 = vpop.permute.xlu0 %7242
          %7244 = vrot.lane.b32.xlu0 %v7159, 126
          %v7245 = vpop.permute.xlu0 %7244
          %7246 = vrot.lane.b32.xlu0 %v7160, 126
          %v7247 = vpop.permute.xlu0 %7246
          %7248 = vrot.lane.b32.xlu0 %v7161, 126
          %v7249 = vpop.permute.xlu0 %7248
          %7250 = vrot.lane.b32.xlu0 %v7162, 126
          %v7251 = vpop.permute.xlu0 %7250
          %7252 = vrot.lane.b32.xlu0 %v7163, 126
          %v7253 = vpop.permute.xlu0 %7252
          %7254 = vrot.lane.b32.xlu0 %v7164, 126
          %v7255 = vpop.permute.xlu0 %7254
          %7256 = vrot.lane.b32.xlu0 %v7165, 126
          %v7257 = vpop.permute.xlu0 %7256
          %7258 = vrot.lane.b32.xlu0 %v7166, 126
          %v7259 = vpop.permute.xlu0 %7258
          %7260 = vrot.lane.b32.xlu0 %v7167, 126
          %v7261 = vpop.permute.xlu0 %7260
          %7262 = vrot.lane.b32.xlu0 %v7168, 126
          %v7263 = vpop.permute.xlu0 %7262
          %7264 = vrot.lane.b32.xlu0 %v7169, 126
          %v7265 = vpop.permute.xlu0 %7264
          %7266 = vrot.lane.b32.xlu0 %v7170, 126
          %v7267 = vpop.permute.xlu0 %7266
          %s7292 = scalar_lea.vmem [#allocation4], 192
          %7293 = vst.msk [vmem:[%s7292] sm:$0xff] %vm7171, %v7221
          %7294 = vst.msk [vmem:[%s7292 + $0x8] sm:$0xff] %vm7171, %v7223
          %7295 = vst.msk [vmem:[%s7292 + $0x10] sm:$0xff] %vm7171, %v7225
          %7296 = vst.msk [vmem:[%s7292 + $0x18] sm:$0xff] %vm7171, %v7227
          %7297 = vst.msk [vmem:[%s7292 + $0x20] sm:$0xff] %vm7171, %v7229
          %7298 = vst.msk [vmem:[%s7292 + $0x28] sm:$0xff] %vm7171, %v7231
          %7299 = vst.msk [vmem:[%s7292 + $0x30] sm:$0xff] %vm7171, %v7233
          %7300 = vst.msk [vmem:[%s7292 + $0x38] sm:$0xff] %vm7171, %v7235
          %7301 = vst.msk [vmem:[%s7292 + $0x40] sm:$0xff] %vm7171, %v7237
          %7302 = vst.msk [vmem:[%s7292 + $0x48] sm:$0xff] %vm7171, %v7239
          %7303 = vst.msk [vmem:[%s7292 + $0x50] sm:$0xff] %vm7171, %v7241
          %7304 = vst.msk [vmem:[%s7292 + $0x58] sm:$0xff] %vm7171, %v7243
          %7305 = vst.msk [vmem:[%s7292 + $0x60] sm:$0xff] %vm7171, %v7245
          %7306 = vst.msk [vmem:[%s7292 + $0x68] sm:$0xff] %vm7171, %v7247
          %7307 = vst.msk [vmem:[%s7292 + $0x70] sm:$0xff] %vm7171, %v7249
          %7308 = vst.msk [vmem:[%s7292 + $0x78] sm:$0xff] %vm7171, %v7251
          %7309 = vst.msk [vmem:[%s7292 + $0x80] sm:$0xff] %vm7171, %v7253
          %7310 = vst.msk [vmem:[%s7292 + $0x88] sm:$0xff] %vm7171, %v7255
          %7311 = vst.msk [vmem:[%s7292 + $0x90] sm:$0xff] %vm7171, %v7257
          %7312 = vst.msk [vmem:[%s7292 + $0x98] sm:$0xff] %vm7171, %v7259
          %7313 = vst.msk [vmem:[%s7292 + $0xa0] sm:$0xff] %vm7171, %v7261
          %7314 = vst.msk [vmem:[%s7292 + $0xa8] sm:$0xff] %vm7171, %v7263
          %7315 = vst.msk [vmem:[%s7292 + $0xb0] sm:$0xff] %vm7171, %v7265
          %7316 = vst.msk [vmem:[%s7292 + $0xb8] sm:$0xff] %vm7171, %v7267
        $region130: #{neck_forward.1} parent=113 // pred_fallthru
          _
        %s7317 = scalar_lea.vmem [#allocation4], %s1757
        %v7318 = vld [vmem:[%s7317] sm:$0xff]
        %v7319 = vld [vmem:[%s7317 + $0x8] sm:$0xff]
        %v7320 = vld [vmem:[%s7317 + $0x10] sm:$0xff]
        %v7321 = vld [vmem:[%s7317 + $0x18] sm:$0xff]
        %v7322 = vld [vmem:[%s7317 + $0x20] sm:$0xff]
        %v7323 = vld [vmem:[%s7317 + $0x28] sm:$0xff]
        %v7324 = vld [vmem:[%s7317 + $0x30] sm:$0xff]
        %v7325 = vld [vmem:[%s7317 + $0x38] sm:$0xff]
        %v7326 = vld [vmem:[%s7317 + $0x40] sm:$0xff]
        %v7327 = vld [vmem:[%s7317 + $0x48] sm:$0xff]
        %v7328 = vld [vmem:[%s7317 + $0x50] sm:$0xff]
        %v7329 = vld [vmem:[%s7317 + $0x58] sm:$0xff]
        %v7330 = vld [vmem:[%s7317 + $0x60] sm:$0xff]
        %v7331 = vld [vmem:[%s7317 + $0x68] sm:$0xff]
        %v7332 = vld [vmem:[%s7317 + $0x70] sm:$0xff]
        %v7333 = vld [vmem:[%s7317 + $0x78] sm:$0xff]
        %v7334 = vld [vmem:[%s7317 + $0x80] sm:$0xff]
        %v7335 = vld [vmem:[%s7317 + $0x88] sm:$0xff]
        %v7336 = vld [vmem:[%s7317 + $0x90] sm:$0xff]
        %v7337 = vld [vmem:[%s7317 + $0x98] sm:$0xff]
        %v7338 = vld [vmem:[%s7317 + $0xa0] sm:$0xff]
        %v7339 = vld [vmem:[%s7317 + $0xa8] sm:$0xff]
        %v7340 = vld [vmem:[%s7317 + $0xb0] sm:$0xff]
        %v7341 = vld [vmem:[%s7317 + $0xb8] sm:$0xff]
        %v7342 = vld [vmem:[%s14] sm:$0x3]
        %vm7343 = vcmask 15360
        %v7345 = vsel %vm7343, %v7318, 0
        %v7348 = vsel %vm7343, %v7319, 0
        %v7351 = vsel %vm7343, %v7320, 0
        %v7354 = vsel %vm7343, %v7321, 0
        %v7357 = vsel %vm7343, %v7322, 0
        %v7360 = vsel %vm7343, %v7323, 0
        %v7363 = vsel %vm7343, %v7324, 0
        %v7366 = vsel %vm7343, %v7325, 0
        %v7369 = vsel %vm7343, %v7326, 0
        %v7372 = vsel %vm7343, %v7327, 0
        %v7375 = vsel %vm7343, %v7328, 0
        %v7378 = vsel %vm7343, %v7329, 0
        %v7381 = vsel %vm7343, %v7330, 0
        %v7384 = vsel %vm7343, %v7331, 0
        %v7387 = vsel %vm7343, %v7332, 0
        %v7390 = vsel %vm7343, %v7333, 0
        %v7393 = vsel %vm7343, %v7334, 0
        %v7396 = vsel %vm7343, %v7335, 0
        %v7399 = vsel %vm7343, %v7336, 0
        %v7402 = vsel %vm7343, %v7337, 0
        %v7405 = vsel %vm7343, %v7338, 0
        %v7408 = vsel %vm7343, %v7339, 0
        %v7411 = vsel %vm7343, %v7340, 0
        %v7414 = vsel %vm7343, %v7341, 0
        %vm7416 = vcmask 1041408
        %v7418 = vsel %vm7416, %v7342, 0
        %7420 = vmatprep.subr.mxu0 0.0
        %7421 = vmatpush1.msra.mxu0 %v7418
        %7422 = vmatprep.subr.mxu0 0.0
        %7423 = vmatpush1.msra.mxu0 0.0
        %7424 = vmatprep.subr.mxu0 0.0
        %7425 = vmatpush1.msra.mxu0 0.0
        %7426 = vmatprep.subr.mxu0 0.0
        %7427 = vmatpush1.msra.mxu0 0.0
        %7428 = vmatprep.subr.mxu0 0.0
        %7429 = vmatpush1.msra.mxu0 0.0
        %7430 = vmatprep.subr.mxu0 0.0
        %7431 = vmatpush1.msra.mxu0 0.0
        %7432 = vmatprep.subr.mxu0 0.0
        %7433 = vmatpush1.msra.mxu0 0.0
        %7434 = vmatprep.subr.mxu0 0.0
        %7435 = vmatpush1.msra.mxu0 0.0
        %7436 = vmatprep.subr.mxu0 0.0
        %7437 = vmatpush1.msra.mxu0 0.0
        %7438 = vmatprep.subr.mxu0 0.0
        %7439 = vmatpush1.msra.mxu0 0.0
        %7440 = vmatprep.subr.mxu0 0.0
        %7441 = vmatpush1.msra.mxu0 0.0
        %7442 = vmatprep.subr.mxu0 0.0
        %7443 = vmatpush1.msra.mxu0 0.0
        %7444 = vmatprep.subr.mxu0 0.0
        %7445 = vmatpush1.msra.mxu0 0.0
        %7446 = vmatprep.subr.mxu0 0.0
        %7447 = vmatpush1.msra.mxu0 0.0
        %7448 = vmatprep.subr.mxu0 0.0
        %7449 = vmatpush1.msra.mxu0 0.0
        %7450 = vmatprep.subr.mxu0 0.0
        %7451 = vmatpush1.msra.mxu0 0.0
        %7452 = vmatprep.subr.mxu0 0.0
        %7453 = vmatpush1.msra.mxu0 0.0
        %7454 = vmatprep.subr.mxu0 0.0
        %7455 = vmatpush1.msra.mxu0 0.0
        %7456 = vmatprep.subr.mxu0 0.0
        %7457 = vmatpush1.msra.mxu0 0.0
        %7458 = vmatprep.subr.mxu0 0.0
        %7459 = vmatpush1.msra.mxu0 0.0
        %7460 = vmatprep.subr.mxu0 0.0
        %7461 = vmatpush1.msra.mxu0 0.0
        %7462 = vmatprep.subr.mxu0 0.0
        %7463 = vmatpush1.msra.mxu0 0.0
        %7464 = vmatprep.subr.mxu0 0.0
        %7465 = vmatpush1.msra.mxu0 0.0
        %7466 = vmatprep.subr.mxu0 0.0
        %7467 = vmatpush1.msra.mxu0 0.0
        %7468 = vmatprep.subr.mxu0 0.0
        %7469 = vmatpush1.msra.mxu0 0.0
        %7470 = vmatprep.subr.mxu0 0.0
        %7471 = vmatpush1.msra.mxu0 0.0
        %7472 = vmatprep.subr.mxu0 0.0
        %7473 = vmatpush1.msra.mxu0 0.0
        %7474 = vmatprep.subr.mxu0 0.0
        %7475 = vmatpush1.msra.mxu0 0.0
        %7476 = vmatprep.subr.mxu0 0.0
        %7477 = vmatpush1.msra.mxu0 0.0
        %7478 = vmatprep.subr.mxu0 0.0
        %7479 = vmatpush1.msra.mxu0 0.0
        %7480 = vmatprep.subr.mxu0 0.0
        %7481 = vmatpush1.msra.mxu0 0.0
        %7482 = vmatprep.subr.mxu0 0.0
        %7483 = vmatpush1.msra.mxu0 0.0
        %7484 = vmatprep.mubr.f32.mxu0 0.0
        %7485 = vmatmul.mubr.f32.gmra.mrb[0].mxu0 %v7345
        %v7486 = vpop.f32.mrb[0].mxu0
        %v7487 = vadd.f32 0.0, %v7486
        %v7488 = vpop.f32.mrb[0].mxu0
        %7489 = vmatprep.mubr.f32.mxu0 0.0
        %7490 = vmatmul.mubr.f32.gmra.mrb[0].mxu0 %v7348
        %v7491 = vpop.f32.mrb[0].mxu0
        %v7492 = vadd.f32 0.0, %v7491
        %v7493 = vpop.f32.mrb[0].mxu0
        %7494 = vmatprep.mubr.f32.mxu0 0.0
        %7495 = vmatmul.mubr.f32.gmra.mrb[0].mxu0 %v7351
        %v7496 = vpop.f32.mrb[0].mxu0
        %v7497 = vadd.f32 0.0, %v7496
        %v7498 = vpop.f32.mrb[0].mxu0
        %7499 = vmatprep.mubr.f32.mxu0 0.0
        %7500 = vmatmul.mubr.f32.gmra.mrb[0].mxu0 %v7354
        %v7501 = vpop.f32.mrb[0].mxu0
        %v7502 = vadd.f32 0.0, %v7501
        %v7503 = vpop.f32.mrb[0].mxu0
        %7504 = vmatprep.mubr.f32.mxu0 0.0
        %7505 = vmatmul.mubr.f32.gmra.mrb[0].mxu0 %v7357
        %v7506 = vpop.f32.mrb[0].mxu0
        %v7507 = vadd.f32 0.0, %v7506
        %v7508 = vpop.f32.mrb[0].mxu0
        %7509 = vmatprep.mubr.f32.mxu0 0.0
        %7510 = vmatmul.mubr.f32.gmra.mrb[0].mxu0 %v7360
        %v7511 = vpop.f32.mrb[0].mxu0
        %v7512 = vadd.f32 0.0, %v7511
        %v7513 = vpop.f32.mrb[0].mxu0
        %7514 = vmatprep.mubr.f32.mxu0 0.0
        %7515 = vmatmul.mubr.f32.gmra.mrb[0].mxu0 %v7363
        %v7516 = vpop.f32.mrb[0].mxu0
        %v7517 = vadd.f32 0.0, %v7516
        %v7518 = vpop.f32.mrb[0].mxu0
        %7519 = vmatprep.mubr.f32.mxu0 0.0
        %7520 = vmatmul.mubr.f32.gmra.mrb[0].mxu0 %v7366
        %v7521 = vpop.f32.mrb[0].mxu0
        %v7522 = vadd.f32 0.0, %v7521
        %v7523 = vpop.f32.mrb[0].mxu0
        %7524 = vmatprep.mubr.f32.mxu0 0.0
        %7525 = vmatmul.mubr.f32.gmra.mrb[0].mxu0 %v7369
        %v7526 = vpop.f32.mrb[0].mxu0
        %v7527 = vadd.f32 0.0, %v7526
        %v7528 = vpop.f32.mrb[0].mxu0
        %7529 = vmatprep.mubr.f32.mxu0 0.0
        %7530 = vmatmul.mubr.f32.gmra.mrb[0].mxu0 %v7372
        %v7531 = vpop.f32.mrb[0].mxu0
        %v7532 = vadd.f32 0.0, %v7531
        %v7533 = vpop.f32.mrb[0].mxu0
        %7534 = vmatprep.mubr.f32.mxu0 0.0
        %7535 = vmatmul.mubr.f32.gmra.mrb[0].mxu0 %v7375
        %v7536 = vpop.f32.mrb[0].mxu0
        %v7537 = vadd.f32 0.0, %v7536
        %v7538 = vpop.f32.mrb[0].mxu0
        %7539 = vmatprep.mubr.f32.mxu0 0.0
        %7540 = vmatmul.mubr.f32.gmra.mrb[0].mxu0 %v7378
        %v7541 = vpop.f32.mrb[0].mxu0
        %v7542 = vadd.f32 0.0, %v7541
        %v7543 = vpop.f32.mrb[0].mxu0
        %7544 = vmatprep.mubr.f32.mxu0 0.0
        %7545 = vmatmul.mubr.f32.gmra.mrb[0].mxu0 %v7381
        %v7546 = vpop.f32.mrb[0].mxu0
        %v7547 = vadd.f32 0.0, %v7546
        %v7548 = vpop.f32.mrb[0].mxu0
        %7549 = vmatprep.mubr.f32.mxu0 0.0
        %7550 = vmatmul.mubr.f32.gmra.mrb[0].mxu0 %v7384
        %v7551 = vpop.f32.mrb[0].mxu0
        %v7552 = vadd.f32 0.0, %v7551
        %v7553 = vpop.f32.mrb[0].mxu0
        %7554 = vmatprep.mubr.f32.mxu0 0.0
        %7555 = vmatmul.mubr.f32.gmra.mrb[0].mxu0 %v7387
        %v7556 = vpop.f32.mrb[0].mxu0
        %v7557 = vadd.f32 0.0, %v7556
        %v7558 = vpop.f32.mrb[0].mxu0
        %7559 = vmatprep.mubr.f32.mxu0 0.0
        %7560 = vmatmul.mubr.f32.gmra.mrb[0].mxu0 %v7390
        %v7561 = vpop.f32.mrb[0].mxu0
        %v7562 = vadd.f32 0.0, %v7561
        %v7563 = vpop.f32.mrb[0].mxu0
        %7564 = vmatprep.mubr.f32.mxu0 0.0
        %7565 = vmatmul.mubr.f32.gmra.mrb[0].mxu0 %v7393
        %v7566 = vpop.f32.mrb[0].mxu0
        %v7567 = vadd.f32 0.0, %v7566
        %v7568 = vpop.f32.mrb[0].mxu0
        %7569 = vmatprep.mubr.f32.mxu0 0.0
        %7570 = vmatmul.mubr.f32.gmra.mrb[0].mxu0 %v7396
        %v7571 = vpop.f32.mrb[0].mxu0
        %v7572 = vadd.f32 0.0, %v7571
        %v7573 = vpop.f32.mrb[0].mxu0
        %7574 = vmatprep.mubr.f32.mxu0 0.0
        %7575 = vmatmul.mubr.f32.gmra.mrb[0].mxu0 %v7399
        %v7576 = vpop.f32.mrb[0].mxu0
        %v7577 = vadd.f32 0.0, %v7576
        %v7578 = vpop.f32.mrb[0].mxu0
        %7579 = vmatprep.mubr.f32.mxu0 0.0
        %7580 = vmatmul.mubr.f32.gmra.mrb[0].mxu0 %v7402
        %v7581 = vpop.f32.mrb[0].mxu0
        %v7582 = vadd.f32 0.0, %v7581
        %v7583 = vpop.f32.mrb[0].mxu0
        %7584 = vmatprep.mubr.f32.mxu0 0.0
        %7585 = vmatmul.mubr.f32.gmra.mrb[0].mxu0 %v7405
        %v7586 = vpop.f32.mrb[0].mxu0
        %v7587 = vadd.f32 0.0, %v7586
        %v7588 = vpop.f32.mrb[0].mxu0
        %7589 = vmatprep.mubr.f32.mxu0 0.0
        %7590 = vmatmul.mubr.f32.gmra.mrb[0].mxu0 %v7408
        %v7591 = vpop.f32.mrb[0].mxu0
        %v7592 = vadd.f32 0.0, %v7591
        %v7593 = vpop.f32.mrb[0].mxu0
        %7594 = vmatprep.mubr.f32.mxu0 0.0
        %7595 = vmatmul.mubr.f32.gmra.mrb[0].mxu0 %v7411
        %v7596 = vpop.f32.mrb[0].mxu0
        %v7597 = vadd.f32 0.0, %v7596
        %v7598 = vpop.f32.mrb[0].mxu0
        %7599 = vmatprep.mubr.f32.mxu0 0.0
        %7600 = vmatmul.mubr.f32.gmra.mrb[0].mxu0 %v7414
        %v7601 = vpop.f32.mrb[0].mxu0
        %v7602 = vadd.f32 0.0, %v7601
        %v7603 = vpop.f32.mrb[0].mxu0
        %7604 = vdwg.mxu0
        %7605 = vst.msk [vmem:[%s645 + $0x240] sm:$0xff] %vm2042, %v7487
        %7606 = vst.msk [vmem:[%s645 + $0x248] sm:$0xff] %vm2042, %v7492
        %7607 = vst.msk [vmem:[%s645 + $0x250] sm:$0xff] %vm2042, %v7497
        %7608 = vst.msk [vmem:[%s645 + $0x258] sm:$0xff] %vm2042, %v7502
        %7609 = vst.msk [vmem:[%s645 + $0x260] sm:$0xff] %vm2042, %v7507
        %7610 = vst.msk [vmem:[%s645 + $0x268] sm:$0xff] %vm2042, %v7512
        %7611 = vst.msk [vmem:[%s645 + $0x270] sm:$0xff] %vm2042, %v7517
        %7612 = vst.msk [vmem:[%s645 + $0x278] sm:$0xff] %vm2042, %v7522
        %7613 = vst.msk [vmem:[%s645 + $0x280] sm:$0xff] %vm2042, %v7527
        %7614 = vst.msk [vmem:[%s645 + $0x288] sm:$0xff] %vm2042, %v7532
        %7615 = vst.msk [vmem:[%s645 + $0x290] sm:$0xff] %vm2042, %v7537
        %7616 = vst.msk [vmem:[%s645 + $0x298] sm:$0xff] %vm2042, %v7542
        %7617 = vst.msk [vmem:[%s645 + $0x2a0] sm:$0xff] %vm2042, %v7547
        %7618 = vst.msk [vmem:[%s645 + $0x2a8] sm:$0xff] %vm2042, %v7552
        %7619 = vst.msk [vmem:[%s645 + $0x2b0] sm:$0xff] %vm2042, %v7557
        %7620 = vst.msk [vmem:[%s645 + $0x2b8] sm:$0xff] %vm2042, %v7562
        %7621 = vst.msk [vmem:[%s645 + $0x2c0] sm:$0xff] %vm2042, %v7567
        %7622 = vst.msk [vmem:[%s645 + $0x2c8] sm:$0xff] %vm2042, %v7572
        %7623 = vst.msk [vmem:[%s645 + $0x2d0] sm:$0xff] %vm2042, %v7577
        %7624 = vst.msk [vmem:[%s645 + $0x2d8] sm:$0xff] %vm2042, %v7582
        %7625 = vst.msk [vmem:[%s645 + $0x2e0] sm:$0xff] %vm2042, %v7587
        %7626 = vst.msk [vmem:[%s645 + $0x2e8] sm:$0xff] %vm2042, %v7592
        %7627 = vst.msk [vmem:[%s645 + $0x2f0] sm:$0xff] %vm2042, %v7597
        %7628 = vst.msk [vmem:[%s645 + $0x2f8] sm:$0xff] %vm2042, %v7602
        %7653 = vrot.lane.b32.xlu0 %v7487, 16
        %v7654 = vpop.permute.xlu0 %7653
        %7655 = vrot.lane.b32.xlu0 %v7492, 16
        %v7656 = vpop.permute.xlu0 %7655
        %7657 = vrot.lane.b32.xlu0 %v7497, 16
        %v7658 = vpop.permute.xlu0 %7657
        %7659 = vrot.lane.b32.xlu0 %v7502, 16
        %v7660 = vpop.permute.xlu0 %7659
        %7661 = vrot.lane.b32.xlu0 %v7507, 16
        %v7662 = vpop.permute.xlu0 %7661
        %7663 = vrot.lane.b32.xlu0 %v7512, 16
        %v7664 = vpop.permute.xlu0 %7663
        %7665 = vrot.lane.b32.xlu0 %v7517, 16
        %v7666 = vpop.permute.xlu0 %7665
        %7667 = vrot.lane.b32.xlu0 %v7522, 16
        %v7668 = vpop.permute.xlu0 %7667
        %7669 = vrot.lane.b32.xlu0 %v7527, 16
        %v7670 = vpop.permute.xlu0 %7669
        %7671 = vrot.lane.b32.xlu0 %v7532, 16
        %v7672 = vpop.permute.xlu0 %7671
        %7673 = vrot.lane.b32.xlu0 %v7537, 16
        %v7674 = vpop.permute.xlu0 %7673
        %7675 = vrot.lane.b32.xlu0 %v7542, 16
        %v7676 = vpop.permute.xlu0 %7675
        %7677 = vrot.lane.b32.xlu0 %v7547, 16
        %v7678 = vpop.permute.xlu0 %7677
        %7679 = vrot.lane.b32.xlu0 %v7552, 16
        %v7680 = vpop.permute.xlu0 %7679
        %7681 = vrot.lane.b32.xlu0 %v7557, 16
        %v7682 = vpop.permute.xlu0 %7681
        %7683 = vrot.lane.b32.xlu0 %v7562, 16
        %v7684 = vpop.permute.xlu0 %7683
        %7685 = vrot.lane.b32.xlu0 %v7567, 16
        %v7686 = vpop.permute.xlu0 %7685
        %7687 = vrot.lane.b32.xlu0 %v7572, 16
        %v7688 = vpop.permute.xlu0 %7687
        %7689 = vrot.lane.b32.xlu0 %v7577, 16
        %v7690 = vpop.permute.xlu0 %7689
        %7691 = vrot.lane.b32.xlu0 %v7582, 16
        %v7692 = vpop.permute.xlu0 %7691
        %7693 = vrot.lane.b32.xlu0 %v7587, 16
        %v7694 = vpop.permute.xlu0 %7693
        %7695 = vrot.lane.b32.xlu0 %v7592, 16
        %v7696 = vpop.permute.xlu0 %7695
        %7697 = vrot.lane.b32.xlu0 %v7597, 16
        %v7698 = vpop.permute.xlu0 %7697
        %7699 = vrot.lane.b32.xlu0 %v7602, 16
        %v7700 = vpop.permute.xlu0 %7699
        %7725 = vst.msk [vmem:[%s645 + $0x240] sm:$0xff] %vm2163, %v7654
        %7726 = vst.msk [vmem:[%s645 + $0x248] sm:$0xff] %vm2163, %v7656
        %7727 = vst.msk [vmem:[%s645 + $0x250] sm:$0xff] %vm2163, %v7658
        %7728 = vst.msk [vmem:[%s645 + $0x258] sm:$0xff] %vm2163, %v7660
        %7729 = vst.msk [vmem:[%s645 + $0x260] sm:$0xff] %vm2163, %v7662
        %7730 = vst.msk [vmem:[%s645 + $0x268] sm:$0xff] %vm2163, %v7664
        %7731 = vst.msk [vmem:[%s645 + $0x270] sm:$0xff] %vm2163, %v7666
        %7732 = vst.msk [vmem:[%s645 + $0x278] sm:$0xff] %vm2163, %v7668
        %7733 = vst.msk [vmem:[%s645 + $0x280] sm:$0xff] %vm2163, %v7670
        %7734 = vst.msk [vmem:[%s645 + $0x288] sm:$0xff] %vm2163, %v7672
        %7735 = vst.msk [vmem:[%s645 + $0x290] sm:$0xff] %vm2163, %v7674
        %7736 = vst.msk [vmem:[%s645 + $0x298] sm:$0xff] %vm2163, %v7676
        %7737 = vst.msk [vmem:[%s645 + $0x2a0] sm:$0xff] %vm2163, %v7678
        %7738 = vst.msk [vmem:[%s645 + $0x2a8] sm:$0xff] %vm2163, %v7680
        %7739 = vst.msk [vmem:[%s645 + $0x2b0] sm:$0xff] %vm2163, %v7682
        %7740 = vst.msk [vmem:[%s645 + $0x2b8] sm:$0xff] %vm2163, %v7684
        %7741 = vst.msk [vmem:[%s645 + $0x2c0] sm:$0xff] %vm2163, %v7686
        %7742 = vst.msk [vmem:[%s645 + $0x2c8] sm:$0xff] %vm2163, %v7688
        %7743 = vst.msk [vmem:[%s645 + $0x2d0] sm:$0xff] %vm2163, %v7690
        %7744 = vst.msk [vmem:[%s645 + $0x2d8] sm:$0xff] %vm2163, %v7692
        %7745 = vst.msk [vmem:[%s645 + $0x2e0] sm:$0xff] %vm2163, %v7694
        %7746 = vst.msk [vmem:[%s645 + $0x2e8] sm:$0xff] %vm2163, %v7696
        %7747 = vst.msk [vmem:[%s645 + $0x2f0] sm:$0xff] %vm2163, %v7698
        %7748 = vst.msk [vmem:[%s645 + $0x2f8] sm:$0xff] %vm2163, %v7700
        %7749 = vrot.lane.b32.xlu0 %v7487, 32
        %v7750 = vpop.permute.xlu0 %7749
        %7751 = vrot.lane.b32.xlu0 %v7492, 32
        %v7752 = vpop.permute.xlu0 %7751
        %7753 = vrot.lane.b32.xlu0 %v7497, 32
        %v7754 = vpop.permute.xlu0 %7753
        %7755 = vrot.lane.b32.xlu0 %v7502, 32
        %v7756 = vpop.permute.xlu0 %7755
        %7757 = vrot.lane.b32.xlu0 %v7507, 32
        %v7758 = vpop.permute.xlu0 %7757
        %7759 = vrot.lane.b32.xlu0 %v7512, 32
        %v7760 = vpop.permute.xlu0 %7759
        %7761 = vrot.lane.b32.xlu0 %v7517, 32
        %v7762 = vpop.permute.xlu0 %7761
        %7763 = vrot.lane.b32.xlu0 %v7522, 32
        %v7764 = vpop.permute.xlu0 %7763
        %7765 = vrot.lane.b32.xlu0 %v7527, 32
        %v7766 = vpop.permute.xlu0 %7765
        %7767 = vrot.lane.b32.xlu0 %v7532, 32
        %v7768 = vpop.permute.xlu0 %7767
        %7769 = vrot.lane.b32.xlu0 %v7537, 32
        %v7770 = vpop.permute.xlu0 %7769
        %7771 = vrot.lane.b32.xlu0 %v7542, 32
        %v7772 = vpop.permute.xlu0 %7771
        %7773 = vrot.lane.b32.xlu0 %v7547, 32
        %v7774 = vpop.permute.xlu0 %7773
        %7775 = vrot.lane.b32.xlu0 %v7552, 32
        %v7776 = vpop.permute.xlu0 %7775
        %7777 = vrot.lane.b32.xlu0 %v7557, 32
        %v7778 = vpop.permute.xlu0 %7777
        %7779 = vrot.lane.b32.xlu0 %v7562, 32
        %v7780 = vpop.permute.xlu0 %7779
        %7781 = vrot.lane.b32.xlu0 %v7567, 32
        %v7782 = vpop.permute.xlu0 %7781
        %7783 = vrot.lane.b32.xlu0 %v7572, 32
        %v7784 = vpop.permute.xlu0 %7783
        %7785 = vrot.lane.b32.xlu0 %v7577, 32
        %v7786 = vpop.permute.xlu0 %7785
        %7787 = vrot.lane.b32.xlu0 %v7582, 32
        %v7788 = vpop.permute.xlu0 %7787
        %7789 = vrot.lane.b32.xlu0 %v7587, 32
        %v7790 = vpop.permute.xlu0 %7789
        %7791 = vrot.lane.b32.xlu0 %v7592, 32
        %v7792 = vpop.permute.xlu0 %7791
        %7793 = vrot.lane.b32.xlu0 %v7597, 32
        %v7794 = vpop.permute.xlu0 %7793
        %7795 = vrot.lane.b32.xlu0 %v7602, 32
        %v7796 = vpop.permute.xlu0 %7795
        %7821 = vst.msk [vmem:[%s645 + $0x240] sm:$0xff] %vm2565, %v7750
        %7822 = vst.msk [vmem:[%s645 + $0x248] sm:$0xff] %vm2565, %v7752
        %7823 = vst.msk [vmem:[%s645 + $0x250] sm:$0xff] %vm2565, %v7754
        %7824 = vst.msk [vmem:[%s645 + $0x258] sm:$0xff] %vm2565, %v7756
        %7825 = vst.msk [vmem:[%s645 + $0x260] sm:$0xff] %vm2565, %v7758
        %7826 = vst.msk [vmem:[%s645 + $0x268] sm:$0xff] %vm2565, %v7760
        %7827 = vst.msk [vmem:[%s645 + $0x270] sm:$0xff] %vm2565, %v7762
        %7828 = vst.msk [vmem:[%s645 + $0x278] sm:$0xff] %vm2565, %v7764
        %7829 = vst.msk [vmem:[%s645 + $0x280] sm:$0xff] %vm2565, %v7766
        %7830 = vst.msk [vmem:[%s645 + $0x288] sm:$0xff] %vm2565, %v7768
        %7831 = vst.msk [vmem:[%s645 + $0x290] sm:$0xff] %vm2565, %v7770
        %7832 = vst.msk [vmem:[%s645 + $0x298] sm:$0xff] %vm2565, %v7772
        %7833 = vst.msk [vmem:[%s645 + $0x2a0] sm:$0xff] %vm2565, %v7774
        %7834 = vst.msk [vmem:[%s645 + $0x2a8] sm:$0xff] %vm2565, %v7776
        %7835 = vst.msk [vmem:[%s645 + $0x2b0] sm:$0xff] %vm2565, %v7778
        %7836 = vst.msk [vmem:[%s645 + $0x2b8] sm:$0xff] %vm2565, %v7780
        %7837 = vst.msk [vmem:[%s645 + $0x2c0] sm:$0xff] %vm2565, %v7782
        %7838 = vst.msk [vmem:[%s645 + $0x2c8] sm:$0xff] %vm2565, %v7784
        %7839 = vst.msk [vmem:[%s645 + $0x2d0] sm:$0xff] %vm2565, %v7786
        %7840 = vst.msk [vmem:[%s645 + $0x2d8] sm:$0xff] %vm2565, %v7788
        %7841 = vst.msk [vmem:[%s645 + $0x2e0] sm:$0xff] %vm2565, %v7790
        %7842 = vst.msk [vmem:[%s645 + $0x2e8] sm:$0xff] %vm2565, %v7792
        %7843 = vst.msk [vmem:[%s645 + $0x2f0] sm:$0xff] %vm2565, %v7794
        %7844 = vst.msk [vmem:[%s645 + $0x2f8] sm:$0xff] %vm2565, %v7796
        %7845 = vrot.lane.b32.xlu0 %v7487, 48
        %v7846 = vpop.permute.xlu0 %7845
        %7847 = vrot.lane.b32.xlu0 %v7492, 48
        %v7848 = vpop.permute.xlu0 %7847
        %7849 = vrot.lane.b32.xlu0 %v7497, 48
        %v7850 = vpop.permute.xlu0 %7849
        %7851 = vrot.lane.b32.xlu0 %v7502, 48
        %v7852 = vpop.permute.xlu0 %7851
        %7853 = vrot.lane.b32.xlu0 %v7507, 48
        %v7854 = vpop.permute.xlu0 %7853
        %7855 = vrot.lane.b32.xlu0 %v7512, 48
        %v7856 = vpop.permute.xlu0 %7855
        %7857 = vrot.lane.b32.xlu0 %v7517, 48
        %v7858 = vpop.permute.xlu0 %7857
        %7859 = vrot.lane.b32.xlu0 %v7522, 48
        %v7860 = vpop.permute.xlu0 %7859
        %7861 = vrot.lane.b32.xlu0 %v7527, 48
        %v7862 = vpop.permute.xlu0 %7861
        %7863 = vrot.lane.b32.xlu0 %v7532, 48
        %v7864 = vpop.permute.xlu0 %7863
        %7865 = vrot.lane.b32.xlu0 %v7537, 48
        %v7866 = vpop.permute.xlu0 %7865
        %7867 = vrot.lane.b32.xlu0 %v7542, 48
        %v7868 = vpop.permute.xlu0 %7867
        %7869 = vrot.lane.b32.xlu0 %v7547, 48
        %v7870 = vpop.permute.xlu0 %7869
        %7871 = vrot.lane.b32.xlu0 %v7552, 48
        %v7872 = vpop.permute.xlu0 %7871
        %7873 = vrot.lane.b32.xlu0 %v7557, 48
        %v7874 = vpop.permute.xlu0 %7873
        %7875 = vrot.lane.b32.xlu0 %v7562, 48
        %v7876 = vpop.permute.xlu0 %7875
        %7877 = vrot.lane.b32.xlu0 %v7567, 48
        %v7878 = vpop.permute.xlu0 %7877
        %7879 = vrot.lane.b32.xlu0 %v7572, 48
        %v7880 = vpop.permute.xlu0 %7879
        %7881 = vrot.lane.b32.xlu0 %v7577, 48
        %v7882 = vpop.permute.xlu0 %7881
        %7883 = vrot.lane.b32.xlu0 %v7582, 48
        %v7884 = vpop.permute.xlu0 %7883
        %7885 = vrot.lane.b32.xlu0 %v7587, 48
        %v7886 = vpop.permute.xlu0 %7885
        %7887 = vrot.lane.b32.xlu0 %v7592, 48
        %v7888 = vpop.permute.xlu0 %7887
        %7889 = vrot.lane.b32.xlu0 %v7597, 48
        %v7890 = vpop.permute.xlu0 %7889
        %7891 = vrot.lane.b32.xlu0 %v7602, 48
        %v7892 = vpop.permute.xlu0 %7891
        %7917 = vst.msk [vmem:[%s645 + $0x240] sm:$0xff] %vm2662, %v7846
        %7918 = vst.msk [vmem:[%s645 + $0x248] sm:$0xff] %vm2662, %v7848
        %7919 = vst.msk [vmem:[%s645 + $0x250] sm:$0xff] %vm2662, %v7850
        %7920 = vst.msk [vmem:[%s645 + $0x258] sm:$0xff] %vm2662, %v7852
        %7921 = vst.msk [vmem:[%s645 + $0x260] sm:$0xff] %vm2662, %v7854
        %7922 = vst.msk [vmem:[%s645 + $0x268] sm:$0xff] %vm2662, %v7856
        %7923 = vst.msk [vmem:[%s645 + $0x270] sm:$0xff] %vm2662, %v7858
        %7924 = vst.msk [vmem:[%s645 + $0x278] sm:$0xff] %vm2662, %v7860
        %7925 = vst.msk [vmem:[%s645 + $0x280] sm:$0xff] %vm2662, %v7862
        %7926 = vst.msk [vmem:[%s645 + $0x288] sm:$0xff] %vm2662, %v7864
        %7927 = vst.msk [vmem:[%s645 + $0x290] sm:$0xff] %vm2662, %v7866
        %7928 = vst.msk [vmem:[%s645 + $0x298] sm:$0xff] %vm2662, %v7868
        %7929 = vst.msk [vmem:[%s645 + $0x2a0] sm:$0xff] %vm2662, %v7870
        %7930 = vst.msk [vmem:[%s645 + $0x2a8] sm:$0xff] %vm2662, %v7872
        %7931 = vst.msk [vmem:[%s645 + $0x2b0] sm:$0xff] %vm2662, %v7874
        %7932 = vst.msk [vmem:[%s645 + $0x2b8] sm:$0xff] %vm2662, %v7876
        %7933 = vst.msk [vmem:[%s645 + $0x2c0] sm:$0xff] %vm2662, %v7878
        %7934 = vst.msk [vmem:[%s645 + $0x2c8] sm:$0xff] %vm2662, %v7880
        %7935 = vst.msk [vmem:[%s645 + $0x2d0] sm:$0xff] %vm2662, %v7882
        %7936 = vst.msk [vmem:[%s645 + $0x2d8] sm:$0xff] %vm2662, %v7884
        %7937 = vst.msk [vmem:[%s645 + $0x2e0] sm:$0xff] %vm2662, %v7886
        %7938 = vst.msk [vmem:[%s645 + $0x2e8] sm:$0xff] %vm2662, %v7888
        %7939 = vst.msk [vmem:[%s645 + $0x2f0] sm:$0xff] %vm2662, %v7890
        %7940 = vst.msk [vmem:[%s645 + $0x2f8] sm:$0xff] %vm2662, %v7892
        %7941 = vrot.lane.b32.xlu0 %v7487, 64
        %v7942 = vpop.permute.xlu0 %7941
        %7943 = vrot.lane.b32.xlu0 %v7492, 64
        %v7944 = vpop.permute.xlu0 %7943
        %7945 = vrot.lane.b32.xlu0 %v7497, 64
        %v7946 = vpop.permute.xlu0 %7945
        %7947 = vrot.lane.b32.xlu0 %v7502, 64
        %v7948 = vpop.permute.xlu0 %7947
        %7949 = vrot.lane.b32.xlu0 %v7507, 64
        %v7950 = vpop.permute.xlu0 %7949
        %7951 = vrot.lane.b32.xlu0 %v7512, 64
        %v7952 = vpop.permute.xlu0 %7951
        %7953 = vrot.lane.b32.xlu0 %v7517, 64
        %v7954 = vpop.permute.xlu0 %7953
        %7955 = vrot.lane.b32.xlu0 %v7522, 64
        %v7956 = vpop.permute.xlu0 %7955
        %7957 = vrot.lane.b32.xlu0 %v7527, 64
        %v7958 = vpop.permute.xlu0 %7957
        %7959 = vrot.lane.b32.xlu0 %v7532, 64
        %v7960 = vpop.permute.xlu0 %7959
        %7961 = vrot.lane.b32.xlu0 %v7537, 64
        %v7962 = vpop.permute.xlu0 %7961
        %7963 = vrot.lane.b32.xlu0 %v7542, 64
        %v7964 = vpop.permute.xlu0 %7963
        %7965 = vrot.lane.b32.xlu0 %v7547, 64
        %v7966 = vpop.permute.xlu0 %7965
        %7967 = vrot.lane.b32.xlu0 %v7552, 64
        %v7968 = vpop.permute.xlu0 %7967
        %7969 = vrot.lane.b32.xlu0 %v7557, 64
        %v7970 = vpop.permute.xlu0 %7969
        %7971 = vrot.lane.b32.xlu0 %v7562, 64
        %v7972 = vpop.permute.xlu0 %7971
        %7973 = vrot.lane.b32.xlu0 %v7567, 64
        %v7974 = vpop.permute.xlu0 %7973
        %7975 = vrot.lane.b32.xlu0 %v7572, 64
        %v7976 = vpop.permute.xlu0 %7975
        %7977 = vrot.lane.b32.xlu0 %v7577, 64
        %v7978 = vpop.permute.xlu0 %7977
        %7979 = vrot.lane.b32.xlu0 %v7582, 64
        %v7980 = vpop.permute.xlu0 %7979
        %7981 = vrot.lane.b32.xlu0 %v7587, 64
        %v7982 = vpop.permute.xlu0 %7981
        %7983 = vrot.lane.b32.xlu0 %v7592, 64
        %v7984 = vpop.permute.xlu0 %7983
        %7985 = vrot.lane.b32.xlu0 %v7597, 64
        %v7986 = vpop.permute.xlu0 %7985
        %7987 = vrot.lane.b32.xlu0 %v7602, 64
        %v7988 = vpop.permute.xlu0 %7987
        %8013 = vst.msk [vmem:[%s645 + $0x240] sm:$0xff] %vm3064, %v7942
        %8014 = vst.msk [vmem:[%s645 + $0x248] sm:$0xff] %vm3064, %v7944
        %8015 = vst.msk [vmem:[%s645 + $0x250] sm:$0xff] %vm3064, %v7946
        %8016 = vst.msk [vmem:[%s645 + $0x258] sm:$0xff] %vm3064, %v7948
        %8017 = vst.msk [vmem:[%s645 + $0x260] sm:$0xff] %vm3064, %v7950
        %8018 = vst.msk [vmem:[%s645 + $0x268] sm:$0xff] %vm3064, %v7952
        %8019 = vst.msk [vmem:[%s645 + $0x270] sm:$0xff] %vm3064, %v7954
        %8020 = vst.msk [vmem:[%s645 + $0x278] sm:$0xff] %vm3064, %v7956
        %8021 = vst.msk [vmem:[%s645 + $0x280] sm:$0xff] %vm3064, %v7958
        %8022 = vst.msk [vmem:[%s645 + $0x288] sm:$0xff] %vm3064, %v7960
        %8023 = vst.msk [vmem:[%s645 + $0x290] sm:$0xff] %vm3064, %v7962
        %8024 = vst.msk [vmem:[%s645 + $0x298] sm:$0xff] %vm3064, %v7964
        %8025 = vst.msk [vmem:[%s645 + $0x2a0] sm:$0xff] %vm3064, %v7966
        %8026 = vst.msk [vmem:[%s645 + $0x2a8] sm:$0xff] %vm3064, %v7968
        %8027 = vst.msk [vmem:[%s645 + $0x2b0] sm:$0xff] %vm3064, %v7970
        %8028 = vst.msk [vmem:[%s645 + $0x2b8] sm:$0xff] %vm3064, %v7972
        %8029 = vst.msk [vmem:[%s645 + $0x2c0] sm:$0xff] %vm3064, %v7974
        %8030 = vst.msk [vmem:[%s645 + $0x2c8] sm:$0xff] %vm3064, %v7976
        %8031 = vst.msk [vmem:[%s645 + $0x2d0] sm:$0xff] %vm3064, %v7978
        %8032 = vst.msk [vmem:[%s645 + $0x2d8] sm:$0xff] %vm3064, %v7980
        %8033 = vst.msk [vmem:[%s645 + $0x2e0] sm:$0xff] %vm3064, %v7982
        %8034 = vst.msk [vmem:[%s645 + $0x2e8] sm:$0xff] %vm3064, %v7984
        %8035 = vst.msk [vmem:[%s645 + $0x2f0] sm:$0xff] %vm3064, %v7986
        %8036 = vst.msk [vmem:[%s645 + $0x2f8] sm:$0xff] %vm3064, %v7988
        %8037 = vrot.lane.b32.xlu0 %v7487, 80
        %v8038 = vpop.permute.xlu0 %8037
        %8039 = vrot.lane.b32.xlu0 %v7492, 80
        %v8040 = vpop.permute.xlu0 %8039
        %8041 = vrot.lane.b32.xlu0 %v7497, 80
        %v8042 = vpop.permute.xlu0 %8041
        %8043 = vrot.lane.b32.xlu0 %v7502, 80
        %v8044 = vpop.permute.xlu0 %8043
        %8045 = vrot.lane.b32.xlu0 %v7507, 80
        %v8046 = vpop.permute.xlu0 %8045
        %8047 = vrot.lane.b32.xlu0 %v7512, 80
        %v8048 = vpop.permute.xlu0 %8047
        %8049 = vrot.lane.b32.xlu0 %v7517, 80
        %v8050 = vpop.permute.xlu0 %8049
        %8051 = vrot.lane.b32.xlu0 %v7522, 80
        %v8052 = vpop.permute.xlu0 %8051
        %8053 = vrot.lane.b32.xlu0 %v7527, 80
        %v8054 = vpop.permute.xlu0 %8053
        %8055 = vrot.lane.b32.xlu0 %v7532, 80
        %v8056 = vpop.permute.xlu0 %8055
        %8057 = vrot.lane.b32.xlu0 %v7537, 80
        %v8058 = vpop.permute.xlu0 %8057
        %8059 = vrot.lane.b32.xlu0 %v7542, 80
        %v8060 = vpop.permute.xlu0 %8059
        %8061 = vrot.lane.b32.xlu0 %v7547, 80
        %v8062 = vpop.permute.xlu0 %8061
        %8063 = vrot.lane.b32.xlu0 %v7552, 80
        %v8064 = vpop.permute.xlu0 %8063
        %8065 = vrot.lane.b32.xlu0 %v7557, 80
        %v8066 = vpop.permute.xlu0 %8065
        %8067 = vrot.lane.b32.xlu0 %v7562, 80
        %v8068 = vpop.permute.xlu0 %8067
        %8069 = vrot.lane.b32.xlu0 %v7567, 80
        %v8070 = vpop.permute.xlu0 %8069
        %8071 = vrot.lane.b32.xlu0 %v7572, 80
        %v8072 = vpop.permute.xlu0 %8071
        %8073 = vrot.lane.b32.xlu0 %v7577, 80
        %v8074 = vpop.permute.xlu0 %8073
        %8075 = vrot.lane.b32.xlu0 %v7582, 80
        %v8076 = vpop.permute.xlu0 %8075
        %8077 = vrot.lane.b32.xlu0 %v7587, 80
        %v8078 = vpop.permute.xlu0 %8077
        %8079 = vrot.lane.b32.xlu0 %v7592, 80
        %v8080 = vpop.permute.xlu0 %8079
        %8081 = vrot.lane.b32.xlu0 %v7597, 80
        %v8082 = vpop.permute.xlu0 %8081
        %8083 = vrot.lane.b32.xlu0 %v7602, 80
        %v8084 = vpop.permute.xlu0 %8083
        %8109 = vst.msk [vmem:[%s645 + $0x240] sm:$0xff] %vm3161, %v8038
        %8110 = vst.msk [vmem:[%s645 + $0x248] sm:$0xff] %vm3161, %v8040
        %8111 = vst.msk [vmem:[%s645 + $0x250] sm:$0xff] %vm3161, %v8042
        %8112 = vst.msk [vmem:[%s645 + $0x258] sm:$0xff] %vm3161, %v8044
        %8113 = vst.msk [vmem:[%s645 + $0x260] sm:$0xff] %vm3161, %v8046
        %8114 = vst.msk [vmem:[%s645 + $0x268] sm:$0xff] %vm3161, %v8048
        %8115 = vst.msk [vmem:[%s645 + $0x270] sm:$0xff] %vm3161, %v8050
        %8116 = vst.msk [vmem:[%s645 + $0x278] sm:$0xff] %vm3161, %v8052
        %8117 = vst.msk [vmem:[%s645 + $0x280] sm:$0xff] %vm3161, %v8054
        %8118 = vst.msk [vmem:[%s645 + $0x288] sm:$0xff] %vm3161, %v8056
        %8119 = vst.msk [vmem:[%s645 + $0x290] sm:$0xff] %vm3161, %v8058
        %8120 = vst.msk [vmem:[%s645 + $0x298] sm:$0xff] %vm3161, %v8060
        %8121 = vst.msk [vmem:[%s645 + $0x2a0] sm:$0xff] %vm3161, %v8062
        %8122 = vst.msk [vmem:[%s645 + $0x2a8] sm:$0xff] %vm3161, %v8064
        %8123 = vst.msk [vmem:[%s645 + $0x2b0] sm:$0xff] %vm3161, %v8066
        %8124 = vst.msk [vmem:[%s645 + $0x2b8] sm:$0xff] %vm3161, %v8068
        %8125 = vst.msk [vmem:[%s645 + $0x2c0] sm:$0xff] %vm3161, %v8070
        %8126 = vst.msk [vmem:[%s645 + $0x2c8] sm:$0xff] %vm3161, %v8072
        %8127 = vst.msk [vmem:[%s645 + $0x2d0] sm:$0xff] %vm3161, %v8074
        %8128 = vst.msk [vmem:[%s645 + $0x2d8] sm:$0xff] %vm3161, %v8076
        %8129 = vst.msk [vmem:[%s645 + $0x2e0] sm:$0xff] %vm3161, %v8078
        %8130 = vst.msk [vmem:[%s645 + $0x2e8] sm:$0xff] %vm3161, %v8080
        %8131 = vst.msk [vmem:[%s645 + $0x2f0] sm:$0xff] %vm3161, %v8082
        %8132 = vst.msk [vmem:[%s645 + $0x2f8] sm:$0xff] %vm3161, %v8084
        %8133 = vrot.lane.b32.xlu0 %v7487, 96
        %v8134 = vpop.permute.xlu0 %8133
        %8135 = vrot.lane.b32.xlu0 %v7492, 96
        %v8136 = vpop.permute.xlu0 %8135
        %8137 = vrot.lane.b32.xlu0 %v7497, 96
        %v8138 = vpop.permute.xlu0 %8137
        %8139 = vrot.lane.b32.xlu0 %v7502, 96
        %v8140 = vpop.permute.xlu0 %8139
        %8141 = vrot.lane.b32.xlu0 %v7507, 96
        %v8142 = vpop.permute.xlu0 %8141
        %8143 = vrot.lane.b32.xlu0 %v7512, 96
        %v8144 = vpop.permute.xlu0 %8143
        %8145 = vrot.lane.b32.xlu0 %v7517, 96
        %v8146 = vpop.permute.xlu0 %8145
        %8147 = vrot.lane.b32.xlu0 %v7522, 96
        %v8148 = vpop.permute.xlu0 %8147
        %8149 = vrot.lane.b32.xlu0 %v7527, 96
        %v8150 = vpop.permute.xlu0 %8149
        %8151 = vrot.lane.b32.xlu0 %v7532, 96
        %v8152 = vpop.permute.xlu0 %8151
        %8153 = vrot.lane.b32.xlu0 %v7537, 96
        %v8154 = vpop.permute.xlu0 %8153
        %8155 = vrot.lane.b32.xlu0 %v7542, 96
        %v8156 = vpop.permute.xlu0 %8155
        %8157 = vrot.lane.b32.xlu0 %v7547, 96
        %v8158 = vpop.permute.xlu0 %8157
        %8159 = vrot.lane.b32.xlu0 %v7552, 96
        %v8160 = vpop.permute.xlu0 %8159
        %8161 = vrot.lane.b32.xlu0 %v7557, 96
        %v8162 = vpop.permute.xlu0 %8161
        %8163 = vrot.lane.b32.xlu0 %v7562, 96
        %v8164 = vpop.permute.xlu0 %8163
        %8165 = vrot.lane.b32.xlu0 %v7567, 96
        %v8166 = vpop.permute.xlu0 %8165
        %8167 = vrot.lane.b32.xlu0 %v7572, 96
        %v8168 = vpop.permute.xlu0 %8167
        %8169 = vrot.lane.b32.xlu0 %v7577, 96
        %v8170 = vpop.permute.xlu0 %8169
        %8171 = vrot.lane.b32.xlu0 %v7582, 96
        %v8172 = vpop.permute.xlu0 %8171
        %8173 = vrot.lane.b32.xlu0 %v7587, 96
        %v8174 = vpop.permute.xlu0 %8173
        %8175 = vrot.lane.b32.xlu0 %v7592, 96
        %v8176 = vpop.permute.xlu0 %8175
        %8177 = vrot.lane.b32.xlu0 %v7597, 96
        %v8178 = vpop.permute.xlu0 %8177
        %8179 = vrot.lane.b32.xlu0 %v7602, 96
        %v8180 = vpop.permute.xlu0 %8179
        %8205 = vst.msk [vmem:[%s645 + $0x240] sm:$0xff] %vm3563, %v8134
        %8206 = vst.msk [vmem:[%s645 + $0x248] sm:$0xff] %vm3563, %v8136
        %8207 = vst.msk [vmem:[%s645 + $0x250] sm:$0xff] %vm3563, %v8138
        %8208 = vst.msk [vmem:[%s645 + $0x258] sm:$0xff] %vm3563, %v8140
        %8209 = vst.msk [vmem:[%s645 + $0x260] sm:$0xff] %vm3563, %v8142
        %8210 = vst.msk [vmem:[%s645 + $0x268] sm:$0xff] %vm3563, %v8144
        %8211 = vst.msk [vmem:[%s645 + $0x270] sm:$0xff] %vm3563, %v8146
        %8212 = vst.msk [vmem:[%s645 + $0x278] sm:$0xff] %vm3563, %v8148
        %8213 = vst.msk [vmem:[%s645 + $0x280] sm:$0xff] %vm3563, %v8150
        %8214 = vst.msk [vmem:[%s645 + $0x288] sm:$0xff] %vm3563, %v8152
        %8215 = vst.msk [vmem:[%s645 + $0x290] sm:$0xff] %vm3563, %v8154
        %8216 = vst.msk [vmem:[%s645 + $0x298] sm:$0xff] %vm3563, %v8156
        %8217 = vst.msk [vmem:[%s645 + $0x2a0] sm:$0xff] %vm3563, %v8158
        %8218 = vst.msk [vmem:[%s645 + $0x2a8] sm:$0xff] %vm3563, %v8160
        %8219 = vst.msk [vmem:[%s645 + $0x2b0] sm:$0xff] %vm3563, %v8162
        %8220 = vst.msk [vmem:[%s645 + $0x2b8] sm:$0xff] %vm3563, %v8164
        %8221 = vst.msk [vmem:[%s645 + $0x2c0] sm:$0xff] %vm3563, %v8166
        %8222 = vst.msk [vmem:[%s645 + $0x2c8] sm:$0xff] %vm3563, %v8168
        %8223 = vst.msk [vmem:[%s645 + $0x2d0] sm:$0xff] %vm3563, %v8170
        %8224 = vst.msk [vmem:[%s645 + $0x2d8] sm:$0xff] %vm3563, %v8172
        %8225 = vst.msk [vmem:[%s645 + $0x2e0] sm:$0xff] %vm3563, %v8174
        %8226 = vst.msk [vmem:[%s645 + $0x2e8] sm:$0xff] %vm3563, %v8176
        %8227 = vst.msk [vmem:[%s645 + $0x2f0] sm:$0xff] %vm3563, %v8178
        %8228 = vst.msk [vmem:[%s645 + $0x2f8] sm:$0xff] %vm3563, %v8180
        %8229 = vrot.lane.b32.xlu0 %v7487, 112
        %v8230 = vpop.permute.xlu0 %8229
        %8231 = vrot.lane.b32.xlu0 %v7492, 112
        %v8232 = vpop.permute.xlu0 %8231
        %8233 = vrot.lane.b32.xlu0 %v7497, 112
        %v8234 = vpop.permute.xlu0 %8233
        %8235 = vrot.lane.b32.xlu0 %v7502, 112
        %v8236 = vpop.permute.xlu0 %8235
        %8237 = vrot.lane.b32.xlu0 %v7507, 112
        %v8238 = vpop.permute.xlu0 %8237
        %8239 = vrot.lane.b32.xlu0 %v7512, 112
        %v8240 = vpop.permute.xlu0 %8239
        %8241 = vrot.lane.b32.xlu0 %v7517, 112
        %v8242 = vpop.permute.xlu0 %8241
        %8243 = vrot.lane.b32.xlu0 %v7522, 112
        %v8244 = vpop.permute.xlu0 %8243
        %8245 = vrot.lane.b32.xlu0 %v7527, 112
        %v8246 = vpop.permute.xlu0 %8245
        %8247 = vrot.lane.b32.xlu0 %v7532, 112
        %v8248 = vpop.permute.xlu0 %8247
        %8249 = vrot.lane.b32.xlu0 %v7537, 112
        %v8250 = vpop.permute.xlu0 %8249
        %8251 = vrot.lane.b32.xlu0 %v7542, 112
        %v8252 = vpop.permute.xlu0 %8251
        %8253 = vrot.lane.b32.xlu0 %v7547, 112
        %v8254 = vpop.permute.xlu0 %8253
        %8255 = vrot.lane.b32.xlu0 %v7552, 112
        %v8256 = vpop.permute.xlu0 %8255
        %8257 = vrot.lane.b32.xlu0 %v7557, 112
        %v8258 = vpop.permute.xlu0 %8257
        %8259 = vrot.lane.b32.xlu0 %v7562, 112
        %v8260 = vpop.permute.xlu0 %8259
        %8261 = vrot.lane.b32.xlu0 %v7567, 112
        %v8262 = vpop.permute.xlu0 %8261
        %8263 = vrot.lane.b32.xlu0 %v7572, 112
        %v8264 = vpop.permute.xlu0 %8263
        %8265 = vrot.lane.b32.xlu0 %v7577, 112
        %v8266 = vpop.permute.xlu0 %8265
        %8267 = vrot.lane.b32.xlu0 %v7582, 112
        %v8268 = vpop.permute.xlu0 %8267
        %8269 = vrot.lane.b32.xlu0 %v7587, 112
        %v8270 = vpop.permute.xlu0 %8269
        %8271 = vrot.lane.b32.xlu0 %v7592, 112
        %v8272 = vpop.permute.xlu0 %8271
        %8273 = vrot.lane.b32.xlu0 %v7597, 112
        %v8274 = vpop.permute.xlu0 %8273
        %8275 = vrot.lane.b32.xlu0 %v7602, 112
        %v8276 = vpop.permute.xlu0 %8275
        %8301 = vst.msk [vmem:[%s645 + $0x240] sm:$0xff] %vm3660, %v8230
        %8302 = vst.msk [vmem:[%s645 + $0x248] sm:$0xff] %vm3660, %v8232
        %8303 = vst.msk [vmem:[%s645 + $0x250] sm:$0xff] %vm3660, %v8234
        %8304 = vst.msk [vmem:[%s645 + $0x258] sm:$0xff] %vm3660, %v8236
        %8305 = vst.msk [vmem:[%s645 + $0x260] sm:$0xff] %vm3660, %v8238
        %8306 = vst.msk [vmem:[%s645 + $0x268] sm:$0xff] %vm3660, %v8240
        %8307 = vst.msk [vmem:[%s645 + $0x270] sm:$0xff] %vm3660, %v8242
        %8308 = vst.msk [vmem:[%s645 + $0x278] sm:$0xff] %vm3660, %v8244
        %8309 = vst.msk [vmem:[%s645 + $0x280] sm:$0xff] %vm3660, %v8246
        %8310 = vst.msk [vmem:[%s645 + $0x288] sm:$0xff] %vm3660, %v8248
        %8311 = vst.msk [vmem:[%s645 + $0x290] sm:$0xff] %vm3660, %v8250
        %8312 = vst.msk [vmem:[%s645 + $0x298] sm:$0xff] %vm3660, %v8252
        %8313 = vst.msk [vmem:[%s645 + $0x2a0] sm:$0xff] %vm3660, %v8254
        %8314 = vst.msk [vmem:[%s645 + $0x2a8] sm:$0xff] %vm3660, %v8256
        %8315 = vst.msk [vmem:[%s645 + $0x2b0] sm:$0xff] %vm3660, %v8258
        %8316 = vst.msk [vmem:[%s645 + $0x2b8] sm:$0xff] %vm3660, %v8260
        %8317 = vst.msk [vmem:[%s645 + $0x2c0] sm:$0xff] %vm3660, %v8262
        %8318 = vst.msk [vmem:[%s645 + $0x2c8] sm:$0xff] %vm3660, %v8264
        %8319 = vst.msk [vmem:[%s645 + $0x2d0] sm:$0xff] %vm3660, %v8266
        %8320 = vst.msk [vmem:[%s645 + $0x2d8] sm:$0xff] %vm3660, %v8268
        %8321 = vst.msk [vmem:[%s645 + $0x2e0] sm:$0xff] %vm3660, %v8270
        %8322 = vst.msk [vmem:[%s645 + $0x2e8] sm:$0xff] %vm3660, %v8272
        %8323 = vst.msk [vmem:[%s645 + $0x2f0] sm:$0xff] %vm3660, %v8274
        %8324 = vst.msk [vmem:[%s645 + $0x2f8] sm:$0xff] %vm3660, %v8276
        %s8325 = sand.u32 %s385, 1
        %s8326 = sand.u32 %s385, 1
        %s8327 = smul.addr %s8326, 768
        %s8328 = scalar_lea.vmem [#allocation6], %s8327
        // Predicated region
        $region131: #{neck_forward.1} parent=113 // pred_check
          %p8329 = pneg %p395
        $region132: #{neck_forward.1} parent=113 // pred_check_branch
          %8331 = sbr.rel (%p8329) target = $region134
        $region133: #{neck_forward.1} parent=113 // pred_region
          %s8332 = smul.addr %s30, 192
          %s8333 = sadd.s32 %s31, %s8332
          %s8334 = smul.addr %s8333, 8
          %s8335 = scalar_lea.vmem %s15, %s8334
          // Predicated region
          $region135: #{neck_forward.1} parent=133 // pred_check
            _
          $region136: #{neck_forward.1} parent=133 // pred_check_branch
            %8337 = sbr.rel (0) target = $region138
          $region137: #{neck_forward.1} parent=133 // pred_region
            // Predicated region
            $region139: #{neck_forward.1} parent=137 // pred_check
              _
            $region140: #{neck_forward.1} parent=137 // pred_check_branch
              %8339 = sbr.rel (0) target = $region142
            $region141: #{neck_forward.1} parent=137 // pred_region
              // Predicated region
              $region154: #{neck_forward.1} parent=141 // pred_check
                _
              $region155: #{neck_forward.1} parent=141 // pred_check_branch
                %8544 = sbr.rel (0) target = $region157
              $region156: #{neck_forward.1} parent=141 // pred_region
                loop: start=0, step=1, limit=1
                $region158: #{neck_forward.1} parent=156 // loop_pre_header
                  _
                $region159: #{neck_forward.1} parent=156 // loop_header
                  %s8546 = sphi 0, %s8550
                  %p8547 = scmp.ge.s32.totalorder %s8546, 1
                  %s8551 = sphi %s8328, %s8328
                  %s8552 = sphi %s8335, %s8335
                $region160: #{neck_forward.1} parent=156 // loop_header_branch
                  %8549 = sbr.rel (%p8547) target = $region164
                $region161: #{neck_forward.1} parent=156 // loop_body
                  %v8553 = vld [vmem:[%s8551] sm:$0xff]
                  %8554 = vst [vmem:[%s8552] sm:$0xff] %v8553
                  %v8555 = vld [vmem:[%s8551 + $0x8] sm:$0xff]
                  %8556 = vst [vmem:[%s8552 + $0x10] sm:$0xff] %v8555
                  %v8557 = vld [vmem:[%s8551 + $0x10] sm:$0xff]
                  %8558 = vst [vmem:[%s8552 + $0x20] sm:$0xff] %v8557
                  %v8559 = vld [vmem:[%s8551 + $0x18] sm:$0xff]
                  %8560 = vst [vmem:[%s8552 + $0x30] sm:$0xff] %v8559
                  %v8561 = vld [vmem:[%s8551 + $0x20] sm:$0xff]
                  %8562 = vst [vmem:[%s8552 + $0x40] sm:$0xff] %v8561
                  %v8563 = vld [vmem:[%s8551 + $0x28] sm:$0xff]
                  %8564 = vst [vmem:[%s8552 + $0x50] sm:$0xff] %v8563
                  %v8565 = vld [vmem:[%s8551 + $0x30] sm:$0xff]
                  %8566 = vst [vmem:[%s8552 + $0x60] sm:$0xff] %v8565
                  %v8567 = vld [vmem:[%s8551 + $0x38] sm:$0xff]
                  %8568 = vst [vmem:[%s8552 + $0x70] sm:$0xff] %v8567
                  %v8569 = vld [vmem:[%s8551 + $0x40] sm:$0xff]
                  %8570 = vst [vmem:[%s8552 + $0x80] sm:$0xff] %v8569
                  %v8571 = vld [vmem:[%s8551 + $0x48] sm:$0xff]
                  %8572 = vst [vmem:[%s8552 + $0x90] sm:$0xff] %v8571
                  %v8573 = vld [vmem:[%s8551 + $0x50] sm:$0xff]
                  %8574 = vst [vmem:[%s8552 + $0xa0] sm:$0xff] %v8573
                  %v8575 = vld [vmem:[%s8551 + $0x58] sm:$0xff]
                  %8576 = vst [vmem:[%s8552 + $0xb0] sm:$0xff] %v8575
                  %v8577 = vld [vmem:[%s8551 + $0x60] sm:$0xff]
                  %8578 = vst [vmem:[%s8552 + $0xc0] sm:$0xff] %v8577
                  %v8579 = vld [vmem:[%s8551 + $0x68] sm:$0xff]
                  %8580 = vst [vmem:[%s8552 + $0xd0] sm:$0xff] %v8579
                  %v8581 = vld [vmem:[%s8551 + $0x70] sm:$0xff]
                  %8582 = vst [vmem:[%s8552 + $0xe0] sm:$0xff] %v8581
                  %v8583 = vld [vmem:[%s8551 + $0x78] sm:$0xff]
                  %8584 = vst [vmem:[%s8552 + $0xf0] sm:$0xff] %v8583
                  %v8585 = vld [vmem:[%s8551 + $0x80] sm:$0xff]
                  %8586 = vst [vmem:[%s8552 + $0x100] sm:$0xff] %v8585
                  %v8587 = vld [vmem:[%s8551 + $0x88] sm:$0xff]
                  %8588 = vst [vmem:[%s8552 + $0x110] sm:$0xff] %v8587
                  %v8589 = vld [vmem:[%s8551 + $0x90] sm:$0xff]
                  %8590 = vst [vmem:[%s8552 + $0x120] sm:$0xff] %v8589
                  %v8591 = vld [vmem:[%s8551 + $0x98] sm:$0xff]
                  %8592 = vst [vmem:[%s8552 + $0x130] sm:$0xff] %v8591
                  %v8593 = vld [vmem:[%s8551 + $0xa0] sm:$0xff]
                  %8594 = vst [vmem:[%s8552 + $0x140] sm:$0xff] %v8593
                  %v8595 = vld [vmem:[%s8551 + $0xa8] sm:$0xff]
                  %8596 = vst [vmem:[%s8552 + $0x150] sm:$0xff] %v8595
                  %v8597 = vld [vmem:[%s8551 + $0xb0] sm:$0xff]
                  %8598 = vst [vmem:[%s8552 + $0x160] sm:$0xff] %v8597
                  %v8599 = vld [vmem:[%s8551 + $0xb8] sm:$0xff]
                  %8600 = vst [vmem:[%s8552 + $0x170] sm:$0xff] %v8599
                  %v8601 = vld [vmem:[%s8551 + $0xc0] sm:$0xff]
                  %8602 = vst [vmem:[%s8552 + $0x180] sm:$0xff] %v8601
                  %v8603 = vld [vmem:[%s8551 + $0xc8] sm:$0xff]
                  %8604 = vst [vmem:[%s8552 + $0x190] sm:$0xff] %v8603
                  %v8605 = vld [vmem:[%s8551 + $0xd0] sm:$0xff]
                  %8606 = vst [vmem:[%s8552 + $0x1a0] sm:$0xff] %v8605
                  %v8607 = vld [vmem:[%s8551 + $0xd8] sm:$0xff]
                  %8608 = vst [vmem:[%s8552 + $0x1b0] sm:$0xff] %v8607
                  %v8609 = vld [vmem:[%s8551 + $0xe0] sm:$0xff]
                  %8610 = vst [vmem:[%s8552 + $0x1c0] sm:$0xff] %v8609
                  %v8611 = vld [vmem:[%s8551 + $0xe8] sm:$0xff]
                  %8612 = vst [vmem:[%s8552 + $0x1d0] sm:$0xff] %v8611
                  %v8613 = vld [vmem:[%s8551 + $0xf0] sm:$0xff]
                  %8614 = vst [vmem:[%s8552 + $0x1e0] sm:$0xff] %v8613
                  %v8615 = vld [vmem:[%s8551 + $0xf8] sm:$0xff]
                  %8616 = vst [vmem:[%s8552 + $0x1f0] sm:$0xff] %v8615
                  %v8617 = vld [vmem:[%s8551 + $0x100] sm:$0xff]
                  %8618 = vst [vmem:[%s8552 + $0x200] sm:$0xff] %v8617
                  %v8619 = vld [vmem:[%s8551 + $0x108] sm:$0xff]
                  %8620 = vst [vmem:[%s8552 + $0x210] sm:$0xff] %v8619
                  %v8621 = vld [vmem:[%s8551 + $0x110] sm:$0xff]
                  %8622 = vst [vmem:[%s8552 + $0x220] sm:$0xff] %v8621
                  %v8623 = vld [vmem:[%s8551 + $0x118] sm:$0xff]
                  %8624 = vst [vmem:[%s8552 + $0x230] sm:$0xff] %v8623
                  %v8625 = vld [vmem:[%s8551 + $0x120] sm:$0xff]
                  %8626 = vst [vmem:[%s8552 + $0x240] sm:$0xff] %v8625
                  %v8627 = vld [vmem:[%s8551 + $0x128] sm:$0xff]
                  %8628 = vst [vmem:[%s8552 + $0x250] sm:$0xff] %v8627
                  %v8629 = vld [vmem:[%s8551 + $0x130] sm:$0xff]
                  %8630 = vst [vmem:[%s8552 + $0x260] sm:$0xff] %v8629
                  %v8631 = vld [vmem:[%s8551 + $0x138] sm:$0xff]
                  %8632 = vst [vmem:[%s8552 + $0x270] sm:$0xff] %v8631
                  %v8633 = vld [vmem:[%s8551 + $0x140] sm:$0xff]
                  %8634 = vst [vmem:[%s8552 + $0x280] sm:$0xff] %v8633
                  %v8635 = vld [vmem:[%s8551 + $0x148] sm:$0xff]
                  %8636 = vst [vmem:[%s8552 + $0x290] sm:$0xff] %v8635
                  %v8637 = vld [vmem:[%s8551 + $0x150] sm:$0xff]
                  %8638 = vst [vmem:[%s8552 + $0x2a0] sm:$0xff] %v8637
                  %v8639 = vld [vmem:[%s8551 + $0x158] sm:$0xff]
                  %8640 = vst [vmem:[%s8552 + $0x2b0] sm:$0xff] %v8639
                  %v8641 = vld [vmem:[%s8551 + $0x160] sm:$0xff]
                  %8642 = vst [vmem:[%s8552 + $0x2c0] sm:$0xff] %v8641
                  %v8643 = vld [vmem:[%s8551 + $0x168] sm:$0xff]
                  %8644 = vst [vmem:[%s8552 + $0x2d0] sm:$0xff] %v8643
                  %v8645 = vld [vmem:[%s8551 + $0x170] sm:$0xff]
                  %8646 = vst [vmem:[%s8552 + $0x2e0] sm:$0xff] %v8645
                  %v8647 = vld [vmem:[%s8551 + $0x178] sm:$0xff]
                  %8648 = vst [vmem:[%s8552 + $0x2f0] sm:$0xff] %v8647
                  %v8649 = vld [vmem:[%s8551 + $0x180] sm:$0xff]
                  %8650 = vst [vmem:[%s8552 + $0x300] sm:$0xff] %v8649
                  %v8651 = vld [vmem:[%s8551 + $0x188] sm:$0xff]
                  %8652 = vst [vmem:[%s8552 + $0x310] sm:$0xff] %v8651
                  %v8653 = vld [vmem:[%s8551 + $0x190] sm:$0xff]
                  %8654 = vst [vmem:[%s8552 + $0x320] sm:$0xff] %v8653
                  %v8655 = vld [vmem:[%s8551 + $0x198] sm:$0xff]
                  %8656 = vst [vmem:[%s8552 + $0x330] sm:$0xff] %v8655
                  %v8657 = vld [vmem:[%s8551 + $0x1a0] sm:$0xff]
                  %8658 = vst [vmem:[%s8552 + $0x340] sm:$0xff] %v8657
                  %v8659 = vld [vmem:[%s8551 + $0x1a8] sm:$0xff]
                  %8660 = vst [vmem:[%s8552 + $0x350] sm:$0xff] %v8659
                  %v8661 = vld [vmem:[%s8551 + $0x1b0] sm:$0xff]
                  %8662 = vst [vmem:[%s8552 + $0x360] sm:$0xff] %v8661
                  %v8663 = vld [vmem:[%s8551 + $0x1b8] sm:$0xff]
                  %8664 = vst [vmem:[%s8552 + $0x370] sm:$0xff] %v8663
                  %v8665 = vld [vmem:[%s8551 + $0x1c0] sm:$0xff]
                  %8666 = vst [vmem:[%s8552 + $0x380] sm:$0xff] %v8665
                  %v8667 = vld [vmem:[%s8551 + $0x1c8] sm:$0xff]
                  %8668 = vst [vmem:[%s8552 + $0x390] sm:$0xff] %v8667
                  %v8669 = vld [vmem:[%s8551 + $0x1d0] sm:$0xff]
                  %8670 = vst [vmem:[%s8552 + $0x3a0] sm:$0xff] %v8669
                  %v8671 = vld [vmem:[%s8551 + $0x1d8] sm:$0xff]
                  %8672 = vst [vmem:[%s8552 + $0x3b0] sm:$0xff] %v8671
                  %v8673 = vld [vmem:[%s8551 + $0x1e0] sm:$0xff]
                  %8674 = vst [vmem:[%s8552 + $0x3c0] sm:$0xff] %v8673
                  %v8675 = vld [vmem:[%s8551 + $0x1e8] sm:$0xff]
                  %8676 = vst [vmem:[%s8552 + $0x3d0] sm:$0xff] %v8675
                  %v8677 = vld [vmem:[%s8551 + $0x1f0] sm:$0xff]
                  %8678 = vst [vmem:[%s8552 + $0x3e0] sm:$0xff] %v8677
                  %v8679 = vld [vmem:[%s8551 + $0x1f8] sm:$0xff]
                  %8680 = vst [vmem:[%s8552 + $0x3f0] sm:$0xff] %v8679
                  %v8681 = vld [vmem:[%s8551 + $0x200] sm:$0xff]
                  %8682 = vst [vmem:[%s8552 + $0x400] sm:$0xff] %v8681
                  %v8683 = vld [vmem:[%s8551 + $0x208] sm:$0xff]
                  %8684 = vst [vmem:[%s8552 + $0x410] sm:$0xff] %v8683
                  %v8685 = vld [vmem:[%s8551 + $0x210] sm:$0xff]
                  %8686 = vst [vmem:[%s8552 + $0x420] sm:$0xff] %v8685
                  %v8687 = vld [vmem:[%s8551 + $0x218] sm:$0xff]
                  %8688 = vst [vmem:[%s8552 + $0x430] sm:$0xff] %v8687
                  %v8689 = vld [vmem:[%s8551 + $0x220] sm:$0xff]
                  %8690 = vst [vmem:[%s8552 + $0x440] sm:$0xff] %v8689
                  %v8691 = vld [vmem:[%s8551 + $0x228] sm:$0xff]
                  %8692 = vst [vmem:[%s8552 + $0x450] sm:$0xff] %v8691
                  %v8693 = vld [vmem:[%s8551 + $0x230] sm:$0xff]
                  %8694 = vst [vmem:[%s8552 + $0x460] sm:$0xff] %v8693
                  %v8695 = vld [vmem:[%s8551 + $0x238] sm:$0xff]
                  %8696 = vst [vmem:[%s8552 + $0x470] sm:$0xff] %v8695
                  %v8697 = vld [vmem:[%s8551 + $0x240] sm:$0xff]
                  %8698 = vst [vmem:[%s8552 + $0x480] sm:$0xff] %v8697
                  %v8699 = vld [vmem:[%s8551 + $0x248] sm:$0xff]
                  %8700 = vst [vmem:[%s8552 + $0x490] sm:$0xff] %v8699
                  %v8701 = vld [vmem:[%s8551 + $0x250] sm:$0xff]
                  %8702 = vst [vmem:[%s8552 + $0x4a0] sm:$0xff] %v8701
                  %v8703 = vld [vmem:[%s8551 + $0x258] sm:$0xff]
                  %8704 = vst [vmem:[%s8552 + $0x4b0] sm:$0xff] %v8703
                  %v8705 = vld [vmem:[%s8551 + $0x260] sm:$0xff]
                  %8706 = vst [vmem:[%s8552 + $0x4c0] sm:$0xff] %v8705
                  %v8707 = vld [vmem:[%s8551 + $0x268] sm:$0xff]
                  %8708 = vst [vmem:[%s8552 + $0x4d0] sm:$0xff] %v8707
                  %v8709 = vld [vmem:[%s8551 + $0x270] sm:$0xff]
                  %8710 = vst [vmem:[%s8552 + $0x4e0] sm:$0xff] %v8709
                  %v8711 = vld [vmem:[%s8551 + $0x278] sm:$0xff]
                  %8712 = vst [vmem:[%s8552 + $0x4f0] sm:$0xff] %v8711
                  %v8713 = vld [vmem:[%s8551 + $0x280] sm:$0xff]
                  %8714 = vst [vmem:[%s8552 + $0x500] sm:$0xff] %v8713
                  %v8715 = vld [vmem:[%s8551 + $0x288] sm:$0xff]
                  %8716 = vst [vmem:[%s8552 + $0x510] sm:$0xff] %v8715
                  %v8717 = vld [vmem:[%s8551 + $0x290] sm:$0xff]
                  %8718 = vst [vmem:[%s8552 + $0x520] sm:$0xff] %v8717
                  %v8719 = vld [vmem:[%s8551 + $0x298] sm:$0xff]
                  %8720 = vst [vmem:[%s8552 + $0x530] sm:$0xff] %v8719
                  %v8721 = vld [vmem:[%s8551 + $0x2a0] sm:$0xff]
                  %8722 = vst [vmem:[%s8552 + $0x540] sm:$0xff] %v8721
                  %v8723 = vld [vmem:[%s8551 + $0x2a8] sm:$0xff]
                  %8724 = vst [vmem:[%s8552 + $0x550] sm:$0xff] %v8723
                  %v8725 = vld [vmem:[%s8551 + $0x2b0] sm:$0xff]
                  %8726 = vst [vmem:[%s8552 + $0x560] sm:$0xff] %v8725
                  %v8727 = vld [vmem:[%s8551 + $0x2b8] sm:$0xff]
                  %8728 = vst [vmem:[%s8552 + $0x570] sm:$0xff] %v8727
                  %v8729 = vld [vmem:[%s8551 + $0x2c0] sm:$0xff]
                  %8730 = vst [vmem:[%s8552 + $0x580] sm:$0xff] %v8729
                  %v8731 = vld [vmem:[%s8551 + $0x2c8] sm:$0xff]
                  %8732 = vst [vmem:[%s8552 + $0x590] sm:$0xff] %v8731
                  %v8733 = vld [vmem:[%s8551 + $0x2d0] sm:$0xff]
                  %8734 = vst [vmem:[%s8552 + $0x5a0] sm:$0xff] %v8733
                  %v8735 = vld [vmem:[%s8551 + $0x2d8] sm:$0xff]
                  %8736 = vst [vmem:[%s8552 + $0x5b0] sm:$0xff] %v8735
                  %v8737 = vld [vmem:[%s8551 + $0x2e0] sm:$0xff]
                  %8738 = vst [vmem:[%s8552 + $0x5c0] sm:$0xff] %v8737
                  %v8739 = vld [vmem:[%s8551 + $0x2e8] sm:$0xff]
                  %8740 = vst [vmem:[%s8552 + $0x5d0] sm:$0xff] %v8739
                  %v8741 = vld [vmem:[%s8551 + $0x2f0] sm:$0xff]
                  %8742 = vst [vmem:[%s8552 + $0x5e0] sm:$0xff] %v8741
                  %v8743 = vld [vmem:[%s8551 + $0x2f8] sm:$0xff]
                  %8744 = vst [vmem:[%s8552 + $0x5f0] sm:$0xff] %v8743
                $region162: #{neck_forward.1} parent=156 // loop_footer
                  %s8550 = sadd.s32 1, %s8546
                $region163: #{neck_forward.1} parent=156 // loop_footer_branch
                  %8545 = sbr.rel target = $region159
                $region164: #{neck_forward.1} parent=156 // loop_exit
                  _
              $region157: #{neck_forward.1} parent=141 // pred_fallthru
                _
              // Predicated region
              $region165: #{neck_forward.1} parent=141 // pred_check
                _
              $region166: #{neck_forward.1} parent=141 // pred_check_branch
                %8746 = sbr.rel target = $region168
              $region167: #{neck_forward.1} parent=141 // pred_region
                _
              $region168: #{neck_forward.1} parent=141 // pred_fallthru
                _
            $region142: #{neck_forward.1} parent=137 // pred_fallthru
              _
            // Predicated region
            $region143: #{neck_forward.1} parent=137 // pred_check
              _
            $region144: #{neck_forward.1} parent=137 // pred_check_branch
              %8341 = sbr.rel target = $region146
            $region145: #{neck_forward.1} parent=137 // pred_region
              loop: start=0, step=1, limit=1
              $region147: #{neck_forward.1} parent=145 // loop_pre_header
                _
              $region148: #{neck_forward.1} parent=145 // loop_header
                %s8344 = sphi 0, %s8348
                %p8345 = scmp.ge.s32.totalorder %s8344, 1
                %s8349 = sphi %s8328, %s8328
                %s8350 = sphi %s8335, %s8335
              $region149: #{neck_forward.1} parent=145 // loop_header_branch
                %8347 = sbr.rel (%p8345) target = $region153
              $region150: #{neck_forward.1} parent=145 // loop_body
                %v8351 = vld [vmem:[%s8349] sm:$0xff]
                %8352 = vst [vmem:[%s8350] sm:$0xff] %v8351
                %v8353 = vld [vmem:[%s8349 + $0x8] sm:$0xff]
                %8354 = vst [vmem:[%s8350 + $0x10] sm:$0xff] %v8353
                %v8355 = vld [vmem:[%s8349 + $0x10] sm:$0xff]
                %8356 = vst [vmem:[%s8350 + $0x20] sm:$0xff] %v8355
                %v8357 = vld [vmem:[%s8349 + $0x18] sm:$0xff]
                %8358 = vst [vmem:[%s8350 + $0x30] sm:$0xff] %v8357
                %v8359 = vld [vmem:[%s8349 + $0x20] sm:$0xff]
                %8360 = vst [vmem:[%s8350 + $0x40] sm:$0xff] %v8359
                %v8361 = vld [vmem:[%s8349 + $0x28] sm:$0xff]
                %8362 = vst [vmem:[%s8350 + $0x50] sm:$0xff] %v8361
                %v8363 = vld [vmem:[%s8349 + $0x30] sm:$0xff]
                %8364 = vst [vmem:[%s8350 + $0x60] sm:$0xff] %v8363
                %v8365 = vld [vmem:[%s8349 + $0x38] sm:$0xff]
                %8366 = vst [vmem:[%s8350 + $0x70] sm:$0xff] %v8365
                %v8367 = vld [vmem:[%s8349 + $0x40] sm:$0xff]
                %8368 = vst [vmem:[%s8350 + $0x80] sm:$0xff] %v8367
                %v8369 = vld [vmem:[%s8349 + $0x48] sm:$0xff]
                %8370 = vst [vmem:[%s8350 + $0x90] sm:$0xff] %v8369
                %v8371 = vld [vmem:[%s8349 + $0x50] sm:$0xff]
                %8372 = vst [vmem:[%s8350 + $0xa0] sm:$0xff] %v8371
                %v8373 = vld [vmem:[%s8349 + $0x58] sm:$0xff]
                %8374 = vst [vmem:[%s8350 + $0xb0] sm:$0xff] %v8373
                %v8375 = vld [vmem:[%s8349 + $0x60] sm:$0xff]
                %8376 = vst [vmem:[%s8350 + $0xc0] sm:$0xff] %v8375
                %v8377 = vld [vmem:[%s8349 + $0x68] sm:$0xff]
                %8378 = vst [vmem:[%s8350 + $0xd0] sm:$0xff] %v8377
                %v8379 = vld [vmem:[%s8349 + $0x70] sm:$0xff]
                %8380 = vst [vmem:[%s8350 + $0xe0] sm:$0xff] %v8379
                %v8381 = vld [vmem:[%s8349 + $0x78] sm:$0xff]
                %8382 = vst [vmem:[%s8350 + $0xf0] sm:$0xff] %v8381
                %v8383 = vld [vmem:[%s8349 + $0x80] sm:$0xff]
                %8384 = vst [vmem:[%s8350 + $0x100] sm:$0xff] %v8383
                %v8385 = vld [vmem:[%s8349 + $0x88] sm:$0xff]
                %8386 = vst [vmem:[%s8350 + $0x110] sm:$0xff] %v8385
                %v8387 = vld [vmem:[%s8349 + $0x90] sm:$0xff]
                %8388 = vst [vmem:[%s8350 + $0x120] sm:$0xff] %v8387
                %v8389 = vld [vmem:[%s8349 + $0x98] sm:$0xff]
                %8390 = vst [vmem:[%s8350 + $0x130] sm:$0xff] %v8389
                %v8391 = vld [vmem:[%s8349 + $0xa0] sm:$0xff]
                %8392 = vst [vmem:[%s8350 + $0x140] sm:$0xff] %v8391
                %v8393 = vld [vmem:[%s8349 + $0xa8] sm:$0xff]
                %8394 = vst [vmem:[%s8350 + $0x150] sm:$0xff] %v8393
                %v8395 = vld [vmem:[%s8349 + $0xb0] sm:$0xff]
                %8396 = vst [vmem:[%s8350 + $0x160] sm:$0xff] %v8395
                %v8397 = vld [vmem:[%s8349 + $0xb8] sm:$0xff]
                %8398 = vst [vmem:[%s8350 + $0x170] sm:$0xff] %v8397
                %v8399 = vld [vmem:[%s8349 + $0xc0] sm:$0xff]
                %8400 = vst [vmem:[%s8350 + $0x180] sm:$0xff] %v8399
                %v8401 = vld [vmem:[%s8349 + $0xc8] sm:$0xff]
                %8402 = vst [vmem:[%s8350 + $0x190] sm:$0xff] %v8401
                %v8403 = vld [vmem:[%s8349 + $0xd0] sm:$0xff]
                %8404 = vst [vmem:[%s8350 + $0x1a0] sm:$0xff] %v8403
                %v8405 = vld [vmem:[%s8349 + $0xd8] sm:$0xff]
                %8406 = vst [vmem:[%s8350 + $0x1b0] sm:$0xff] %v8405
                %v8407 = vld [vmem:[%s8349 + $0xe0] sm:$0xff]
                %8408 = vst [vmem:[%s8350 + $0x1c0] sm:$0xff] %v8407
                %v8409 = vld [vmem:[%s8349 + $0xe8] sm:$0xff]
                %8410 = vst [vmem:[%s8350 + $0x1d0] sm:$0xff] %v8409
                %v8411 = vld [vmem:[%s8349 + $0xf0] sm:$0xff]
                %8412 = vst [vmem:[%s8350 + $0x1e0] sm:$0xff] %v8411
                %v8413 = vld [vmem:[%s8349 + $0xf8] sm:$0xff]
                %8414 = vst [vmem:[%s8350 + $0x1f0] sm:$0xff] %v8413
                %v8415 = vld [vmem:[%s8349 + $0x100] sm:$0xff]
                %8416 = vst [vmem:[%s8350 + $0x200] sm:$0xff] %v8415
                %v8417 = vld [vmem:[%s8349 + $0x108] sm:$0xff]
                %8418 = vst [vmem:[%s8350 + $0x210] sm:$0xff] %v8417
                %v8419 = vld [vmem:[%s8349 + $0x110] sm:$0xff]
                %8420 = vst [vmem:[%s8350 + $0x220] sm:$0xff] %v8419
                %v8421 = vld [vmem:[%s8349 + $0x118] sm:$0xff]
                %8422 = vst [vmem:[%s8350 + $0x230] sm:$0xff] %v8421
                %v8423 = vld [vmem:[%s8349 + $0x120] sm:$0xff]
                %8424 = vst [vmem:[%s8350 + $0x240] sm:$0xff] %v8423
                %v8425 = vld [vmem:[%s8349 + $0x128] sm:$0xff]
                %8426 = vst [vmem:[%s8350 + $0x250] sm:$0xff] %v8425
                %v8427 = vld [vmem:[%s8349 + $0x130] sm:$0xff]
                %8428 = vst [vmem:[%s8350 + $0x260] sm:$0xff] %v8427
                %v8429 = vld [vmem:[%s8349 + $0x138] sm:$0xff]
                %8430 = vst [vmem:[%s8350 + $0x270] sm:$0xff] %v8429
                %v8431 = vld [vmem:[%s8349 + $0x140] sm:$0xff]
                %8432 = vst [vmem:[%s8350 + $0x280] sm:$0xff] %v8431
                %v8433 = vld [vmem:[%s8349 + $0x148] sm:$0xff]
                %8434 = vst [vmem:[%s8350 + $0x290] sm:$0xff] %v8433
                %v8435 = vld [vmem:[%s8349 + $0x150] sm:$0xff]
                %8436 = vst [vmem:[%s8350 + $0x2a0] sm:$0xff] %v8435
                %v8437 = vld [vmem:[%s8349 + $0x158] sm:$0xff]
                %8438 = vst [vmem:[%s8350 + $0x2b0] sm:$0xff] %v8437
                %v8439 = vld [vmem:[%s8349 + $0x160] sm:$0xff]
                %8440 = vst [vmem:[%s8350 + $0x2c0] sm:$0xff] %v8439
                %v8441 = vld [vmem:[%s8349 + $0x168] sm:$0xff]
                %8442 = vst [vmem:[%s8350 + $0x2d0] sm:$0xff] %v8441
                %v8443 = vld [vmem:[%s8349 + $0x170] sm:$0xff]
                %8444 = vst [vmem:[%s8350 + $0x2e0] sm:$0xff] %v8443
                %v8445 = vld [vmem:[%s8349 + $0x178] sm:$0xff]
                %8446 = vst [vmem:[%s8350 + $0x2f0] sm:$0xff] %v8445
                %v8447 = vld [vmem:[%s8349 + $0x180] sm:$0xff]
                %8448 = vst [vmem:[%s8350 + $0x300] sm:$0xff] %v8447
                %v8449 = vld [vmem:[%s8349 + $0x188] sm:$0xff]
                %8450 = vst [vmem:[%s8350 + $0x310] sm:$0xff] %v8449
                %v8451 = vld [vmem:[%s8349 + $0x190] sm:$0xff]
                %8452 = vst [vmem:[%s8350 + $0x320] sm:$0xff] %v8451
                %v8453 = vld [vmem:[%s8349 + $0x198] sm:$0xff]
                %8454 = vst [vmem:[%s8350 + $0x330] sm:$0xff] %v8453
                %v8455 = vld [vmem:[%s8349 + $0x1a0] sm:$0xff]
                %8456 = vst [vmem:[%s8350 + $0x340] sm:$0xff] %v8455
                %v8457 = vld [vmem:[%s8349 + $0x1a8] sm:$0xff]
                %8458 = vst [vmem:[%s8350 + $0x350] sm:$0xff] %v8457
                %v8459 = vld [vmem:[%s8349 + $0x1b0] sm:$0xff]
                %8460 = vst [vmem:[%s8350 + $0x360] sm:$0xff] %v8459
                %v8461 = vld [vmem:[%s8349 + $0x1b8] sm:$0xff]
                %8462 = vst [vmem:[%s8350 + $0x370] sm:$0xff] %v8461
                %v8463 = vld [vmem:[%s8349 + $0x1c0] sm:$0xff]
                %8464 = vst [vmem:[%s8350 + $0x380] sm:$0xff] %v8463
                %v8465 = vld [vmem:[%s8349 + $0x1c8] sm:$0xff]
                %8466 = vst [vmem:[%s8350 + $0x390] sm:$0xff] %v8465
                %v8467 = vld [vmem:[%s8349 + $0x1d0] sm:$0xff]
                %8468 = vst [vmem:[%s8350 + $0x3a0] sm:$0xff] %v8467
                %v8469 = vld [vmem:[%s8349 + $0x1d8] sm:$0xff]
                %8470 = vst [vmem:[%s8350 + $0x3b0] sm:$0xff] %v8469
                %v8471 = vld [vmem:[%s8349 + $0x1e0] sm:$0xff]
                %8472 = vst [vmem:[%s8350 + $0x3c0] sm:$0xff] %v8471
                %v8473 = vld [vmem:[%s8349 + $0x1e8] sm:$0xff]
                %8474 = vst [vmem:[%s8350 + $0x3d0] sm:$0xff] %v8473
                %v8475 = vld [vmem:[%s8349 + $0x1f0] sm:$0xff]
                %8476 = vst [vmem:[%s8350 + $0x3e0] sm:$0xff] %v8475
                %v8477 = vld [vmem:[%s8349 + $0x1f8] sm:$0xff]
                %8478 = vst [vmem:[%s8350 + $0x3f0] sm:$0xff] %v8477
                %v8479 = vld [vmem:[%s8349 + $0x200] sm:$0xff]
                %8480 = vst [vmem:[%s8350 + $0x400] sm:$0xff] %v8479
                %v8481 = vld [vmem:[%s8349 + $0x208] sm:$0xff]
                %8482 = vst [vmem:[%s8350 + $0x410] sm:$0xff] %v8481
                %v8483 = vld [vmem:[%s8349 + $0x210] sm:$0xff]
                %8484 = vst [vmem:[%s8350 + $0x420] sm:$0xff] %v8483
                %v8485 = vld [vmem:[%s8349 + $0x218] sm:$0xff]
                %8486 = vst [vmem:[%s8350 + $0x430] sm:$0xff] %v8485
                %v8487 = vld [vmem:[%s8349 + $0x220] sm:$0xff]
                %8488 = vst [vmem:[%s8350 + $0x440] sm:$0xff] %v8487
                %v8489 = vld [vmem:[%s8349 + $0x228] sm:$0xff]
                %8490 = vst [vmem:[%s8350 + $0x450] sm:$0xff] %v8489
                %v8491 = vld [vmem:[%s8349 + $0x230] sm:$0xff]
                %8492 = vst [vmem:[%s8350 + $0x460] sm:$0xff] %v8491
                %v8493 = vld [vmem:[%s8349 + $0x238] sm:$0xff]
                %8494 = vst [vmem:[%s8350 + $0x470] sm:$0xff] %v8493
                %v8495 = vld [vmem:[%s8349 + $0x240] sm:$0xff]
                %8496 = vst [vmem:[%s8350 + $0x480] sm:$0xff] %v8495
                %v8497 = vld [vmem:[%s8349 + $0x248] sm:$0xff]
                %8498 = vst [vmem:[%s8350 + $0x490] sm:$0xff] %v8497
                %v8499 = vld [vmem:[%s8349 + $0x250] sm:$0xff]
                %8500 = vst [vmem:[%s8350 + $0x4a0] sm:$0xff] %v8499
                %v8501 = vld [vmem:[%s8349 + $0x258] sm:$0xff]
                %8502 = vst [vmem:[%s8350 + $0x4b0] sm:$0xff] %v8501
                %v8503 = vld [vmem:[%s8349 + $0x260] sm:$0xff]
                %8504 = vst [vmem:[%s8350 + $0x4c0] sm:$0xff] %v8503
                %v8505 = vld [vmem:[%s8349 + $0x268] sm:$0xff]
                %8506 = vst [vmem:[%s8350 + $0x4d0] sm:$0xff] %v8505
                %v8507 = vld [vmem:[%s8349 + $0x270] sm:$0xff]
                %8508 = vst [vmem:[%s8350 + $0x4e0] sm:$0xff] %v8507
                %v8509 = vld [vmem:[%s8349 + $0x278] sm:$0xff]
                %8510 = vst [vmem:[%s8350 + $0x4f0] sm:$0xff] %v8509
                %v8511 = vld [vmem:[%s8349 + $0x280] sm:$0xff]
                %8512 = vst [vmem:[%s8350 + $0x500] sm:$0xff] %v8511
                %v8513 = vld [vmem:[%s8349 + $0x288] sm:$0xff]
                %8514 = vst [vmem:[%s8350 + $0x510] sm:$0xff] %v8513
                %v8515 = vld [vmem:[%s8349 + $0x290] sm:$0xff]
                %8516 = vst [vmem:[%s8350 + $0x520] sm:$0xff] %v8515
                %v8517 = vld [vmem:[%s8349 + $0x298] sm:$0xff]
                %8518 = vst [vmem:[%s8350 + $0x530] sm:$0xff] %v8517
                %v8519 = vld [vmem:[%s8349 + $0x2a0] sm:$0xff]
                %8520 = vst [vmem:[%s8350 + $0x540] sm:$0xff] %v8519
                %v8521 = vld [vmem:[%s8349 + $0x2a8] sm:$0xff]
                %8522 = vst [vmem:[%s8350 + $0x550] sm:$0xff] %v8521
                %v8523 = vld [vmem:[%s8349 + $0x2b0] sm:$0xff]
                %8524 = vst [vmem:[%s8350 + $0x560] sm:$0xff] %v8523
                %v8525 = vld [vmem:[%s8349 + $0x2b8] sm:$0xff]
                %8526 = vst [vmem:[%s8350 + $0x570] sm:$0xff] %v8525
                %v8527 = vld [vmem:[%s8349 + $0x2c0] sm:$0xff]
                %8528 = vst [vmem:[%s8350 + $0x580] sm:$0xff] %v8527
                %v8529 = vld [vmem:[%s8349 + $0x2c8] sm:$0xff]
                %8530 = vst [vmem:[%s8350 + $0x590] sm:$0xff] %v8529
                %v8531 = vld [vmem:[%s8349 + $0x2d0] sm:$0xff]
                %8532 = vst [vmem:[%s8350 + $0x5a0] sm:$0xff] %v8531
                %v8533 = vld [vmem:[%s8349 + $0x2d8] sm:$0xff]
                %8534 = vst [vmem:[%s8350 + $0x5b0] sm:$0xff] %v8533
                %v8535 = vld [vmem:[%s8349 + $0x2e0] sm:$0xff]
                %8536 = vst [vmem:[%s8350 + $0x5c0] sm:$0xff] %v8535
                %v8537 = vld [vmem:[%s8349 + $0x2e8] sm:$0xff]
                %8538 = vst [vmem:[%s8350 + $0x5d0] sm:$0xff] %v8537
                %v8539 = vld [vmem:[%s8349 + $0x2f0] sm:$0xff]
                %8540 = vst [vmem:[%s8350 + $0x5e0] sm:$0xff] %v8539
                %v8541 = vld [vmem:[%s8349 + $0x2f8] sm:$0xff]
                %8542 = vst [vmem:[%s8350 + $0x5f0] sm:$0xff] %v8541
              $region151: #{neck_forward.1} parent=145 // loop_footer
                %s8348 = sadd.s32 1, %s8344
              $region152: #{neck_forward.1} parent=145 // loop_footer_branch
                %8343 = sbr.rel target = $region148
              $region153: #{neck_forward.1} parent=145 // loop_exit
                _
            $region146: #{neck_forward.1} parent=137 // pred_fallthru
              _
          $region138: #{neck_forward.1} parent=133 // pred_fallthru
            _
          %8747 = vnop
        $region134: #{neck_forward.1} parent=113 // pred_fallthru
          _
      $region114: #{neck_forward.1} parent=5 // pred_fallthru
        _
      %p8748 = scmp.le.s32.totalorder 2, %s21
      // Predicated region
      $region169: #{neck_forward.1} parent=5 // pred_check
        %p8749 = pneg %p8748
      $region170: #{neck_forward.1} parent=5 // pred_check_branch
        %8751 = sbr.rel (%p8749) target = $region172
      $region171: #{neck_forward.1} parent=5 // pred_region
        %s8752 = ssub.s32 %s21, 2
        // Predicated region
        $region173: #{neck_forward.1} parent=171 // pred_check
          %p8753 = pneg %p401
        $region174: #{neck_forward.1} parent=171 // pred_check_branch
          %8755 = sbr.rel (%p8753) target = $region176
        $region175: #{neck_forward.1} parent=171 // pred_region
          %s8756 = sand.u32 %s386, 1
          %s8757 = sand.u32 %s386, 1
          %s8758 = smul.addr %s8757, 768
          %s8759 = scalar_lea.vmem [#allocation6], %s8758
        $region176: #{neck_forward.1} parent=171 // pred_fallthru
          _
      $region172: #{neck_forward.1} parent=5 // pred_fallthru
        _
    $region6: #{neck_forward.1} parent=1 // loop_footer
      %s25 = sadd.s32 1, %s21
    $region7: #{neck_forward.1} parent=1 // loop_footer_branch
      %20 = sbr.rel target = $region3
    $region8: #{neck_forward.1} parent=1 // loop_exit
      _

</llo_original>
